<compile_context>
chip_gen: v7x
topology: tpu7x:2x2x1
jax: 0.10.0
libtpu: 0.0.40
codegen_flags: <defaults>
</compile_context>

<pallas_src>
import math
import jax
import jax.numpy as jnp
from jax.experimental import pallas as pl
from jax.experimental.pallas import tpu as pltpu


# ------------------------------ Pallas kernel --------------------------------

def _basic_block_kernel(x_ref, w1_ref, s1_ref, w2_ref, s2_ref, o_ref,
                        mid_ref, acc_ref):
    # x_ref  : (H+2, W+2, Cp) bf16  spatially padded NHWC input tile (one image)
    # w1_ref : (9,  Cp, Cp)  bf16   conv1 taps (BN1 scale folded in)
    # s1_ref : (1, Cp)       f32    BN1 shift
    # w2_ref : (10, Cp, Cp)  bf16   conv2 taps (BN2 scale folded) + identity tap [9]
    # s2_ref : (1, Cp)       f32    BN2 shift
    # o_ref  : (Ho*Wo, Cp)   f32    block output (flattened spatial, lane-dense)
    # mid_ref: (H+2, W+2, Cp) f32   conv1 output, zero halo, VMEM-resident
    # acc_ref: (Ho*Wo, Cp)   f32    shared MXU accumulator
    Hp, Wp, Cp = x_ref.shape
    Ho, Wo = Hp - 2, Wp - 2
    M = Ho * Wo

    # ---- conv1 (3x3, stride 1, pad 1) as 9 shifted matmuls ----------------------
    for t in range(9):
        kh, kw = divmod(t, 3)
        slab = x_ref[kh:kh + Ho, kw:kw + Wo, :].reshape(M, Cp)          # bf16
        tap = jnp.dot(slab, w1_ref[t], preferred_element_type=jnp.float32)
        if t == 0:
            acc_ref[...] = tap
        else:
            acc_ref[...] += tap

    # BN1 shift + ReLU; keep the intermediate in VMEM with a zero spatial halo.
    mid = jnp.maximum(acc_ref[...] + s1_ref[...], 0.0)                  # (M, Cp) f32
    mid_ref[...] = jnp.zeros_like(mid_ref)
    mid_ref[1:1 + Ho, 1:1 + Wo, :] = mid.reshape(Ho, Wo, Cp)

    # ---- conv2 off the VMEM-resident intermediate + residual identity tap -------
    for t in range(9):
        kh, kw = divmod(t, 3)
        slab = mid_ref[kh:kh + Ho, kw:kw + Wo, :].reshape(M, Cp)
        slab = slab.astype(jnp.bfloat16)                                # MXU bf16 staging
        tap = jnp.dot(slab, w2_ref[t], preferred_element_type=jnp.float32)
        if t == 0:
            acc_ref[...] = tap
        else:
            acc_ref[...] += tap
    # residual = original x (downsample=None), read from the padded input's interior.
    residual = x_ref[1:1 + Ho, 1:1 + Wo, :].reshape(M, Cp)
    acc_ref[...] += jnp.dot(residual, w2_ref[9], preferred_element_type=jnp.float32)

    # BN2 shift + (already accumulated) residual + ReLU; single lane-dense store.
    o_ref[...] = jnp.maximum(acc_ref[...] + s2_ref[...], 0.0).astype(o_ref.dtype)


# -------------------------------- Wrapper ------------------------------------

def _round_up(a, b):
    return ((a + b - 1) // b) * b


def _fold_bn_into_conv(w_oihw, gamma, beta, mean, var, cp, eps):
    """(O,I,3,3) conv + inference-BN -> (9, Cp, Cp) bf16 taps + (1, Cp) f32 shift."""
    cout, cin = w_oihw.shape[0], w_oihw.shape[1]
    scale = (gamma / jnp.sqrt(var + eps)).astype(jnp.float32)
    shift = (beta - mean * scale).astype(jnp.float32)
    w = jnp.transpose(w_oihw, (2, 3, 1, 0)) * scale                     # (3,3,Cin,Cout)
    w = jnp.pad(w, ((0, 0), (0, 0), (0, cp - cin), (0, cp - cout)))
    w = w.reshape(9, cp, cp).astype(jnp.bfloat16)
    shift = jnp.pad(shift, (0, cp - cout)).reshape(1, cp)
    return w, shift


def basic_block_forward(x_nchw, params, *, stride=1, eps=1e-5):
    if stride != 1:
        # TODO(synk): stride > 1 requires the downsample branch (None in this configuration).
        raise NotImplementedError("BasicBlock Pallas kernel: only stride=1 / downsample=None")
    N, Cin, H, W = x_nchw.shape
    Cout = params["conv1_w"].shape[0]
    assert Cin == Cout, "identity residual requires inplanes == planes (downsample=None)"
    Cp = _round_up(Cout, 128)                                           # lane-dense channels
    Ho, Wo, M = H, W, H * W

    # NHWC, bf16 BEFORE any expansion, spatial halo of 1, channels zero-padded to Cp.
    x_nhwc = jnp.transpose(x_nchw, (0, 2, 3, 1)).astype(jnp.bfloat16)   # NCHW boundary kept
    xpad = jnp.pad(x_nhwc, ((0, 0), (1, 1), (1, 1), (0, Cp - Cin)))

    w1, shift1 = _fold_bn_into_conv(params["conv1_w"], params["bn1_gamma"],
                                    params["bn1_beta"], params["bn1_mean"],
                                    params["bn1_var"], Cp, eps)
    w2, shift2 = _fold_bn_into_conv(params["conv2_w"], params["bn2_gamma"],
                                    params["bn2_beta"], params["bn2_mean"],
                                    params["bn2_var"], Cp, eps)
    # Residual (identity) fused as a 10th conv2 tap; padded input channels are zero.
    w2 = jnp.concatenate([w2, jnp.eye(Cp, dtype=jnp.bfloat16)[None]], axis=0)  # (10,Cp,Cp)

    out = pl.pallas_call(
        _basic_block_kernel,
        out_shape=jax.ShapeDtypeStruct((N, M, Cp), jnp.float32),
        grid_spec=pltpu.PrefetchScalarGridSpec(
            num_scalar_prefetch=0,
            grid=(N,),
            in_specs=[
                pl.BlockSpec((None, H + 2, W + 2, Cp), lambda n: (n, 0, 0, 0)),
                pl.BlockSpec((9, Cp, Cp), lambda n: (0, 0, 0)),
                pl.BlockSpec((1, Cp), lambda n: (0, 0)),
                pl.BlockSpec((10, Cp, Cp), lambda n: (0, 0, 0)),
                pl.BlockSpec((1, Cp), lambda n: (0, 0)),
            ],
            out_specs=pl.BlockSpec((None, M, Cp), lambda n: (n, 0, 0)),
            scratch_shapes=[
                pltpu.VMEM((H + 2, W + 2, Cp), jnp.float32),            # conv1 out + halo
                pltpu.VMEM((M, Cp), jnp.float32),                       # f32 accumulator
            ],
        ),
        compiler_params=pltpu.CompilerParams(dimension_semantics=("parallel",)),
    )(xpad, w1, shift1, w2, shift2)

    out = out[:, :, :Cout].reshape(N, Ho, Wo, Cout)
    return jnp.transpose(out, (0, 3, 1, 2))                             # back to NCHW


# ------------------------- Pure-JAX reference (f32) ---------------------------

def _ref_forward(x, p, eps=1e-5):
    def conv(z, w):
        return jax.lax.conv_general_dilated(
            z, w, window_strides=(1, 1), padding=((1, 1), (1, 1)),
            dimension_numbers=("NCHW", "OIHW", "NCHW"))

    def bn(z, g, b, m, v):
        s = g / jnp.sqrt(v + eps)
        return z * s[None, :, None, None] + (b - m * s)[None, :, None, None]

    out = jax.nn.relu(bn(conv(x, p["conv1_w"]),
                         p["bn1_gamma"], p["bn1_beta"], p["bn1_mean"], p["bn1_var"]))
    out = bn(conv(out, p["conv2_w"]),
             p["bn2_gamma"], p["bn2_beta"], p["bn2_mean"], p["bn2_var"])
    return jax.nn.relu(out + x)


# --------------------------------- Main ---------------------------------------

if __name__ == "__main__":
    key = jax.random.PRNGKey(0)
    kx, kw1, kw2, kb = jax.random.split(key, 4)
    kb1, kb2, kb3, kb4, kb5, kb6, kb7, kb8 = jax.random.split(kb, 8)

    # inplanes = planes = 64, stride = 1, downsample = None
    N, C, H, W = 2, 64, 16, 16
    x = jax.random.normal(kx, (N, C, H, W), dtype=jnp.float32)

    std = math.sqrt(2.0 / (3 * 3 * C))                                   # He init like ResNet
    params = {
        "conv1_w": jax.random.normal(kw1, (C, C, 3, 3), jnp.float32) * std,
        "conv2_w": jax.random.normal(kw2, (C, C, 3, 3), jnp.float32) * std,
        "bn1_gamma": jax.random.uniform(kb1, (C,), jnp.float32, 0.5, 1.5),
        "bn1_beta": jax.random.normal(kb2, (C,), jnp.float32) * 0.1,
        "bn1_mean": jax.random.normal(kb3, (C,), jnp.float32) * 0.1,
        "bn1_var": jax.random.uniform(kb4, (C,), jnp.float32, 0.5, 1.5),
        "bn2_gamma": jax.random.uniform(kb5, (C,), jnp.float32, 0.5, 1.5),
        "bn2_beta": jax.random.normal(kb6, (C,), jnp.float32) * 0.1,
        "bn2_mean": jax.random.normal(kb7, (C,), jnp.float32) * 0.1,
        "bn2_var": jax.random.uniform(kb8, (C,), jnp.float32, 0.5, 1.5),
    }

    out = jax.jit(basic_block_forward)(x, params)
    out = jax.block_until_ready(out)

    assert out.shape == (N, C, H, W), out.shape
    assert bool(jnp.all(out >= 0.0))                                     # final ReLU

    ref = _ref_forward(x, params)
    max_err = float(jnp.max(jnp.abs(out - ref)))
    assert max_err < 2e-1, f"max abs err vs f32 reference: {max_err}"

    print("KERNEL_OK")
</pallas_src>

<mosaic_0001>
module attributes {stable_mosaic.version = 11 : i64} {
  func.func @_basic_block_kernel(%arg0: i32, %arg1: memref<1x18x18x128xbf16, #tpu.memory_space<vmem>>, %arg2: memref<9x128x128xbf16, #tpu.memory_space<vmem>>, %arg3: memref<1x128xf32, #tpu.memory_space<vmem>>, %arg4: memref<10x128x128xbf16, #tpu.memory_space<vmem>>, %arg5: memref<1x128xf32, #tpu.memory_space<vmem>>, %arg6: memref<1x256x128xf32, #tpu.memory_space<vmem>>, %arg7: memref<18x18x128xf32, #tpu.memory_space<vmem>>, %arg8: memref<256x128xf32, #tpu.memory_space<vmem>>) attributes {dimension_semantics = [#tpu.dimension_semantics<parallel>], iteration_bounds = array<i64: 2>, scalar_prefetch = 0 : i64, scratch_operands = 2 : i64, tpu.core_type = #tpu.core_type<tc>, window_params = [{transform_indices = @transform_0, window_bounds = array<i64: 1, 18, 18, 128>}, {pipeline_mode = #tpu.pipeline_mode<synchronous>, transform_indices = @transform_1, window_bounds = array<i64: 9, 128, 128>}, {pipeline_mode = #tpu.pipeline_mode<synchronous>, transform_indices = @transform_2, window_bounds = array<i64: 1, 128>}, {pipeline_mode = #tpu.pipeline_mode<synchronous>, transform_indices = @transform_3, window_bounds = array<i64: 10, 128, 128>}, {pipeline_mode = #tpu.pipeline_mode<synchronous>, transform_indices = @transform_4, window_bounds = array<i64: 1, 128>}, {transform_indices = @transform_5, window_bounds = array<i64: 1, 256, 128>}]} {
    %c0 = arith.constant 0 : index
    %c0_0 = arith.constant 0 : index
    %c0_1 = arith.constant 0 : index
    %c0_2 = arith.constant 0 : index
    %0 = vector.load %arg1[%c0, %c0_0, %c0_1, %c0_2] : memref<1x18x18x128xbf16, #tpu.memory_space<vmem>>, vector<1x16x16x128xbf16>
    %1 = vector.shape_cast %0 : vector<1x16x16x128xbf16> to vector<16x16x128xbf16>
    %2 = vector.shape_cast %1 : vector<16x16x128xbf16> to vector<256x128xbf16>
    %c0_3 = arith.constant 0 : index
    %c0_4 = arith.constant 0 : index
    %c0_5 = arith.constant 0 : index
    %3 = vector.load %arg2[%c0_3, %c0_4, %c0_5] : memref<9x128x128xbf16, #tpu.memory_space<vmem>>, vector<1x128x128xbf16>
    %4 = vector.shape_cast %3 : vector<1x128x128xbf16> to vector<128x128xbf16>
    %cst = arith.constant dense<0.000000e+00> : vector<256x128xf32>
    %5 = tpu.matmul %2, %4, %cst {dimension_numbers = #tpu.dot_dimension_numbers<[1], [0], [0], [1], [0, 0, 1, 1], [], []>} : vector<256x128xbf16>, vector<128x128xbf16>, vector<256x128xf32> -> vector<256x128xf32>
    %c0_6 = arith.constant 0 : index
    %c0_7 = arith.constant 0 : index
    %6 = vector.load %arg8[%c0_6, %c0_7] : memref<256x128xf32, #tpu.memory_space<vmem>>, vector<256x128xf32>
    tpu.vector_store %arg8[%c0_6, %c0_7], %5 {strides = array<i32>} : memref<256x128xf32, #tpu.memory_space<vmem>>, vector<256x128xf32>,
    %c0_8 = arith.constant 0 : index
    %c0_9 = arith.constant 0 : index
    %c1 = arith.constant 1 : index
    %c0_10 = arith.constant 0 : index
    %7 = vector.load %arg1[%c0_8, %c0_9, %c1, %c0_10] : memref<1x18x18x128xbf16, #tpu.memory_space<vmem>>, vector<1x16x16x128xbf16>
    %8 = vector.shape_cast %7 : vector<1x16x16x128xbf16> to vector<16x16x128xbf16>
    %9 = vector.shape_cast %8 : vector<16x16x128xbf16> to vector<256x128xbf16>
    %c1_11 = arith.constant 1 : index
    %c0_12 = arith.constant 0 : index
    %c0_13 = arith.constant 0 : index
    %10 = vector.load %arg2[%c1_11, %c0_12, %c0_13] : memref<9x128x128xbf16, #tpu.memory_space<vmem>>, vector<1x128x128xbf16>
    %11 = vector.shape_cast %10 : vector<1x128x128xbf16> to vector<128x128xbf16>
    %cst_14 = arith.constant dense<0.000000e+00> : vector<256x128xf32>
    %12 = tpu.matmul %9, %11, %cst_14 {dimension_numbers = #tpu.dot_dimension_numbers<[1], [0], [0], [1], [0, 0, 1, 1], [], []>} : vector<256x128xbf16>, vector<128x128xbf16>, vector<256x128xf32> -> vector<256x128xf32>
    %c0_15 = arith.constant 0 : index
    %c0_16 = arith.constant 0 : index
    %13 = vector.load %arg8[%c0_15, %c0_16] : memref<256x128xf32, #tpu.memory_space<vmem>>, vector<256x128xf32>
    %14 = arith.addf %13, %12 : vector<256x128xf32>
    %c0_17 = arith.constant 0 : index
    %c0_18 = arith.constant 0 : index
    %15 = vector.load %arg8[%c0_17, %c0_18] : memref<256x128xf32, #tpu.memory_space<vmem>>, vector<256x128xf32>
    tpu.vector_store %arg8[%c0_17, %c0_18], %14 {strides = array<i32>} : memref<256x128xf32, #tpu.memory_space<vmem>>, vector<256x128xf32>,
    %c0_19 = arith.constant 0 : index
    %c0_20 = arith.constant 0 : index
    %c2 = arith.constant 2 : index
    %c0_21 = arith.constant 0 : index
    %16 = vector.load %arg1[%c0_19, %c0_20, %c2, %c0_21] : memref<1x18x18x128xbf16, #tpu.memory_space<vmem>>, vector<1x16x16x128xbf16>
    %17 = vector.shape_cast %16 : vector<1x16x16x128xbf16> to vector<16x16x128xbf16>
    %18 = vector.shape_cast %17 : vector<16x16x128xbf16> to vector<256x128xbf16>
    %c2_22 = arith.constant 2 : index
    %c0_23 = arith.constant 0 : index
    %c0_24 = arith.constant 0 : index
    %19 = vector.load %arg2[%c2_22, %c0_23, %c0_24] : memref<9x128x128xbf16, #tpu.memory_space<vmem>>, vector<1x128x128xbf16>
    %20 = vector.shape_cast %19 : vector<1x128x128xbf16> to vector<128x128xbf16>
    %cst_25 = arith.constant dense<0.000000e+00> : vector<256x128xf32>
    %21 = tpu.matmul %18, %20, %cst_25 {dimension_numbers = #tpu.dot_dimension_numbers<[1], [0], [0], [1], [0, 0, 1, 1], [], []>} : vector<256x128xbf16>, vector<128x128xbf16>, vector<256x128xf32> -> vector<256x128xf32>
    %c0_26 = arith.constant 0 : index
    %c0_27 = arith.constant 0 : index
    %22 = vector.load %arg8[%c0_26, %c0_27] : memref<256x128xf32, #tpu.memory_space<vmem>>, vector<256x128xf32>
    %23 = arith.addf %22, %21 : vector<256x128xf32>
    %c0_28 = arith.constant 0 : index
    %c0_29 = arith.constant 0 : index
    %24 = vector.load %arg8[%c0_28, %c0_29] : memref<256x128xf32, #tpu.memory_space<vmem>>, vector<256x128xf32>
    tpu.vector_store %arg8[%c0_28, %c0_29], %23 {strides = array<i32>} : memref<256x128xf32, #tpu.memory_space<vmem>>, vector<256x128xf32>,
    %c0_30 = arith.constant 0 : index
    %c1_31 = arith.constant 1 : index
    %c0_32 = arith.constant 0 : index
    %c0_33 = arith.constant 0 : index
    %25 = vector.load %arg1[%c0_30, %c1_31, %c0_32, %c0_33] : memref<1x18x18x128xbf16, #tpu.memory_space<vmem>>, vector<1x16x16x128xbf16>
    %26 = vector.shape_cast %25 : vector<1x16x16x128xbf16> to vector<16x16x128xbf16>
    %27 = vector.shape_cast %26 : vector<16x16x128xbf16> to vector<256x128xbf16>
    %c3 = arith.constant 3 : index
    %c0_34 = arith.constant 0 : index
    %c0_35 = arith.constant 0 : index
    %28 = vector.load %arg2[%c3, %c0_34, %c0_35] : memref<9x128x128xbf16, #tpu.memory_space<vmem>>, vector<1x128x128xbf16>
    %29 = vector.shape_cast %28 : vector<1x128x128xbf16> to vector<128x128xbf16>
    %cst_36 = arith.constant dense<0.000000e+00> : vector<256x128xf32>
    %30 = tpu.matmul %27, %29, %cst_36 {dimension_numbers = #tpu.dot_dimension_numbers<[1], [0], [0], [1], [0, 0, 1, 1], [], []>} : vector<256x128xbf16>, vector<128x128xbf16>, vector<256x128xf32> -> vector<256x128xf32>
    %c0_37 = arith.constant 0 : index
    %c0_38 = arith.constant 0 : index
    %31 = vector.load %arg8[%c0_37, %c0_38] : memref<256x128xf32, #tpu.memory_space<vmem>>, vector<256x128xf32>
    %32 = arith.addf %31, %30 : vector<256x128xf32>
    %c0_39 = arith.constant 0 : index
    %c0_40 = arith.constant 0 : index
    %33 = vector.load %arg8[%c0_39, %c0_40] : memref<256x128xf32, #tpu.memory_space<vmem>>, vector<256x128xf32>
    tpu.vector_store %arg8[%c0_39, %c0_40], %32 {strides = array<i32>} : memref<256x128xf32, #tpu.memory_space<vmem>>, vector<256x128xf32>,
    %c0_41 = arith.constant 0 : index
    %c1_42 = arith.constant 1 : index
    %c1_43 = arith.constant 1 : index
    %c0_44 = arith.constant 0 : index
    %34 = vector.load %arg1[%c0_41, %c1_42, %c1_43, %c0_44] : memref<1x18x18x128xbf16, #tpu.memory_space<vmem>>, vector<1x16x16x128xbf16>
    %35 = vector.shape_cast %34 : vector<1x16x16x128xbf16> to vector<16x16x128xbf16>
    %36 = vector.shape_cast %35 : vector<16x16x128xbf16> to vector<256x128xbf16>
    %c4 = arith.constant 4 : index
    %c0_45 = arith.constant 0 : index
    %c0_46 = arith.constant 0 : index
    %37 = vector.load %arg2[%c4, %c0_45, %c0_46] : memref<9x128x128xbf16, #tpu.memory_space<vmem>>, vector<1x128x128xbf16>
    %38 = vector.shape_cast %37 : vector<1x128x128xbf16> to vector<128x128xbf16>
    %cst_47 = arith.constant dense<0.000000e+00> : vector<256x128xf32>
    %39 = tpu.matmul %36, %38, %cst_47 {dimension_numbers = #tpu.dot_dimension_numbers<[1], [0], [0], [1], [0, 0, 1, 1], [], []>} : vector<256x128xbf16>, vector<128x128xbf16>, vector<256x128xf32> -> vector<256x128xf32>
    %c0_48 = arith.constant 0 : index
    %c0_49 = arith.constant 0 : index
    %40 = vector.load %arg8[%c0_48, %c0_49] : memref<256x128xf32, #tpu.memory_space<vmem>>, vector<256x128xf32>
    %41 = arith.addf %40, %39 : vector<256x128xf32>
    %c0_50 = arith.constant 0 : index
    %c0_51 = arith.constant 0 : index
    %42 = vector.load %arg8[%c0_50, %c0_51] : memref<256x128xf32, #tpu.memory_space<vmem>>, vector<256x128xf32>
    tpu.vector_store %arg8[%c0_50, %c0_51], %41 {strides = array<i32>} : memref<256x128xf32, #tpu.memory_space<vmem>>, vector<256x128xf32>,
    %c0_52 = arith.constant 0 : index
    %c1_53 = arith.constant 1 : index
    %c2_54 = arith.constant 2 : index
    %c0_55 = arith.constant 0 : index
    %43 = vector.load %arg1[%c0_52, %c1_53, %c2_54, %c0_55] : memref<1x18x18x128xbf16, #tpu.memory_space<vmem>>, vector<1x16x16x128xbf16>
    %44 = vector.shape_cast %43 : vector<1x16x16x128xbf16> to vector<16x16x128xbf16>
    %45 = vector.shape_cast %44 : vector<16x16x128xbf16> to vector<256x128xbf16>
    %c5 = arith.constant 5 : index
    %c0_56 = arith.constant 0 : index
    %c0_57 = arith.constant 0 : index
    %46 = vector.load %arg2[%c5, %c0_56, %c0_57] : memref<9x128x128xbf16, #tpu.memory_space<vmem>>, vector<1x128x128xbf16>
    %47 = vector.shape_cast %46 : vector<1x128x128xbf16> to vector<128x128xbf16>
    %cst_58 = arith.constant dense<0.000000e+00> : vector<256x128xf32>
    %48 = tpu.matmul %45, %47, %cst_58 {dimension_numbers = #tpu.dot_dimension_numbers<[1], [0], [0], [1], [0, 0, 1, 1], [], []>} : vector<256x128xbf16>, vector<128x128xbf16>, vector<256x128xf32> -> vector<256x128xf32>
    %c0_59 = arith.constant 0 : index
    %c0_60 = arith.constant 0 : index
    %49 = vector.load %arg8[%c0_59, %c0_60] : memref<256x128xf32, #tpu.memory_space<vmem>>, vector<256x128xf32>
    %50 = arith.addf %49, %48 : vector<256x128xf32>
    %c0_61 = arith.constant 0 : index
    %c0_62 = arith.constant 0 : index
    %51 = vector.load %arg8[%c0_61, %c0_62] : memref<256x128xf32, #tpu.memory_space<vmem>>, vector<256x128xf32>
    tpu.vector_store %arg8[%c0_61, %c0_62], %50 {strides = array<i32>} : memref<256x128xf32, #tpu.memory_space<vmem>>, vector<256x128xf32>,
    %c0_63 = arith.constant 0 : index
    %c2_64 = arith.constant 2 : index
    %c0_65 = arith.constant 0 : index
    %c0_66 = arith.constant 0 : index
    %52 = vector.load %arg1[%c0_63, %c2_64, %c0_65, %c0_66] : memref<1x18x18x128xbf16, #tpu.memory_space<vmem>>, vector<1x16x16x128xbf16>
    %53 = vector.shape_cast %52 : vector<1x16x16x128xbf16> to vector<16x16x128xbf16>
    %54 = vector.shape_cast %53 : vector<16x16x128xbf16> to vector<256x128xbf16>
    %c6 = arith.constant 6 : index
    %c0_67 = arith.constant 0 : index
    %c0_68 = arith.constant 0 : index
    %55 = vector.load %arg2[%c6, %c0_67, %c0_68] : memref<9x128x128xbf16, #tpu.memory_space<vmem>>, vector<1x128x128xbf16>
    %56 = vector.shape_cast %55 : vector<1x128x128xbf16> to vector<128x128xbf16>
    %cst_69 = arith.constant dense<0.000000e+00> : vector<256x128xf32>
    %57 = tpu.matmul %54, %56, %cst_69 {dimension_numbers = #tpu.dot_dimension_numbers<[1], [0], [0], [1], [0, 0, 1, 1], [], []>} : vector<256x128xbf16>, vector<128x128xbf16>, vector<256x128xf32> -> vector<256x128xf32>
    %c0_70 = arith.constant 0 : index
    %c0_71 = arith.constant 0 : index
    %58 = vector.load %arg8[%c0_70, %c0_71] : memref<256x128xf32, #tpu.memory_space<vmem>>, vector<256x128xf32>
    %59 = arith.addf %58, %57 : vector<256x128xf32>
    %c0_72 = arith.constant 0 : index
    %c0_73 = arith.constant 0 : index
    %60 = vector.load %arg8[%c0_72, %c0_73] : memref<256x128xf32, #tpu.memory_space<vmem>>, vector<256x128xf32>
    tpu.vector_store %arg8[%c0_72, %c0_73], %59 {strides = array<i32>} : memref<256x128xf32, #tpu.memory_space<vmem>>, vector<256x128xf32>,
    %c0_74 = arith.constant 0 : index
    %c2_75 = arith.constant 2 : index
    %c1_76 = arith.constant 1 : index
    %c0_77 = arith.constant 0 : index
    %61 = vector.load %arg1[%c0_74, %c2_75, %c1_76, %c0_77] : memref<1x18x18x128xbf16, #tpu.memory_space<vmem>>, vector<1x16x16x128xbf16>
    %62 = vector.shape_cast %61 : vector<1x16x16x128xbf16> to vector<16x16x128xbf16>
    %63 = vector.shape_cast %62 : vector<16x16x128xbf16> to vector<256x128xbf16>
    %c7 = arith.constant 7 : index
    %c0_78 = arith.constant 0 : index
    %c0_79 = arith.constant 0 : index
    %64 = vector.load %arg2[%c7, %c0_78, %c0_79] : memref<9x128x128xbf16, #tpu.memory_space<vmem>>, vector<1x128x128xbf16>
    %65 = vector.shape_cast %64 : vector<1x128x128xbf16> to vector<128x128xbf16>
    %cst_80 = arith.constant dense<0.000000e+00> : vector<256x128xf32>
    %66 = tpu.matmul %63, %65, %cst_80 {dimension_numbers = #tpu.dot_dimension_numbers<[1], [0], [0], [1], [0, 0, 1, 1], [], []>} : vector<256x128xbf16>, vector<128x128xbf16>, vector<256x128xf32> -> vector<256x128xf32>
    %c0_81 = arith.constant 0 : index
    %c0_82 = arith.constant 0 : index
    %67 = vector.load %arg8[%c0_81, %c0_82] : memref<256x128xf32, #tpu.memory_space<vmem>>, vector<256x128xf32>
    %68 = arith.addf %67, %66 : vector<256x128xf32>
    %c0_83 = arith.constant 0 : index
    %c0_84 = arith.constant 0 : index
    %69 = vector.load %arg8[%c0_83, %c0_84] : memref<256x128xf32, #tpu.memory_space<vmem>>, vector<256x128xf32>
    tpu.vector_store %arg8[%c0_83, %c0_84], %68 {strides = array<i32>} : memref<256x128xf32, #tpu.memory_space<vmem>>, vector<256x128xf32>,
    %c0_85 = arith.constant 0 : index
    %c2_86 = arith.constant 2 : index
    %c2_87 = arith.constant 2 : index
    %c0_88 = arith.constant 0 : index
    %70 = vector.load %arg1[%c0_85, %c2_86, %c2_87, %c0_88] : memref<1x18x18x128xbf16, #tpu.memory_space<vmem>>, vector<1x16x16x128xbf16>
    %71 = vector.shape_cast %70 : vector<1x16x16x128xbf16> to vector<16x16x128xbf16>
    %72 = vector.shape_cast %71 : vector<16x16x128xbf16> to vector<256x128xbf16>
    %c8 = arith.constant 8 : index
    %c0_89 = arith.constant 0 : index
    %c0_90 = arith.constant 0 : index
    %73 = vector.load %arg2[%c8, %c0_89, %c0_90] : memref<9x128x128xbf16, #tpu.memory_space<vmem>>, vector<1x128x128xbf16>
    %74 = vector.shape_cast %73 : vector<1x128x128xbf16> to vector<128x128xbf16>
    %cst_91 = arith.constant dense<0.000000e+00> : vector<256x128xf32>
    %75 = tpu.matmul %72, %74, %cst_91 {dimension_numbers = #tpu.dot_dimension_numbers<[1], [0], [0], [1], [0, 0, 1, 1], [], []>} : vector<256x128xbf16>, vector<128x128xbf16>, vector<256x128xf32> -> vector<256x128xf32>
    %c0_92 = arith.constant 0 : index
    %c0_93 = arith.constant 0 : index
    %76 = vector.load %arg8[%c0_92, %c0_93] : memref<256x128xf32, #tpu.memory_space<vmem>>, vector<256x128xf32>
    %77 = arith.addf %76, %75 : vector<256x128xf32>
    %c0_94 = arith.constant 0 : index
    %c0_95 = arith.constant 0 : index
    %78 = vector.load %arg8[%c0_94, %c0_95] : memref<256x128xf32, #tpu.memory_space<vmem>>, vector<256x128xf32>
    tpu.vector_store %arg8[%c0_94, %c0_95], %77 {strides = array<i32>} : memref<256x128xf32, #tpu.memory_space<vmem>>, vector<256x128xf32>,
    %c0_96 = arith.constant 0 : index
    %c0_97 = arith.constant 0 : index
    %79 = vector.load %arg8[%c0_96, %c0_97] : memref<256x128xf32, #tpu.memory_space<vmem>>, vector<256x128xf32>
    %c0_98 = arith.constant 0 : index
    %c0_99 = arith.constant 0 : index
    %80 = vector.load %arg3[%c0_98, %c0_99] : memref<1x128xf32, #tpu.memory_space<vmem>>, vector<1x128xf32>
    %81 = vector.broadcast %80 : vector<1x128xf32> to vector<256x128xf32>
    %82 = arith.addf %79, %81 : vector<256x128xf32>
    %cst_100 = arith.constant 0.000000e+00 : f32
    %83 = vector.broadcast %cst_100 : f32 to vector<256x128xf32>
    %84 = arith.maximumf %82, %83 : vector<256x128xf32>
    %cst_101 = arith.constant 0.000000e+00 : f32
    %85 = vector.broadcast %cst_101 : f32 to vector<18x18x128xf32>
    %c0_102 = arith.constant 0 : index
    %c0_103 = arith.constant 0 : index
    %c0_104 = arith.constant 0 : index
    %86 = vector.load %arg7[%c0_102, %c0_103, %c0_104] : memref<18x18x128xf32, #tpu.memory_space<vmem>>, vector<18x18x128xf32>
    tpu.vector_store %arg7[%c0_102, %c0_103, %c0_104], %85 {strides = array<i32>} : memref<18x18x128xf32, #tpu.memory_space<vmem>>, vector<18x18x128xf32>,
    %87 = vector.shape_cast %84 : vector<256x128xf32> to vector<16x16x128xf32>
    %c1_105 = arith.constant 1 : index
    %c1_106 = arith.constant 1 : index
    %c0_107 = arith.constant 0 : index
    %88 = vector.load %arg7[%c1_105, %c1_106, %c0_107] : memref<18x18x128xf32, #tpu.memory_space<vmem>>, vector<16x16x128xf32>
    tpu.vector_store %arg7[%c1_105, %c1_106, %c0_107], %87 {strides = array<i32>} : memref<18x18x128xf32, #tpu.memory_space<vmem>>, vector<16x16x128xf32>,
    %c0_108 = arith.constant 0 : index
    %c0_109 = arith.constant 0 : index
    %c0_110 = arith.constant 0 : index
    %89 = vector.load %arg7[%c0_108, %c0_109, %c0_110] : memref<18x18x128xf32, #tpu.memory_space<vmem>>, vector<16x16x128xf32>
    %90 = vector.shape_cast %89 : vector<16x16x128xf32> to vector<256x128xf32>
    %91 = arith.truncf %90 : vector<256x128xf32> to vector<256x128xbf16>
    %c0_111 = arith.constant 0 : index
    %c0_112 = arith.constant 0 : index
    %c0_113 = arith.constant 0 : index
    %92 = vector.load %arg4[%c0_111, %c0_112, %c0_113] : memref<10x128x128xbf16, #tpu.memory_space<vmem>>, vector<1x128x128xbf16>
    %93 = vector.shape_cast %92 : vector<1x128x128xbf16> to vector<128x128xbf16>
    %cst_114 = arith.constant dense<0.000000e+00> : vector<256x128xf32>
    %94 = tpu.matmul %91, %93, %cst_114 {dimension_numbers = #tpu.dot_dimension_numbers<[1], [0], [0], [1], [0, 0, 1, 1], [], []>} : vector<256x128xbf16>, vector<128x128xbf16>, vector<256x128xf32> -> vector<256x128xf32>
    %c0_115 = arith.constant 0 : index
    %c0_116 = arith.constant 0 : index
    %95 = vector.load %arg8[%c0_115, %c0_116] : memref<256x128xf32, #tpu.memory_space<vmem>>, vector<256x128xf32>
    tpu.vector_store %arg8[%c0_115, %c0_116], %94 {strides = array<i32>} : memref<256x128xf32, #tpu.memory_space<vmem>>, vector<256x128xf32>,
    %c0_117 = arith.constant 0 : index
    %c1_118 = arith.constant 1 : index
    %c0_119 = arith.constant 0 : index
    %96 = vector.load %arg7[%c0_117, %c1_118, %c0_119] : memref<18x18x128xf32, #tpu.memory_space<vmem>>, vector<16x16x128xf32>
    %97 = vector.shape_cast %96 : vector<16x16x128xf32> to vector<256x128xf32>
    %98 = arith.truncf %97 : vector<256x128xf32> to vector<256x128xbf16>
    %c1_120 = arith.constant 1 : index
    %c0_121 = arith.constant 0 : index
    %c0_122 = arith.constant 0 : index
    %99 = vector.load %arg4[%c1_120, %c0_121, %c0_122] : memref<10x128x128xbf16, #tpu.memory_space<vmem>>, vector<1x128x128xbf16>
    %100 = vector.shape_cast %99 : vector<1x128x128xbf16> to vector<128x128xbf16>
    %cst_123 = arith.constant dense<0.000000e+00> : vector<256x128xf32>
    %101 = tpu.matmul %98, %100, %cst_123 {dimension_numbers = #tpu.dot_dimension_numbers<[1], [0], [0], [1], [0, 0, 1, 1], [], []>} : vector<256x128xbf16>, vector<128x128xbf16>, vector<256x128xf32> -> vector<256x128xf32>
    %c0_124 = arith.constant 0 : index
    %c0_125 = arith.constant 0 : index
    %102 = vector.load %arg8[%c0_124, %c0_125] : memref<256x128xf32, #tpu.memory_space<vmem>>, vector<256x128xf32>
    %103 = arith.addf %102, %101 : vector<256x128xf32>
    %c0_126 = arith.constant 0 : index
    %c0_127 = arith.constant 0 : index
    %104 = vector.load %arg8[%c0_126, %c0_127] : memref<256x128xf32, #tpu.memory_space<vmem>>, vector<256x128xf32>
    tpu.vector_store %arg8[%c0_126, %c0_127], %103 {strides = array<i32>} : memref<256x128xf32, #tpu.memory_space<vmem>>, vector<256x128xf32>,
    %c0_128 = arith.constant 0 : index
    %c2_129 = arith.constant 2 : index
    %c0_130 = arith.constant 0 : index
    %105 = vector.load %arg7[%c0_128, %c2_129, %c0_130] : memref<18x18x128xf32, #tpu.memory_space<vmem>>, vector<16x16x128xf32>
    %106 = vector.shape_cast %105 : vector<16x16x128xf32> to vector<256x128xf32>
    %107 = arith.truncf %106 : vector<256x128xf32> to vector<256x128xbf16>
    %c2_131 = arith.constant 2 : index
    %c0_132 = arith.constant 0 : index
    %c0_133 = arith.constant 0 : index
    %108 = vector.load %arg4[%c2_131, %c0_132, %c0_133] : memref<10x128x128xbf16, #tpu.memory_space<vmem>>, vector<1x128x128xbf16>
    %109 = vector.shape_cast %108 : vector<1x128x128xbf16> to vector<128x128xbf16>
    %cst_134 = arith.constant dense<0.000000e+00> : vector<256x128xf32>
    %110 = tpu.matmul %107, %109, %cst_134 {dimension_numbers = #tpu.dot_dimension_numbers<[1], [0], [0], [1], [0, 0, 1, 1], [], []>} : vector<256x128xbf16>, vector<128x128xbf16>, vector<256x128xf32> -> vector<256x128xf32>
    %c0_135 = arith.constant 0 : index
    %c0_136 = arith.constant 0 : index
    %111 = vector.load %arg8[%c0_135, %c0_136] : memref<256x128xf32, #tpu.memory_space<vmem>>, vector<256x128xf32>
    %112 = arith.addf %111, %110 : vector<256x128xf32>
    %c0_137 = arith.constant 0 : index
    %c0_138 = arith.constant 0 : index
    %113 = vector.load %arg8[%c0_137, %c0_138] : memref<256x128xf32, #tpu.memory_space<vmem>>, vector<256x128xf32>
    tpu.vector_store %arg8[%c0_137, %c0_138], %112 {strides = array<i32>} : memref<256x128xf32, #tpu.memory_space<vmem>>, vector<256x128xf32>,
    %c1_139 = arith.constant 1 : index
    %c0_140 = arith.constant 0 : index
    %c0_141 = arith.constant 0 : index
    %114 = vector.load %arg7[%c1_139, %c0_140, %c0_141] : memref<18x18x128xf32, #tpu.memory_space<vmem>>, vector<16x16x128xf32>
    %115 = vector.shape_cast %114 : vector<16x16x128xf32> to vector<256x128xf32>
    %116 = arith.truncf %115 : vector<256x128xf32> to vector<256x128xbf16>
    %c3_142 = arith.constant 3 : index
    %c0_143 = arith.constant 0 : index
    %c0_144 = arith.constant 0 : index
    %117 = vector.load %arg4[%c3_142, %c0_143, %c0_144] : memref<10x128x128xbf16, #tpu.memory_space<vmem>>, vector<1x128x128xbf16>
    %118 = vector.shape_cast %117 : vector<1x128x128xbf16> to vector<128x128xbf16>
    %cst_145 = arith.constant dense<0.000000e+00> : vector<256x128xf32>
    %119 = tpu.matmul %116, %118, %cst_145 {dimension_numbers = #tpu.dot_dimension_numbers<[1], [0], [0], [1], [0, 0, 1, 1], [], []>} : vector<256x128xbf16>, vector<128x128xbf16>, vector<256x128xf32> -> vector<256x128xf32>
    %c0_146 = arith.constant 0 : index
    %c0_147 = arith.constant 0 : index
    %120 = vector.load %arg8[%c0_146, %c0_147] : memref<256x128xf32, #tpu.memory_space<vmem>>, vector<256x128xf32>
    %121 = arith.addf %120, %119 : vector<256x128xf32>
    %c0_148 = arith.constant 0 : index
    %c0_149 = arith.constant 0 : index
    %122 = vector.load %arg8[%c0_148, %c0_149] : memref<256x128xf32, #tpu.memory_space<vmem>>, vector<256x128xf32>
    tpu.vector_store %arg8[%c0_148, %c0_149], %121 {strides = array<i32>} : memref<256x128xf32, #tpu.memory_space<vmem>>, vector<256x128xf32>,
    %c1_150 = arith.constant 1 : index
    %c1_151 = arith.constant 1 : index
    %c0_152 = arith.constant 0 : index
    %123 = vector.load %arg7[%c1_150, %c1_151, %c0_152] : memref<18x18x128xf32, #tpu.memory_space<vmem>>, vector<16x16x128xf32>
    %124 = vector.shape_cast %123 : vector<16x16x128xf32> to vector<256x128xf32>
    %125 = arith.truncf %124 : vector<256x128xf32> to vector<256x128xbf16>
    %c4_153 = arith.constant 4 : index
    %c0_154 = arith.constant 0 : index
    %c0_155 = arith.constant 0 : index
    %126 = vector.load %arg4[%c4_153, %c0_154, %c0_155] : memref<10x128x128xbf16, #tpu.memory_space<vmem>>, vector<1x128x128xbf16>
    %127 = vector.shape_cast %126 : vector<1x128x128xbf16> to vector<128x128xbf16>
    %cst_156 = arith.constant dense<0.000000e+00> : vector<256x128xf32>
    %128 = tpu.matmul %125, %127, %cst_156 {dimension_numbers = #tpu.dot_dimension_numbers<[1], [0], [0], [1], [0, 0, 1, 1], [], []>} : vector<256x128xbf16>, vector<128x128xbf16>, vector<256x128xf32> -> vector<256x128xf32>
    %c0_157 = arith.constant 0 : index
    %c0_158 = arith.constant 0 : index
    %129 = vector.load %arg8[%c0_157, %c0_158] : memref<256x128xf32, #tpu.memory_space<vmem>>, vector<256x128xf32>
    %130 = arith.addf %129, %128 : vector<256x128xf32>
    %c0_159 = arith.constant 0 : index
    %c0_160 = arith.constant 0 : index
    %131 = vector.load %arg8[%c0_159, %c0_160] : memref<256x128xf32, #tpu.memory_space<vmem>>, vector<256x128xf32>
    tpu.vector_store %arg8[%c0_159, %c0_160], %130 {strides = array<i32>} : memref<256x128xf32, #tpu.memory_space<vmem>>, vector<256x128xf32>,
    %c1_161 = arith.constant 1 : index
    %c2_162 = arith.constant 2 : index
    %c0_163 = arith.constant 0 : index
    %132 = vector.load %arg7[%c1_161, %c2_162, %c0_163] : memref<18x18x128xf32, #tpu.memory_space<vmem>>, vector<16x16x128xf32>
    %133 = vector.shape_cast %132 : vector<16x16x128xf32> to vector<256x128xf32>
    %134 = arith.truncf %133 : vector<256x128xf32> to vector<256x128xbf16>
    %c5_164 = arith.constant 5 : index
    %c0_165 = arith.constant 0 : index
    %c0_166 = arith.constant 0 : index
    %135 = vector.load %arg4[%c5_164, %c0_165, %c0_166] : memref<10x128x128xbf16, #tpu.memory_space<vmem>>, vector<1x128x128xbf16>
    %136 = vector.shape_cast %135 : vector<1x128x128xbf16> to vector<128x128xbf16>
    %cst_167 = arith.constant dense<0.000000e+00> : vector<256x128xf32>
    %137 = tpu.matmul %134, %136, %cst_167 {dimension_numbers = #tpu.dot_dimension_numbers<[1], [0], [0], [1], [0, 0, 1, 1], [], []>} : vector<256x128xbf16>, vector<128x128xbf16>, vector<256x128xf32> -> vector<256x128xf32>
    %c0_168 = arith.constant 0 : index
    %c0_169 = arith.constant 0 : index
    %138 = vector.load %arg8[%c0_168, %c0_169] : memref<256x128xf32, #tpu.memory_space<vmem>>, vector<256x128xf32>
    %139 = arith.addf %138, %137 : vector<256x128xf32>
    %c0_170 = arith.constant 0 : index
    %c0_171 = arith.constant 0 : index
    %140 = vector.load %arg8[%c0_170, %c0_171] : memref<256x128xf32, #tpu.memory_space<vmem>>, vector<256x128xf32>
    tpu.vector_store %arg8[%c0_170, %c0_171], %139 {strides = array<i32>} : memref<256x128xf32, #tpu.memory_space<vmem>>, vector<256x128xf32>,
    %c2_172 = arith.constant 2 : index
    %c0_173 = arith.constant 0 : index
    %c0_174 = arith.constant 0 : index
    %141 = vector.load %arg7[%c2_172, %c0_173, %c0_174] : memref<18x18x128xf32, #tpu.memory_space<vmem>>, vector<16x16x128xf32>
    %142 = vector.shape_cast %141 : vector<16x16x128xf32> to vector<256x128xf32>
    %143 = arith.truncf %142 : vector<256x128xf32> to vector<256x128xbf16>
    %c6_175 = arith.constant 6 : index
    %c0_176 = arith.constant 0 : index
    %c0_177 = arith.constant 0 : index
    %144 = vector.load %arg4[%c6_175, %c0_176, %c0_177] : memref<10x128x128xbf16, #tpu.memory_space<vmem>>, vector<1x128x128xbf16>
    %145 = vector.shape_cast %144 : vector<1x128x128xbf16> to vector<128x128xbf16>
    %cst_178 = arith.constant dense<0.000000e+00> : vector<256x128xf32>
    %146 = tpu.matmul %143, %145, %cst_178 {dimension_numbers = #tpu.dot_dimension_numbers<[1], [0], [0], [1], [0, 0, 1, 1], [], []>} : vector<256x128xbf16>, vector<128x128xbf16>, vector<256x128xf32> -> vector<256x128xf32>
    %c0_179 = arith.constant 0 : index
    %c0_180 = arith.constant 0 : index
    %147 = vector.load %arg8[%c0_179, %c0_180] : memref<256x128xf32, #tpu.memory_space<vmem>>, vector<256x128xf32>
    %148 = arith.addf %147, %146 : vector<256x128xf32>
    %c0_181 = arith.constant 0 : index
    %c0_182 = arith.constant 0 : index
    %149 = vector.load %arg8[%c0_181, %c0_182] : memref<256x128xf32, #tpu.memory_space<vmem>>, vector<256x128xf32>
    tpu.vector_store %arg8[%c0_181, %c0_182], %148 {strides = array<i32>} : memref<256x128xf32, #tpu.memory_space<vmem>>, vector<256x128xf32>,
    %c2_183 = arith.constant 2 : index
    %c1_184 = arith.constant 1 : index
    %c0_185 = arith.constant 0 : index
    %150 = vector.load %arg7[%c2_183, %c1_184, %c0_185] : memref<18x18x128xf32, #tpu.memory_space<vmem>>, vector<16x16x128xf32>
    %151 = vector.shape_cast %150 : vector<16x16x128xf32> to vector<256x128xf32>
    %152 = arith.truncf %151 : vector<256x128xf32> to vector<256x128xbf16>
    %c7_186 = arith.constant 7 : index
    %c0_187 = arith.constant 0 : index
    %c0_188 = arith.constant 0 : index
    %153 = vector.load %arg4[%c7_186, %c0_187, %c0_188] : memref<10x128x128xbf16, #tpu.memory_space<vmem>>, vector<1x128x128xbf16>
    %154 = vector.shape_cast %153 : vector<1x128x128xbf16> to vector<128x128xbf16>
    %cst_189 = arith.constant dense<0.000000e+00> : vector<256x128xf32>
    %155 = tpu.matmul %152, %154, %cst_189 {dimension_numbers = #tpu.dot_dimension_numbers<[1], [0], [0], [1], [0, 0, 1, 1], [], []>} : vector<256x128xbf16>, vector<128x128xbf16>, vector<256x128xf32> -> vector<256x128xf32>
    %c0_190 = arith.constant 0 : index
    %c0_191 = arith.constant 0 : index
    %156 = vector.load %arg8[%c0_190, %c0_191] : memref<256x128xf32, #tpu.memory_space<vmem>>, vector<256x128xf32>
    %157 = arith.addf %156, %155 : vector<256x128xf32>
    %c0_192 = arith.constant 0 : index
    %c0_193 = arith.constant 0 : index
    %158 = vector.load %arg8[%c0_192, %c0_193] : memref<256x128xf32, #tpu.memory_space<vmem>>, vector<256x128xf32>
    tpu.vector_store %arg8[%c0_192, %c0_193], %157 {strides = array<i32>} : memref<256x128xf32, #tpu.memory_space<vmem>>, vector<256x128xf32>,
    %c2_194 = arith.constant 2 : index
    %c2_195 = arith.constant 2 : index
    %c0_196 = arith.constant 0 : index
    %159 = vector.load %arg7[%c2_194, %c2_195, %c0_196] : memref<18x18x128xf32, #tpu.memory_space<vmem>>, vector<16x16x128xf32>
    %160 = vector.shape_cast %159 : vector<16x16x128xf32> to vector<256x128xf32>
    %161 = arith.truncf %160 : vector<256x128xf32> to vector<256x128xbf16>
    %c8_197 = arith.constant 8 : index
    %c0_198 = arith.constant 0 : index
    %c0_199 = arith.constant 0 : index
    %162 = vector.load %arg4[%c8_197, %c0_198, %c0_199] : memref<10x128x128xbf16, #tpu.memory_space<vmem>>, vector<1x128x128xbf16>
    %163 = vector.shape_cast %162 : vector<1x128x128xbf16> to vector<128x128xbf16>
    %cst_200 = arith.constant dense<0.000000e+00> : vector<256x128xf32>
    %164 = tpu.matmul %161, %163, %cst_200 {dimension_numbers = #tpu.dot_dimension_numbers<[1], [0], [0], [1], [0, 0, 1, 1], [], []>} : vector<256x128xbf16>, vector<128x128xbf16>, vector<256x128xf32> -> vector<256x128xf32>
    %c0_201 = arith.constant 0 : index
    %c0_202 = arith.constant 0 : index
    %165 = vector.load %arg8[%c0_201, %c0_202] : memref<256x128xf32, #tpu.memory_space<vmem>>, vector<256x128xf32>
    %166 = arith.addf %165, %164 : vector<256x128xf32>
    %c0_203 = arith.constant 0 : index
    %c0_204 = arith.constant 0 : index
    %167 = vector.load %arg8[%c0_203, %c0_204] : memref<256x128xf32, #tpu.memory_space<vmem>>, vector<256x128xf32>
    tpu.vector_store %arg8[%c0_203, %c0_204], %166 {strides = array<i32>} : memref<256x128xf32, #tpu.memory_space<vmem>>, vector<256x128xf32>,
    %c0_205 = arith.constant 0 : index
    %c1_206 = arith.constant 1 : index
    %c1_207 = arith.constant 1 : index
    %c0_208 = arith.constant 0 : index
    %168 = vector.load %arg1[%c0_205, %c1_206, %c1_207, %c0_208] : memref<1x18x18x128xbf16, #tpu.memory_space<vmem>>, vector<1x16x16x128xbf16>
    %169 = vector.shape_cast %168 : vector<1x16x16x128xbf16> to vector<16x16x128xbf16>
    %170 = vector.shape_cast %169 : vector<16x16x128xbf16> to vector<256x128xbf16>
    %c0_209 = arith.constant 0 : index
    %c0_210 = arith.constant 0 : index
    %171 = vector.load %arg8[%c0_209, %c0_210] : memref<256x128xf32, #tpu.memory_space<vmem>>, vector<256x128xf32>
    %c9 = arith.constant 9 : index
    %c0_211 = arith.constant 0 : index
    %c0_212 = arith.constant 0 : index
    %172 = vector.load %arg4[%c9, %c0_211, %c0_212] : memref<10x128x128xbf16, #tpu.memory_space<vmem>>, vector<1x128x128xbf16>
    %173 = vector.shape_cast %172 : vector<1x128x128xbf16> to vector<128x128xbf16>
    %cst_213 = arith.constant dense<0.000000e+00> : vector<256x128xf32>
    %174 = tpu.matmul %170, %173, %cst_213 {dimension_numbers = #tpu.dot_dimension_numbers<[1], [0], [0], [1], [0, 0, 1, 1], [], []>} : vector<256x128xbf16>, vector<128x128xbf16>, vector<256x128xf32> -> vector<256x128xf32>
    %175 = arith.addf %171, %174 : vector<256x128xf32>
    %c0_214 = arith.constant 0 : index
    %c0_215 = arith.constant 0 : index
    %176 = vector.load %arg8[%c0_214, %c0_215] : memref<256x128xf32, #tpu.memory_space<vmem>>, vector<256x128xf32>
    tpu.vector_store %arg8[%c0_214, %c0_215], %175 {strides = array<i32>} : memref<256x128xf32, #tpu.memory_space<vmem>>, vector<256x128xf32>,
    %c0_216 = arith.constant 0 : index
    %c0_217 = arith.constant 0 : index
    %177 = vector.load %arg8[%c0_216, %c0_217] : memref<256x128xf32, #tpu.memory_space<vmem>>, vector<256x128xf32>
    %c0_218 = arith.constant 0 : index
    %c0_219 = arith.constant 0 : index
    %178 = vector.load %arg5[%c0_218, %c0_219] : memref<1x128xf32, #tpu.memory_space<vmem>>, vector<1x128xf32>
    %179 = vector.broadcast %178 : vector<1x128xf32> to vector<256x128xf32>
    %180 = arith.addf %177, %179 : vector<256x128xf32>
    %cst_220 = arith.constant 0.000000e+00 : f32
    %181 = vector.broadcast %cst_220 : f32 to vector<256x128xf32>
    %182 = arith.maximumf %180, %181 : vector<256x128xf32>
    %c0_221 = arith.constant 0 : index
    %c0_222 = arith.constant 0 : index
    %c0_223 = arith.constant 0 : index
    %183 = vector.load %arg6[%c0_221, %c0_222, %c0_223] : memref<1x256x128xf32, #tpu.memory_space<vmem>>, vector<1x256x128xf32>
    %184 = vector.shape_cast %183 : vector<1x256x128xf32> to vector<256x128xf32>
    %185 = vector.shape_cast %182 : vector<256x128xf32> to vector<1x256x128xf32>
    tpu.vector_store %arg6[%c0_221, %c0_222, %c0_223], %185 {strides = array<i32>} : memref<1x256x128xf32, #tpu.memory_space<vmem>>, vector<1x256x128xf32>,
    return
  }
  func.func @transform_0(%arg0: i32) -> (i32, i32, i32, i32) {
    %c0_i32 = arith.constant 0 : i32
    %c0_i32_0 = arith.constant 0 : i32
    %c0_i32_1 = arith.constant 0 : i32
    %c0_i32_2 = arith.constant 0 : i32
    return %arg0, %c0_i32, %c0_i32_0, %c0_i32_1 : i32, i32, i32, i32
  }
  func.func @transform_1(%arg0: i32) -> (i32, i32, i32) {
    %c0_i32 = arith.constant 0 : i32
    %c0_i32_0 = arith.constant 0 : i32
    %c0_i32_1 = arith.constant 0 : i32
    %c0_i32_2 = arith.constant 0 : i32
    return %c0_i32, %c0_i32_0, %c0_i32_1 : i32, i32, i32
  }
  func.func @transform_2(%arg0: i32) -> (i32, i32) {
    %c0_i32 = arith.constant 0 : i32
    %c0_i32_0 = arith.constant 0 : i32
    %c0_i32_1 = arith.constant 0 : i32
    return %c0_i32, %c0_i32_0 : i32, i32
  }
  func.func @transform_3(%arg0: i32) -> (i32, i32, i32) {
    %c0_i32 = arith.constant 0 : i32
    %c0_i32_0 = arith.constant 0 : i32
    %c0_i32_1 = arith.constant 0 : i32
    %c0_i32_2 = arith.constant 0 : i32
    return %c0_i32, %c0_i32_0, %c0_i32_1 : i32, i32, i32
  }
  func.func @transform_4(%arg0: i32) -> (i32, i32) {
    %c0_i32 = arith.constant 0 : i32
    %c0_i32_0 = arith.constant 0 : i32
    %c0_i32_1 = arith.constant 0 : i32
    return %c0_i32, %c0_i32_0 : i32, i32
  }
  func.func @transform_5(%arg0: i32) -> (i32, i32, i32) {
    %c0_i32 = arith.constant 0 : i32
    %c0_i32_0 = arith.constant 0 : i32
    %c0_i32_1 = arith.constant 0 : i32
    return %arg0, %c0_i32, %c0_i32_0 : i32, i32, i32
  }
}

</mosaic_0001>

<llo_original>
// kernel: basic_block_forward.1
$region0: #{basic_block_forward.1}
  #allocation0 [shape = 'u32[]', space=smem, size = 0x4, offset = 0x4, fixed_abs, tag = 'smem constant byte address 0x4 - core index']
  #allocation1 [shape = 'u32[144,128]{1,0:T(1,128)}', space=vmem, size = 0x12000, scoped, tag = 'internal scratch']
  #allocation2 [shape = 'f32[18,18,128]{2,1,0:T(8,128)}', space=vmem, size = 0x36000, scoped, tag = 'scratch operand']
  #allocation3 [shape = 'f32[256,128]{1,0:T(8,128)}', space=vmem, size = 0x20000, scoped, tag = 'scratch operand']
  %s0 = inlined_call_operand.vmem [shape: bf16[2,18,18,128], index: 0, kind: input, shape index: {}]
  %s1 = inlined_call_operand.vmem [shape: bf16[9,128,128], index: 1, kind: input, shape index: {}]
  %s2 = inlined_call_operand.vmem [shape: f32[1,128], index: 2, kind: input, shape index: {}]
  %s3 = inlined_call_operand.vmem [shape: bf16[10,128,128], index: 3, kind: input, shape index: {}]
  %s4 = inlined_call_operand.vmem [shape: f32[1,128], index: 4, kind: input, shape index: {}]
  %s5 = inlined_call_operand.hbm [shape: f32[2,256,128], index: 5, kind: output, shape index: {}]
  %s6 = sld [smem:[#allocation0]]
  $region53: #{basic_block_forward.1} parent=0
    _
  %s8 = ssub.s32 1, %s6
  %s9 = scalar_select 0, %s8, %s6
  $region1: #{basic_block_forward.1} parent=0
    #allocation4 [shape = 'u8[262144]{0}', space=vmem, size = 0x40000, scoped, tag = 'output window, operand 0']
    #allocation5 [shape = 's32[2]{0}', space=sflag, size = 0x8, scoped, tag = 'scoped memory for basic_block_forward.1']
    %10 = vsyncpa [#allocation5], 0
    %s11 = scalar_lea.sflag [#allocation5], 1
    %12 = vsyncpa %s11, 0
    loop: start=0, step=1, limit=4
    $region2: #{basic_block_forward.1} parent=1 // loop_pre_header
      _
    $region3: #{basic_block_forward.1} parent=1 // loop_header
      %s14 = sphi 0, %s18
      %p15 = scmp.ge.s32.totalorder %s14, 4
      %s24 = sphi 0, %s26
      %s27 = sphi 0, %s24
      %s28 = sphi 0, %s27
      %s44 = sphi 0, %s28
      %s48 = sphi 0, %s48
      %s50 = sphi 0, %s48
      %s51 = sphi 0, %s50
      %s65 = sphi 0, %s51
      %s69 = sphi 0, %s69
      %s71 = sphi 0, %s69
      %s72 = sphi 0, %s71
      %s86 = sphi 0, %s72
      %s90 = sphi 0, %s90
      %s92 = sphi 0, %s90
      %s93 = sphi 0, %s92
      %s107 = sphi 0, %s93
      %s111 = sphi 0, %s111
      %s113 = sphi 0, %s111
      %s114 = sphi 0, %s113
      %s128 = sphi 0, %s114
      %s134 = sphi 0, %s136
      %s137 = sphi 0, %s134
      %s138 = sphi 0, %s137
      %s154 = sphi 0, %s138
    $region4: #{basic_block_forward.1} parent=1 // loop_header_branch
      %17 = sbr.rel (%p15) target = $region8
    $region5: #{basic_block_forward.1} parent=1 // loop_body
      %s19 = ssub.s32 %s14, 1
      %s20 = ssub.s32 %s14, 2
      %s21 = sadd.s32 %s14, 1
      %s22 = ssub.s32 %s14, %s21
      %p23 = scmp.eq.s32.totalorder %s22, 0
      %s25 = sadd.s32 %s24, 1
      %s26 = scalar_select %p23, %s24, %s25
      %p29 = pneg %p23
      %p30 = scmp.eq.s32.totalorder %s14, 1
      %p31 = por %p29, %p30
      %p32 = scmp.ne.s32.totalorder %s24, %s27
      %p33 = scmp.eq.s32.totalorder %s14, 0
      %p34 = por %p32, %p33
      %p35 = scmp.ne.s32.totalorder %s24, %s27
      %p36 = scmp.eq.s32.totalorder %s19, 1
      %p37 = por %p35, %p36
      %p38 = scmp.ne.s32.totalorder %s27, %s28
      %p39 = scmp.eq.s32.totalorder %s19, 0
      %p40 = por %p38, %p39
      %p41 = scmp.ne.s32.totalorder %s27, %s28
      %p42 = scmp.eq.s32.totalorder %s20, 1
      %p43 = por %p41, %p42
      %p45 = scmp.ne.s32.totalorder %s28, %s44
      %p46 = scmp.eq.s32.totalorder %s20, 0
      %p47 = por %p45, %p46
      %s49 = sadd.s32 %s48, 1
      %p52 = scmp.eq.s32.totalorder %s14, 1
      %p53 = scmp.ne.s32.totalorder %s48, %s50
      %p54 = scmp.eq.s32.totalorder %s14, 0
      %p55 = por %p53, %p54
      %p56 = scmp.ne.s32.totalorder %s48, %s50
      %p57 = scmp.eq.s32.totalorder %s19, 1
      %p58 = por %p56, %p57
      %p59 = scmp.ne.s32.totalorder %s50, %s51
      %p60 = scmp.eq.s32.totalorder %s19, 0
      %p61 = por %p59, %p60
      %p62 = scmp.ne.s32.totalorder %s50, %s51
      %p63 = scmp.eq.s32.totalorder %s20, 1
      %p64 = por %p62, %p63
      %p66 = scmp.ne.s32.totalorder %s51, %s65
      %p67 = scmp.eq.s32.totalorder %s20, 0
      %p68 = por %p66, %p67
      %s70 = sadd.s32 %s69, 1
      %p73 = scmp.eq.s32.totalorder %s14, 1
      %p74 = scmp.ne.s32.totalorder %s69, %s71
      %p75 = scmp.eq.s32.totalorder %s14, 0
      %p76 = por %p74, %p75
      %p77 = scmp.ne.s32.totalorder %s69, %s71
      %p78 = scmp.eq.s32.totalorder %s19, 1
      %p79 = por %p77, %p78
      %p80 = scmp.ne.s32.totalorder %s71, %s72
      %p81 = scmp.eq.s32.totalorder %s19, 0
      %p82 = por %p80, %p81
      %p83 = scmp.ne.s32.totalorder %s71, %s72
      %p84 = scmp.eq.s32.totalorder %s20, 1
      %p85 = por %p83, %p84
      %p87 = scmp.ne.s32.totalorder %s72, %s86
      %p88 = scmp.eq.s32.totalorder %s20, 0
      %p89 = por %p87, %p88
      %s91 = sadd.s32 %s90, 1
      %p94 = scmp.eq.s32.totalorder %s14, 1
      %p95 = scmp.ne.s32.totalorder %s90, %s92
      %p96 = scmp.eq.s32.totalorder %s14, 0
      %p97 = por %p95, %p96
      %p98 = scmp.ne.s32.totalorder %s90, %s92
      %p99 = scmp.eq.s32.totalorder %s19, 1
      %p100 = por %p98, %p99
      %p101 = scmp.ne.s32.totalorder %s92, %s93
      %p102 = scmp.eq.s32.totalorder %s19, 0
      %p103 = por %p101, %p102
      %p104 = scmp.ne.s32.totalorder %s92, %s93
      %p105 = scmp.eq.s32.totalorder %s20, 1
      %p106 = por %p104, %p105
      %p108 = scmp.ne.s32.totalorder %s93, %s107
      %p109 = scmp.eq.s32.totalorder %s20, 0
      %p110 = por %p108, %p109
      %s112 = sadd.s32 %s111, 1
      %p115 = scmp.eq.s32.totalorder %s14, 1
      %p116 = scmp.ne.s32.totalorder %s111, %s113
      %p117 = scmp.eq.s32.totalorder %s14, 0
      %p118 = por %p116, %p117
      %p119 = scmp.ne.s32.totalorder %s111, %s113
      %p120 = scmp.eq.s32.totalorder %s19, 1
      %p121 = por %p119, %p120
      %p122 = scmp.ne.s32.totalorder %s113, %s114
      %p123 = scmp.eq.s32.totalorder %s19, 0
      %p124 = por %p122, %p123
      %p125 = scmp.ne.s32.totalorder %s113, %s114
      %p126 = scmp.eq.s32.totalorder %s20, 1
      %p127 = por %p125, %p126
      %p129 = scmp.ne.s32.totalorder %s114, %s128
      %p130 = scmp.eq.s32.totalorder %s20, 0
      %p131 = por %p129, %p130
      %s132 = ssub.s32 %s14, %s21
      %p133 = scmp.eq.s32.totalorder %s132, 0
      %s135 = sadd.s32 %s134, 1
      %s136 = scalar_select %p133, %s134, %s135
      %p139 = pneg %p133
      %p140 = scmp.eq.s32.totalorder %s14, 1
      %p141 = por %p139, %p140
      %p142 = scmp.ne.s32.totalorder %s134, %s137
      %p143 = scmp.eq.s32.totalorder %s14, 0
      %p144 = por %p142, %p143
      %p145 = scmp.ne.s32.totalorder %s134, %s137
      %p146 = scmp.eq.s32.totalorder %s19, 1
      %p147 = por %p145, %p146
      %p148 = scmp.ne.s32.totalorder %s137, %s138
      %p149 = scmp.eq.s32.totalorder %s19, 0
      %p150 = por %p148, %p149
      %p151 = scmp.ne.s32.totalorder %s137, %s138
      %p152 = scmp.eq.s32.totalorder %s20, 1
      %p153 = por %p151, %p152
      %p155 = scmp.ne.s32.totalorder %s138, %s154
      %p156 = scmp.eq.s32.totalorder %s20, 0
      %p157 = por %p155, %p156
      %p158 = scmp.le.s32.totalorder 1, %s14
      %p159 = scmp.lt.s32.totalorder %s14, 3
      %p160 = pnand %p158, %p159
      %p161 = pneg %p160
      // Predicated region
      $region9: #{basic_block_forward.1} parent=5 // pred_check
        _
      $region10: #{basic_block_forward.1} parent=5 // pred_check_branch
        %163 = sbr.rel (%p160) target = $region12
      $region11: #{basic_block_forward.1} parent=5 // pred_region
        %s164 = ssub.s32 %s14, 1
        // Predicated region
        $region13: #{basic_block_forward.1} parent=11 // pred_check
          %p165 = pneg %p61
        $region14: #{basic_block_forward.1} parent=11 // pred_check_branch
          %167 = sbr.rel (%p165) target = $region16
        $region15: #{basic_block_forward.1} parent=11 // pred_region
          _
        $region16: #{basic_block_forward.1} parent=11 // pred_fallthru
          _
        // Predicated region
        $region17: #{basic_block_forward.1} parent=11 // pred_check
          %p168 = pneg %p82
        $region18: #{basic_block_forward.1} parent=11 // pred_check_branch
          %170 = sbr.rel (%p168) target = $region20
        $region19: #{basic_block_forward.1} parent=11 // pred_region
          _
        $region20: #{basic_block_forward.1} parent=11 // pred_fallthru
          _
        // Predicated region
        $region21: #{basic_block_forward.1} parent=11 // pred_check
          %p171 = pneg %p103
        $region22: #{basic_block_forward.1} parent=11 // pred_check_branch
          %173 = sbr.rel (%p171) target = $region24
        $region23: #{basic_block_forward.1} parent=11 // pred_region
          _
        $region24: #{basic_block_forward.1} parent=11 // pred_fallthru
          _
        // Predicated region
        $region25: #{basic_block_forward.1} parent=11 // pred_check
          %p174 = pneg %p124
        $region26: #{basic_block_forward.1} parent=11 // pred_check_branch
          %176 = sbr.rel (%p174) target = $region28
        $region27: #{basic_block_forward.1} parent=11 // pred_region
          _
        $region28: #{basic_block_forward.1} parent=11 // pred_fallthru
          _
      $region12: #{basic_block_forward.1} parent=5 // pred_fallthru
        _
      %p177 = scmp.lt.s32.totalorder %s14, 2
      // Predicated region
      $region29: #{basic_block_forward.1} parent=5 // pred_check
        %p178 = pneg %p177
      $region30: #{basic_block_forward.1} parent=5 // pred_check_branch
        %180 = sbr.rel (%p178) target = $region32
      $region31: #{basic_block_forward.1} parent=5 // pred_region
        // Predicated region
        $region33: #{basic_block_forward.1} parent=31 // pred_check
          %p181 = pneg %p34
        $region34: #{basic_block_forward.1} parent=31 // pred_check_branch
          %183 = sbr.rel (%p181) target = $region36
        $region35: #{basic_block_forward.1} parent=31 // pred_region
          %p184 = scmp.lt.s32.totalorder %s14, 1
          %s185 = scalar_select %p184, %s14, 1
          %s186 = smul.addr %s185, 54
          %s187 = smul.addr %s186, 4
          %s188 = scalar_lea.vmem %s0, %s187
        $region36: #{basic_block_forward.1} parent=31 // pred_fallthru
          _
      $region32: #{basic_block_forward.1} parent=5 // pred_fallthru
        _
      %p189 = scmp.le.s32.totalorder 1, %s14
      %p190 = scmp.lt.s32.totalorder %s14, 3
      %p191 = pnand %p189, %p190
      %p192 = pneg %p191
      // Predicated region
      $region37: #{basic_block_forward.1} parent=5 // pred_check
        _
      $region38: #{basic_block_forward.1} parent=5 // pred_check_branch
        %194 = sbr.rel (%p191) target = $region40
      $region39: #{basic_block_forward.1} parent=5 // pred_region
        %s195 = ssub.s32 %s14, 1
        %p196 = scmp.lt.s32.totalorder %s19, 1
        %s197 = scalar_select %p196, %s19, 1
        %s198 = smul.addr %s197, 54
        %s199 = smul.addr %s198, 4
        %s200 = scalar_lea.vmem %s0, %s199
        %p201 = pneg %p40
        %p202 = pneg %p37
        %p203 = pneg %p61
        %p204 = pneg %p58
        %p205 = pneg %p82
        %p206 = pneg %p79
        %p207 = pneg %p103
        %p208 = pneg %p100
        %p209 = pneg %p124
        %p210 = pneg %p121
        %p211 = pneg %p150
        %p212 = pneg %p147
        %s213 = sand.u32 %s137, 1
        %s214 = scalar_lea.sflag [#allocation5], %s213
        %s215 = sand.u32 %s137, 1
        %s216 = smul.addr %s215, 256
        %s217 = scalar_lea.vmem [#allocation4], %s216
        %p218 = scmp.lt.s32.totalorder %s19, 1
        %s219 = scalar_select %p218, %s19, 1
        %s220 = smul.addr %s219, 54
        %s221 = smul.addr %s220, 4
        %s222 = scalar_lea.vmem %s0, %s221
        %v224 = vld [vmem:[%s222] sm:$0xf]
        %v225 = vld [vmem:[%s222 + $0x4] sm:$0xf]
        %v226 = vld [vmem:[%s222 + $0xc] sm:$0xf]
        %v227 = vld [vmem:[%s222 + $0x10] sm:$0xf]
        %v228 = vld [vmem:[%s222 + $0x18] sm:$0xf]
        %v229 = vld [vmem:[%s222 + $0x1c] sm:$0xf]
        %v230 = vld [vmem:[%s222 + $0x24] sm:$0xf]
        %v231 = vld [vmem:[%s222 + $0x28] sm:$0xf]
        %v232 = vld [vmem:[%s222 + $0x30] sm:$0xf]
        %v233 = vld [vmem:[%s222 + $0x34] sm:$0xf]
        %v234 = vld [vmem:[%s222 + $0x3c] sm:$0xf]
        %v235 = vld [vmem:[%s222 + $0x40] sm:$0xf]
        %v236 = vld [vmem:[%s222 + $0x48] sm:$0xf]
        %v237 = vld [vmem:[%s222 + $0x4c] sm:$0xf]
        %v238 = vld [vmem:[%s222 + $0x54] sm:$0xf]
        %v239 = vld [vmem:[%s222 + $0x58] sm:$0xf]
        %v240 = vld [vmem:[%s222 + $0x60] sm:$0xf]
        %v241 = vld [vmem:[%s222 + $0x64] sm:$0xf]
        %v242 = vld [vmem:[%s222 + $0x6c] sm:$0xf]
        %v243 = vld [vmem:[%s222 + $0x70] sm:$0xf]
        %v244 = vld [vmem:[%s222 + $0x78] sm:$0xf]
        %v245 = vld [vmem:[%s222 + $0x7c] sm:$0xf]
        %v246 = vld [vmem:[%s222 + $0x84] sm:$0xf]
        %v247 = vld [vmem:[%s222 + $0x88] sm:$0xf]
        %v248 = vld [vmem:[%s222 + $0x90] sm:$0xf]
        %v249 = vld [vmem:[%s222 + $0x94] sm:$0xf]
        %v250 = vld [vmem:[%s222 + $0x9c] sm:$0xf]
        %v251 = vld [vmem:[%s222 + $0xa0] sm:$0xf]
        %v252 = vld [vmem:[%s222 + $0xa8] sm:$0xf]
        %v253 = vld [vmem:[%s222 + $0xac] sm:$0xf]
        %v254 = vld [vmem:[%s222 + $0xb4] sm:$0xf]
        %v255 = vld [vmem:[%s222 + $0xb8] sm:$0xf]
        %v256 = vld [vmem:[%s1] sm:$0xf]
        %v257 = vld [vmem:[%s1 + $0x4] sm:$0xf]
        %v258 = vld [vmem:[%s1 + $0x8] sm:$0xf]
        %v259 = vld [vmem:[%s1 + $0xc] sm:$0xf]
        %v260 = vld [vmem:[%s1 + $0x10] sm:$0xf]
        %v261 = vld [vmem:[%s1 + $0x14] sm:$0xf]
        %v262 = vld [vmem:[%s1 + $0x18] sm:$0xf]
        %v263 = vld [vmem:[%s1 + $0x1c] sm:$0xf]
        %v264 = vld [vmem:[%s1 + $0x20] sm:$0xf]
        %v265 = vld [vmem:[%s1 + $0x24] sm:$0xf]
        %v266 = vld [vmem:[%s1 + $0x28] sm:$0xf]
        %v267 = vld [vmem:[%s1 + $0x2c] sm:$0xf]
        %v268 = vld [vmem:[%s1 + $0x30] sm:$0xf]
        %v269 = vld [vmem:[%s1 + $0x34] sm:$0xf]
        %v270 = vld [vmem:[%s1 + $0x38] sm:$0xf]
        %v271 = vld [vmem:[%s1 + $0x3c] sm:$0xf]
        %v304 = vunpack.c.l.b16 %v224
        %v305 = vunpack.c.l.b16 %v225
        %v306 = vunpack.c.l.b16 %v226
        %v307 = vunpack.c.l.b16 %v227
        %v308 = vunpack.c.l.b16 %v228
        %v309 = vunpack.c.l.b16 %v229
        %v310 = vunpack.c.l.b16 %v230
        %v311 = vunpack.c.l.b16 %v231
        %v312 = vunpack.c.l.b16 %v232
        %v313 = vunpack.c.l.b16 %v233
        %v314 = vunpack.c.l.b16 %v234
        %v315 = vunpack.c.l.b16 %v235
        %v316 = vunpack.c.l.b16 %v236
        %v317 = vunpack.c.l.b16 %v237
        %v318 = vunpack.c.l.b16 %v238
        %v319 = vunpack.c.l.b16 %v239
        %v320 = vunpack.c.l.b16 %v240
        %v321 = vunpack.c.l.b16 %v241
        %v322 = vunpack.c.l.b16 %v242
        %v323 = vunpack.c.l.b16 %v243
        %v324 = vunpack.c.l.b16 %v244
        %v325 = vunpack.c.l.b16 %v245
        %v326 = vunpack.c.l.b16 %v246
        %v327 = vunpack.c.l.b16 %v247
        %v328 = vunpack.c.l.b16 %v248
        %v329 = vunpack.c.l.b16 %v249
        %v330 = vunpack.c.l.b16 %v250
        %v331 = vunpack.c.l.b16 %v251
        %v332 = vunpack.c.l.b16 %v252
        %v333 = vunpack.c.l.b16 %v253
        %v334 = vunpack.c.l.b16 %v254
        %v335 = vunpack.c.l.b16 %v255
        %v336 = vpack.c.b16 %v305, %v304
        %v337 = vpack.c.b16 %v307, %v306
        %v338 = vpack.c.b16 %v309, %v308
        %v339 = vpack.c.b16 %v311, %v310
        %v340 = vpack.c.b16 %v313, %v312
        %v341 = vpack.c.b16 %v315, %v314
        %v342 = vpack.c.b16 %v317, %v316
        %v343 = vpack.c.b16 %v319, %v318
        %v344 = vpack.c.b16 %v321, %v320
        %v345 = vpack.c.b16 %v323, %v322
        %v346 = vpack.c.b16 %v325, %v324
        %v347 = vpack.c.b16 %v327, %v326
        %v348 = vpack.c.b16 %v329, %v328
        %v349 = vpack.c.b16 %v331, %v330
        %v350 = vpack.c.b16 %v333, %v332
        %v351 = vpack.c.b16 %v335, %v334
        %v384 = vunpack.c.l.b16 %v256
        %v385 = vunpack.c.l.b16 %v257
        %v386 = vunpack.c.l.b16 %v258
        %v387 = vunpack.c.l.b16 %v259
        %v388 = vunpack.c.l.b16 %v260
        %v389 = vunpack.c.l.b16 %v261
        %v390 = vunpack.c.l.b16 %v262
        %v391 = vunpack.c.l.b16 %v263
        %v392 = vunpack.c.l.b16 %v264
        %v393 = vunpack.c.l.b16 %v265
        %v394 = vunpack.c.l.b16 %v266
        %v395 = vunpack.c.l.b16 %v267
        %v396 = vunpack.c.l.b16 %v268
        %v397 = vunpack.c.l.b16 %v269
        %v398 = vunpack.c.l.b16 %v270
        %v399 = vunpack.c.l.b16 %v271
        %v400 = vpack.c.b16 %v385, %v384
        %v401 = vpack.c.b16 %v387, %v386
        %v402 = vpack.c.b16 %v389, %v388
        %v403 = vpack.c.b16 %v391, %v390
        %v404 = vpack.c.b16 %v393, %v392
        %v405 = vpack.c.b16 %v395, %v394
        %v406 = vpack.c.b16 %v397, %v396
        %v407 = vpack.c.b16 %v399, %v398
        %416 = vmatprep.subr.bf16.mxu0 0
        %417 = vmatpush1.bf16.msra.mxu0 %v400
        %418 = vmatprep.subr.bf16.mxu0 0
        %419 = vmatpush1.bf16.msra.mxu0 %v401
        %420 = vmatprep.subr.bf16.mxu0 0
        %421 = vmatpush1.bf16.msra.mxu0 %v402
        %422 = vmatprep.subr.bf16.mxu0 0
        %423 = vmatpush1.bf16.msra.mxu0 %v403
        %424 = vmatprep.subr.bf16.mxu0 0
        %425 = vmatpush1.bf16.msra.mxu0 %v404
        %426 = vmatprep.subr.bf16.mxu0 0
        %427 = vmatpush1.bf16.msra.mxu0 %v405
        %428 = vmatprep.subr.bf16.mxu0 0
        %429 = vmatpush1.bf16.msra.mxu0 %v406
        %430 = vmatprep.subr.bf16.mxu0 0
        %431 = vmatpush1.bf16.msra.mxu0 %v407
        %432 = vmatprep.subr.bf16.mxu0 0
        %433 = vmatpush1.bf16.msra.mxu0 0
        %434 = vmatprep.subr.bf16.mxu0 0
        %435 = vmatpush1.bf16.msra.mxu0 0
        %436 = vmatprep.subr.bf16.mxu0 0
        %437 = vmatpush1.bf16.msra.mxu0 0
        %438 = vmatprep.subr.bf16.mxu0 0
        %439 = vmatpush1.bf16.msra.mxu0 0
        %440 = vmatprep.subr.bf16.mxu0 0
        %441 = vmatpush1.bf16.msra.mxu0 0
        %442 = vmatprep.subr.bf16.mxu0 0
        %443 = vmatpush1.bf16.msra.mxu0 0
        %444 = vmatprep.subr.bf16.mxu0 0
        %445 = vmatpush1.bf16.msra.mxu0 0
        %446 = vmatprep.subr.bf16.mxu0 0
        %447 = vmatpush1.bf16.msra.mxu0 0
        %448 = vmatprep.mubr.bf16.mxu0 0
        %449 = vmatmul.mubr.bf16.gmra.mrb[0].mxu0 %v336
        %v450 = vpop.f32.mrb[0].mxu0
        %v451 = vadd.f32 0.0, %v450
        %v452 = vpop.f32.mrb[0].mxu0
        %v453 = vpop.f32.mrb[0].mxu0
        %v454 = vadd.f32 0.0, %v453
        %v455 = vpop.f32.mrb[0].mxu0
        %456 = vmatprep.mubr.bf16.mxu0 0
        %457 = vmatmul.mubr.bf16.gmra.mrb[0].mxu0 %v337
        %v458 = vpop.f32.mrb[0].mxu0
        %v459 = vadd.f32 0.0, %v458
        %v460 = vpop.f32.mrb[0].mxu0
        %v461 = vpop.f32.mrb[0].mxu0
        %v462 = vadd.f32 0.0, %v461
        %v463 = vpop.f32.mrb[0].mxu0
        %464 = vmatprep.mubr.bf16.mxu0 0
        %465 = vmatmul.mubr.bf16.gmra.mrb[0].mxu0 %v338
        %v466 = vpop.f32.mrb[0].mxu0
        %v467 = vadd.f32 0.0, %v466
        %v468 = vpop.f32.mrb[0].mxu0
        %v469 = vpop.f32.mrb[0].mxu0
        %v470 = vadd.f32 0.0, %v469
        %v471 = vpop.f32.mrb[0].mxu0
        %472 = vmatprep.mubr.bf16.mxu0 0
        %473 = vmatmul.mubr.bf16.gmra.mrb[0].mxu0 %v339
        %v474 = vpop.f32.mrb[0].mxu0
        %v475 = vadd.f32 0.0, %v474
        %v476 = vpop.f32.mrb[0].mxu0
        %v477 = vpop.f32.mrb[0].mxu0
        %v478 = vadd.f32 0.0, %v477
        %v479 = vpop.f32.mrb[0].mxu0
        %480 = vmatprep.mubr.bf16.mxu0 0
        %481 = vmatmul.mubr.bf16.gmra.mrb[0].mxu0 %v340
        %v482 = vpop.f32.mrb[0].mxu0
        %v483 = vadd.f32 0.0, %v482
        %v484 = vpop.f32.mrb[0].mxu0
        %v485 = vpop.f32.mrb[0].mxu0
        %v486 = vadd.f32 0.0, %v485
        %v487 = vpop.f32.mrb[0].mxu0
        %488 = vmatprep.mubr.bf16.mxu0 0
        %489 = vmatmul.mubr.bf16.gmra.mrb[0].mxu0 %v341
        %v490 = vpop.f32.mrb[0].mxu0
        %v491 = vadd.f32 0.0, %v490
        %v492 = vpop.f32.mrb[0].mxu0
        %v493 = vpop.f32.mrb[0].mxu0
        %v494 = vadd.f32 0.0, %v493
        %v495 = vpop.f32.mrb[0].mxu0
        %496 = vmatprep.mubr.bf16.mxu0 0
        %497 = vmatmul.mubr.bf16.gmra.mrb[0].mxu0 %v342
        %v498 = vpop.f32.mrb[0].mxu0
        %v499 = vadd.f32 0.0, %v498
        %v500 = vpop.f32.mrb[0].mxu0
        %v501 = vpop.f32.mrb[0].mxu0
        %v502 = vadd.f32 0.0, %v501
        %v503 = vpop.f32.mrb[0].mxu0
        %504 = vmatprep.mubr.bf16.mxu0 0
        %505 = vmatmul.mubr.bf16.gmra.mrb[0].mxu0 %v343
        %v506 = vpop.f32.mrb[0].mxu0
        %v507 = vadd.f32 0.0, %v506
        %v508 = vpop.f32.mrb[0].mxu0
        %v509 = vpop.f32.mrb[0].mxu0
        %v510 = vadd.f32 0.0, %v509
        %v511 = vpop.f32.mrb[0].mxu0
        %512 = vmatprep.mubr.bf16.mxu0 0
        %513 = vmatmul.mubr.bf16.gmra.mrb[0].mxu0 %v344
        %v514 = vpop.f32.mrb[0].mxu0
        %v515 = vadd.f32 0.0, %v514
        %v516 = vpop.f32.mrb[0].mxu0
        %v517 = vpop.f32.mrb[0].mxu0
        %v518 = vadd.f32 0.0, %v517
        %v519 = vpop.f32.mrb[0].mxu0
        %520 = vmatprep.mubr.bf16.mxu0 0
        %521 = vmatmul.mubr.bf16.gmra.mrb[0].mxu0 %v345
        %v522 = vpop.f32.mrb[0].mxu0
        %v523 = vadd.f32 0.0, %v522
        %v524 = vpop.f32.mrb[0].mxu0
        %v525 = vpop.f32.mrb[0].mxu0
        %v526 = vadd.f32 0.0, %v525
        %v527 = vpop.f32.mrb[0].mxu0
        %528 = vmatprep.mubr.bf16.mxu0 0
        %529 = vmatmul.mubr.bf16.gmra.mrb[0].mxu0 %v346
        %v530 = vpop.f32.mrb[0].mxu0
        %v531 = vadd.f32 0.0, %v530
        %v532 = vpop.f32.mrb[0].mxu0
        %v533 = vpop.f32.mrb[0].mxu0
        %v534 = vadd.f32 0.0, %v533
        %v535 = vpop.f32.mrb[0].mxu0
        %536 = vmatprep.mubr.bf16.mxu0 0
        %537 = vmatmul.mubr.bf16.gmra.mrb[0].mxu0 %v347
        %v538 = vpop.f32.mrb[0].mxu0
        %v539 = vadd.f32 0.0, %v538
        %v540 = vpop.f32.mrb[0].mxu0
        %v541 = vpop.f32.mrb[0].mxu0
        %v542 = vadd.f32 0.0, %v541
        %v543 = vpop.f32.mrb[0].mxu0
        %544 = vmatprep.mubr.bf16.mxu0 0
        %545 = vmatmul.mubr.bf16.gmra.mrb[0].mxu0 %v348
        %v546 = vpop.f32.mrb[0].mxu0
        %v547 = vadd.f32 0.0, %v546
        %v548 = vpop.f32.mrb[0].mxu0
        %v549 = vpop.f32.mrb[0].mxu0
        %v550 = vadd.f32 0.0, %v549
        %v551 = vpop.f32.mrb[0].mxu0
        %552 = vmatprep.mubr.bf16.mxu0 0
        %553 = vmatmul.mubr.bf16.gmra.mrb[0].mxu0 %v349
        %v554 = vpop.f32.mrb[0].mxu0
        %v555 = vadd.f32 0.0, %v554
        %v556 = vpop.f32.mrb[0].mxu0
        %v557 = vpop.f32.mrb[0].mxu0
        %v558 = vadd.f32 0.0, %v557
        %v559 = vpop.f32.mrb[0].mxu0
        %560 = vmatprep.mubr.bf16.mxu0 0
        %561 = vmatmul.mubr.bf16.gmra.mrb[0].mxu0 %v350
        %v562 = vpop.f32.mrb[0].mxu0
        %v563 = vadd.f32 0.0, %v562
        %v564 = vpop.f32.mrb[0].mxu0
        %v565 = vpop.f32.mrb[0].mxu0
        %v566 = vadd.f32 0.0, %v565
        %v567 = vpop.f32.mrb[0].mxu0
        %568 = vmatprep.mubr.bf16.mxu0 0
        %569 = vmatmul.mubr.bf16.gmra.mrb[0].mxu0 %v351
        %v570 = vpop.f32.mrb[0].mxu0
        %v571 = vadd.f32 0.0, %v570
        %v572 = vpop.f32.mrb[0].mxu0
        %v573 = vpop.f32.mrb[0].mxu0
        %v574 = vadd.f32 0.0, %v573
        %v575 = vpop.f32.mrb[0].mxu0
        %576 = vdwg.mxu0
        %577 = vst [vmem:[#allocation3] sm:$0xff] %v451
        %578 = vst [vmem:[#allocation3 + $0x8] sm:$0xff] %v454
        %579 = vst [vmem:[#allocation3 + $0x10] sm:$0xff] %v459
        %580 = vst [vmem:[#allocation3 + $0x18] sm:$0xff] %v462
        %581 = vst [vmem:[#allocation3 + $0x20] sm:$0xff] %v467
        %582 = vst [vmem:[#allocation3 + $0x28] sm:$0xff] %v470
        %583 = vst [vmem:[#allocation3 + $0x30] sm:$0xff] %v475
        %584 = vst [vmem:[#allocation3 + $0x38] sm:$0xff] %v478
        %585 = vst [vmem:[#allocation3 + $0x40] sm:$0xff] %v483
        %586 = vst [vmem:[#allocation3 + $0x48] sm:$0xff] %v486
        %587 = vst [vmem:[#allocation3 + $0x50] sm:$0xff] %v491
        %588 = vst [vmem:[#allocation3 + $0x58] sm:$0xff] %v494
        %589 = vst [vmem:[#allocation3 + $0x60] sm:$0xff] %v499
        %590 = vst [vmem:[#allocation3 + $0x68] sm:$0xff] %v502
        %591 = vst [vmem:[#allocation3 + $0x70] sm:$0xff] %v507
        %592 = vst [vmem:[#allocation3 + $0x78] sm:$0xff] %v510
        %593 = vst [vmem:[#allocation3 + $0x80] sm:$0xff] %v515
        %594 = vst [vmem:[#allocation3 + $0x88] sm:$0xff] %v518
        %595 = vst [vmem:[#allocation3 + $0x90] sm:$0xff] %v523
        %596 = vst [vmem:[#allocation3 + $0x98] sm:$0xff] %v526
        %597 = vst [vmem:[#allocation3 + $0xa0] sm:$0xff] %v531
        %598 = vst [vmem:[#allocation3 + $0xa8] sm:$0xff] %v534
        %599 = vst [vmem:[#allocation3 + $0xb0] sm:$0xff] %v539
        %600 = vst [vmem:[#allocation3 + $0xb8] sm:$0xff] %v542
        %601 = vst [vmem:[#allocation3 + $0xc0] sm:$0xff] %v547
        %602 = vst [vmem:[#allocation3 + $0xc8] sm:$0xff] %v550
        %603 = vst [vmem:[#allocation3 + $0xd0] sm:$0xff] %v555
        %604 = vst [vmem:[#allocation3 + $0xd8] sm:$0xff] %v558
        %605 = vst [vmem:[#allocation3 + $0xe0] sm:$0xff] %v563
        %606 = vst [vmem:[#allocation3 + $0xe8] sm:$0xff] %v566
        %607 = vst [vmem:[#allocation3 + $0xf0] sm:$0xff] %v571
        %608 = vst [vmem:[#allocation3 + $0xf8] sm:$0xff] %v574
        %v609 = vld [vmem:[%s222] sm:$0xf]
        %v610 = vld [vmem:[%s222 + $0x4] sm:$0xf]
        %v611 = vld [vmem:[%s222 + $0x8] sm:$0x1]
        %v612 = vld [vmem:[%s222 + $0xc] sm:$0xf]
        %v613 = vld [vmem:[%s222 + $0x10] sm:$0xf]
        %v614 = vld [vmem:[%s222 + $0x14] sm:$0x1]
        %v615 = vld [vmem:[%s222 + $0x18] sm:$0xf]
        %v616 = vld [vmem:[%s222 + $0x1c] sm:$0xf]
        %v617 = vld [vmem:[%s222 + $0x20] sm:$0x1]
        %v618 = vld [vmem:[%s222 + $0x24] sm:$0xf]
        %v619 = vld [vmem:[%s222 + $0x28] sm:$0xf]
        %v620 = vld [vmem:[%s222 + $0x2c] sm:$0x1]
        %v621 = vld [vmem:[%s222 + $0x30] sm:$0xf]
        %v622 = vld [vmem:[%s222 + $0x34] sm:$0xf]
        %v623 = vld [vmem:[%s222 + $0x38] sm:$0x1]
        %v624 = vld [vmem:[%s222 + $0x3c] sm:$0xf]
        %v625 = vld [vmem:[%s222 + $0x40] sm:$0xf]
        %v626 = vld [vmem:[%s222 + $0x44] sm:$0x1]
        %v627 = vld [vmem:[%s222 + $0x48] sm:$0xf]
        %v628 = vld [vmem:[%s222 + $0x4c] sm:$0xf]
        %v629 = vld [vmem:[%s222 + $0x50] sm:$0x1]
        %v630 = vld [vmem:[%s222 + $0x54] sm:$0xf]
        %v631 = vld [vmem:[%s222 + $0x58] sm:$0xf]
        %v632 = vld [vmem:[%s222 + $0x5c] sm:$0x1]
        %v633 = vld [vmem:[%s222 + $0x60] sm:$0xf]
        %v634 = vld [vmem:[%s222 + $0x64] sm:$0xf]
        %v635 = vld [vmem:[%s222 + $0x68] sm:$0x1]
        %v636 = vld [vmem:[%s222 + $0x6c] sm:$0xf]
        %v637 = vld [vmem:[%s222 + $0x70] sm:$0xf]
        %v638 = vld [vmem:[%s222 + $0x74] sm:$0x1]
        %v639 = vld [vmem:[%s222 + $0x78] sm:$0xf]
        %v640 = vld [vmem:[%s222 + $0x7c] sm:$0xf]
        %v641 = vld [vmem:[%s222 + $0x80] sm:$0x1]
        %v642 = vld [vmem:[%s222 + $0x84] sm:$0xf]
        %v643 = vld [vmem:[%s222 + $0x88] sm:$0xf]
        %v644 = vld [vmem:[%s222 + $0x8c] sm:$0x1]
        %v645 = vld [vmem:[%s222 + $0x90] sm:$0xf]
        %v646 = vld [vmem:[%s222 + $0x94] sm:$0xf]
        %v647 = vld [vmem:[%s222 + $0x98] sm:$0x1]
        %v648 = vld [vmem:[%s222 + $0x9c] sm:$0xf]
        %v649 = vld [vmem:[%s222 + $0xa0] sm:$0xf]
        %v650 = vld [vmem:[%s222 + $0xa4] sm:$0x1]
        %v651 = vld [vmem:[%s222 + $0xa8] sm:$0xf]
        %v652 = vld [vmem:[%s222 + $0xac] sm:$0xf]
        %v653 = vld [vmem:[%s222 + $0xb0] sm:$0x1]
        %v654 = vld [vmem:[%s222 + $0xb4] sm:$0xf]
        %v655 = vld [vmem:[%s222 + $0xb8] sm:$0xf]
        %v656 = vld [vmem:[%s222 + $0xbc] sm:$0x1]
        %vm657 = vsmask.f32 3328
        %vm658 = vsmask.f32 7440
        %vm659 = vmor %vm657, %vm658
        %v661 = vshrl.u32 %v609, 16
        %v663 = vrot.slane %v661, 4
        %v664 = vshll.u32 %v609, 16
        %v666 = vrot.slane %v664, 5
        %v667 = vor.u32 %v663, %v666
        %v668 = vrot.slane %v667, 4
        %v670 = vshll.u32 %v610, 16
        %v672 = vrot.slane %v670, 5
        %v673 = vsel %vm659, %v668, %v672
        %v674 = vshrl.u32 %v610, 16
        %v676 = vrot.slane %v674, 4
        %v677 = vor.u32 %v676, %v672
        %v678 = vrot.slane %v677, 4
        %v680 = vshll.u32 %v611, 16
        %v682 = vrot.slane %v680, 5
        %v683 = vsel %vm659, %v678, %v682
        %v685 = vshrl.u32 %v612, 16
        %v687 = vrot.slane %v685, 4
        %v688 = vshll.u32 %v612, 16
        %v690 = vrot.slane %v688, 5
        %v691 = vor.u32 %v687, %v690
        %v692 = vrot.slane %v691, 4
        %v694 = vshll.u32 %v613, 16
        %v696 = vrot.slane %v694, 5
        %v697 = vsel %vm659, %v692, %v696
        %v698 = vshrl.u32 %v613, 16
        %v700 = vrot.slane %v698, 4
        %v701 = vor.u32 %v700, %v696
        %v702 = vrot.slane %v701, 4
        %v704 = vshll.u32 %v614, 16
        %v706 = vrot.slane %v704, 5
        %v707 = vsel %vm659, %v702, %v706
        %v709 = vshrl.u32 %v615, 16
        %v711 = vrot.slane %v709, 4
        %v712 = vshll.u32 %v615, 16
        %v714 = vrot.slane %v712, 5
        %v715 = vor.u32 %v711, %v714
        %v716 = vrot.slane %v715, 4
        %v718 = vshll.u32 %v616, 16
        %v720 = vrot.slane %v718, 5
        %v721 = vsel %vm659, %v716, %v720
        %v722 = vshrl.u32 %v616, 16
        %v724 = vrot.slane %v722, 4
        %v725 = vor.u32 %v724, %v720
        %v726 = vrot.slane %v725, 4
        %v728 = vshll.u32 %v617, 16
        %v730 = vrot.slane %v728, 5
        %v731 = vsel %vm659, %v726, %v730
        %v733 = vshrl.u32 %v618, 16
        %v735 = vrot.slane %v733, 4
        %v736 = vshll.u32 %v618, 16
        %v738 = vrot.slane %v736, 5
        %v739 = vor.u32 %v735, %v738
        %v740 = vrot.slane %v739, 4
        %v742 = vshll.u32 %v619, 16
        %v744 = vrot.slane %v742, 5
        %v745 = vsel %vm659, %v740, %v744
        %v746 = vshrl.u32 %v619, 16
        %v748 = vrot.slane %v746, 4
        %v749 = vor.u32 %v748, %v744
        %v750 = vrot.slane %v749, 4
        %v752 = vshll.u32 %v620, 16
        %v754 = vrot.slane %v752, 5
        %v755 = vsel %vm659, %v750, %v754
        %v757 = vshrl.u32 %v621, 16
        %v759 = vrot.slane %v757, 4
        %v760 = vshll.u32 %v621, 16
        %v762 = vrot.slane %v760, 5
        %v763 = vor.u32 %v759, %v762
        %v764 = vrot.slane %v763, 4
        %v766 = vshll.u32 %v622, 16
        %v768 = vrot.slane %v766, 5
        %v769 = vsel %vm659, %v764, %v768
        %v770 = vshrl.u32 %v622, 16
        %v772 = vrot.slane %v770, 4
        %v773 = vor.u32 %v772, %v768
        %v774 = vrot.slane %v773, 4
        %v776 = vshll.u32 %v623, 16
        %v778 = vrot.slane %v776, 5
        %v779 = vsel %vm659, %v774, %v778
        %v781 = vshrl.u32 %v624, 16
        %v783 = vrot.slane %v781, 4
        %v784 = vshll.u32 %v624, 16
        %v786 = vrot.slane %v784, 5
        %v787 = vor.u32 %v783, %v786
        %v788 = vrot.slane %v787, 4
        %v790 = vshll.u32 %v625, 16
        %v792 = vrot.slane %v790, 5
        %v793 = vsel %vm659, %v788, %v792
        %v794 = vshrl.u32 %v625, 16
        %v796 = vrot.slane %v794, 4
        %v797 = vor.u32 %v796, %v792
        %v798 = vrot.slane %v797, 4
        %v800 = vshll.u32 %v626, 16
        %v802 = vrot.slane %v800, 5
        %v803 = vsel %vm659, %v798, %v802
        %v805 = vshrl.u32 %v627, 16
        %v807 = vrot.slane %v805, 4
        %v808 = vshll.u32 %v627, 16
        %v810 = vrot.slane %v808, 5
        %v811 = vor.u32 %v807, %v810
        %v812 = vrot.slane %v811, 4
        %v814 = vshll.u32 %v628, 16
        %v816 = vrot.slane %v814, 5
        %v817 = vsel %vm659, %v812, %v816
        %v818 = vshrl.u32 %v628, 16
        %v820 = vrot.slane %v818, 4
        %v821 = vor.u32 %v820, %v816
        %v822 = vrot.slane %v821, 4
        %v824 = vshll.u32 %v629, 16
        %v826 = vrot.slane %v824, 5
        %v827 = vsel %vm659, %v822, %v826
        %v829 = vshrl.u32 %v630, 16
        %v831 = vrot.slane %v829, 4
        %v832 = vshll.u32 %v630, 16
        %v834 = vrot.slane %v832, 5
        %v835 = vor.u32 %v831, %v834
        %v836 = vrot.slane %v835, 4
        %v838 = vshll.u32 %v631, 16
        %v840 = vrot.slane %v838, 5
        %v841 = vsel %vm659, %v836, %v840
        %v842 = vshrl.u32 %v631, 16
        %v844 = vrot.slane %v842, 4
        %v845 = vor.u32 %v844, %v840
        %v846 = vrot.slane %v845, 4
        %v848 = vshll.u32 %v632, 16
        %v850 = vrot.slane %v848, 5
        %v851 = vsel %vm659, %v846, %v850
        %v853 = vshrl.u32 %v633, 16
        %v855 = vrot.slane %v853, 4
        %v856 = vshll.u32 %v633, 16
        %v858 = vrot.slane %v856, 5
        %v859 = vor.u32 %v855, %v858
        %v860 = vrot.slane %v859, 4
        %v862 = vshll.u32 %v634, 16
        %v864 = vrot.slane %v862, 5
        %v865 = vsel %vm659, %v860, %v864
        %v866 = vshrl.u32 %v634, 16
        %v868 = vrot.slane %v866, 4
        %v869 = vor.u32 %v868, %v864
        %v870 = vrot.slane %v869, 4
        %v872 = vshll.u32 %v635, 16
        %v874 = vrot.slane %v872, 5
        %v875 = vsel %vm659, %v870, %v874
        %v877 = vshrl.u32 %v636, 16
        %v879 = vrot.slane %v877, 4
        %v880 = vshll.u32 %v636, 16
        %v882 = vrot.slane %v880, 5
        %v883 = vor.u32 %v879, %v882
        %v884 = vrot.slane %v883, 4
        %v886 = vshll.u32 %v637, 16
        %v888 = vrot.slane %v886, 5
        %v889 = vsel %vm659, %v884, %v888
        %v890 = vshrl.u32 %v637, 16
        %v892 = vrot.slane %v890, 4
        %v893 = vor.u32 %v892, %v888
        %v894 = vrot.slane %v893, 4
        %v896 = vshll.u32 %v638, 16
        %v898 = vrot.slane %v896, 5
        %v899 = vsel %vm659, %v894, %v898
        %v901 = vshrl.u32 %v639, 16
        %v903 = vrot.slane %v901, 4
        %v904 = vshll.u32 %v639, 16
        %v906 = vrot.slane %v904, 5
        %v907 = vor.u32 %v903, %v906
        %v908 = vrot.slane %v907, 4
        %v910 = vshll.u32 %v640, 16
        %v912 = vrot.slane %v910, 5
        %v913 = vsel %vm659, %v908, %v912
        %v914 = vshrl.u32 %v640, 16
        %v916 = vrot.slane %v914, 4
        %v917 = vor.u32 %v916, %v912
        %v918 = vrot.slane %v917, 4
        %v920 = vshll.u32 %v641, 16
        %v922 = vrot.slane %v920, 5
        %v923 = vsel %vm659, %v918, %v922
        %v925 = vshrl.u32 %v642, 16
        %v927 = vrot.slane %v925, 4
        %v928 = vshll.u32 %v642, 16
        %v930 = vrot.slane %v928, 5
        %v931 = vor.u32 %v927, %v930
        %v932 = vrot.slane %v931, 4
        %v934 = vshll.u32 %v643, 16
        %v936 = vrot.slane %v934, 5
        %v937 = vsel %vm659, %v932, %v936
        %v938 = vshrl.u32 %v643, 16
        %v940 = vrot.slane %v938, 4
        %v941 = vor.u32 %v940, %v936
        %v942 = vrot.slane %v941, 4
        %v944 = vshll.u32 %v644, 16
        %v946 = vrot.slane %v944, 5
        %v947 = vsel %vm659, %v942, %v946
        %v949 = vshrl.u32 %v645, 16
        %v951 = vrot.slane %v949, 4
        %v952 = vshll.u32 %v645, 16
        %v954 = vrot.slane %v952, 5
        %v955 = vor.u32 %v951, %v954
        %v956 = vrot.slane %v955, 4
        %v958 = vshll.u32 %v646, 16
        %v960 = vrot.slane %v958, 5
        %v961 = vsel %vm659, %v956, %v960
        %v962 = vshrl.u32 %v646, 16
        %v964 = vrot.slane %v962, 4
        %v965 = vor.u32 %v964, %v960
        %v966 = vrot.slane %v965, 4
        %v968 = vshll.u32 %v647, 16
        %v970 = vrot.slane %v968, 5
        %v971 = vsel %vm659, %v966, %v970
        %v973 = vshrl.u32 %v648, 16
        %v975 = vrot.slane %v973, 4
        %v976 = vshll.u32 %v648, 16
        %v978 = vrot.slane %v976, 5
        %v979 = vor.u32 %v975, %v978
        %v980 = vrot.slane %v979, 4
        %v982 = vshll.u32 %v649, 16
        %v984 = vrot.slane %v982, 5
        %v985 = vsel %vm659, %v980, %v984
        %v986 = vshrl.u32 %v649, 16
        %v988 = vrot.slane %v986, 4
        %v989 = vor.u32 %v988, %v984
        %v990 = vrot.slane %v989, 4
        %v992 = vshll.u32 %v650, 16
        %v994 = vrot.slane %v992, 5
        %v995 = vsel %vm659, %v990, %v994
        %v997 = vshrl.u32 %v651, 16
        %v999 = vrot.slane %v997, 4
        %v1000 = vshll.u32 %v651, 16
        %v1002 = vrot.slane %v1000, 5
        %v1003 = vor.u32 %v999, %v1002
        %v1004 = vrot.slane %v1003, 4
        %v1006 = vshll.u32 %v652, 16
        %v1008 = vrot.slane %v1006, 5
        %v1009 = vsel %vm659, %v1004, %v1008
        %v1010 = vshrl.u32 %v652, 16
        %v1012 = vrot.slane %v1010, 4
        %v1013 = vor.u32 %v1012, %v1008
        %v1014 = vrot.slane %v1013, 4
        %v1016 = vshll.u32 %v653, 16
        %v1018 = vrot.slane %v1016, 5
        %v1019 = vsel %vm659, %v1014, %v1018
        %v1021 = vshrl.u32 %v654, 16
        %v1023 = vrot.slane %v1021, 4
        %v1024 = vshll.u32 %v654, 16
        %v1026 = vrot.slane %v1024, 5
        %v1027 = vor.u32 %v1023, %v1026
        %v1028 = vrot.slane %v1027, 4
        %v1030 = vshll.u32 %v655, 16
        %v1032 = vrot.slane %v1030, 5
        %v1033 = vsel %vm659, %v1028, %v1032
        %v1034 = vshrl.u32 %v655, 16
        %v1036 = vrot.slane %v1034, 4
        %v1037 = vor.u32 %v1036, %v1032
        %v1038 = vrot.slane %v1037, 4
        %v1040 = vshll.u32 %v656, 16
        %v1042 = vrot.slane %v1040, 5
        %v1043 = vsel %vm659, %v1038, %v1042
        %s1044 = scalar_lea.vmem %s1, 64
        %v1045 = vld [vmem:[%s1044] sm:$0xf]
        %v1046 = vld [vmem:[%s1044 + $0x4] sm:$0xf]
        %v1047 = vld [vmem:[%s1044 + $0x8] sm:$0xf]
        %v1048 = vld [vmem:[%s1044 + $0xc] sm:$0xf]
        %v1049 = vld [vmem:[%s1044 + $0x10] sm:$0xf]
        %v1050 = vld [vmem:[%s1044 + $0x14] sm:$0xf]
        %v1051 = vld [vmem:[%s1044 + $0x18] sm:$0xf]
        %v1052 = vld [vmem:[%s1044 + $0x1c] sm:$0xf]
        %v1053 = vld [vmem:[%s1044 + $0x20] sm:$0xf]
        %v1054 = vld [vmem:[%s1044 + $0x24] sm:$0xf]
        %v1055 = vld [vmem:[%s1044 + $0x28] sm:$0xf]
        %v1056 = vld [vmem:[%s1044 + $0x2c] sm:$0xf]
        %v1057 = vld [vmem:[%s1044 + $0x30] sm:$0xf]
        %v1058 = vld [vmem:[%s1044 + $0x34] sm:$0xf]
        %v1059 = vld [vmem:[%s1044 + $0x38] sm:$0xf]
        %v1060 = vld [vmem:[%s1044 + $0x3c] sm:$0xf]
        %v1061 = vunpack.c.l.b16 %v673
        %v1062 = vunpack.c.l.b16 %v683
        %v1063 = vunpack.c.l.b16 %v697
        %v1064 = vunpack.c.l.b16 %v707
        %v1065 = vunpack.c.l.b16 %v721
        %v1066 = vunpack.c.l.b16 %v731
        %v1067 = vunpack.c.l.b16 %v745
        %v1068 = vunpack.c.l.b16 %v755
        %v1069 = vunpack.c.l.b16 %v769
        %v1070 = vunpack.c.l.b16 %v779
        %v1071 = vunpack.c.l.b16 %v793
        %v1072 = vunpack.c.l.b16 %v803
        %v1073 = vunpack.c.l.b16 %v817
        %v1074 = vunpack.c.l.b16 %v827
        %v1075 = vunpack.c.l.b16 %v841
        %v1076 = vunpack.c.l.b16 %v851
        %v1077 = vunpack.c.l.b16 %v865
        %v1078 = vunpack.c.l.b16 %v875
        %v1079 = vunpack.c.l.b16 %v889
        %v1080 = vunpack.c.l.b16 %v899
        %v1081 = vunpack.c.l.b16 %v913
        %v1082 = vunpack.c.l.b16 %v923
        %v1083 = vunpack.c.l.b16 %v937
        %v1084 = vunpack.c.l.b16 %v947
        %v1085 = vunpack.c.l.b16 %v961
        %v1086 = vunpack.c.l.b16 %v971
        %v1087 = vunpack.c.l.b16 %v985
        %v1088 = vunpack.c.l.b16 %v995
        %v1089 = vunpack.c.l.b16 %v1009
        %v1090 = vunpack.c.l.b16 %v1019
        %v1091 = vunpack.c.l.b16 %v1033
        %v1092 = vunpack.c.l.b16 %v1043
        %v1093 = vpack.c.b16 %v1062, %v1061
        %v1094 = vpack.c.b16 %v1064, %v1063
        %v1095 = vpack.c.b16 %v1066, %v1065
        %v1096 = vpack.c.b16 %v1068, %v1067
        %v1097 = vpack.c.b16 %v1070, %v1069
        %v1098 = vpack.c.b16 %v1072, %v1071
        %v1099 = vpack.c.b16 %v1074, %v1073
        %v1100 = vpack.c.b16 %v1076, %v1075
        %v1101 = vpack.c.b16 %v1078, %v1077
        %v1102 = vpack.c.b16 %v1080, %v1079
        %v1103 = vpack.c.b16 %v1082, %v1081
        %v1104 = vpack.c.b16 %v1084, %v1083
        %v1105 = vpack.c.b16 %v1086, %v1085
        %v1106 = vpack.c.b16 %v1088, %v1087
        %v1107 = vpack.c.b16 %v1090, %v1089
        %v1108 = vpack.c.b16 %v1092, %v1091
        %v1141 = vunpack.c.l.b16 %v1045
        %v1142 = vunpack.c.l.b16 %v1046
        %v1143 = vunpack.c.l.b16 %v1047
        %v1144 = vunpack.c.l.b16 %v1048
        %v1145 = vunpack.c.l.b16 %v1049
        %v1146 = vunpack.c.l.b16 %v1050
        %v1147 = vunpack.c.l.b16 %v1051
        %v1148 = vunpack.c.l.b16 %v1052
        %v1149 = vunpack.c.l.b16 %v1053
        %v1150 = vunpack.c.l.b16 %v1054
        %v1151 = vunpack.c.l.b16 %v1055
        %v1152 = vunpack.c.l.b16 %v1056
        %v1153 = vunpack.c.l.b16 %v1057
        %v1154 = vunpack.c.l.b16 %v1058
        %v1155 = vunpack.c.l.b16 %v1059
        %v1156 = vunpack.c.l.b16 %v1060
        %v1157 = vpack.c.b16 %v1142, %v1141
        %v1158 = vpack.c.b16 %v1144, %v1143
        %v1159 = vpack.c.b16 %v1146, %v1145
        %v1160 = vpack.c.b16 %v1148, %v1147
        %v1161 = vpack.c.b16 %v1150, %v1149
        %v1162 = vpack.c.b16 %v1152, %v1151
        %v1163 = vpack.c.b16 %v1154, %v1153
        %v1164 = vpack.c.b16 %v1156, %v1155
        %1173 = vmatprep.subr.bf16.mxu0 0
        %1174 = vmatpush1.bf16.msra.mxu0 %v1157
        %1175 = vmatprep.subr.bf16.mxu0 0
        %1176 = vmatpush1.bf16.msra.mxu0 %v1158
        %1177 = vmatprep.subr.bf16.mxu0 0
        %1178 = vmatpush1.bf16.msra.mxu0 %v1159
        %1179 = vmatprep.subr.bf16.mxu0 0
        %1180 = vmatpush1.bf16.msra.mxu0 %v1160
        %1181 = vmatprep.subr.bf16.mxu0 0
        %1182 = vmatpush1.bf16.msra.mxu0 %v1161
        %1183 = vmatprep.subr.bf16.mxu0 0
        %1184 = vmatpush1.bf16.msra.mxu0 %v1162
        %1185 = vmatprep.subr.bf16.mxu0 0
        %1186 = vmatpush1.bf16.msra.mxu0 %v1163
        %1187 = vmatprep.subr.bf16.mxu0 0
        %1188 = vmatpush1.bf16.msra.mxu0 %v1164
        %1189 = vmatprep.subr.bf16.mxu0 0
        %1190 = vmatpush1.bf16.msra.mxu0 0
        %1191 = vmatprep.subr.bf16.mxu0 0
        %1192 = vmatpush1.bf16.msra.mxu0 0
        %1193 = vmatprep.subr.bf16.mxu0 0
        %1194 = vmatpush1.bf16.msra.mxu0 0
        %1195 = vmatprep.subr.bf16.mxu0 0
        %1196 = vmatpush1.bf16.msra.mxu0 0
        %1197 = vmatprep.subr.bf16.mxu0 0
        %1198 = vmatpush1.bf16.msra.mxu0 0
        %1199 = vmatprep.subr.bf16.mxu0 0
        %1200 = vmatpush1.bf16.msra.mxu0 0
        %1201 = vmatprep.subr.bf16.mxu0 0
        %1202 = vmatpush1.bf16.msra.mxu0 0
        %1203 = vmatprep.subr.bf16.mxu0 0
        %1204 = vmatpush1.bf16.msra.mxu0 0
        %1205 = vmatprep.mubr.bf16.mxu0 0
        %1206 = vmatmul.mubr.bf16.gmra.mrb[0].mxu0 %v1093
        %v1207 = vpop.f32.mrb[0].mxu0
        %v1208 = vadd.f32 0.0, %v1207
        %v1209 = vpop.f32.mrb[0].mxu0
        %v1210 = vpop.f32.mrb[0].mxu0
        %v1211 = vadd.f32 0.0, %v1210
        %v1212 = vpop.f32.mrb[0].mxu0
        %1213 = vmatprep.mubr.bf16.mxu0 0
        %1214 = vmatmul.mubr.bf16.gmra.mrb[0].mxu0 %v1094
        %v1215 = vpop.f32.mrb[0].mxu0
        %v1216 = vadd.f32 0.0, %v1215
        %v1217 = vpop.f32.mrb[0].mxu0
        %v1218 = vpop.f32.mrb[0].mxu0
        %v1219 = vadd.f32 0.0, %v1218
        %v1220 = vpop.f32.mrb[0].mxu0
        %1221 = vmatprep.mubr.bf16.mxu0 0
        %1222 = vmatmul.mubr.bf16.gmra.mrb[0].mxu0 %v1095
        %v1223 = vpop.f32.mrb[0].mxu0
        %v1224 = vadd.f32 0.0, %v1223
        %v1225 = vpop.f32.mrb[0].mxu0
        %v1226 = vpop.f32.mrb[0].mxu0
        %v1227 = vadd.f32 0.0, %v1226
        %v1228 = vpop.f32.mrb[0].mxu0
        %1229 = vmatprep.mubr.bf16.mxu0 0
        %1230 = vmatmul.mubr.bf16.gmra.mrb[0].mxu0 %v1096
        %v1231 = vpop.f32.mrb[0].mxu0
        %v1232 = vadd.f32 0.0, %v1231
        %v1233 = vpop.f32.mrb[0].mxu0
        %v1234 = vpop.f32.mrb[0].mxu0
        %v1235 = vadd.f32 0.0, %v1234
        %v1236 = vpop.f32.mrb[0].mxu0
        %1237 = vmatprep.mubr.bf16.mxu0 0
        %1238 = vmatmul.mubr.bf16.gmra.mrb[0].mxu0 %v1097
        %v1239 = vpop.f32.mrb[0].mxu0
        %v1240 = vadd.f32 0.0, %v1239
        %v1241 = vpop.f32.mrb[0].mxu0
        %v1242 = vpop.f32.mrb[0].mxu0
        %v1243 = vadd.f32 0.0, %v1242
        %v1244 = vpop.f32.mrb[0].mxu0
        %1245 = vmatprep.mubr.bf16.mxu0 0
        %1246 = vmatmul.mubr.bf16.gmra.mrb[0].mxu0 %v1098
        %v1247 = vpop.f32.mrb[0].mxu0
        %v1248 = vadd.f32 0.0, %v1247
        %v1249 = vpop.f32.mrb[0].mxu0
        %v1250 = vpop.f32.mrb[0].mxu0
        %v1251 = vadd.f32 0.0, %v1250
        %v1252 = vpop.f32.mrb[0].mxu0
        %1253 = vmatprep.mubr.bf16.mxu0 0
        %1254 = vmatmul.mubr.bf16.gmra.mrb[0].mxu0 %v1099
        %v1255 = vpop.f32.mrb[0].mxu0
        %v1256 = vadd.f32 0.0, %v1255
        %v1257 = vpop.f32.mrb[0].mxu0
        %v1258 = vpop.f32.mrb[0].mxu0
        %v1259 = vadd.f32 0.0, %v1258
        %v1260 = vpop.f32.mrb[0].mxu0
        %1261 = vmatprep.mubr.bf16.mxu0 0
        %1262 = vmatmul.mubr.bf16.gmra.mrb[0].mxu0 %v1100
        %v1263 = vpop.f32.mrb[0].mxu0
        %v1264 = vadd.f32 0.0, %v1263
        %v1265 = vpop.f32.mrb[0].mxu0
        %v1266 = vpop.f32.mrb[0].mxu0
        %v1267 = vadd.f32 0.0, %v1266
        %v1268 = vpop.f32.mrb[0].mxu0
        %1269 = vmatprep.mubr.bf16.mxu0 0
        %1270 = vmatmul.mubr.bf16.gmra.mrb[0].mxu0 %v1101
        %v1271 = vpop.f32.mrb[0].mxu0
        %v1272 = vadd.f32 0.0, %v1271
        %v1273 = vpop.f32.mrb[0].mxu0
        %v1274 = vpop.f32.mrb[0].mxu0
        %v1275 = vadd.f32 0.0, %v1274
        %v1276 = vpop.f32.mrb[0].mxu0
        %1277 = vmatprep.mubr.bf16.mxu0 0
        %1278 = vmatmul.mubr.bf16.gmra.mrb[0].mxu0 %v1102
        %v1279 = vpop.f32.mrb[0].mxu0
        %v1280 = vadd.f32 0.0, %v1279
        %v1281 = vpop.f32.mrb[0].mxu0
        %v1282 = vpop.f32.mrb[0].mxu0
        %v1283 = vadd.f32 0.0, %v1282
        %v1284 = vpop.f32.mrb[0].mxu0
        %1285 = vmatprep.mubr.bf16.mxu0 0
        %1286 = vmatmul.mubr.bf16.gmra.mrb[0].mxu0 %v1103
        %v1287 = vpop.f32.mrb[0].mxu0
        %v1288 = vadd.f32 0.0, %v1287
        %v1289 = vpop.f32.mrb[0].mxu0
        %v1290 = vpop.f32.mrb[0].mxu0
        %v1291 = vadd.f32 0.0, %v1290
        %v1292 = vpop.f32.mrb[0].mxu0
        %1293 = vmatprep.mubr.bf16.mxu0 0
        %1294 = vmatmul.mubr.bf16.gmra.mrb[0].mxu0 %v1104
        %v1295 = vpop.f32.mrb[0].mxu0
        %v1296 = vadd.f32 0.0, %v1295
        %v1297 = vpop.f32.mrb[0].mxu0
        %v1298 = vpop.f32.mrb[0].mxu0
        %v1299 = vadd.f32 0.0, %v1298
        %v1300 = vpop.f32.mrb[0].mxu0
        %1301 = vmatprep.mubr.bf16.mxu0 0
        %1302 = vmatmul.mubr.bf16.gmra.mrb[0].mxu0 %v1105
        %v1303 = vpop.f32.mrb[0].mxu0
        %v1304 = vadd.f32 0.0, %v1303
        %v1305 = vpop.f32.mrb[0].mxu0
        %v1306 = vpop.f32.mrb[0].mxu0
        %v1307 = vadd.f32 0.0, %v1306
        %v1308 = vpop.f32.mrb[0].mxu0
        %1309 = vmatprep.mubr.bf16.mxu0 0
        %1310 = vmatmul.mubr.bf16.gmra.mrb[0].mxu0 %v1106
        %v1311 = vpop.f32.mrb[0].mxu0
        %v1312 = vadd.f32 0.0, %v1311
        %v1313 = vpop.f32.mrb[0].mxu0
        %v1314 = vpop.f32.mrb[0].mxu0
        %v1315 = vadd.f32 0.0, %v1314
        %v1316 = vpop.f32.mrb[0].mxu0
        %1317 = vmatprep.mubr.bf16.mxu0 0
        %1318 = vmatmul.mubr.bf16.gmra.mrb[0].mxu0 %v1107
        %v1319 = vpop.f32.mrb[0].mxu0
        %v1320 = vadd.f32 0.0, %v1319
        %v1321 = vpop.f32.mrb[0].mxu0
        %v1322 = vpop.f32.mrb[0].mxu0
        %v1323 = vadd.f32 0.0, %v1322
        %v1324 = vpop.f32.mrb[0].mxu0
        %1325 = vmatprep.mubr.bf16.mxu0 0
        %1326 = vmatmul.mubr.bf16.gmra.mrb[0].mxu0 %v1108
        %v1327 = vpop.f32.mrb[0].mxu0
        %v1328 = vadd.f32 0.0, %v1327
        %v1329 = vpop.f32.mrb[0].mxu0
        %v1330 = vpop.f32.mrb[0].mxu0
        %v1331 = vadd.f32 0.0, %v1330
        %v1332 = vpop.f32.mrb[0].mxu0
        %1333 = vdwg.mxu0
        %v1334 = vld [vmem:[#allocation3] sm:$0xff]
        %v1335 = vld [vmem:[#allocation3 + $0x8] sm:$0xff]
        %v1336 = vld [vmem:[#allocation3 + $0x10] sm:$0xff]
        %v1337 = vld [vmem:[#allocation3 + $0x18] sm:$0xff]
        %v1338 = vld [vmem:[#allocation3 + $0x20] sm:$0xff]
        %v1339 = vld [vmem:[#allocation3 + $0x28] sm:$0xff]
        %v1340 = vld [vmem:[#allocation3 + $0x30] sm:$0xff]
        %v1341 = vld [vmem:[#allocation3 + $0x38] sm:$0xff]
        %v1342 = vld [vmem:[#allocation3 + $0x40] sm:$0xff]
        %v1343 = vld [vmem:[#allocation3 + $0x48] sm:$0xff]
        %v1344 = vld [vmem:[#allocation3 + $0x50] sm:$0xff]
        %v1345 = vld [vmem:[#allocation3 + $0x58] sm:$0xff]
        %v1346 = vld [vmem:[#allocation3 + $0x60] sm:$0xff]
        %v1347 = vld [vmem:[#allocation3 + $0x68] sm:$0xff]
        %v1348 = vld [vmem:[#allocation3 + $0x70] sm:$0xff]
        %v1349 = vld [vmem:[#allocation3 + $0x78] sm:$0xff]
        %v1350 = vld [vmem:[#allocation3 + $0x80] sm:$0xff]
        %v1351 = vld [vmem:[#allocation3 + $0x88] sm:$0xff]
        %v1352 = vld [vmem:[#allocation3 + $0x90] sm:$0xff]
        %v1353 = vld [vmem:[#allocation3 + $0x98] sm:$0xff]
        %v1354 = vld [vmem:[#allocation3 + $0xa0] sm:$0xff]
        %v1355 = vld [vmem:[#allocation3 + $0xa8] sm:$0xff]
        %v1356 = vld [vmem:[#allocation3 + $0xb0] sm:$0xff]
        %v1357 = vld [vmem:[#allocation3 + $0xb8] sm:$0xff]
        %v1358 = vld [vmem:[#allocation3 + $0xc0] sm:$0xff]
        %v1359 = vld [vmem:[#allocation3 + $0xc8] sm:$0xff]
        %v1360 = vld [vmem:[#allocation3 + $0xd0] sm:$0xff]
        %v1361 = vld [vmem:[#allocation3 + $0xd8] sm:$0xff]
        %v1362 = vld [vmem:[#allocation3 + $0xe0] sm:$0xff]
        %v1363 = vld [vmem:[#allocation3 + $0xe8] sm:$0xff]
        %v1364 = vld [vmem:[#allocation3 + $0xf0] sm:$0xff]
        %v1365 = vld [vmem:[#allocation3 + $0xf8] sm:$0xff]
        %v1366 = vadd.f32 %v1334, %v1208
        %v1367 = vadd.f32 %v1335, %v1211
        %v1368 = vadd.f32 %v1336, %v1216
        %v1369 = vadd.f32 %v1337, %v1219
        %v1370 = vadd.f32 %v1338, %v1224
        %v1371 = vadd.f32 %v1339, %v1227
        %v1372 = vadd.f32 %v1340, %v1232
        %v1373 = vadd.f32 %v1341, %v1235
        %v1374 = vadd.f32 %v1342, %v1240
        %v1375 = vadd.f32 %v1343, %v1243
        %v1376 = vadd.f32 %v1344, %v1248
        %v1377 = vadd.f32 %v1345, %v1251
        %v1378 = vadd.f32 %v1346, %v1256
        %v1379 = vadd.f32 %v1347, %v1259
        %v1380 = vadd.f32 %v1348, %v1264
        %v1381 = vadd.f32 %v1349, %v1267
        %v1382 = vadd.f32 %v1350, %v1272
        %v1383 = vadd.f32 %v1351, %v1275
        %v1384 = vadd.f32 %v1352, %v1280
        %v1385 = vadd.f32 %v1353, %v1283
        %v1386 = vadd.f32 %v1354, %v1288
        %v1387 = vadd.f32 %v1355, %v1291
        %v1388 = vadd.f32 %v1356, %v1296
        %v1389 = vadd.f32 %v1357, %v1299
        %v1390 = vadd.f32 %v1358, %v1304
        %v1391 = vadd.f32 %v1359, %v1307
        %v1392 = vadd.f32 %v1360, %v1312
        %v1393 = vadd.f32 %v1361, %v1315
        %v1394 = vadd.f32 %v1362, %v1320
        %v1395 = vadd.f32 %v1363, %v1323
        %v1396 = vadd.f32 %v1364, %v1328
        %v1397 = vadd.f32 %v1365, %v1331
        %1398 = vst [vmem:[#allocation3] sm:$0xff] %v1366
        %1399 = vst [vmem:[#allocation3 + $0x8] sm:$0xff] %v1367
        %1400 = vst [vmem:[#allocation3 + $0x10] sm:$0xff] %v1368
        %1401 = vst [vmem:[#allocation3 + $0x18] sm:$0xff] %v1369
        %1402 = vst [vmem:[#allocation3 + $0x20] sm:$0xff] %v1370
        %1403 = vst [vmem:[#allocation3 + $0x28] sm:$0xff] %v1371
        %1404 = vst [vmem:[#allocation3 + $0x30] sm:$0xff] %v1372
        %1405 = vst [vmem:[#allocation3 + $0x38] sm:$0xff] %v1373
        %1406 = vst [vmem:[#allocation3 + $0x40] sm:$0xff] %v1374
        %1407 = vst [vmem:[#allocation3 + $0x48] sm:$0xff] %v1375
        %1408 = vst [vmem:[#allocation3 + $0x50] sm:$0xff] %v1376
        %1409 = vst [vmem:[#allocation3 + $0x58] sm:$0xff] %v1377
        %1410 = vst [vmem:[#allocation3 + $0x60] sm:$0xff] %v1378
        %1411 = vst [vmem:[#allocation3 + $0x68] sm:$0xff] %v1379
        %1412 = vst [vmem:[#allocation3 + $0x70] sm:$0xff] %v1380
        %1413 = vst [vmem:[#allocation3 + $0x78] sm:$0xff] %v1381
        %1414 = vst [vmem:[#allocation3 + $0x80] sm:$0xff] %v1382
        %1415 = vst [vmem:[#allocation3 + $0x88] sm:$0xff] %v1383
        %1416 = vst [vmem:[#allocation3 + $0x90] sm:$0xff] %v1384
        %1417 = vst [vmem:[#allocation3 + $0x98] sm:$0xff] %v1385
        %1418 = vst [vmem:[#allocation3 + $0xa0] sm:$0xff] %v1386
        %1419 = vst [vmem:[#allocation3 + $0xa8] sm:$0xff] %v1387
        %1420 = vst [vmem:[#allocation3 + $0xb0] sm:$0xff] %v1388
        %1421 = vst [vmem:[#allocation3 + $0xb8] sm:$0xff] %v1389
        %1422 = vst [vmem:[#allocation3 + $0xc0] sm:$0xff] %v1390
        %1423 = vst [vmem:[#allocation3 + $0xc8] sm:$0xff] %v1391
        %1424 = vst [vmem:[#allocation3 + $0xd0] sm:$0xff] %v1392
        %1425 = vst [vmem:[#allocation3 + $0xd8] sm:$0xff] %v1393
        %1426 = vst [vmem:[#allocation3 + $0xe0] sm:$0xff] %v1394
        %1427 = vst [vmem:[#allocation3 + $0xe8] sm:$0xff] %v1395
        %1428 = vst [vmem:[#allocation3 + $0xf0] sm:$0xff] %v1396
        %1429 = vst [vmem:[#allocation3 + $0xf8] sm:$0xff] %v1397
        %v1430 = vld [vmem:[%s222] sm:$0xe]
        %v1431 = vld [vmem:[%s222 + $0x4] sm:$0xf]
        %v1432 = vld [vmem:[%s222 + $0x8] sm:$0x1]
        %v1433 = vld [vmem:[%s222 + $0xc] sm:$0xe]
        %v1434 = vld [vmem:[%s222 + $0x10] sm:$0xf]
        %v1435 = vld [vmem:[%s222 + $0x14] sm:$0x1]
        %v1436 = vld [vmem:[%s222 + $0x18] sm:$0xe]
        %v1437 = vld [vmem:[%s222 + $0x1c] sm:$0xf]
        %v1438 = vld [vmem:[%s222 + $0x20] sm:$0x1]
        %v1439 = vld [vmem:[%s222 + $0x24] sm:$0xe]
        %v1440 = vld [vmem:[%s222 + $0x28] sm:$0xf]
        %v1441 = vld [vmem:[%s222 + $0x2c] sm:$0x1]
        %v1442 = vld [vmem:[%s222 + $0x30] sm:$0xe]
        %v1443 = vld [vmem:[%s222 + $0x34] sm:$0xf]
        %v1444 = vld [vmem:[%s222 + $0x38] sm:$0x1]
        %v1445 = vld [vmem:[%s222 + $0x3c] sm:$0xe]
        %v1446 = vld [vmem:[%s222 + $0x40] sm:$0xf]
        %v1447 = vld [vmem:[%s222 + $0x44] sm:$0x1]
        %v1448 = vld [vmem:[%s222 + $0x48] sm:$0xe]
        %v1449 = vld [vmem:[%s222 + $0x4c] sm:$0xf]
        %v1450 = vld [vmem:[%s222 + $0x50] sm:$0x1]
        %v1451 = vld [vmem:[%s222 + $0x54] sm:$0xe]
        %v1452 = vld [vmem:[%s222 + $0x58] sm:$0xf]
        %v1453 = vld [vmem:[%s222 + $0x5c] sm:$0x1]
        %v1454 = vld [vmem:[%s222 + $0x60] sm:$0xe]
        %v1455 = vld [vmem:[%s222 + $0x64] sm:$0xf]
        %v1456 = vld [vmem:[%s222 + $0x68] sm:$0x1]
        %v1457 = vld [vmem:[%s222 + $0x6c] sm:$0xe]
        %v1458 = vld [vmem:[%s222 + $0x70] sm:$0xf]
        %v1459 = vld [vmem:[%s222 + $0x74] sm:$0x1]
        %v1460 = vld [vmem:[%s222 + $0x78] sm:$0xe]
        %v1461 = vld [vmem:[%s222 + $0x7c] sm:$0xf]
        %v1462 = vld [vmem:[%s222 + $0x80] sm:$0x1]
        %v1463 = vld [vmem:[%s222 + $0x84] sm:$0xe]
        %v1464 = vld [vmem:[%s222 + $0x88] sm:$0xf]
        %v1465 = vld [vmem:[%s222 + $0x8c] sm:$0x1]
        %v1466 = vld [vmem:[%s222 + $0x90] sm:$0xe]
        %v1467 = vld [vmem:[%s222 + $0x94] sm:$0xf]
        %v1468 = vld [vmem:[%s222 + $0x98] sm:$0x1]
        %v1469 = vld [vmem:[%s222 + $0x9c] sm:$0xe]
        %v1470 = vld [vmem:[%s222 + $0xa0] sm:$0xf]
        %v1471 = vld [vmem:[%s222 + $0xa4] sm:$0x1]
        %v1472 = vld [vmem:[%s222 + $0xa8] sm:$0xe]
        %v1473 = vld [vmem:[%s222 + $0xac] sm:$0xf]
        %v1474 = vld [vmem:[%s222 + $0xb0] sm:$0x1]
        %v1475 = vld [vmem:[%s222 + $0xb4] sm:$0xe]
        %v1476 = vld [vmem:[%s222 + $0xb8] sm:$0xf]
        %v1477 = vld [vmem:[%s222 + $0xbc] sm:$0x1]
        %vm1526 = vcmask 1042432
        %vm1527 = vcmask 1046532
        %vm1528 = vmor %vm1526, %vm1527
        %v1529 = vrot.slane %v1430, 5
        %v1530 = vrot.slane %v1529, 4
        %v1531 = vrot.slane %v1431, 5
        %v1532 = vsel %vm1528, %v1530, %v1531
        %v1533 = vrot.slane %v1531, 4
        %v1534 = vrot.slane %v1432, 5
        %v1535 = vsel %vm1528, %v1533, %v1534
        %v1536 = vrot.slane %v1433, 5
        %v1537 = vrot.slane %v1536, 4
        %v1538 = vrot.slane %v1434, 5
        %v1539 = vsel %vm1528, %v1537, %v1538
        %v1540 = vrot.slane %v1538, 4
        %v1541 = vrot.slane %v1435, 5
        %v1542 = vsel %vm1528, %v1540, %v1541
        %v1543 = vrot.slane %v1436, 5
        %v1544 = vrot.slane %v1543, 4
        %v1545 = vrot.slane %v1437, 5
        %v1546 = vsel %vm1528, %v1544, %v1545
        %v1547 = vrot.slane %v1545, 4
        %v1548 = vrot.slane %v1438, 5
        %v1549 = vsel %vm1528, %v1547, %v1548
        %v1550 = vrot.slane %v1439, 5
        %v1551 = vrot.slane %v1550, 4
        %v1552 = vrot.slane %v1440, 5
        %v1553 = vsel %vm1528, %v1551, %v1552
        %v1554 = vrot.slane %v1552, 4
        %v1555 = vrot.slane %v1441, 5
        %v1556 = vsel %vm1528, %v1554, %v1555
        %v1557 = vrot.slane %v1442, 5
        %v1558 = vrot.slane %v1557, 4
        %v1559 = vrot.slane %v1443, 5
        %v1560 = vsel %vm1528, %v1558, %v1559
        %v1561 = vrot.slane %v1559, 4
        %v1562 = vrot.slane %v1444, 5
        %v1563 = vsel %vm1528, %v1561, %v1562
        %v1564 = vrot.slane %v1445, 5
        %v1565 = vrot.slane %v1564, 4
        %v1566 = vrot.slane %v1446, 5
        %v1567 = vsel %vm1528, %v1565, %v1566
        %v1568 = vrot.slane %v1566, 4
        %v1569 = vrot.slane %v1447, 5
        %v1570 = vsel %vm1528, %v1568, %v1569
        %v1571 = vrot.slane %v1448, 5
        %v1572 = vrot.slane %v1571, 4
        %v1573 = vrot.slane %v1449, 5
        %v1574 = vsel %vm1528, %v1572, %v1573
        %v1575 = vrot.slane %v1573, 4
        %v1576 = vrot.slane %v1450, 5
        %v1577 = vsel %vm1528, %v1575, %v1576
        %v1578 = vrot.slane %v1451, 5
        %v1579 = vrot.slane %v1578, 4
        %v1580 = vrot.slane %v1452, 5
        %v1581 = vsel %vm1528, %v1579, %v1580
        %v1582 = vrot.slane %v1580, 4
        %v1583 = vrot.slane %v1453, 5
        %v1584 = vsel %vm1528, %v1582, %v1583
        %v1585 = vrot.slane %v1454, 5
        %v1586 = vrot.slane %v1585, 4
        %v1587 = vrot.slane %v1455, 5
        %v1588 = vsel %vm1528, %v1586, %v1587
        %v1589 = vrot.slane %v1587, 4
        %v1590 = vrot.slane %v1456, 5
        %v1591 = vsel %vm1528, %v1589, %v1590
        %v1592 = vrot.slane %v1457, 5
        %v1593 = vrot.slane %v1592, 4
        %v1594 = vrot.slane %v1458, 5
        %v1595 = vsel %vm1528, %v1593, %v1594
        %v1596 = vrot.slane %v1594, 4
        %v1597 = vrot.slane %v1459, 5
        %v1598 = vsel %vm1528, %v1596, %v1597
        %v1599 = vrot.slane %v1460, 5
        %v1600 = vrot.slane %v1599, 4
        %v1601 = vrot.slane %v1461, 5
        %v1602 = vsel %vm1528, %v1600, %v1601
        %v1603 = vrot.slane %v1601, 4
        %v1604 = vrot.slane %v1462, 5
        %v1605 = vsel %vm1528, %v1603, %v1604
        %v1606 = vrot.slane %v1463, 5
        %v1607 = vrot.slane %v1606, 4
        %v1608 = vrot.slane %v1464, 5
        %v1609 = vsel %vm1528, %v1607, %v1608
        %v1610 = vrot.slane %v1608, 4
        %v1611 = vrot.slane %v1465, 5
        %v1612 = vsel %vm1528, %v1610, %v1611
        %v1613 = vrot.slane %v1466, 5
        %v1614 = vrot.slane %v1613, 4
        %v1615 = vrot.slane %v1467, 5
        %v1616 = vsel %vm1528, %v1614, %v1615
        %v1617 = vrot.slane %v1615, 4
        %v1618 = vrot.slane %v1468, 5
        %v1619 = vsel %vm1528, %v1617, %v1618
        %v1620 = vrot.slane %v1469, 5
        %v1621 = vrot.slane %v1620, 4
        %v1622 = vrot.slane %v1470, 5
        %v1623 = vsel %vm1528, %v1621, %v1622
        %v1624 = vrot.slane %v1622, 4
        %v1625 = vrot.slane %v1471, 5
        %v1626 = vsel %vm1528, %v1624, %v1625
        %v1627 = vrot.slane %v1472, 5
        %v1628 = vrot.slane %v1627, 4
        %v1629 = vrot.slane %v1473, 5
        %v1630 = vsel %vm1528, %v1628, %v1629
        %v1631 = vrot.slane %v1629, 4
        %v1632 = vrot.slane %v1474, 5
        %v1633 = vsel %vm1528, %v1631, %v1632
        %v1634 = vrot.slane %v1475, 5
        %v1635 = vrot.slane %v1634, 4
        %v1636 = vrot.slane %v1476, 5
        %v1637 = vsel %vm1528, %v1635, %v1636
        %v1638 = vrot.slane %v1636, 4
        %v1639 = vrot.slane %v1477, 5
        %v1640 = vsel %vm1528, %v1638, %v1639
        %s1641 = scalar_lea.vmem %s1, 128
        %v1642 = vld [vmem:[%s1641] sm:$0xf]
        %v1643 = vld [vmem:[%s1641 + $0x4] sm:$0xf]
        %v1644 = vld [vmem:[%s1641 + $0x8] sm:$0xf]
        %v1645 = vld [vmem:[%s1641 + $0xc] sm:$0xf]
        %v1646 = vld [vmem:[%s1641 + $0x10] sm:$0xf]
        %v1647 = vld [vmem:[%s1641 + $0x14] sm:$0xf]
        %v1648 = vld [vmem:[%s1641 + $0x18] sm:$0xf]
        %v1649 = vld [vmem:[%s1641 + $0x1c] sm:$0xf]
        %v1650 = vld [vmem:[%s1641 + $0x20] sm:$0xf]
        %v1651 = vld [vmem:[%s1641 + $0x24] sm:$0xf]
        %v1652 = vld [vmem:[%s1641 + $0x28] sm:$0xf]
        %v1653 = vld [vmem:[%s1641 + $0x2c] sm:$0xf]
        %v1654 = vld [vmem:[%s1641 + $0x30] sm:$0xf]
        %v1655 = vld [vmem:[%s1641 + $0x34] sm:$0xf]
        %v1656 = vld [vmem:[%s1641 + $0x38] sm:$0xf]
        %v1657 = vld [vmem:[%s1641 + $0x3c] sm:$0xf]
        %v1658 = vunpack.c.l.b16 %v1532
        %v1659 = vunpack.c.l.b16 %v1535
        %v1660 = vunpack.c.l.b16 %v1539
        %v1661 = vunpack.c.l.b16 %v1542
        %v1662 = vunpack.c.l.b16 %v1546
        %v1663 = vunpack.c.l.b16 %v1549
        %v1664 = vunpack.c.l.b16 %v1553
        %v1665 = vunpack.c.l.b16 %v1556
        %v1666 = vunpack.c.l.b16 %v1560
        %v1667 = vunpack.c.l.b16 %v1563
        %v1668 = vunpack.c.l.b16 %v1567
        %v1669 = vunpack.c.l.b16 %v1570
        %v1670 = vunpack.c.l.b16 %v1574
        %v1671 = vunpack.c.l.b16 %v1577
        %v1672 = vunpack.c.l.b16 %v1581
        %v1673 = vunpack.c.l.b16 %v1584
        %v1674 = vunpack.c.l.b16 %v1588
        %v1675 = vunpack.c.l.b16 %v1591
        %v1676 = vunpack.c.l.b16 %v1595
        %v1677 = vunpack.c.l.b16 %v1598
        %v1678 = vunpack.c.l.b16 %v1602
        %v1679 = vunpack.c.l.b16 %v1605
        %v1680 = vunpack.c.l.b16 %v1609
        %v1681 = vunpack.c.l.b16 %v1612
        %v1682 = vunpack.c.l.b16 %v1616
        %v1683 = vunpack.c.l.b16 %v1619
        %v1684 = vunpack.c.l.b16 %v1623
        %v1685 = vunpack.c.l.b16 %v1626
        %v1686 = vunpack.c.l.b16 %v1630
        %v1687 = vunpack.c.l.b16 %v1633
        %v1688 = vunpack.c.l.b16 %v1637
        %v1689 = vunpack.c.l.b16 %v1640
        %v1690 = vpack.c.b16 %v1659, %v1658
        %v1691 = vpack.c.b16 %v1661, %v1660
        %v1692 = vpack.c.b16 %v1663, %v1662
        %v1693 = vpack.c.b16 %v1665, %v1664
        %v1694 = vpack.c.b16 %v1667, %v1666
        %v1695 = vpack.c.b16 %v1669, %v1668
        %v1696 = vpack.c.b16 %v1671, %v1670
        %v1697 = vpack.c.b16 %v1673, %v1672
        %v1698 = vpack.c.b16 %v1675, %v1674
        %v1699 = vpack.c.b16 %v1677, %v1676
        %v1700 = vpack.c.b16 %v1679, %v1678
        %v1701 = vpack.c.b16 %v1681, %v1680
        %v1702 = vpack.c.b16 %v1683, %v1682
        %v1703 = vpack.c.b16 %v1685, %v1684
        %v1704 = vpack.c.b16 %v1687, %v1686
        %v1705 = vpack.c.b16 %v1689, %v1688
        %v1738 = vunpack.c.l.b16 %v1642
        %v1739 = vunpack.c.l.b16 %v1643
        %v1740 = vunpack.c.l.b16 %v1644
        %v1741 = vunpack.c.l.b16 %v1645
        %v1742 = vunpack.c.l.b16 %v1646
        %v1743 = vunpack.c.l.b16 %v1647
        %v1744 = vunpack.c.l.b16 %v1648
        %v1745 = vunpack.c.l.b16 %v1649
        %v1746 = vunpack.c.l.b16 %v1650
        %v1747 = vunpack.c.l.b16 %v1651
        %v1748 = vunpack.c.l.b16 %v1652
        %v1749 = vunpack.c.l.b16 %v1653
        %v1750 = vunpack.c.l.b16 %v1654
        %v1751 = vunpack.c.l.b16 %v1655
        %v1752 = vunpack.c.l.b16 %v1656
        %v1753 = vunpack.c.l.b16 %v1657
        %v1754 = vpack.c.b16 %v1739, %v1738
        %v1755 = vpack.c.b16 %v1741, %v1740
        %v1756 = vpack.c.b16 %v1743, %v1742
        %v1757 = vpack.c.b16 %v1745, %v1744
        %v1758 = vpack.c.b16 %v1747, %v1746
        %v1759 = vpack.c.b16 %v1749, %v1748
        %v1760 = vpack.c.b16 %v1751, %v1750
        %v1761 = vpack.c.b16 %v1753, %v1752
        %1770 = vmatprep.subr.bf16.mxu0 0
        %1771 = vmatpush1.bf16.msra.mxu0 %v1754
        %1772 = vmatprep.subr.bf16.mxu0 0
        %1773 = vmatpush1.bf16.msra.mxu0 %v1755
        %1774 = vmatprep.subr.bf16.mxu0 0
        %1775 = vmatpush1.bf16.msra.mxu0 %v1756
        %1776 = vmatprep.subr.bf16.mxu0 0
        %1777 = vmatpush1.bf16.msra.mxu0 %v1757
        %1778 = vmatprep.subr.bf16.mxu0 0
        %1779 = vmatpush1.bf16.msra.mxu0 %v1758
        %1780 = vmatprep.subr.bf16.mxu0 0
        %1781 = vmatpush1.bf16.msra.mxu0 %v1759
        %1782 = vmatprep.subr.bf16.mxu0 0
        %1783 = vmatpush1.bf16.msra.mxu0 %v1760
        %1784 = vmatprep.subr.bf16.mxu0 0
        %1785 = vmatpush1.bf16.msra.mxu0 %v1761
        %1786 = vmatprep.subr.bf16.mxu0 0
        %1787 = vmatpush1.bf16.msra.mxu0 0
        %1788 = vmatprep.subr.bf16.mxu0 0
        %1789 = vmatpush1.bf16.msra.mxu0 0
        %1790 = vmatprep.subr.bf16.mxu0 0
        %1791 = vmatpush1.bf16.msra.mxu0 0
        %1792 = vmatprep.subr.bf16.mxu0 0
        %1793 = vmatpush1.bf16.msra.mxu0 0
        %1794 = vmatprep.subr.bf16.mxu0 0
        %1795 = vmatpush1.bf16.msra.mxu0 0
        %1796 = vmatprep.subr.bf16.mxu0 0
        %1797 = vmatpush1.bf16.msra.mxu0 0
        %1798 = vmatprep.subr.bf16.mxu0 0
        %1799 = vmatpush1.bf16.msra.mxu0 0
        %1800 = vmatprep.subr.bf16.mxu0 0
        %1801 = vmatpush1.bf16.msra.mxu0 0
        %1802 = vmatprep.mubr.bf16.mxu0 0
        %1803 = vmatmul.mubr.bf16.gmra.mrb[0].mxu0 %v1690
        %v1804 = vpop.f32.mrb[0].mxu0
        %v1805 = vadd.f32 0.0, %v1804
        %v1806 = vpop.f32.mrb[0].mxu0
        %v1807 = vpop.f32.mrb[0].mxu0
        %v1808 = vadd.f32 0.0, %v1807
        %v1809 = vpop.f32.mrb[0].mxu0
        %1810 = vmatprep.mubr.bf16.mxu0 0
        %1811 = vmatmul.mubr.bf16.gmra.mrb[0].mxu0 %v1691
        %v1812 = vpop.f32.mrb[0].mxu0
        %v1813 = vadd.f32 0.0, %v1812
        %v1814 = vpop.f32.mrb[0].mxu0
        %v1815 = vpop.f32.mrb[0].mxu0
        %v1816 = vadd.f32 0.0, %v1815
        %v1817 = vpop.f32.mrb[0].mxu0
        %1818 = vmatprep.mubr.bf16.mxu0 0
        %1819 = vmatmul.mubr.bf16.gmra.mrb[0].mxu0 %v1692
        %v1820 = vpop.f32.mrb[0].mxu0
        %v1821 = vadd.f32 0.0, %v1820
        %v1822 = vpop.f32.mrb[0].mxu0
        %v1823 = vpop.f32.mrb[0].mxu0
        %v1824 = vadd.f32 0.0, %v1823
        %v1825 = vpop.f32.mrb[0].mxu0
        %1826 = vmatprep.mubr.bf16.mxu0 0
        %1827 = vmatmul.mubr.bf16.gmra.mrb[0].mxu0 %v1693
        %v1828 = vpop.f32.mrb[0].mxu0
        %v1829 = vadd.f32 0.0, %v1828
        %v1830 = vpop.f32.mrb[0].mxu0
        %v1831 = vpop.f32.mrb[0].mxu0
        %v1832 = vadd.f32 0.0, %v1831
        %v1833 = vpop.f32.mrb[0].mxu0
        %1834 = vmatprep.mubr.bf16.mxu0 0
        %1835 = vmatmul.mubr.bf16.gmra.mrb[0].mxu0 %v1694
        %v1836 = vpop.f32.mrb[0].mxu0
        %v1837 = vadd.f32 0.0, %v1836
        %v1838 = vpop.f32.mrb[0].mxu0
        %v1839 = vpop.f32.mrb[0].mxu0
        %v1840 = vadd.f32 0.0, %v1839
        %v1841 = vpop.f32.mrb[0].mxu0
        %1842 = vmatprep.mubr.bf16.mxu0 0
        %1843 = vmatmul.mubr.bf16.gmra.mrb[0].mxu0 %v1695
        %v1844 = vpop.f32.mrb[0].mxu0
        %v1845 = vadd.f32 0.0, %v1844
        %v1846 = vpop.f32.mrb[0].mxu0
        %v1847 = vpop.f32.mrb[0].mxu0
        %v1848 = vadd.f32 0.0, %v1847
        %v1849 = vpop.f32.mrb[0].mxu0
        %1850 = vmatprep.mubr.bf16.mxu0 0
        %1851 = vmatmul.mubr.bf16.gmra.mrb[0].mxu0 %v1696
        %v1852 = vpop.f32.mrb[0].mxu0
        %v1853 = vadd.f32 0.0, %v1852
        %v1854 = vpop.f32.mrb[0].mxu0
        %v1855 = vpop.f32.mrb[0].mxu0
        %v1856 = vadd.f32 0.0, %v1855
        %v1857 = vpop.f32.mrb[0].mxu0
        %1858 = vmatprep.mubr.bf16.mxu0 0
        %1859 = vmatmul.mubr.bf16.gmra.mrb[0].mxu0 %v1697
        %v1860 = vpop.f32.mrb[0].mxu0
        %v1861 = vadd.f32 0.0, %v1860
        %v1862 = vpop.f32.mrb[0].mxu0
        %v1863 = vpop.f32.mrb[0].mxu0
        %v1864 = vadd.f32 0.0, %v1863
        %v1865 = vpop.f32.mrb[0].mxu0
        %1866 = vmatprep.mubr.bf16.mxu0 0
        %1867 = vmatmul.mubr.bf16.gmra.mrb[0].mxu0 %v1698
        %v1868 = vpop.f32.mrb[0].mxu0
        %v1869 = vadd.f32 0.0, %v1868
        %v1870 = vpop.f32.mrb[0].mxu0
        %v1871 = vpop.f32.mrb[0].mxu0
        %v1872 = vadd.f32 0.0, %v1871
        %v1873 = vpop.f32.mrb[0].mxu0
        %1874 = vmatprep.mubr.bf16.mxu0 0
        %1875 = vmatmul.mubr.bf16.gmra.mrb[0].mxu0 %v1699
        %v1876 = vpop.f32.mrb[0].mxu0
        %v1877 = vadd.f32 0.0, %v1876
        %v1878 = vpop.f32.mrb[0].mxu0
        %v1879 = vpop.f32.mrb[0].mxu0
        %v1880 = vadd.f32 0.0, %v1879
        %v1881 = vpop.f32.mrb[0].mxu0
        %1882 = vmatprep.mubr.bf16.mxu0 0
        %1883 = vmatmul.mubr.bf16.gmra.mrb[0].mxu0 %v1700
        %v1884 = vpop.f32.mrb[0].mxu0
        %v1885 = vadd.f32 0.0, %v1884
        %v1886 = vpop.f32.mrb[0].mxu0
        %v1887 = vpop.f32.mrb[0].mxu0
        %v1888 = vadd.f32 0.0, %v1887
        %v1889 = vpop.f32.mrb[0].mxu0
        %1890 = vmatprep.mubr.bf16.mxu0 0
        %1891 = vmatmul.mubr.bf16.gmra.mrb[0].mxu0 %v1701
        %v1892 = vpop.f32.mrb[0].mxu0
        %v1893 = vadd.f32 0.0, %v1892
        %v1894 = vpop.f32.mrb[0].mxu0
        %v1895 = vpop.f32.mrb[0].mxu0
        %v1896 = vadd.f32 0.0, %v1895
        %v1897 = vpop.f32.mrb[0].mxu0
        %1898 = vmatprep.mubr.bf16.mxu0 0
        %1899 = vmatmul.mubr.bf16.gmra.mrb[0].mxu0 %v1702
        %v1900 = vpop.f32.mrb[0].mxu0
        %v1901 = vadd.f32 0.0, %v1900
        %v1902 = vpop.f32.mrb[0].mxu0
        %v1903 = vpop.f32.mrb[0].mxu0
        %v1904 = vadd.f32 0.0, %v1903
        %v1905 = vpop.f32.mrb[0].mxu0
        %1906 = vmatprep.mubr.bf16.mxu0 0
        %1907 = vmatmul.mubr.bf16.gmra.mrb[0].mxu0 %v1703
        %v1908 = vpop.f32.mrb[0].mxu0
        %v1909 = vadd.f32 0.0, %v1908
        %v1910 = vpop.f32.mrb[0].mxu0
        %v1911 = vpop.f32.mrb[0].mxu0
        %v1912 = vadd.f32 0.0, %v1911
        %v1913 = vpop.f32.mrb[0].mxu0
        %1914 = vmatprep.mubr.bf16.mxu0 0
        %1915 = vmatmul.mubr.bf16.gmra.mrb[0].mxu0 %v1704
        %v1916 = vpop.f32.mrb[0].mxu0
        %v1917 = vadd.f32 0.0, %v1916
        %v1918 = vpop.f32.mrb[0].mxu0
        %v1919 = vpop.f32.mrb[0].mxu0
        %v1920 = vadd.f32 0.0, %v1919
        %v1921 = vpop.f32.mrb[0].mxu0
        %1922 = vmatprep.mubr.bf16.mxu0 0
        %1923 = vmatmul.mubr.bf16.gmra.mrb[0].mxu0 %v1705
        %v1924 = vpop.f32.mrb[0].mxu0
        %v1925 = vadd.f32 0.0, %v1924
        %v1926 = vpop.f32.mrb[0].mxu0
        %v1927 = vpop.f32.mrb[0].mxu0
        %v1928 = vadd.f32 0.0, %v1927
        %v1929 = vpop.f32.mrb[0].mxu0
        %1930 = vdwg.mxu0
        %v1931 = vld [vmem:[#allocation3] sm:$0xff]
        %v1932 = vld [vmem:[#allocation3 + $0x8] sm:$0xff]
        %v1933 = vld [vmem:[#allocation3 + $0x10] sm:$0xff]
        %v1934 = vld [vmem:[#allocation3 + $0x18] sm:$0xff]
        %v1935 = vld [vmem:[#allocation3 + $0x20] sm:$0xff]
        %v1936 = vld [vmem:[#allocation3 + $0x28] sm:$0xff]
        %v1937 = vld [vmem:[#allocation3 + $0x30] sm:$0xff]
        %v1938 = vld [vmem:[#allocation3 + $0x38] sm:$0xff]
        %v1939 = vld [vmem:[#allocation3 + $0x40] sm:$0xff]
        %v1940 = vld [vmem:[#allocation3 + $0x48] sm:$0xff]
        %v1941 = vld [vmem:[#allocation3 + $0x50] sm:$0xff]
        %v1942 = vld [vmem:[#allocation3 + $0x58] sm:$0xff]
        %v1943 = vld [vmem:[#allocation3 + $0x60] sm:$0xff]
        %v1944 = vld [vmem:[#allocation3 + $0x68] sm:$0xff]
        %v1945 = vld [vmem:[#allocation3 + $0x70] sm:$0xff]
        %v1946 = vld [vmem:[#allocation3 + $0x78] sm:$0xff]
        %v1947 = vld [vmem:[#allocation3 + $0x80] sm:$0xff]
        %v1948 = vld [vmem:[#allocation3 + $0x88] sm:$0xff]
        %v1949 = vld [vmem:[#allocation3 + $0x90] sm:$0xff]
        %v1950 = vld [vmem:[#allocation3 + $0x98] sm:$0xff]
        %v1951 = vld [vmem:[#allocation3 + $0xa0] sm:$0xff]
        %v1952 = vld [vmem:[#allocation3 + $0xa8] sm:$0xff]
        %v1953 = vld [vmem:[#allocation3 + $0xb0] sm:$0xff]
        %v1954 = vld [vmem:[#allocation3 + $0xb8] sm:$0xff]
        %v1955 = vld [vmem:[#allocation3 + $0xc0] sm:$0xff]
        %v1956 = vld [vmem:[#allocation3 + $0xc8] sm:$0xff]
        %v1957 = vld [vmem:[#allocation3 + $0xd0] sm:$0xff]
        %v1958 = vld [vmem:[#allocation3 + $0xd8] sm:$0xff]
        %v1959 = vld [vmem:[#allocation3 + $0xe0] sm:$0xff]
        %v1960 = vld [vmem:[#allocation3 + $0xe8] sm:$0xff]
        %v1961 = vld [vmem:[#allocation3 + $0xf0] sm:$0xff]
        %v1962 = vld [vmem:[#allocation3 + $0xf8] sm:$0xff]
        %v1963 = vadd.f32 %v1931, %v1805
        %v1964 = vadd.f32 %v1932, %v1808
        %v1965 = vadd.f32 %v1933, %v1813
        %v1966 = vadd.f32 %v1934, %v1816
        %v1967 = vadd.f32 %v1935, %v1821
        %v1968 = vadd.f32 %v1936, %v1824
        %v1969 = vadd.f32 %v1937, %v1829
        %v1970 = vadd.f32 %v1938, %v1832
        %v1971 = vadd.f32 %v1939, %v1837
        %v1972 = vadd.f32 %v1940, %v1840
        %v1973 = vadd.f32 %v1941, %v1845
        %v1974 = vadd.f32 %v1942, %v1848
        %v1975 = vadd.f32 %v1943, %v1853
        %v1976 = vadd.f32 %v1944, %v1856
        %v1977 = vadd.f32 %v1945, %v1861
        %v1978 = vadd.f32 %v1946, %v1864
        %v1979 = vadd.f32 %v1947, %v1869
        %v1980 = vadd.f32 %v1948, %v1872
        %v1981 = vadd.f32 %v1949, %v1877
        %v1982 = vadd.f32 %v1950, %v1880
        %v1983 = vadd.f32 %v1951, %v1885
        %v1984 = vadd.f32 %v1952, %v1888
        %v1985 = vadd.f32 %v1953, %v1893
        %v1986 = vadd.f32 %v1954, %v1896
        %v1987 = vadd.f32 %v1955, %v1901
        %v1988 = vadd.f32 %v1956, %v1904
        %v1989 = vadd.f32 %v1957, %v1909
        %v1990 = vadd.f32 %v1958, %v1912
        %v1991 = vadd.f32 %v1959, %v1917
        %v1992 = vadd.f32 %v1960, %v1920
        %v1993 = vadd.f32 %v1961, %v1925
        %v1994 = vadd.f32 %v1962, %v1928
        %1995 = vst [vmem:[#allocation3] sm:$0xff] %v1963
        %1996 = vst [vmem:[#allocation3 + $0x8] sm:$0xff] %v1964
        %1997 = vst [vmem:[#allocation3 + $0x10] sm:$0xff] %v1965
        %1998 = vst [vmem:[#allocation3 + $0x18] sm:$0xff] %v1966
        %1999 = vst [vmem:[#allocation3 + $0x20] sm:$0xff] %v1967
        %2000 = vst [vmem:[#allocation3 + $0x28] sm:$0xff] %v1968
        %2001 = vst [vmem:[#allocation3 + $0x30] sm:$0xff] %v1969
        %2002 = vst [vmem:[#allocation3 + $0x38] sm:$0xff] %v1970
        %2003 = vst [vmem:[#allocation3 + $0x40] sm:$0xff] %v1971
        %2004 = vst [vmem:[#allocation3 + $0x48] sm:$0xff] %v1972
        %2005 = vst [vmem:[#allocation3 + $0x50] sm:$0xff] %v1973
        %2006 = vst [vmem:[#allocation3 + $0x58] sm:$0xff] %v1974
        %2007 = vst [vmem:[#allocation3 + $0x60] sm:$0xff] %v1975
        %2008 = vst [vmem:[#allocation3 + $0x68] sm:$0xff] %v1976
        %2009 = vst [vmem:[#allocation3 + $0x70] sm:$0xff] %v1977
        %2010 = vst [vmem:[#allocation3 + $0x78] sm:$0xff] %v1978
        %2011 = vst [vmem:[#allocation3 + $0x80] sm:$0xff] %v1979
        %2012 = vst [vmem:[#allocation3 + $0x88] sm:$0xff] %v1980
        %2013 = vst [vmem:[#allocation3 + $0x90] sm:$0xff] %v1981
        %2014 = vst [vmem:[#allocation3 + $0x98] sm:$0xff] %v1982
        %2015 = vst [vmem:[#allocation3 + $0xa0] sm:$0xff] %v1983
        %2016 = vst [vmem:[#allocation3 + $0xa8] sm:$0xff] %v1984
        %2017 = vst [vmem:[#allocation3 + $0xb0] sm:$0xff] %v1985
        %2018 = vst [vmem:[#allocation3 + $0xb8] sm:$0xff] %v1986
        %2019 = vst [vmem:[#allocation3 + $0xc0] sm:$0xff] %v1987
        %2020 = vst [vmem:[#allocation3 + $0xc8] sm:$0xff] %v1988
        %2021 = vst [vmem:[#allocation3 + $0xd0] sm:$0xff] %v1989
        %2022 = vst [vmem:[#allocation3 + $0xd8] sm:$0xff] %v1990
        %2023 = vst [vmem:[#allocation3 + $0xe0] sm:$0xff] %v1991
        %2024 = vst [vmem:[#allocation3 + $0xe8] sm:$0xff] %v1992
        %2025 = vst [vmem:[#allocation3 + $0xf0] sm:$0xff] %v1993
        %2026 = vst [vmem:[#allocation3 + $0xf8] sm:$0xff] %v1994
        %s2027 = scalar_lea.vmem %s222, 12
        %v2028 = vld [vmem:[%s2027] sm:$0xf]
        %v2029 = vld [vmem:[%s2027 + $0x4] sm:$0xf]
        %v2030 = vld [vmem:[%s2027 + $0xc] sm:$0xf]
        %v2031 = vld [vmem:[%s2027 + $0x10] sm:$0xf]
        %v2032 = vld [vmem:[%s2027 + $0x18] sm:$0xf]
        %v2033 = vld [vmem:[%s2027 + $0x1c] sm:$0xf]
        %v2034 = vld [vmem:[%s2027 + $0x24] sm:$0xf]
        %v2035 = vld [vmem:[%s2027 + $0x28] sm:$0xf]
        %v2036 = vld [vmem:[%s2027 + $0x30] sm:$0xf]
        %v2037 = vld [vmem:[%s2027 + $0x34] sm:$0xf]
        %v2038 = vld [vmem:[%s2027 + $0x3c] sm:$0xf]
        %v2039 = vld [vmem:[%s2027 + $0x40] sm:$0xf]
        %v2040 = vld [vmem:[%s2027 + $0x48] sm:$0xf]
        %v2041 = vld [vmem:[%s2027 + $0x4c] sm:$0xf]
        %v2042 = vld [vmem:[%s2027 + $0x54] sm:$0xf]
        %v2043 = vld [vmem:[%s2027 + $0x58] sm:$0xf]
        %v2044 = vld [vmem:[%s2027 + $0x60] sm:$0xf]
        %v2045 = vld [vmem:[%s2027 + $0x64] sm:$0xf]
        %v2046 = vld [vmem:[%s2027 + $0x6c] sm:$0xf]
        %v2047 = vld [vmem:[%s2027 + $0x70] sm:$0xf]
        %v2048 = vld [vmem:[%s2027 + $0x78] sm:$0xf]
        %v2049 = vld [vmem:[%s2027 + $0x7c] sm:$0xf]
        %v2050 = vld [vmem:[%s2027 + $0x84] sm:$0xf]
        %v2051 = vld [vmem:[%s2027 + $0x88] sm:$0xf]
        %v2052 = vld [vmem:[%s2027 + $0x90] sm:$0xf]
        %v2053 = vld [vmem:[%s2027 + $0x94] sm:$0xf]
        %v2054 = vld [vmem:[%s2027 + $0x9c] sm:$0xf]
        %v2055 = vld [vmem:[%s2027 + $0xa0] sm:$0xf]
        %v2056 = vld [vmem:[%s2027 + $0xa8] sm:$0xf]
        %v2057 = vld [vmem:[%s2027 + $0xac] sm:$0xf]
        %v2058 = vld [vmem:[%s2027 + $0xb4] sm:$0xf]
        %v2059 = vld [vmem:[%s2027 + $0xb8] sm:$0xf]
        %s2060 = scalar_lea.vmem %s1, 192
        %v2061 = vld [vmem:[%s2060] sm:$0xf]
        %v2062 = vld [vmem:[%s2060 + $0x4] sm:$0xf]
        %v2063 = vld [vmem:[%s2060 + $0x8] sm:$0xf]
        %v2064 = vld [vmem:[%s2060 + $0xc] sm:$0xf]
        %v2065 = vld [vmem:[%s2060 + $0x10] sm:$0xf]
        %v2066 = vld [vmem:[%s2060 + $0x14] sm:$0xf]
        %v2067 = vld [vmem:[%s2060 + $0x18] sm:$0xf]
        %v2068 = vld [vmem:[%s2060 + $0x1c] sm:$0xf]
        %v2069 = vld [vmem:[%s2060 + $0x20] sm:$0xf]
        %v2070 = vld [vmem:[%s2060 + $0x24] sm:$0xf]
        %v2071 = vld [vmem:[%s2060 + $0x28] sm:$0xf]
        %v2072 = vld [vmem:[%s2060 + $0x2c] sm:$0xf]
        %v2073 = vld [vmem:[%s2060 + $0x30] sm:$0xf]
        %v2074 = vld [vmem:[%s2060 + $0x34] sm:$0xf]
        %v2075 = vld [vmem:[%s2060 + $0x38] sm:$0xf]
        %v2076 = vld [vmem:[%s2060 + $0x3c] sm:$0xf]
        %v2109 = vunpack.c.l.b16 %v2028
        %v2110 = vunpack.c.l.b16 %v2029
        %v2111 = vunpack.c.l.b16 %v2030
        %v2112 = vunpack.c.l.b16 %v2031
        %v2113 = vunpack.c.l.b16 %v2032
        %v2114 = vunpack.c.l.b16 %v2033
        %v2115 = vunpack.c.l.b16 %v2034
        %v2116 = vunpack.c.l.b16 %v2035
        %v2117 = vunpack.c.l.b16 %v2036
        %v2118 = vunpack.c.l.b16 %v2037
        %v2119 = vunpack.c.l.b16 %v2038
        %v2120 = vunpack.c.l.b16 %v2039
        %v2121 = vunpack.c.l.b16 %v2040
        %v2122 = vunpack.c.l.b16 %v2041
        %v2123 = vunpack.c.l.b16 %v2042
        %v2124 = vunpack.c.l.b16 %v2043
        %v2125 = vunpack.c.l.b16 %v2044
        %v2126 = vunpack.c.l.b16 %v2045
        %v2127 = vunpack.c.l.b16 %v2046
        %v2128 = vunpack.c.l.b16 %v2047
        %v2129 = vunpack.c.l.b16 %v2048
        %v2130 = vunpack.c.l.b16 %v2049
        %v2131 = vunpack.c.l.b16 %v2050
        %v2132 = vunpack.c.l.b16 %v2051
        %v2133 = vunpack.c.l.b16 %v2052
        %v2134 = vunpack.c.l.b16 %v2053
        %v2135 = vunpack.c.l.b16 %v2054
        %v2136 = vunpack.c.l.b16 %v2055
        %v2137 = vunpack.c.l.b16 %v2056
        %v2138 = vunpack.c.l.b16 %v2057
        %v2139 = vunpack.c.l.b16 %v2058
        %v2140 = vunpack.c.l.b16 %v2059
        %v2141 = vpack.c.b16 %v2110, %v2109
        %v2142 = vpack.c.b16 %v2112, %v2111
        %v2143 = vpack.c.b16 %v2114, %v2113
        %v2144 = vpack.c.b16 %v2116, %v2115
        %v2145 = vpack.c.b16 %v2118, %v2117
        %v2146 = vpack.c.b16 %v2120, %v2119
        %v2147 = vpack.c.b16 %v2122, %v2121
        %v2148 = vpack.c.b16 %v2124, %v2123
        %v2149 = vpack.c.b16 %v2126, %v2125
        %v2150 = vpack.c.b16 %v2128, %v2127
        %v2151 = vpack.c.b16 %v2130, %v2129
        %v2152 = vpack.c.b16 %v2132, %v2131
        %v2153 = vpack.c.b16 %v2134, %v2133
        %v2154 = vpack.c.b16 %v2136, %v2135
        %v2155 = vpack.c.b16 %v2138, %v2137
        %v2156 = vpack.c.b16 %v2140, %v2139
        %v2189 = vunpack.c.l.b16 %v2061
        %v2190 = vunpack.c.l.b16 %v2062
        %v2191 = vunpack.c.l.b16 %v2063
        %v2192 = vunpack.c.l.b16 %v2064
        %v2193 = vunpack.c.l.b16 %v2065
        %v2194 = vunpack.c.l.b16 %v2066
        %v2195 = vunpack.c.l.b16 %v2067
        %v2196 = vunpack.c.l.b16 %v2068
        %v2197 = vunpack.c.l.b16 %v2069
        %v2198 = vunpack.c.l.b16 %v2070
        %v2199 = vunpack.c.l.b16 %v2071
        %v2200 = vunpack.c.l.b16 %v2072
        %v2201 = vunpack.c.l.b16 %v2073
        %v2202 = vunpack.c.l.b16 %v2074
        %v2203 = vunpack.c.l.b16 %v2075
        %v2204 = vunpack.c.l.b16 %v2076
        %v2205 = vpack.c.b16 %v2190, %v2189
        %v2206 = vpack.c.b16 %v2192, %v2191
        %v2207 = vpack.c.b16 %v2194, %v2193
        %v2208 = vpack.c.b16 %v2196, %v2195
        %v2209 = vpack.c.b16 %v2198, %v2197
        %v2210 = vpack.c.b16 %v2200, %v2199
        %v2211 = vpack.c.b16 %v2202, %v2201
        %v2212 = vpack.c.b16 %v2204, %v2203
        %2221 = vmatprep.subr.bf16.mxu0 0
        %2222 = vmatpush1.bf16.msra.mxu0 %v2205
        %2223 = vmatprep.subr.bf16.mxu0 0
        %2224 = vmatpush1.bf16.msra.mxu0 %v2206
        %2225 = vmatprep.subr.bf16.mxu0 0
        %2226 = vmatpush1.bf16.msra.mxu0 %v2207
        %2227 = vmatprep.subr.bf16.mxu0 0
        %2228 = vmatpush1.bf16.msra.mxu0 %v2208
        %2229 = vmatprep.subr.bf16.mxu0 0
        %2230 = vmatpush1.bf16.msra.mxu0 %v2209
        %2231 = vmatprep.subr.bf16.mxu0 0
        %2232 = vmatpush1.bf16.msra.mxu0 %v2210
        %2233 = vmatprep.subr.bf16.mxu0 0
        %2234 = vmatpush1.bf16.msra.mxu0 %v2211
        %2235 = vmatprep.subr.bf16.mxu0 0
        %2236 = vmatpush1.bf16.msra.mxu0 %v2212
        %2237 = vmatprep.subr.bf16.mxu0 0
        %2238 = vmatpush1.bf16.msra.mxu0 0
        %2239 = vmatprep.subr.bf16.mxu0 0
        %2240 = vmatpush1.bf16.msra.mxu0 0
        %2241 = vmatprep.subr.bf16.mxu0 0
        %2242 = vmatpush1.bf16.msra.mxu0 0
        %2243 = vmatprep.subr.bf16.mxu0 0
        %2244 = vmatpush1.bf16.msra.mxu0 0
        %2245 = vmatprep.subr.bf16.mxu0 0
        %2246 = vmatpush1.bf16.msra.mxu0 0
        %2247 = vmatprep.subr.bf16.mxu0 0
        %2248 = vmatpush1.bf16.msra.mxu0 0
        %2249 = vmatprep.subr.bf16.mxu0 0
        %2250 = vmatpush1.bf16.msra.mxu0 0
        %2251 = vmatprep.subr.bf16.mxu0 0
        %2252 = vmatpush1.bf16.msra.mxu0 0
        %2253 = vmatprep.mubr.bf16.mxu0 0
        %2254 = vmatmul.mubr.bf16.gmra.mrb[0].mxu0 %v2141
        %v2255 = vpop.f32.mrb[0].mxu0
        %v2256 = vadd.f32 0.0, %v2255
        %v2257 = vpop.f32.mrb[0].mxu0
        %v2258 = vpop.f32.mrb[0].mxu0
        %v2259 = vadd.f32 0.0, %v2258
        %v2260 = vpop.f32.mrb[0].mxu0
        %2261 = vmatprep.mubr.bf16.mxu0 0
        %2262 = vmatmul.mubr.bf16.gmra.mrb[0].mxu0 %v2142
        %v2263 = vpop.f32.mrb[0].mxu0
        %v2264 = vadd.f32 0.0, %v2263
        %v2265 = vpop.f32.mrb[0].mxu0
        %v2266 = vpop.f32.mrb[0].mxu0
        %v2267 = vadd.f32 0.0, %v2266
        %v2268 = vpop.f32.mrb[0].mxu0
        %2269 = vmatprep.mubr.bf16.mxu0 0
        %2270 = vmatmul.mubr.bf16.gmra.mrb[0].mxu0 %v2143
        %v2271 = vpop.f32.mrb[0].mxu0
        %v2272 = vadd.f32 0.0, %v2271
        %v2273 = vpop.f32.mrb[0].mxu0
        %v2274 = vpop.f32.mrb[0].mxu0
        %v2275 = vadd.f32 0.0, %v2274
        %v2276 = vpop.f32.mrb[0].mxu0
        %2277 = vmatprep.mubr.bf16.mxu0 0
        %2278 = vmatmul.mubr.bf16.gmra.mrb[0].mxu0 %v2144
        %v2279 = vpop.f32.mrb[0].mxu0
        %v2280 = vadd.f32 0.0, %v2279
        %v2281 = vpop.f32.mrb[0].mxu0
        %v2282 = vpop.f32.mrb[0].mxu0
        %v2283 = vadd.f32 0.0, %v2282
        %v2284 = vpop.f32.mrb[0].mxu0
        %2285 = vmatprep.mubr.bf16.mxu0 0
        %2286 = vmatmul.mubr.bf16.gmra.mrb[0].mxu0 %v2145
        %v2287 = vpop.f32.mrb[0].mxu0
        %v2288 = vadd.f32 0.0, %v2287
        %v2289 = vpop.f32.mrb[0].mxu0
        %v2290 = vpop.f32.mrb[0].mxu0
        %v2291 = vadd.f32 0.0, %v2290
        %v2292 = vpop.f32.mrb[0].mxu0
        %2293 = vmatprep.mubr.bf16.mxu0 0
        %2294 = vmatmul.mubr.bf16.gmra.mrb[0].mxu0 %v2146
        %v2295 = vpop.f32.mrb[0].mxu0
        %v2296 = vadd.f32 0.0, %v2295
        %v2297 = vpop.f32.mrb[0].mxu0
        %v2298 = vpop.f32.mrb[0].mxu0
        %v2299 = vadd.f32 0.0, %v2298
        %v2300 = vpop.f32.mrb[0].mxu0
        %2301 = vmatprep.mubr.bf16.mxu0 0
        %2302 = vmatmul.mubr.bf16.gmra.mrb[0].mxu0 %v2147
        %v2303 = vpop.f32.mrb[0].mxu0
        %v2304 = vadd.f32 0.0, %v2303
        %v2305 = vpop.f32.mrb[0].mxu0
        %v2306 = vpop.f32.mrb[0].mxu0
        %v2307 = vadd.f32 0.0, %v2306
        %v2308 = vpop.f32.mrb[0].mxu0
        %2309 = vmatprep.mubr.bf16.mxu0 0
        %2310 = vmatmul.mubr.bf16.gmra.mrb[0].mxu0 %v2148
        %v2311 = vpop.f32.mrb[0].mxu0
        %v2312 = vadd.f32 0.0, %v2311
        %v2313 = vpop.f32.mrb[0].mxu0
        %v2314 = vpop.f32.mrb[0].mxu0
        %v2315 = vadd.f32 0.0, %v2314
        %v2316 = vpop.f32.mrb[0].mxu0
        %2317 = vmatprep.mubr.bf16.mxu0 0
        %2318 = vmatmul.mubr.bf16.gmra.mrb[0].mxu0 %v2149
        %v2319 = vpop.f32.mrb[0].mxu0
        %v2320 = vadd.f32 0.0, %v2319
        %v2321 = vpop.f32.mrb[0].mxu0
        %v2322 = vpop.f32.mrb[0].mxu0
        %v2323 = vadd.f32 0.0, %v2322
        %v2324 = vpop.f32.mrb[0].mxu0
        %2325 = vmatprep.mubr.bf16.mxu0 0
        %2326 = vmatmul.mubr.bf16.gmra.mrb[0].mxu0 %v2150
        %v2327 = vpop.f32.mrb[0].mxu0
        %v2328 = vadd.f32 0.0, %v2327
        %v2329 = vpop.f32.mrb[0].mxu0
        %v2330 = vpop.f32.mrb[0].mxu0
        %v2331 = vadd.f32 0.0, %v2330
        %v2332 = vpop.f32.mrb[0].mxu0
        %2333 = vmatprep.mubr.bf16.mxu0 0
        %2334 = vmatmul.mubr.bf16.gmra.mrb[0].mxu0 %v2151
        %v2335 = vpop.f32.mrb[0].mxu0
        %v2336 = vadd.f32 0.0, %v2335
        %v2337 = vpop.f32.mrb[0].mxu0
        %v2338 = vpop.f32.mrb[0].mxu0
        %v2339 = vadd.f32 0.0, %v2338
        %v2340 = vpop.f32.mrb[0].mxu0
        %2341 = vmatprep.mubr.bf16.mxu0 0
        %2342 = vmatmul.mubr.bf16.gmra.mrb[0].mxu0 %v2152
        %v2343 = vpop.f32.mrb[0].mxu0
        %v2344 = vadd.f32 0.0, %v2343
        %v2345 = vpop.f32.mrb[0].mxu0
        %v2346 = vpop.f32.mrb[0].mxu0
        %v2347 = vadd.f32 0.0, %v2346
        %v2348 = vpop.f32.mrb[0].mxu0
        %2349 = vmatprep.mubr.bf16.mxu0 0
        %2350 = vmatmul.mubr.bf16.gmra.mrb[0].mxu0 %v2153
        %v2351 = vpop.f32.mrb[0].mxu0
        %v2352 = vadd.f32 0.0, %v2351
        %v2353 = vpop.f32.mrb[0].mxu0
        %v2354 = vpop.f32.mrb[0].mxu0
        %v2355 = vadd.f32 0.0, %v2354
        %v2356 = vpop.f32.mrb[0].mxu0
        %2357 = vmatprep.mubr.bf16.mxu0 0
        %2358 = vmatmul.mubr.bf16.gmra.mrb[0].mxu0 %v2154
        %v2359 = vpop.f32.mrb[0].mxu0
        %v2360 = vadd.f32 0.0, %v2359
        %v2361 = vpop.f32.mrb[0].mxu0
        %v2362 = vpop.f32.mrb[0].mxu0
        %v2363 = vadd.f32 0.0, %v2362
        %v2364 = vpop.f32.mrb[0].mxu0
        %2365 = vmatprep.mubr.bf16.mxu0 0
        %2366 = vmatmul.mubr.bf16.gmra.mrb[0].mxu0 %v2155
        %v2367 = vpop.f32.mrb[0].mxu0
        %v2368 = vadd.f32 0.0, %v2367
        %v2369 = vpop.f32.mrb[0].mxu0
        %v2370 = vpop.f32.mrb[0].mxu0
        %v2371 = vadd.f32 0.0, %v2370
        %v2372 = vpop.f32.mrb[0].mxu0
        %2373 = vmatprep.mubr.bf16.mxu0 0
        %2374 = vmatmul.mubr.bf16.gmra.mrb[0].mxu0 %v2156
        %v2375 = vpop.f32.mrb[0].mxu0
        %v2376 = vadd.f32 0.0, %v2375
        %v2377 = vpop.f32.mrb[0].mxu0
        %v2378 = vpop.f32.mrb[0].mxu0
        %v2379 = vadd.f32 0.0, %v2378
        %v2380 = vpop.f32.mrb[0].mxu0
        %2381 = vdwg.mxu0
        %v2382 = vld [vmem:[#allocation3] sm:$0xff]
        %v2383 = vld [vmem:[#allocation3 + $0x8] sm:$0xff]
        %v2384 = vld [vmem:[#allocation3 + $0x10] sm:$0xff]
        %v2385 = vld [vmem:[#allocation3 + $0x18] sm:$0xff]
        %v2386 = vld [vmem:[#allocation3 + $0x20] sm:$0xff]
        %v2387 = vld [vmem:[#allocation3 + $0x28] sm:$0xff]
        %v2388 = vld [vmem:[#allocation3 + $0x30] sm:$0xff]
        %v2389 = vld [vmem:[#allocation3 + $0x38] sm:$0xff]
        %v2390 = vld [vmem:[#allocation3 + $0x40] sm:$0xff]
        %v2391 = vld [vmem:[#allocation3 + $0x48] sm:$0xff]
        %v2392 = vld [vmem:[#allocation3 + $0x50] sm:$0xff]
        %v2393 = vld [vmem:[#allocation3 + $0x58] sm:$0xff]
        %v2394 = vld [vmem:[#allocation3 + $0x60] sm:$0xff]
        %v2395 = vld [vmem:[#allocation3 + $0x68] sm:$0xff]
        %v2396 = vld [vmem:[#allocation3 + $0x70] sm:$0xff]
        %v2397 = vld [vmem:[#allocation3 + $0x78] sm:$0xff]
        %v2398 = vld [vmem:[#allocation3 + $0x80] sm:$0xff]
        %v2399 = vld [vmem:[#allocation3 + $0x88] sm:$0xff]
        %v2400 = vld [vmem:[#allocation3 + $0x90] sm:$0xff]
        %v2401 = vld [vmem:[#allocation3 + $0x98] sm:$0xff]
        %v2402 = vld [vmem:[#allocation3 + $0xa0] sm:$0xff]
        %v2403 = vld [vmem:[#allocation3 + $0xa8] sm:$0xff]
        %v2404 = vld [vmem:[#allocation3 + $0xb0] sm:$0xff]
        %v2405 = vld [vmem:[#allocation3 + $0xb8] sm:$0xff]
        %v2406 = vld [vmem:[#allocation3 + $0xc0] sm:$0xff]
        %v2407 = vld [vmem:[#allocation3 + $0xc8] sm:$0xff]
        %v2408 = vld [vmem:[#allocation3 + $0xd0] sm:$0xff]
        %v2409 = vld [vmem:[#allocation3 + $0xd8] sm:$0xff]
        %v2410 = vld [vmem:[#allocation3 + $0xe0] sm:$0xff]
        %v2411 = vld [vmem:[#allocation3 + $0xe8] sm:$0xff]
        %v2412 = vld [vmem:[#allocation3 + $0xf0] sm:$0xff]
        %v2413 = vld [vmem:[#allocation3 + $0xf8] sm:$0xff]
        %v2414 = vadd.f32 %v2382, %v2256
        %v2415 = vadd.f32 %v2383, %v2259
        %v2416 = vadd.f32 %v2384, %v2264
        %v2417 = vadd.f32 %v2385, %v2267
        %v2418 = vadd.f32 %v2386, %v2272
        %v2419 = vadd.f32 %v2387, %v2275
        %v2420 = vadd.f32 %v2388, %v2280
        %v2421 = vadd.f32 %v2389, %v2283
        %v2422 = vadd.f32 %v2390, %v2288
        %v2423 = vadd.f32 %v2391, %v2291
        %v2424 = vadd.f32 %v2392, %v2296
        %v2425 = vadd.f32 %v2393, %v2299
        %v2426 = vadd.f32 %v2394, %v2304
        %v2427 = vadd.f32 %v2395, %v2307
        %v2428 = vadd.f32 %v2396, %v2312
        %v2429 = vadd.f32 %v2397, %v2315
        %v2430 = vadd.f32 %v2398, %v2320
        %v2431 = vadd.f32 %v2399, %v2323
        %v2432 = vadd.f32 %v2400, %v2328
        %v2433 = vadd.f32 %v2401, %v2331
        %v2434 = vadd.f32 %v2402, %v2336
        %v2435 = vadd.f32 %v2403, %v2339
        %v2436 = vadd.f32 %v2404, %v2344
        %v2437 = vadd.f32 %v2405, %v2347
        %v2438 = vadd.f32 %v2406, %v2352
        %v2439 = vadd.f32 %v2407, %v2355
        %v2440 = vadd.f32 %v2408, %v2360
        %v2441 = vadd.f32 %v2409, %v2363
        %v2442 = vadd.f32 %v2410, %v2368
        %v2443 = vadd.f32 %v2411, %v2371
        %v2444 = vadd.f32 %v2412, %v2376
        %v2445 = vadd.f32 %v2413, %v2379
        %2446 = vst [vmem:[#allocation3] sm:$0xff] %v2414
        %2447 = vst [vmem:[#allocation3 + $0x8] sm:$0xff] %v2415
        %2448 = vst [vmem:[#allocation3 + $0x10] sm:$0xff] %v2416
        %2449 = vst [vmem:[#allocation3 + $0x18] sm:$0xff] %v2417
        %2450 = vst [vmem:[#allocation3 + $0x20] sm:$0xff] %v2418
        %2451 = vst [vmem:[#allocation3 + $0x28] sm:$0xff] %v2419
        %2452 = vst [vmem:[#allocation3 + $0x30] sm:$0xff] %v2420
        %2453 = vst [vmem:[#allocation3 + $0x38] sm:$0xff] %v2421
        %2454 = vst [vmem:[#allocation3 + $0x40] sm:$0xff] %v2422
        %2455 = vst [vmem:[#allocation3 + $0x48] sm:$0xff] %v2423
        %2456 = vst [vmem:[#allocation3 + $0x50] sm:$0xff] %v2424
        %2457 = vst [vmem:[#allocation3 + $0x58] sm:$0xff] %v2425
        %2458 = vst [vmem:[#allocation3 + $0x60] sm:$0xff] %v2426
        %2459 = vst [vmem:[#allocation3 + $0x68] sm:$0xff] %v2427
        %2460 = vst [vmem:[#allocation3 + $0x70] sm:$0xff] %v2428
        %2461 = vst [vmem:[#allocation3 + $0x78] sm:$0xff] %v2429
        %2462 = vst [vmem:[#allocation3 + $0x80] sm:$0xff] %v2430
        %2463 = vst [vmem:[#allocation3 + $0x88] sm:$0xff] %v2431
        %2464 = vst [vmem:[#allocation3 + $0x90] sm:$0xff] %v2432
        %2465 = vst [vmem:[#allocation3 + $0x98] sm:$0xff] %v2433
        %2466 = vst [vmem:[#allocation3 + $0xa0] sm:$0xff] %v2434
        %2467 = vst [vmem:[#allocation3 + $0xa8] sm:$0xff] %v2435
        %2468 = vst [vmem:[#allocation3 + $0xb0] sm:$0xff] %v2436
        %2469 = vst [vmem:[#allocation3 + $0xb8] sm:$0xff] %v2437
        %2470 = vst [vmem:[#allocation3 + $0xc0] sm:$0xff] %v2438
        %2471 = vst [vmem:[#allocation3 + $0xc8] sm:$0xff] %v2439
        %2472 = vst [vmem:[#allocation3 + $0xd0] sm:$0xff] %v2440
        %2473 = vst [vmem:[#allocation3 + $0xd8] sm:$0xff] %v2441
        %2474 = vst [vmem:[#allocation3 + $0xe0] sm:$0xff] %v2442
        %2475 = vst [vmem:[#allocation3 + $0xe8] sm:$0xff] %v2443
        %2476 = vst [vmem:[#allocation3 + $0xf0] sm:$0xff] %v2444
        %2477 = vst [vmem:[#allocation3 + $0xf8] sm:$0xff] %v2445
        %v2478 = vld [vmem:[%s2027] sm:$0xf]
        %v2479 = vld [vmem:[%s2027 + $0x4] sm:$0xf]
        %v2480 = vld [vmem:[%s2027 + $0x8] sm:$0x1]
        %v2481 = vld [vmem:[%s2027 + $0xc] sm:$0xf]
        %v2482 = vld [vmem:[%s2027 + $0x10] sm:$0xf]
        %v2483 = vld [vmem:[%s2027 + $0x14] sm:$0x1]
        %v2484 = vld [vmem:[%s2027 + $0x18] sm:$0xf]
        %v2485 = vld [vmem:[%s2027 + $0x1c] sm:$0xf]
        %v2486 = vld [vmem:[%s2027 + $0x20] sm:$0x1]
        %v2487 = vld [vmem:[%s2027 + $0x24] sm:$0xf]
        %v2488 = vld [vmem:[%s2027 + $0x28] sm:$0xf]
        %v2489 = vld [vmem:[%s2027 + $0x2c] sm:$0x1]
        %v2490 = vld [vmem:[%s2027 + $0x30] sm:$0xf]
        %v2491 = vld [vmem:[%s2027 + $0x34] sm:$0xf]
        %v2492 = vld [vmem:[%s2027 + $0x38] sm:$0x1]
        %v2493 = vld [vmem:[%s2027 + $0x3c] sm:$0xf]
        %v2494 = vld [vmem:[%s2027 + $0x40] sm:$0xf]
        %v2495 = vld [vmem:[%s2027 + $0x44] sm:$0x1]
        %v2496 = vld [vmem:[%s2027 + $0x48] sm:$0xf]
        %v2497 = vld [vmem:[%s2027 + $0x4c] sm:$0xf]
        %v2498 = vld [vmem:[%s2027 + $0x50] sm:$0x1]
        %v2499 = vld [vmem:[%s2027 + $0x54] sm:$0xf]
        %v2500 = vld [vmem:[%s2027 + $0x58] sm:$0xf]
        %v2501 = vld [vmem:[%s2027 + $0x5c] sm:$0x1]
        %v2502 = vld [vmem:[%s2027 + $0x60] sm:$0xf]
        %v2503 = vld [vmem:[%s2027 + $0x64] sm:$0xf]
        %v2504 = vld [vmem:[%s2027 + $0x68] sm:$0x1]
        %v2505 = vld [vmem:[%s2027 + $0x6c] sm:$0xf]
        %v2506 = vld [vmem:[%s2027 + $0x70] sm:$0xf]
        %v2507 = vld [vmem:[%s2027 + $0x74] sm:$0x1]
        %v2508 = vld [vmem:[%s2027 + $0x78] sm:$0xf]
        %v2509 = vld [vmem:[%s2027 + $0x7c] sm:$0xf]
        %v2510 = vld [vmem:[%s2027 + $0x80] sm:$0x1]
        %v2511 = vld [vmem:[%s2027 + $0x84] sm:$0xf]
        %v2512 = vld [vmem:[%s2027 + $0x88] sm:$0xf]
        %v2513 = vld [vmem:[%s2027 + $0x8c] sm:$0x1]
        %v2514 = vld [vmem:[%s2027 + $0x90] sm:$0xf]
        %v2515 = vld [vmem:[%s2027 + $0x94] sm:$0xf]
        %v2516 = vld [vmem:[%s2027 + $0x98] sm:$0x1]
        %v2517 = vld [vmem:[%s2027 + $0x9c] sm:$0xf]
        %v2518 = vld [vmem:[%s2027 + $0xa0] sm:$0xf]
        %v2519 = vld [vmem:[%s2027 + $0xa4] sm:$0x1]
        %v2520 = vld [vmem:[%s2027 + $0xa8] sm:$0xf]
        %v2521 = vld [vmem:[%s2027 + $0xac] sm:$0xf]
        %v2522 = vld [vmem:[%s2027 + $0xb0] sm:$0x1]
        %v2523 = vld [vmem:[%s2027 + $0xb4] sm:$0xf]
        %v2524 = vld [vmem:[%s2027 + $0xb8] sm:$0xf]
        %v2525 = vld [vmem:[%s2027 + $0xbc] sm:$0x1]
        %v2527 = vshrl.u32 %v2478, 16
        %v2529 = vrot.slane %v2527, 4
        %v2530 = vshll.u32 %v2478, 16
        %v2532 = vrot.slane %v2530, 5
        %v2533 = vor.u32 %v2529, %v2532
        %v2534 = vrot.slane %v2533, 4
        %v2536 = vshll.u32 %v2479, 16
        %v2538 = vrot.slane %v2536, 5
        %v2539 = vsel %vm659, %v2534, %v2538
        %v2540 = vshrl.u32 %v2479, 16
        %v2542 = vrot.slane %v2540, 4
        %v2543 = vor.u32 %v2542, %v2538
        %v2544 = vrot.slane %v2543, 4
        %v2546 = vshll.u32 %v2480, 16
        %v2548 = vrot.slane %v2546, 5
        %v2549 = vsel %vm659, %v2544, %v2548
        %v2551 = vshrl.u32 %v2481, 16
        %v2553 = vrot.slane %v2551, 4
        %v2554 = vshll.u32 %v2481, 16
        %v2556 = vrot.slane %v2554, 5
        %v2557 = vor.u32 %v2553, %v2556
        %v2558 = vrot.slane %v2557, 4
        %v2560 = vshll.u32 %v2482, 16
        %v2562 = vrot.slane %v2560, 5
        %v2563 = vsel %vm659, %v2558, %v2562
        %v2564 = vshrl.u32 %v2482, 16
        %v2566 = vrot.slane %v2564, 4
        %v2567 = vor.u32 %v2566, %v2562
        %v2568 = vrot.slane %v2567, 4
        %v2570 = vshll.u32 %v2483, 16
        %v2572 = vrot.slane %v2570, 5
        %v2573 = vsel %vm659, %v2568, %v2572
        %v2575 = vshrl.u32 %v2484, 16
        %v2577 = vrot.slane %v2575, 4
        %v2578 = vshll.u32 %v2484, 16
        %v2580 = vrot.slane %v2578, 5
        %v2581 = vor.u32 %v2577, %v2580
        %v2582 = vrot.slane %v2581, 4
        %v2584 = vshll.u32 %v2485, 16
        %v2586 = vrot.slane %v2584, 5
        %v2587 = vsel %vm659, %v2582, %v2586
        %v2588 = vshrl.u32 %v2485, 16
        %v2590 = vrot.slane %v2588, 4
        %v2591 = vor.u32 %v2590, %v2586
        %v2592 = vrot.slane %v2591, 4
        %v2594 = vshll.u32 %v2486, 16
        %v2596 = vrot.slane %v2594, 5
        %v2597 = vsel %vm659, %v2592, %v2596
        %v2599 = vshrl.u32 %v2487, 16
        %v2601 = vrot.slane %v2599, 4
        %v2602 = vshll.u32 %v2487, 16
        %v2604 = vrot.slane %v2602, 5
        %v2605 = vor.u32 %v2601, %v2604
        %v2606 = vrot.slane %v2605, 4
        %v2608 = vshll.u32 %v2488, 16
        %v2610 = vrot.slane %v2608, 5
        %v2611 = vsel %vm659, %v2606, %v2610
        %v2612 = vshrl.u32 %v2488, 16
        %v2614 = vrot.slane %v2612, 4
        %v2615 = vor.u32 %v2614, %v2610
        %v2616 = vrot.slane %v2615, 4
        %v2618 = vshll.u32 %v2489, 16
        %v2620 = vrot.slane %v2618, 5
        %v2621 = vsel %vm659, %v2616, %v2620
        %v2623 = vshrl.u32 %v2490, 16
        %v2625 = vrot.slane %v2623, 4
        %v2626 = vshll.u32 %v2490, 16
        %v2628 = vrot.slane %v2626, 5
        %v2629 = vor.u32 %v2625, %v2628
        %v2630 = vrot.slane %v2629, 4
        %v2632 = vshll.u32 %v2491, 16
        %v2634 = vrot.slane %v2632, 5
        %v2635 = vsel %vm659, %v2630, %v2634
        %v2636 = vshrl.u32 %v2491, 16
        %v2638 = vrot.slane %v2636, 4
        %v2639 = vor.u32 %v2638, %v2634
        %v2640 = vrot.slane %v2639, 4
        %v2642 = vshll.u32 %v2492, 16
        %v2644 = vrot.slane %v2642, 5
        %v2645 = vsel %vm659, %v2640, %v2644
        %v2647 = vshrl.u32 %v2493, 16
        %v2649 = vrot.slane %v2647, 4
        %v2650 = vshll.u32 %v2493, 16
        %v2652 = vrot.slane %v2650, 5
        %v2653 = vor.u32 %v2649, %v2652
        %v2654 = vrot.slane %v2653, 4
        %v2656 = vshll.u32 %v2494, 16
        %v2658 = vrot.slane %v2656, 5
        %v2659 = vsel %vm659, %v2654, %v2658
        %v2660 = vshrl.u32 %v2494, 16
        %v2662 = vrot.slane %v2660, 4
        %v2663 = vor.u32 %v2662, %v2658
        %v2664 = vrot.slane %v2663, 4
        %v2666 = vshll.u32 %v2495, 16
        %v2668 = vrot.slane %v2666, 5
        %v2669 = vsel %vm659, %v2664, %v2668
        %v2671 = vshrl.u32 %v2496, 16
        %v2673 = vrot.slane %v2671, 4
        %v2674 = vshll.u32 %v2496, 16
        %v2676 = vrot.slane %v2674, 5
        %v2677 = vor.u32 %v2673, %v2676
        %v2678 = vrot.slane %v2677, 4
        %v2680 = vshll.u32 %v2497, 16
        %v2682 = vrot.slane %v2680, 5
        %v2683 = vsel %vm659, %v2678, %v2682
        %v2684 = vshrl.u32 %v2497, 16
        %v2686 = vrot.slane %v2684, 4
        %v2687 = vor.u32 %v2686, %v2682
        %v2688 = vrot.slane %v2687, 4
        %v2690 = vshll.u32 %v2498, 16
        %v2692 = vrot.slane %v2690, 5
        %v2693 = vsel %vm659, %v2688, %v2692
        %v2695 = vshrl.u32 %v2499, 16
        %v2697 = vrot.slane %v2695, 4
        %v2698 = vshll.u32 %v2499, 16
        %v2700 = vrot.slane %v2698, 5
        %v2701 = vor.u32 %v2697, %v2700
        %v2702 = vrot.slane %v2701, 4
        %v2704 = vshll.u32 %v2500, 16
        %v2706 = vrot.slane %v2704, 5
        %v2707 = vsel %vm659, %v2702, %v2706
        %v2708 = vshrl.u32 %v2500, 16
        %v2710 = vrot.slane %v2708, 4
        %v2711 = vor.u32 %v2710, %v2706
        %v2712 = vrot.slane %v2711, 4
        %v2714 = vshll.u32 %v2501, 16
        %v2716 = vrot.slane %v2714, 5
        %v2717 = vsel %vm659, %v2712, %v2716
        %v2719 = vshrl.u32 %v2502, 16
        %v2721 = vrot.slane %v2719, 4
        %v2722 = vshll.u32 %v2502, 16
        %v2724 = vrot.slane %v2722, 5
        %v2725 = vor.u32 %v2721, %v2724
        %v2726 = vrot.slane %v2725, 4
        %v2728 = vshll.u32 %v2503, 16
        %v2730 = vrot.slane %v2728, 5
        %v2731 = vsel %vm659, %v2726, %v2730
        %v2732 = vshrl.u32 %v2503, 16
        %v2734 = vrot.slane %v2732, 4
        %v2735 = vor.u32 %v2734, %v2730
        %v2736 = vrot.slane %v2735, 4
        %v2738 = vshll.u32 %v2504, 16
        %v2740 = vrot.slane %v2738, 5
        %v2741 = vsel %vm659, %v2736, %v2740
        %v2743 = vshrl.u32 %v2505, 16
        %v2745 = vrot.slane %v2743, 4
        %v2746 = vshll.u32 %v2505, 16
        %v2748 = vrot.slane %v2746, 5
        %v2749 = vor.u32 %v2745, %v2748
        %v2750 = vrot.slane %v2749, 4
        %v2752 = vshll.u32 %v2506, 16
        %v2754 = vrot.slane %v2752, 5
        %v2755 = vsel %vm659, %v2750, %v2754
        %v2756 = vshrl.u32 %v2506, 16
        %v2758 = vrot.slane %v2756, 4
        %v2759 = vor.u32 %v2758, %v2754
        %v2760 = vrot.slane %v2759, 4
        %v2762 = vshll.u32 %v2507, 16
        %v2764 = vrot.slane %v2762, 5
        %v2765 = vsel %vm659, %v2760, %v2764
        %v2767 = vshrl.u32 %v2508, 16
        %v2769 = vrot.slane %v2767, 4
        %v2770 = vshll.u32 %v2508, 16
        %v2772 = vrot.slane %v2770, 5
        %v2773 = vor.u32 %v2769, %v2772
        %v2774 = vrot.slane %v2773, 4
        %v2776 = vshll.u32 %v2509, 16
        %v2778 = vrot.slane %v2776, 5
        %v2779 = vsel %vm659, %v2774, %v2778
        %v2780 = vshrl.u32 %v2509, 16
        %v2782 = vrot.slane %v2780, 4
        %v2783 = vor.u32 %v2782, %v2778
        %v2784 = vrot.slane %v2783, 4
        %v2786 = vshll.u32 %v2510, 16
        %v2788 = vrot.slane %v2786, 5
        %v2789 = vsel %vm659, %v2784, %v2788
        %v2791 = vshrl.u32 %v2511, 16
        %v2793 = vrot.slane %v2791, 4
        %v2794 = vshll.u32 %v2511, 16
        %v2796 = vrot.slane %v2794, 5
        %v2797 = vor.u32 %v2793, %v2796
        %v2798 = vrot.slane %v2797, 4
        %v2800 = vshll.u32 %v2512, 16
        %v2802 = vrot.slane %v2800, 5
        %v2803 = vsel %vm659, %v2798, %v2802
        %v2804 = vshrl.u32 %v2512, 16
        %v2806 = vrot.slane %v2804, 4
        %v2807 = vor.u32 %v2806, %v2802
        %v2808 = vrot.slane %v2807, 4
        %v2810 = vshll.u32 %v2513, 16
        %v2812 = vrot.slane %v2810, 5
        %v2813 = vsel %vm659, %v2808, %v2812
        %v2815 = vshrl.u32 %v2514, 16
        %v2817 = vrot.slane %v2815, 4
        %v2818 = vshll.u32 %v2514, 16
        %v2820 = vrot.slane %v2818, 5
        %v2821 = vor.u32 %v2817, %v2820
        %v2822 = vrot.slane %v2821, 4
        %v2824 = vshll.u32 %v2515, 16
        %v2826 = vrot.slane %v2824, 5
        %v2827 = vsel %vm659, %v2822, %v2826
        %v2828 = vshrl.u32 %v2515, 16
        %v2830 = vrot.slane %v2828, 4
        %v2831 = vor.u32 %v2830, %v2826
        %v2832 = vrot.slane %v2831, 4
        %v2834 = vshll.u32 %v2516, 16
        %v2836 = vrot.slane %v2834, 5
        %v2837 = vsel %vm659, %v2832, %v2836
        %v2839 = vshrl.u32 %v2517, 16
        %v2841 = vrot.slane %v2839, 4
        %v2842 = vshll.u32 %v2517, 16
        %v2844 = vrot.slane %v2842, 5
        %v2845 = vor.u32 %v2841, %v2844
        %v2846 = vrot.slane %v2845, 4
        %v2848 = vshll.u32 %v2518, 16
        %v2850 = vrot.slane %v2848, 5
        %v2851 = vsel %vm659, %v2846, %v2850
        %v2852 = vshrl.u32 %v2518, 16
        %v2854 = vrot.slane %v2852, 4
        %v2855 = vor.u32 %v2854, %v2850
        %v2856 = vrot.slane %v2855, 4
        %v2858 = vshll.u32 %v2519, 16
        %v2860 = vrot.slane %v2858, 5
        %v2861 = vsel %vm659, %v2856, %v2860
        %v2863 = vshrl.u32 %v2520, 16
        %v2865 = vrot.slane %v2863, 4
        %v2866 = vshll.u32 %v2520, 16
        %v2868 = vrot.slane %v2866, 5
        %v2869 = vor.u32 %v2865, %v2868
        %v2870 = vrot.slane %v2869, 4
        %v2872 = vshll.u32 %v2521, 16
        %v2874 = vrot.slane %v2872, 5
        %v2875 = vsel %vm659, %v2870, %v2874
        %v2876 = vshrl.u32 %v2521, 16
        %v2878 = vrot.slane %v2876, 4
        %v2879 = vor.u32 %v2878, %v2874
        %v2880 = vrot.slane %v2879, 4
        %v2882 = vshll.u32 %v2522, 16
        %v2884 = vrot.slane %v2882, 5
        %v2885 = vsel %vm659, %v2880, %v2884
        %v2887 = vshrl.u32 %v2523, 16
        %v2889 = vrot.slane %v2887, 4
        %v2890 = vshll.u32 %v2523, 16
        %v2892 = vrot.slane %v2890, 5
        %v2893 = vor.u32 %v2889, %v2892
        %v2894 = vrot.slane %v2893, 4
        %v2896 = vshll.u32 %v2524, 16
        %v2898 = vrot.slane %v2896, 5
        %v2899 = vsel %vm659, %v2894, %v2898
        %v2900 = vshrl.u32 %v2524, 16
        %v2902 = vrot.slane %v2900, 4
        %v2903 = vor.u32 %v2902, %v2898
        %v2904 = vrot.slane %v2903, 4
        %v2906 = vshll.u32 %v2525, 16
        %v2908 = vrot.slane %v2906, 5
        %v2909 = vsel %vm659, %v2904, %v2908
        %s2910 = scalar_lea.vmem %s1, 256
        %v2911 = vld [vmem:[%s2910] sm:$0xf]
        %v2912 = vld [vmem:[%s2910 + $0x4] sm:$0xf]
        %v2913 = vld [vmem:[%s2910 + $0x8] sm:$0xf]
        %v2914 = vld [vmem:[%s2910 + $0xc] sm:$0xf]
        %v2915 = vld [vmem:[%s2910 + $0x10] sm:$0xf]
        %v2916 = vld [vmem:[%s2910 + $0x14] sm:$0xf]
        %v2917 = vld [vmem:[%s2910 + $0x18] sm:$0xf]
        %v2918 = vld [vmem:[%s2910 + $0x1c] sm:$0xf]
        %v2919 = vld [vmem:[%s2910 + $0x20] sm:$0xf]
        %v2920 = vld [vmem:[%s2910 + $0x24] sm:$0xf]
        %v2921 = vld [vmem:[%s2910 + $0x28] sm:$0xf]
        %v2922 = vld [vmem:[%s2910 + $0x2c] sm:$0xf]
        %v2923 = vld [vmem:[%s2910 + $0x30] sm:$0xf]
        %v2924 = vld [vmem:[%s2910 + $0x34] sm:$0xf]
        %v2925 = vld [vmem:[%s2910 + $0x38] sm:$0xf]
        %v2926 = vld [vmem:[%s2910 + $0x3c] sm:$0xf]
        %v2927 = vunpack.c.l.b16 %v2539
        %v2928 = vunpack.c.l.b16 %v2549
        %v2929 = vunpack.c.l.b16 %v2563
        %v2930 = vunpack.c.l.b16 %v2573
        %v2931 = vunpack.c.l.b16 %v2587
        %v2932 = vunpack.c.l.b16 %v2597
        %v2933 = vunpack.c.l.b16 %v2611
        %v2934 = vunpack.c.l.b16 %v2621
        %v2935 = vunpack.c.l.b16 %v2635
        %v2936 = vunpack.c.l.b16 %v2645
        %v2937 = vunpack.c.l.b16 %v2659
        %v2938 = vunpack.c.l.b16 %v2669
        %v2939 = vunpack.c.l.b16 %v2683
        %v2940 = vunpack.c.l.b16 %v2693
        %v2941 = vunpack.c.l.b16 %v2707
        %v2942 = vunpack.c.l.b16 %v2717
        %v2943 = vunpack.c.l.b16 %v2731
        %v2944 = vunpack.c.l.b16 %v2741
        %v2945 = vunpack.c.l.b16 %v2755
        %v2946 = vunpack.c.l.b16 %v2765
        %v2947 = vunpack.c.l.b16 %v2779
        %v2948 = vunpack.c.l.b16 %v2789
        %v2949 = vunpack.c.l.b16 %v2803
        %v2950 = vunpack.c.l.b16 %v2813
        %v2951 = vunpack.c.l.b16 %v2827
        %v2952 = vunpack.c.l.b16 %v2837
        %v2953 = vunpack.c.l.b16 %v2851
        %v2954 = vunpack.c.l.b16 %v2861
        %v2955 = vunpack.c.l.b16 %v2875
        %v2956 = vunpack.c.l.b16 %v2885
        %v2957 = vunpack.c.l.b16 %v2899
        %v2958 = vunpack.c.l.b16 %v2909
        %v2959 = vpack.c.b16 %v2928, %v2927
        %v2960 = vpack.c.b16 %v2930, %v2929
        %v2961 = vpack.c.b16 %v2932, %v2931
        %v2962 = vpack.c.b16 %v2934, %v2933
        %v2963 = vpack.c.b16 %v2936, %v2935
        %v2964 = vpack.c.b16 %v2938, %v2937
        %v2965 = vpack.c.b16 %v2940, %v2939
        %v2966 = vpack.c.b16 %v2942, %v2941
        %v2967 = vpack.c.b16 %v2944, %v2943
        %v2968 = vpack.c.b16 %v2946, %v2945
        %v2969 = vpack.c.b16 %v2948, %v2947
        %v2970 = vpack.c.b16 %v2950, %v2949
        %v2971 = vpack.c.b16 %v2952, %v2951
        %v2972 = vpack.c.b16 %v2954, %v2953
        %v2973 = vpack.c.b16 %v2956, %v2955
        %v2974 = vpack.c.b16 %v2958, %v2957
        %v3007 = vunpack.c.l.b16 %v2911
        %v3008 = vunpack.c.l.b16 %v2912
        %v3009 = vunpack.c.l.b16 %v2913
        %v3010 = vunpack.c.l.b16 %v2914
        %v3011 = vunpack.c.l.b16 %v2915
        %v3012 = vunpack.c.l.b16 %v2916
        %v3013 = vunpack.c.l.b16 %v2917
        %v3014 = vunpack.c.l.b16 %v2918
        %v3015 = vunpack.c.l.b16 %v2919
        %v3016 = vunpack.c.l.b16 %v2920
        %v3017 = vunpack.c.l.b16 %v2921
        %v3018 = vunpack.c.l.b16 %v2922
        %v3019 = vunpack.c.l.b16 %v2923
        %v3020 = vunpack.c.l.b16 %v2924
        %v3021 = vunpack.c.l.b16 %v2925
        %v3022 = vunpack.c.l.b16 %v2926
        %v3023 = vpack.c.b16 %v3008, %v3007
        %v3024 = vpack.c.b16 %v3010, %v3009
        %v3025 = vpack.c.b16 %v3012, %v3011
        %v3026 = vpack.c.b16 %v3014, %v3013
        %v3027 = vpack.c.b16 %v3016, %v3015
        %v3028 = vpack.c.b16 %v3018, %v3017
        %v3029 = vpack.c.b16 %v3020, %v3019
        %v3030 = vpack.c.b16 %v3022, %v3021
        %3039 = vmatprep.subr.bf16.mxu0 0
        %3040 = vmatpush1.bf16.msra.mxu0 %v3023
        %3041 = vmatprep.subr.bf16.mxu0 0
        %3042 = vmatpush1.bf16.msra.mxu0 %v3024
        %3043 = vmatprep.subr.bf16.mxu0 0
        %3044 = vmatpush1.bf16.msra.mxu0 %v3025
        %3045 = vmatprep.subr.bf16.mxu0 0
        %3046 = vmatpush1.bf16.msra.mxu0 %v3026
        %3047 = vmatprep.subr.bf16.mxu0 0
        %3048 = vmatpush1.bf16.msra.mxu0 %v3027
        %3049 = vmatprep.subr.bf16.mxu0 0
        %3050 = vmatpush1.bf16.msra.mxu0 %v3028
        %3051 = vmatprep.subr.bf16.mxu0 0
        %3052 = vmatpush1.bf16.msra.mxu0 %v3029
        %3053 = vmatprep.subr.bf16.mxu0 0
        %3054 = vmatpush1.bf16.msra.mxu0 %v3030
        %3055 = vmatprep.subr.bf16.mxu0 0
        %3056 = vmatpush1.bf16.msra.mxu0 0
        %3057 = vmatprep.subr.bf16.mxu0 0
        %3058 = vmatpush1.bf16.msra.mxu0 0
        %3059 = vmatprep.subr.bf16.mxu0 0
        %3060 = vmatpush1.bf16.msra.mxu0 0
        %3061 = vmatprep.subr.bf16.mxu0 0
        %3062 = vmatpush1.bf16.msra.mxu0 0
        %3063 = vmatprep.subr.bf16.mxu0 0
        %3064 = vmatpush1.bf16.msra.mxu0 0
        %3065 = vmatprep.subr.bf16.mxu0 0
        %3066 = vmatpush1.bf16.msra.mxu0 0
        %3067 = vmatprep.subr.bf16.mxu0 0
        %3068 = vmatpush1.bf16.msra.mxu0 0
        %3069 = vmatprep.subr.bf16.mxu0 0
        %3070 = vmatpush1.bf16.msra.mxu0 0
        %3071 = vmatprep.mubr.bf16.mxu0 0
        %3072 = vmatmul.mubr.bf16.gmra.mrb[0].mxu0 %v2959
        %v3073 = vpop.f32.mrb[0].mxu0
        %v3074 = vadd.f32 0.0, %v3073
        %v3075 = vpop.f32.mrb[0].mxu0
        %v3076 = vpop.f32.mrb[0].mxu0
        %v3077 = vadd.f32 0.0, %v3076
        %v3078 = vpop.f32.mrb[0].mxu0
        %3079 = vmatprep.mubr.bf16.mxu0 0
        %3080 = vmatmul.mubr.bf16.gmra.mrb[0].mxu0 %v2960
        %v3081 = vpop.f32.mrb[0].mxu0
        %v3082 = vadd.f32 0.0, %v3081
        %v3083 = vpop.f32.mrb[0].mxu0
        %v3084 = vpop.f32.mrb[0].mxu0
        %v3085 = vadd.f32 0.0, %v3084
        %v3086 = vpop.f32.mrb[0].mxu0
        %3087 = vmatprep.mubr.bf16.mxu0 0
        %3088 = vmatmul.mubr.bf16.gmra.mrb[0].mxu0 %v2961
        %v3089 = vpop.f32.mrb[0].mxu0
        %v3090 = vadd.f32 0.0, %v3089
        %v3091 = vpop.f32.mrb[0].mxu0
        %v3092 = vpop.f32.mrb[0].mxu0
        %v3093 = vadd.f32 0.0, %v3092
        %v3094 = vpop.f32.mrb[0].mxu0
        %3095 = vmatprep.mubr.bf16.mxu0 0
        %3096 = vmatmul.mubr.bf16.gmra.mrb[0].mxu0 %v2962
        %v3097 = vpop.f32.mrb[0].mxu0
        %v3098 = vadd.f32 0.0, %v3097
        %v3099 = vpop.f32.mrb[0].mxu0
        %v3100 = vpop.f32.mrb[0].mxu0
        %v3101 = vadd.f32 0.0, %v3100
        %v3102 = vpop.f32.mrb[0].mxu0
        %3103 = vmatprep.mubr.bf16.mxu0 0
        %3104 = vmatmul.mubr.bf16.gmra.mrb[0].mxu0 %v2963
        %v3105 = vpop.f32.mrb[0].mxu0
        %v3106 = vadd.f32 0.0, %v3105
        %v3107 = vpop.f32.mrb[0].mxu0
        %v3108 = vpop.f32.mrb[0].mxu0
        %v3109 = vadd.f32 0.0, %v3108
        %v3110 = vpop.f32.mrb[0].mxu0
        %3111 = vmatprep.mubr.bf16.mxu0 0
        %3112 = vmatmul.mubr.bf16.gmra.mrb[0].mxu0 %v2964
        %v3113 = vpop.f32.mrb[0].mxu0
        %v3114 = vadd.f32 0.0, %v3113
        %v3115 = vpop.f32.mrb[0].mxu0
        %v3116 = vpop.f32.mrb[0].mxu0
        %v3117 = vadd.f32 0.0, %v3116
        %v3118 = vpop.f32.mrb[0].mxu0
        %3119 = vmatprep.mubr.bf16.mxu0 0
        %3120 = vmatmul.mubr.bf16.gmra.mrb[0].mxu0 %v2965
        %v3121 = vpop.f32.mrb[0].mxu0
        %v3122 = vadd.f32 0.0, %v3121
        %v3123 = vpop.f32.mrb[0].mxu0
        %v3124 = vpop.f32.mrb[0].mxu0
        %v3125 = vadd.f32 0.0, %v3124
        %v3126 = vpop.f32.mrb[0].mxu0
        %3127 = vmatprep.mubr.bf16.mxu0 0
        %3128 = vmatmul.mubr.bf16.gmra.mrb[0].mxu0 %v2966
        %v3129 = vpop.f32.mrb[0].mxu0
        %v3130 = vadd.f32 0.0, %v3129
        %v3131 = vpop.f32.mrb[0].mxu0
        %v3132 = vpop.f32.mrb[0].mxu0
        %v3133 = vadd.f32 0.0, %v3132
        %v3134 = vpop.f32.mrb[0].mxu0
        %3135 = vmatprep.mubr.bf16.mxu0 0
        %3136 = vmatmul.mubr.bf16.gmra.mrb[0].mxu0 %v2967
        %v3137 = vpop.f32.mrb[0].mxu0
        %v3138 = vadd.f32 0.0, %v3137
        %v3139 = vpop.f32.mrb[0].mxu0
        %v3140 = vpop.f32.mrb[0].mxu0
        %v3141 = vadd.f32 0.0, %v3140
        %v3142 = vpop.f32.mrb[0].mxu0
        %3143 = vmatprep.mubr.bf16.mxu0 0
        %3144 = vmatmul.mubr.bf16.gmra.mrb[0].mxu0 %v2968
        %v3145 = vpop.f32.mrb[0].mxu0
        %v3146 = vadd.f32 0.0, %v3145
        %v3147 = vpop.f32.mrb[0].mxu0
        %v3148 = vpop.f32.mrb[0].mxu0
        %v3149 = vadd.f32 0.0, %v3148
        %v3150 = vpop.f32.mrb[0].mxu0
        %3151 = vmatprep.mubr.bf16.mxu0 0
        %3152 = vmatmul.mubr.bf16.gmra.mrb[0].mxu0 %v2969
        %v3153 = vpop.f32.mrb[0].mxu0
        %v3154 = vadd.f32 0.0, %v3153
        %v3155 = vpop.f32.mrb[0].mxu0
        %v3156 = vpop.f32.mrb[0].mxu0
        %v3157 = vadd.f32 0.0, %v3156
        %v3158 = vpop.f32.mrb[0].mxu0
        %3159 = vmatprep.mubr.bf16.mxu0 0
        %3160 = vmatmul.mubr.bf16.gmra.mrb[0].mxu0 %v2970
        %v3161 = vpop.f32.mrb[0].mxu0
        %v3162 = vadd.f32 0.0, %v3161
        %v3163 = vpop.f32.mrb[0].mxu0
        %v3164 = vpop.f32.mrb[0].mxu0
        %v3165 = vadd.f32 0.0, %v3164
        %v3166 = vpop.f32.mrb[0].mxu0
        %3167 = vmatprep.mubr.bf16.mxu0 0
        %3168 = vmatmul.mubr.bf16.gmra.mrb[0].mxu0 %v2971
        %v3169 = vpop.f32.mrb[0].mxu0
        %v3170 = vadd.f32 0.0, %v3169
        %v3171 = vpop.f32.mrb[0].mxu0
        %v3172 = vpop.f32.mrb[0].mxu0
        %v3173 = vadd.f32 0.0, %v3172
        %v3174 = vpop.f32.mrb[0].mxu0
        %3175 = vmatprep.mubr.bf16.mxu0 0
        %3176 = vmatmul.mubr.bf16.gmra.mrb[0].mxu0 %v2972
        %v3177 = vpop.f32.mrb[0].mxu0
        %v3178 = vadd.f32 0.0, %v3177
        %v3179 = vpop.f32.mrb[0].mxu0
        %v3180 = vpop.f32.mrb[0].mxu0
        %v3181 = vadd.f32 0.0, %v3180
        %v3182 = vpop.f32.mrb[0].mxu0
        %3183 = vmatprep.mubr.bf16.mxu0 0
        %3184 = vmatmul.mubr.bf16.gmra.mrb[0].mxu0 %v2973
        %v3185 = vpop.f32.mrb[0].mxu0
        %v3186 = vadd.f32 0.0, %v3185
        %v3187 = vpop.f32.mrb[0].mxu0
        %v3188 = vpop.f32.mrb[0].mxu0
        %v3189 = vadd.f32 0.0, %v3188
        %v3190 = vpop.f32.mrb[0].mxu0
        %3191 = vmatprep.mubr.bf16.mxu0 0
        %3192 = vmatmul.mubr.bf16.gmra.mrb[0].mxu0 %v2974
        %v3193 = vpop.f32.mrb[0].mxu0
        %v3194 = vadd.f32 0.0, %v3193
        %v3195 = vpop.f32.mrb[0].mxu0
        %v3196 = vpop.f32.mrb[0].mxu0
        %v3197 = vadd.f32 0.0, %v3196
        %v3198 = vpop.f32.mrb[0].mxu0
        %3199 = vdwg.mxu0
        %v3200 = vld [vmem:[#allocation3] sm:$0xff]
        %v3201 = vld [vmem:[#allocation3 + $0x8] sm:$0xff]
        %v3202 = vld [vmem:[#allocation3 + $0x10] sm:$0xff]
        %v3203 = vld [vmem:[#allocation3 + $0x18] sm:$0xff]
        %v3204 = vld [vmem:[#allocation3 + $0x20] sm:$0xff]
        %v3205 = vld [vmem:[#allocation3 + $0x28] sm:$0xff]
        %v3206 = vld [vmem:[#allocation3 + $0x30] sm:$0xff]
        %v3207 = vld [vmem:[#allocation3 + $0x38] sm:$0xff]
        %v3208 = vld [vmem:[#allocation3 + $0x40] sm:$0xff]
        %v3209 = vld [vmem:[#allocation3 + $0x48] sm:$0xff]
        %v3210 = vld [vmem:[#allocation3 + $0x50] sm:$0xff]
        %v3211 = vld [vmem:[#allocation3 + $0x58] sm:$0xff]
        %v3212 = vld [vmem:[#allocation3 + $0x60] sm:$0xff]
        %v3213 = vld [vmem:[#allocation3 + $0x68] sm:$0xff]
        %v3214 = vld [vmem:[#allocation3 + $0x70] sm:$0xff]
        %v3215 = vld [vmem:[#allocation3 + $0x78] sm:$0xff]
        %v3216 = vld [vmem:[#allocation3 + $0x80] sm:$0xff]
        %v3217 = vld [vmem:[#allocation3 + $0x88] sm:$0xff]
        %v3218 = vld [vmem:[#allocation3 + $0x90] sm:$0xff]
        %v3219 = vld [vmem:[#allocation3 + $0x98] sm:$0xff]
        %v3220 = vld [vmem:[#allocation3 + $0xa0] sm:$0xff]
        %v3221 = vld [vmem:[#allocation3 + $0xa8] sm:$0xff]
        %v3222 = vld [vmem:[#allocation3 + $0xb0] sm:$0xff]
        %v3223 = vld [vmem:[#allocation3 + $0xb8] sm:$0xff]
        %v3224 = vld [vmem:[#allocation3 + $0xc0] sm:$0xff]
        %v3225 = vld [vmem:[#allocation3 + $0xc8] sm:$0xff]
        %v3226 = vld [vmem:[#allocation3 + $0xd0] sm:$0xff]
        %v3227 = vld [vmem:[#allocation3 + $0xd8] sm:$0xff]
        %v3228 = vld [vmem:[#allocation3 + $0xe0] sm:$0xff]
        %v3229 = vld [vmem:[#allocation3 + $0xe8] sm:$0xff]
        %v3230 = vld [vmem:[#allocation3 + $0xf0] sm:$0xff]
        %v3231 = vld [vmem:[#allocation3 + $0xf8] sm:$0xff]
        %v3232 = vadd.f32 %v3200, %v3074
        %v3233 = vadd.f32 %v3201, %v3077
        %v3234 = vadd.f32 %v3202, %v3082
        %v3235 = vadd.f32 %v3203, %v3085
        %v3236 = vadd.f32 %v3204, %v3090
        %v3237 = vadd.f32 %v3205, %v3093
        %v3238 = vadd.f32 %v3206, %v3098
        %v3239 = vadd.f32 %v3207, %v3101
        %v3240 = vadd.f32 %v3208, %v3106
        %v3241 = vadd.f32 %v3209, %v3109
        %v3242 = vadd.f32 %v3210, %v3114
        %v3243 = vadd.f32 %v3211, %v3117
        %v3244 = vadd.f32 %v3212, %v3122
        %v3245 = vadd.f32 %v3213, %v3125
        %v3246 = vadd.f32 %v3214, %v3130
        %v3247 = vadd.f32 %v3215, %v3133
        %v3248 = vadd.f32 %v3216, %v3138
        %v3249 = vadd.f32 %v3217, %v3141
        %v3250 = vadd.f32 %v3218, %v3146
        %v3251 = vadd.f32 %v3219, %v3149
        %v3252 = vadd.f32 %v3220, %v3154
        %v3253 = vadd.f32 %v3221, %v3157
        %v3254 = vadd.f32 %v3222, %v3162
        %v3255 = vadd.f32 %v3223, %v3165
        %v3256 = vadd.f32 %v3224, %v3170
        %v3257 = vadd.f32 %v3225, %v3173
        %v3258 = vadd.f32 %v3226, %v3178
        %v3259 = vadd.f32 %v3227, %v3181
        %v3260 = vadd.f32 %v3228, %v3186
        %v3261 = vadd.f32 %v3229, %v3189
        %v3262 = vadd.f32 %v3230, %v3194
        %v3263 = vadd.f32 %v3231, %v3197
        %3264 = vst [vmem:[#allocation3] sm:$0xff] %v3232
        %3265 = vst [vmem:[#allocation3 + $0x8] sm:$0xff] %v3233
        %3266 = vst [vmem:[#allocation3 + $0x10] sm:$0xff] %v3234
        %3267 = vst [vmem:[#allocation3 + $0x18] sm:$0xff] %v3235
        %3268 = vst [vmem:[#allocation3 + $0x20] sm:$0xff] %v3236
        %3269 = vst [vmem:[#allocation3 + $0x28] sm:$0xff] %v3237
        %3270 = vst [vmem:[#allocation3 + $0x30] sm:$0xff] %v3238
        %3271 = vst [vmem:[#allocation3 + $0x38] sm:$0xff] %v3239
        %3272 = vst [vmem:[#allocation3 + $0x40] sm:$0xff] %v3240
        %3273 = vst [vmem:[#allocation3 + $0x48] sm:$0xff] %v3241
        %3274 = vst [vmem:[#allocation3 + $0x50] sm:$0xff] %v3242
        %3275 = vst [vmem:[#allocation3 + $0x58] sm:$0xff] %v3243
        %3276 = vst [vmem:[#allocation3 + $0x60] sm:$0xff] %v3244
        %3277 = vst [vmem:[#allocation3 + $0x68] sm:$0xff] %v3245
        %3278 = vst [vmem:[#allocation3 + $0x70] sm:$0xff] %v3246
        %3279 = vst [vmem:[#allocation3 + $0x78] sm:$0xff] %v3247
        %3280 = vst [vmem:[#allocation3 + $0x80] sm:$0xff] %v3248
        %3281 = vst [vmem:[#allocation3 + $0x88] sm:$0xff] %v3249
        %3282 = vst [vmem:[#allocation3 + $0x90] sm:$0xff] %v3250
        %3283 = vst [vmem:[#allocation3 + $0x98] sm:$0xff] %v3251
        %3284 = vst [vmem:[#allocation3 + $0xa0] sm:$0xff] %v3252
        %3285 = vst [vmem:[#allocation3 + $0xa8] sm:$0xff] %v3253
        %3286 = vst [vmem:[#allocation3 + $0xb0] sm:$0xff] %v3254
        %3287 = vst [vmem:[#allocation3 + $0xb8] sm:$0xff] %v3255
        %3288 = vst [vmem:[#allocation3 + $0xc0] sm:$0xff] %v3256
        %3289 = vst [vmem:[#allocation3 + $0xc8] sm:$0xff] %v3257
        %3290 = vst [vmem:[#allocation3 + $0xd0] sm:$0xff] %v3258
        %3291 = vst [vmem:[#allocation3 + $0xd8] sm:$0xff] %v3259
        %3292 = vst [vmem:[#allocation3 + $0xe0] sm:$0xff] %v3260
        %3293 = vst [vmem:[#allocation3 + $0xe8] sm:$0xff] %v3261
        %3294 = vst [vmem:[#allocation3 + $0xf0] sm:$0xff] %v3262
        %3295 = vst [vmem:[#allocation3 + $0xf8] sm:$0xff] %v3263
        %v3296 = vld [vmem:[%s2027] sm:$0xe]
        %v3297 = vld [vmem:[%s2027 + $0x4] sm:$0xf]
        %v3298 = vld [vmem:[%s2027 + $0x8] sm:$0x1]
        %v3299 = vld [vmem:[%s2027 + $0xc] sm:$0xe]
        %v3300 = vld [vmem:[%s2027 + $0x10] sm:$0xf]
        %v3301 = vld [vmem:[%s2027 + $0x14] sm:$0x1]
        %v3302 = vld [vmem:[%s2027 + $0x18] sm:$0xe]
        %v3303 = vld [vmem:[%s2027 + $0x1c] sm:$0xf]
        %v3304 = vld [vmem:[%s2027 + $0x20] sm:$0x1]
        %v3305 = vld [vmem:[%s2027 + $0x24] sm:$0xe]
        %v3306 = vld [vmem:[%s2027 + $0x28] sm:$0xf]
        %v3307 = vld [vmem:[%s2027 + $0x2c] sm:$0x1]
        %v3308 = vld [vmem:[%s2027 + $0x30] sm:$0xe]
        %v3309 = vld [vmem:[%s2027 + $0x34] sm:$0xf]
        %v3310 = vld [vmem:[%s2027 + $0x38] sm:$0x1]
        %v3311 = vld [vmem:[%s2027 + $0x3c] sm:$0xe]
        %v3312 = vld [vmem:[%s2027 + $0x40] sm:$0xf]
        %v3313 = vld [vmem:[%s2027 + $0x44] sm:$0x1]
        %v3314 = vld [vmem:[%s2027 + $0x48] sm:$0xe]
        %v3315 = vld [vmem:[%s2027 + $0x4c] sm:$0xf]
        %v3316 = vld [vmem:[%s2027 + $0x50] sm:$0x1]
        %v3317 = vld [vmem:[%s2027 + $0x54] sm:$0xe]
        %v3318 = vld [vmem:[%s2027 + $0x58] sm:$0xf]
        %v3319 = vld [vmem:[%s2027 + $0x5c] sm:$0x1]
        %v3320 = vld [vmem:[%s2027 + $0x60] sm:$0xe]
        %v3321 = vld [vmem:[%s2027 + $0x64] sm:$0xf]
        %v3322 = vld [vmem:[%s2027 + $0x68] sm:$0x1]
        %v3323 = vld [vmem:[%s2027 + $0x6c] sm:$0xe]
        %v3324 = vld [vmem:[%s2027 + $0x70] sm:$0xf]
        %v3325 = vld [vmem:[%s2027 + $0x74] sm:$0x1]
        %v3326 = vld [vmem:[%s2027 + $0x78] sm:$0xe]
        %v3327 = vld [vmem:[%s2027 + $0x7c] sm:$0xf]
        %v3328 = vld [vmem:[%s2027 + $0x80] sm:$0x1]
        %v3329 = vld [vmem:[%s2027 + $0x84] sm:$0xe]
        %v3330 = vld [vmem:[%s2027 + $0x88] sm:$0xf]
        %v3331 = vld [vmem:[%s2027 + $0x8c] sm:$0x1]
        %v3332 = vld [vmem:[%s2027 + $0x90] sm:$0xe]
        %v3333 = vld [vmem:[%s2027 + $0x94] sm:$0xf]
        %v3334 = vld [vmem:[%s2027 + $0x98] sm:$0x1]
        %v3335 = vld [vmem:[%s2027 + $0x9c] sm:$0xe]
        %v3336 = vld [vmem:[%s2027 + $0xa0] sm:$0xf]
        %v3337 = vld [vmem:[%s2027 + $0xa4] sm:$0x1]
        %v3338 = vld [vmem:[%s2027 + $0xa8] sm:$0xe]
        %v3339 = vld [vmem:[%s2027 + $0xac] sm:$0xf]
        %v3340 = vld [vmem:[%s2027 + $0xb0] sm:$0x1]
        %v3341 = vld [vmem:[%s2027 + $0xb4] sm:$0xe]
        %v3342 = vld [vmem:[%s2027 + $0xb8] sm:$0xf]
        %v3343 = vld [vmem:[%s2027 + $0xbc] sm:$0x1]
        %v3392 = vrot.slane %v3296, 5
        %v3393 = vrot.slane %v3392, 4
        %v3394 = vrot.slane %v3297, 5
        %v3395 = vsel %vm1528, %v3393, %v3394
        %v3396 = vrot.slane %v3394, 4
        %v3397 = vrot.slane %v3298, 5
        %v3398 = vsel %vm1528, %v3396, %v3397
        %v3399 = vrot.slane %v3299, 5
        %v3400 = vrot.slane %v3399, 4
        %v3401 = vrot.slane %v3300, 5
        %v3402 = vsel %vm1528, %v3400, %v3401
        %v3403 = vrot.slane %v3401, 4
        %v3404 = vrot.slane %v3301, 5
        %v3405 = vsel %vm1528, %v3403, %v3404
        %v3406 = vrot.slane %v3302, 5
        %v3407 = vrot.slane %v3406, 4
        %v3408 = vrot.slane %v3303, 5
        %v3409 = vsel %vm1528, %v3407, %v3408
        %v3410 = vrot.slane %v3408, 4
        %v3411 = vrot.slane %v3304, 5
        %v3412 = vsel %vm1528, %v3410, %v3411
        %v3413 = vrot.slane %v3305, 5
        %v3414 = vrot.slane %v3413, 4
        %v3415 = vrot.slane %v3306, 5
        %v3416 = vsel %vm1528, %v3414, %v3415
        %v3417 = vrot.slane %v3415, 4
        %v3418 = vrot.slane %v3307, 5
        %v3419 = vsel %vm1528, %v3417, %v3418
        %v3420 = vrot.slane %v3308, 5
        %v3421 = vrot.slane %v3420, 4
        %v3422 = vrot.slane %v3309, 5
        %v3423 = vsel %vm1528, %v3421, %v3422
        %v3424 = vrot.slane %v3422, 4
        %v3425 = vrot.slane %v3310, 5
        %v3426 = vsel %vm1528, %v3424, %v3425
        %v3427 = vrot.slane %v3311, 5
        %v3428 = vrot.slane %v3427, 4
        %v3429 = vrot.slane %v3312, 5
        %v3430 = vsel %vm1528, %v3428, %v3429
        %v3431 = vrot.slane %v3429, 4
        %v3432 = vrot.slane %v3313, 5
        %v3433 = vsel %vm1528, %v3431, %v3432
        %v3434 = vrot.slane %v3314, 5
        %v3435 = vrot.slane %v3434, 4
        %v3436 = vrot.slane %v3315, 5
        %v3437 = vsel %vm1528, %v3435, %v3436
        %v3438 = vrot.slane %v3436, 4
        %v3439 = vrot.slane %v3316, 5
        %v3440 = vsel %vm1528, %v3438, %v3439
        %v3441 = vrot.slane %v3317, 5
        %v3442 = vrot.slane %v3441, 4
        %v3443 = vrot.slane %v3318, 5
        %v3444 = vsel %vm1528, %v3442, %v3443
        %v3445 = vrot.slane %v3443, 4
        %v3446 = vrot.slane %v3319, 5
        %v3447 = vsel %vm1528, %v3445, %v3446
        %v3448 = vrot.slane %v3320, 5
        %v3449 = vrot.slane %v3448, 4
        %v3450 = vrot.slane %v3321, 5
        %v3451 = vsel %vm1528, %v3449, %v3450
        %v3452 = vrot.slane %v3450, 4
        %v3453 = vrot.slane %v3322, 5
        %v3454 = vsel %vm1528, %v3452, %v3453
        %v3455 = vrot.slane %v3323, 5
        %v3456 = vrot.slane %v3455, 4
        %v3457 = vrot.slane %v3324, 5
        %v3458 = vsel %vm1528, %v3456, %v3457
        %v3459 = vrot.slane %v3457, 4
        %v3460 = vrot.slane %v3325, 5
        %v3461 = vsel %vm1528, %v3459, %v3460
        %v3462 = vrot.slane %v3326, 5
        %v3463 = vrot.slane %v3462, 4
        %v3464 = vrot.slane %v3327, 5
        %v3465 = vsel %vm1528, %v3463, %v3464
        %v3466 = vrot.slane %v3464, 4
        %v3467 = vrot.slane %v3328, 5
        %v3468 = vsel %vm1528, %v3466, %v3467
        %v3469 = vrot.slane %v3329, 5
        %v3470 = vrot.slane %v3469, 4
        %v3471 = vrot.slane %v3330, 5
        %v3472 = vsel %vm1528, %v3470, %v3471
        %v3473 = vrot.slane %v3471, 4
        %v3474 = vrot.slane %v3331, 5
        %v3475 = vsel %vm1528, %v3473, %v3474
        %v3476 = vrot.slane %v3332, 5
        %v3477 = vrot.slane %v3476, 4
        %v3478 = vrot.slane %v3333, 5
        %v3479 = vsel %vm1528, %v3477, %v3478
        %v3480 = vrot.slane %v3478, 4
        %v3481 = vrot.slane %v3334, 5
        %v3482 = vsel %vm1528, %v3480, %v3481
        %v3483 = vrot.slane %v3335, 5
        %v3484 = vrot.slane %v3483, 4
        %v3485 = vrot.slane %v3336, 5
        %v3486 = vsel %vm1528, %v3484, %v3485
        %v3487 = vrot.slane %v3485, 4
        %v3488 = vrot.slane %v3337, 5
        %v3489 = vsel %vm1528, %v3487, %v3488
        %v3490 = vrot.slane %v3338, 5
        %v3491 = vrot.slane %v3490, 4
        %v3492 = vrot.slane %v3339, 5
        %v3493 = vsel %vm1528, %v3491, %v3492
        %v3494 = vrot.slane %v3492, 4
        %v3495 = vrot.slane %v3340, 5
        %v3496 = vsel %vm1528, %v3494, %v3495
        %v3497 = vrot.slane %v3341, 5
        %v3498 = vrot.slane %v3497, 4
        %v3499 = vrot.slane %v3342, 5
        %v3500 = vsel %vm1528, %v3498, %v3499
        %v3501 = vrot.slane %v3499, 4
        %v3502 = vrot.slane %v3343, 5
        %v3503 = vsel %vm1528, %v3501, %v3502
        %s3504 = scalar_lea.vmem %s1, 320
        %v3505 = vld [vmem:[%s3504] sm:$0xf]
        %v3506 = vld [vmem:[%s3504 + $0x4] sm:$0xf]
        %v3507 = vld [vmem:[%s3504 + $0x8] sm:$0xf]
        %v3508 = vld [vmem:[%s3504 + $0xc] sm:$0xf]
        %v3509 = vld [vmem:[%s3504 + $0x10] sm:$0xf]
        %v3510 = vld [vmem:[%s3504 + $0x14] sm:$0xf]
        %v3511 = vld [vmem:[%s3504 + $0x18] sm:$0xf]
        %v3512 = vld [vmem:[%s3504 + $0x1c] sm:$0xf]
        %v3513 = vld [vmem:[%s3504 + $0x20] sm:$0xf]
        %v3514 = vld [vmem:[%s3504 + $0x24] sm:$0xf]
        %v3515 = vld [vmem:[%s3504 + $0x28] sm:$0xf]
        %v3516 = vld [vmem:[%s3504 + $0x2c] sm:$0xf]
        %v3517 = vld [vmem:[%s3504 + $0x30] sm:$0xf]
        %v3518 = vld [vmem:[%s3504 + $0x34] sm:$0xf]
        %v3519 = vld [vmem:[%s3504 + $0x38] sm:$0xf]
        %v3520 = vld [vmem:[%s3504 + $0x3c] sm:$0xf]
        %v3521 = vunpack.c.l.b16 %v3395
        %v3522 = vunpack.c.l.b16 %v3398
        %v3523 = vunpack.c.l.b16 %v3402
        %v3524 = vunpack.c.l.b16 %v3405
        %v3525 = vunpack.c.l.b16 %v3409
        %v3526 = vunpack.c.l.b16 %v3412
        %v3527 = vunpack.c.l.b16 %v3416
        %v3528 = vunpack.c.l.b16 %v3419
        %v3529 = vunpack.c.l.b16 %v3423
        %v3530 = vunpack.c.l.b16 %v3426
        %v3531 = vunpack.c.l.b16 %v3430
        %v3532 = vunpack.c.l.b16 %v3433
        %v3533 = vunpack.c.l.b16 %v3437
        %v3534 = vunpack.c.l.b16 %v3440
        %v3535 = vunpack.c.l.b16 %v3444
        %v3536 = vunpack.c.l.b16 %v3447
        %v3537 = vunpack.c.l.b16 %v3451
        %v3538 = vunpack.c.l.b16 %v3454
        %v3539 = vunpack.c.l.b16 %v3458
        %v3540 = vunpack.c.l.b16 %v3461
        %v3541 = vunpack.c.l.b16 %v3465
        %v3542 = vunpack.c.l.b16 %v3468
        %v3543 = vunpack.c.l.b16 %v3472
        %v3544 = vunpack.c.l.b16 %v3475
        %v3545 = vunpack.c.l.b16 %v3479
        %v3546 = vunpack.c.l.b16 %v3482
        %v3547 = vunpack.c.l.b16 %v3486
        %v3548 = vunpack.c.l.b16 %v3489
        %v3549 = vunpack.c.l.b16 %v3493
        %v3550 = vunpack.c.l.b16 %v3496
        %v3551 = vunpack.c.l.b16 %v3500
        %v3552 = vunpack.c.l.b16 %v3503
        %v3553 = vpack.c.b16 %v3522, %v3521
        %v3554 = vpack.c.b16 %v3524, %v3523
        %v3555 = vpack.c.b16 %v3526, %v3525
        %v3556 = vpack.c.b16 %v3528, %v3527
        %v3557 = vpack.c.b16 %v3530, %v3529
        %v3558 = vpack.c.b16 %v3532, %v3531
        %v3559 = vpack.c.b16 %v3534, %v3533
        %v3560 = vpack.c.b16 %v3536, %v3535
        %v3561 = vpack.c.b16 %v3538, %v3537
        %v3562 = vpack.c.b16 %v3540, %v3539
        %v3563 = vpack.c.b16 %v3542, %v3541
        %v3564 = vpack.c.b16 %v3544, %v3543
        %v3565 = vpack.c.b16 %v3546, %v3545
        %v3566 = vpack.c.b16 %v3548, %v3547
        %v3567 = vpack.c.b16 %v3550, %v3549
        %v3568 = vpack.c.b16 %v3552, %v3551
        %v3601 = vunpack.c.l.b16 %v3505
        %v3602 = vunpack.c.l.b16 %v3506
        %v3603 = vunpack.c.l.b16 %v3507
        %v3604 = vunpack.c.l.b16 %v3508
        %v3605 = vunpack.c.l.b16 %v3509
        %v3606 = vunpack.c.l.b16 %v3510
        %v3607 = vunpack.c.l.b16 %v3511
        %v3608 = vunpack.c.l.b16 %v3512
        %v3609 = vunpack.c.l.b16 %v3513
        %v3610 = vunpack.c.l.b16 %v3514
        %v3611 = vunpack.c.l.b16 %v3515
        %v3612 = vunpack.c.l.b16 %v3516
        %v3613 = vunpack.c.l.b16 %v3517
        %v3614 = vunpack.c.l.b16 %v3518
        %v3615 = vunpack.c.l.b16 %v3519
        %v3616 = vunpack.c.l.b16 %v3520
        %v3617 = vpack.c.b16 %v3602, %v3601
        %v3618 = vpack.c.b16 %v3604, %v3603
        %v3619 = vpack.c.b16 %v3606, %v3605
        %v3620 = vpack.c.b16 %v3608, %v3607
        %v3621 = vpack.c.b16 %v3610, %v3609
        %v3622 = vpack.c.b16 %v3612, %v3611
        %v3623 = vpack.c.b16 %v3614, %v3613
        %v3624 = vpack.c.b16 %v3616, %v3615
        %3633 = vmatprep.subr.bf16.mxu0 0
        %3634 = vmatpush1.bf16.msra.mxu0 %v3617
        %3635 = vmatprep.subr.bf16.mxu0 0
        %3636 = vmatpush1.bf16.msra.mxu0 %v3618
        %3637 = vmatprep.subr.bf16.mxu0 0
        %3638 = vmatpush1.bf16.msra.mxu0 %v3619
        %3639 = vmatprep.subr.bf16.mxu0 0
        %3640 = vmatpush1.bf16.msra.mxu0 %v3620
        %3641 = vmatprep.subr.bf16.mxu0 0
        %3642 = vmatpush1.bf16.msra.mxu0 %v3621
        %3643 = vmatprep.subr.bf16.mxu0 0
        %3644 = vmatpush1.bf16.msra.mxu0 %v3622
        %3645 = vmatprep.subr.bf16.mxu0 0
        %3646 = vmatpush1.bf16.msra.mxu0 %v3623
        %3647 = vmatprep.subr.bf16.mxu0 0
        %3648 = vmatpush1.bf16.msra.mxu0 %v3624
        %3649 = vmatprep.subr.bf16.mxu0 0
        %3650 = vmatpush1.bf16.msra.mxu0 0
        %3651 = vmatprep.subr.bf16.mxu0 0
        %3652 = vmatpush1.bf16.msra.mxu0 0
        %3653 = vmatprep.subr.bf16.mxu0 0
        %3654 = vmatpush1.bf16.msra.mxu0 0
        %3655 = vmatprep.subr.bf16.mxu0 0
        %3656 = vmatpush1.bf16.msra.mxu0 0
        %3657 = vmatprep.subr.bf16.mxu0 0
        %3658 = vmatpush1.bf16.msra.mxu0 0
        %3659 = vmatprep.subr.bf16.mxu0 0
        %3660 = vmatpush1.bf16.msra.mxu0 0
        %3661 = vmatprep.subr.bf16.mxu0 0
        %3662 = vmatpush1.bf16.msra.mxu0 0
        %3663 = vmatprep.subr.bf16.mxu0 0
        %3664 = vmatpush1.bf16.msra.mxu0 0
        %3665 = vmatprep.mubr.bf16.mxu0 0
        %3666 = vmatmul.mubr.bf16.gmra.mrb[0].mxu0 %v3553
        %v3667 = vpop.f32.mrb[0].mxu0
        %v3668 = vadd.f32 0.0, %v3667
        %v3669 = vpop.f32.mrb[0].mxu0
        %v3670 = vpop.f32.mrb[0].mxu0
        %v3671 = vadd.f32 0.0, %v3670
        %v3672 = vpop.f32.mrb[0].mxu0
        %3673 = vmatprep.mubr.bf16.mxu0 0
        %3674 = vmatmul.mubr.bf16.gmra.mrb[0].mxu0 %v3554
        %v3675 = vpop.f32.mrb[0].mxu0
        %v3676 = vadd.f32 0.0, %v3675
        %v3677 = vpop.f32.mrb[0].mxu0
        %v3678 = vpop.f32.mrb[0].mxu0
        %v3679 = vadd.f32 0.0, %v3678
        %v3680 = vpop.f32.mrb[0].mxu0
        %3681 = vmatprep.mubr.bf16.mxu0 0
        %3682 = vmatmul.mubr.bf16.gmra.mrb[0].mxu0 %v3555
        %v3683 = vpop.f32.mrb[0].mxu0
        %v3684 = vadd.f32 0.0, %v3683
        %v3685 = vpop.f32.mrb[0].mxu0
        %v3686 = vpop.f32.mrb[0].mxu0
        %v3687 = vadd.f32 0.0, %v3686
        %v3688 = vpop.f32.mrb[0].mxu0
        %3689 = vmatprep.mubr.bf16.mxu0 0
        %3690 = vmatmul.mubr.bf16.gmra.mrb[0].mxu0 %v3556
        %v3691 = vpop.f32.mrb[0].mxu0
        %v3692 = vadd.f32 0.0, %v3691
        %v3693 = vpop.f32.mrb[0].mxu0
        %v3694 = vpop.f32.mrb[0].mxu0
        %v3695 = vadd.f32 0.0, %v3694
        %v3696 = vpop.f32.mrb[0].mxu0
        %3697 = vmatprep.mubr.bf16.mxu0 0
        %3698 = vmatmul.mubr.bf16.gmra.mrb[0].mxu0 %v3557
        %v3699 = vpop.f32.mrb[0].mxu0
        %v3700 = vadd.f32 0.0, %v3699
        %v3701 = vpop.f32.mrb[0].mxu0
        %v3702 = vpop.f32.mrb[0].mxu0
        %v3703 = vadd.f32 0.0, %v3702
        %v3704 = vpop.f32.mrb[0].mxu0
        %3705 = vmatprep.mubr.bf16.mxu0 0
        %3706 = vmatmul.mubr.bf16.gmra.mrb[0].mxu0 %v3558
        %v3707 = vpop.f32.mrb[0].mxu0
        %v3708 = vadd.f32 0.0, %v3707
        %v3709 = vpop.f32.mrb[0].mxu0
        %v3710 = vpop.f32.mrb[0].mxu0
        %v3711 = vadd.f32 0.0, %v3710
        %v3712 = vpop.f32.mrb[0].mxu0
        %3713 = vmatprep.mubr.bf16.mxu0 0
        %3714 = vmatmul.mubr.bf16.gmra.mrb[0].mxu0 %v3559
        %v3715 = vpop.f32.mrb[0].mxu0
        %v3716 = vadd.f32 0.0, %v3715
        %v3717 = vpop.f32.mrb[0].mxu0
        %v3718 = vpop.f32.mrb[0].mxu0
        %v3719 = vadd.f32 0.0, %v3718
        %v3720 = vpop.f32.mrb[0].mxu0
        %3721 = vmatprep.mubr.bf16.mxu0 0
        %3722 = vmatmul.mubr.bf16.gmra.mrb[0].mxu0 %v3560
        %v3723 = vpop.f32.mrb[0].mxu0
        %v3724 = vadd.f32 0.0, %v3723
        %v3725 = vpop.f32.mrb[0].mxu0
        %v3726 = vpop.f32.mrb[0].mxu0
        %v3727 = vadd.f32 0.0, %v3726
        %v3728 = vpop.f32.mrb[0].mxu0
        %3729 = vmatprep.mubr.bf16.mxu0 0
        %3730 = vmatmul.mubr.bf16.gmra.mrb[0].mxu0 %v3561
        %v3731 = vpop.f32.mrb[0].mxu0
        %v3732 = vadd.f32 0.0, %v3731
        %v3733 = vpop.f32.mrb[0].mxu0
        %v3734 = vpop.f32.mrb[0].mxu0
        %v3735 = vadd.f32 0.0, %v3734
        %v3736 = vpop.f32.mrb[0].mxu0
        %3737 = vmatprep.mubr.bf16.mxu0 0
        %3738 = vmatmul.mubr.bf16.gmra.mrb[0].mxu0 %v3562
        %v3739 = vpop.f32.mrb[0].mxu0
        %v3740 = vadd.f32 0.0, %v3739
        %v3741 = vpop.f32.mrb[0].mxu0
        %v3742 = vpop.f32.mrb[0].mxu0
        %v3743 = vadd.f32 0.0, %v3742
        %v3744 = vpop.f32.mrb[0].mxu0
        %3745 = vmatprep.mubr.bf16.mxu0 0
        %3746 = vmatmul.mubr.bf16.gmra.mrb[0].mxu0 %v3563
        %v3747 = vpop.f32.mrb[0].mxu0
        %v3748 = vadd.f32 0.0, %v3747
        %v3749 = vpop.f32.mrb[0].mxu0
        %v3750 = vpop.f32.mrb[0].mxu0
        %v3751 = vadd.f32 0.0, %v3750
        %v3752 = vpop.f32.mrb[0].mxu0
        %3753 = vmatprep.mubr.bf16.mxu0 0
        %3754 = vmatmul.mubr.bf16.gmra.mrb[0].mxu0 %v3564
        %v3755 = vpop.f32.mrb[0].mxu0
        %v3756 = vadd.f32 0.0, %v3755
        %v3757 = vpop.f32.mrb[0].mxu0
        %v3758 = vpop.f32.mrb[0].mxu0
        %v3759 = vadd.f32 0.0, %v3758
        %v3760 = vpop.f32.mrb[0].mxu0
        %3761 = vmatprep.mubr.bf16.mxu0 0
        %3762 = vmatmul.mubr.bf16.gmra.mrb[0].mxu0 %v3565
        %v3763 = vpop.f32.mrb[0].mxu0
        %v3764 = vadd.f32 0.0, %v3763
        %v3765 = vpop.f32.mrb[0].mxu0
        %v3766 = vpop.f32.mrb[0].mxu0
        %v3767 = vadd.f32 0.0, %v3766
        %v3768 = vpop.f32.mrb[0].mxu0
        %3769 = vmatprep.mubr.bf16.mxu0 0
        %3770 = vmatmul.mubr.bf16.gmra.mrb[0].mxu0 %v3566
        %v3771 = vpop.f32.mrb[0].mxu0
        %v3772 = vadd.f32 0.0, %v3771
        %v3773 = vpop.f32.mrb[0].mxu0
        %v3774 = vpop.f32.mrb[0].mxu0
        %v3775 = vadd.f32 0.0, %v3774
        %v3776 = vpop.f32.mrb[0].mxu0
        %3777 = vmatprep.mubr.bf16.mxu0 0
        %3778 = vmatmul.mubr.bf16.gmra.mrb[0].mxu0 %v3567
        %v3779 = vpop.f32.mrb[0].mxu0
        %v3780 = vadd.f32 0.0, %v3779
        %v3781 = vpop.f32.mrb[0].mxu0
        %v3782 = vpop.f32.mrb[0].mxu0
        %v3783 = vadd.f32 0.0, %v3782
        %v3784 = vpop.f32.mrb[0].mxu0
        %3785 = vmatprep.mubr.bf16.mxu0 0
        %3786 = vmatmul.mubr.bf16.gmra.mrb[0].mxu0 %v3568
        %v3787 = vpop.f32.mrb[0].mxu0
        %v3788 = vadd.f32 0.0, %v3787
        %v3789 = vpop.f32.mrb[0].mxu0
        %v3790 = vpop.f32.mrb[0].mxu0
        %v3791 = vadd.f32 0.0, %v3790
        %v3792 = vpop.f32.mrb[0].mxu0
        %3793 = vdwg.mxu0
        %v3794 = vld [vmem:[#allocation3] sm:$0xff]
        %v3795 = vld [vmem:[#allocation3 + $0x8] sm:$0xff]
        %v3796 = vld [vmem:[#allocation3 + $0x10] sm:$0xff]
        %v3797 = vld [vmem:[#allocation3 + $0x18] sm:$0xff]
        %v3798 = vld [vmem:[#allocation3 + $0x20] sm:$0xff]
        %v3799 = vld [vmem:[#allocation3 + $0x28] sm:$0xff]
        %v3800 = vld [vmem:[#allocation3 + $0x30] sm:$0xff]
        %v3801 = vld [vmem:[#allocation3 + $0x38] sm:$0xff]
        %v3802 = vld [vmem:[#allocation3 + $0x40] sm:$0xff]
        %v3803 = vld [vmem:[#allocation3 + $0x48] sm:$0xff]
        %v3804 = vld [vmem:[#allocation3 + $0x50] sm:$0xff]
        %v3805 = vld [vmem:[#allocation3 + $0x58] sm:$0xff]
        %v3806 = vld [vmem:[#allocation3 + $0x60] sm:$0xff]
        %v3807 = vld [vmem:[#allocation3 + $0x68] sm:$0xff]
        %v3808 = vld [vmem:[#allocation3 + $0x70] sm:$0xff]
        %v3809 = vld [vmem:[#allocation3 + $0x78] sm:$0xff]
        %v3810 = vld [vmem:[#allocation3 + $0x80] sm:$0xff]
        %v3811 = vld [vmem:[#allocation3 + $0x88] sm:$0xff]
        %v3812 = vld [vmem:[#allocation3 + $0x90] sm:$0xff]
        %v3813 = vld [vmem:[#allocation3 + $0x98] sm:$0xff]
        %v3814 = vld [vmem:[#allocation3 + $0xa0] sm:$0xff]
        %v3815 = vld [vmem:[#allocation3 + $0xa8] sm:$0xff]
        %v3816 = vld [vmem:[#allocation3 + $0xb0] sm:$0xff]
        %v3817 = vld [vmem:[#allocation3 + $0xb8] sm:$0xff]
        %v3818 = vld [vmem:[#allocation3 + $0xc0] sm:$0xff]
        %v3819 = vld [vmem:[#allocation3 + $0xc8] sm:$0xff]
        %v3820 = vld [vmem:[#allocation3 + $0xd0] sm:$0xff]
        %v3821 = vld [vmem:[#allocation3 + $0xd8] sm:$0xff]
        %v3822 = vld [vmem:[#allocation3 + $0xe0] sm:$0xff]
        %v3823 = vld [vmem:[#allocation3 + $0xe8] sm:$0xff]
        %v3824 = vld [vmem:[#allocation3 + $0xf0] sm:$0xff]
        %v3825 = vld [vmem:[#allocation3 + $0xf8] sm:$0xff]
        %v3826 = vadd.f32 %v3794, %v3668
        %v3827 = vadd.f32 %v3795, %v3671
        %v3828 = vadd.f32 %v3796, %v3676
        %v3829 = vadd.f32 %v3797, %v3679
        %v3830 = vadd.f32 %v3798, %v3684
        %v3831 = vadd.f32 %v3799, %v3687
        %v3832 = vadd.f32 %v3800, %v3692
        %v3833 = vadd.f32 %v3801, %v3695
        %v3834 = vadd.f32 %v3802, %v3700
        %v3835 = vadd.f32 %v3803, %v3703
        %v3836 = vadd.f32 %v3804, %v3708
        %v3837 = vadd.f32 %v3805, %v3711
        %v3838 = vadd.f32 %v3806, %v3716
        %v3839 = vadd.f32 %v3807, %v3719
        %v3840 = vadd.f32 %v3808, %v3724
        %v3841 = vadd.f32 %v3809, %v3727
        %v3842 = vadd.f32 %v3810, %v3732
        %v3843 = vadd.f32 %v3811, %v3735
        %v3844 = vadd.f32 %v3812, %v3740
        %v3845 = vadd.f32 %v3813, %v3743
        %v3846 = vadd.f32 %v3814, %v3748
        %v3847 = vadd.f32 %v3815, %v3751
        %v3848 = vadd.f32 %v3816, %v3756
        %v3849 = vadd.f32 %v3817, %v3759
        %v3850 = vadd.f32 %v3818, %v3764
        %v3851 = vadd.f32 %v3819, %v3767
        %v3852 = vadd.f32 %v3820, %v3772
        %v3853 = vadd.f32 %v3821, %v3775
        %v3854 = vadd.f32 %v3822, %v3780
        %v3855 = vadd.f32 %v3823, %v3783
        %v3856 = vadd.f32 %v3824, %v3788
        %v3857 = vadd.f32 %v3825, %v3791
        %3858 = vst [vmem:[#allocation3] sm:$0xff] %v3826
        %3859 = vst [vmem:[#allocation3 + $0x8] sm:$0xff] %v3827
        %3860 = vst [vmem:[#allocation3 + $0x10] sm:$0xff] %v3828
        %3861 = vst [vmem:[#allocation3 + $0x18] sm:$0xff] %v3829
        %3862 = vst [vmem:[#allocation3 + $0x20] sm:$0xff] %v3830
        %3863 = vst [vmem:[#allocation3 + $0x28] sm:$0xff] %v3831
        %3864 = vst [vmem:[#allocation3 + $0x30] sm:$0xff] %v3832
        %3865 = vst [vmem:[#allocation3 + $0x38] sm:$0xff] %v3833
        %3866 = vst [vmem:[#allocation3 + $0x40] sm:$0xff] %v3834
        %3867 = vst [vmem:[#allocation3 + $0x48] sm:$0xff] %v3835
        %3868 = vst [vmem:[#allocation3 + $0x50] sm:$0xff] %v3836
        %3869 = vst [vmem:[#allocation3 + $0x58] sm:$0xff] %v3837
        %3870 = vst [vmem:[#allocation3 + $0x60] sm:$0xff] %v3838
        %3871 = vst [vmem:[#allocation3 + $0x68] sm:$0xff] %v3839
        %3872 = vst [vmem:[#allocation3 + $0x70] sm:$0xff] %v3840
        %3873 = vst [vmem:[#allocation3 + $0x78] sm:$0xff] %v3841
        %3874 = vst [vmem:[#allocation3 + $0x80] sm:$0xff] %v3842
        %3875 = vst [vmem:[#allocation3 + $0x88] sm:$0xff] %v3843
        %3876 = vst [vmem:[#allocation3 + $0x90] sm:$0xff] %v3844
        %3877 = vst [vmem:[#allocation3 + $0x98] sm:$0xff] %v3845
        %3878 = vst [vmem:[#allocation3 + $0xa0] sm:$0xff] %v3846
        %3879 = vst [vmem:[#allocation3 + $0xa8] sm:$0xff] %v3847
        %3880 = vst [vmem:[#allocation3 + $0xb0] sm:$0xff] %v3848
        %3881 = vst [vmem:[#allocation3 + $0xb8] sm:$0xff] %v3849
        %3882 = vst [vmem:[#allocation3 + $0xc0] sm:$0xff] %v3850
        %3883 = vst [vmem:[#allocation3 + $0xc8] sm:$0xff] %v3851
        %3884 = vst [vmem:[#allocation3 + $0xd0] sm:$0xff] %v3852
        %3885 = vst [vmem:[#allocation3 + $0xd8] sm:$0xff] %v3853
        %3886 = vst [vmem:[#allocation3 + $0xe0] sm:$0xff] %v3854
        %3887 = vst [vmem:[#allocation3 + $0xe8] sm:$0xff] %v3855
        %3888 = vst [vmem:[#allocation3 + $0xf0] sm:$0xff] %v3856
        %3889 = vst [vmem:[#allocation3 + $0xf8] sm:$0xff] %v3857
        %s3890 = scalar_lea.vmem %s222, 24
        %v3891 = vld [vmem:[%s3890] sm:$0xf]
        %v3892 = vld [vmem:[%s3890 + $0x4] sm:$0xf]
        %v3893 = vld [vmem:[%s3890 + $0xc] sm:$0xf]
        %v3894 = vld [vmem:[%s3890 + $0x10] sm:$0xf]
        %v3895 = vld [vmem:[%s3890 + $0x18] sm:$0xf]
        %v3896 = vld [vmem:[%s3890 + $0x1c] sm:$0xf]
        %v3897 = vld [vmem:[%s3890 + $0x24] sm:$0xf]
        %v3898 = vld [vmem:[%s3890 + $0x28] sm:$0xf]
        %v3899 = vld [vmem:[%s3890 + $0x30] sm:$0xf]
        %v3900 = vld [vmem:[%s3890 + $0x34] sm:$0xf]
        %v3901 = vld [vmem:[%s3890 + $0x3c] sm:$0xf]
        %v3902 = vld [vmem:[%s3890 + $0x40] sm:$0xf]
        %v3903 = vld [vmem:[%s3890 + $0x48] sm:$0xf]
        %v3904 = vld [vmem:[%s3890 + $0x4c] sm:$0xf]
        %v3905 = vld [vmem:[%s3890 + $0x54] sm:$0xf]
        %v3906 = vld [vmem:[%s3890 + $0x58] sm:$0xf]
        %v3907 = vld [vmem:[%s3890 + $0x60] sm:$0xf]
        %v3908 = vld [vmem:[%s3890 + $0x64] sm:$0xf]
        %v3909 = vld [vmem:[%s3890 + $0x6c] sm:$0xf]
        %v3910 = vld [vmem:[%s3890 + $0x70] sm:$0xf]
        %v3911 = vld [vmem:[%s3890 + $0x78] sm:$0xf]
        %v3912 = vld [vmem:[%s3890 + $0x7c] sm:$0xf]
        %v3913 = vld [vmem:[%s3890 + $0x84] sm:$0xf]
        %v3914 = vld [vmem:[%s3890 + $0x88] sm:$0xf]
        %v3915 = vld [vmem:[%s3890 + $0x90] sm:$0xf]
        %v3916 = vld [vmem:[%s3890 + $0x94] sm:$0xf]
        %v3917 = vld [vmem:[%s3890 + $0x9c] sm:$0xf]
        %v3918 = vld [vmem:[%s3890 + $0xa0] sm:$0xf]
        %v3919 = vld [vmem:[%s3890 + $0xa8] sm:$0xf]
        %v3920 = vld [vmem:[%s3890 + $0xac] sm:$0xf]
        %v3921 = vld [vmem:[%s3890 + $0xb4] sm:$0xf]
        %v3922 = vld [vmem:[%s3890 + $0xb8] sm:$0xf]
        %s3923 = scalar_lea.vmem %s1, 384
        %v3924 = vld [vmem:[%s3923] sm:$0xf]
        %v3925 = vld [vmem:[%s3923 + $0x4] sm:$0xf]
        %v3926 = vld [vmem:[%s3923 + $0x8] sm:$0xf]
        %v3927 = vld [vmem:[%s3923 + $0xc] sm:$0xf]
        %v3928 = vld [vmem:[%s3923 + $0x10] sm:$0xf]
        %v3929 = vld [vmem:[%s3923 + $0x14] sm:$0xf]
        %v3930 = vld [vmem:[%s3923 + $0x18] sm:$0xf]
        %v3931 = vld [vmem:[%s3923 + $0x1c] sm:$0xf]
        %v3932 = vld [vmem:[%s3923 + $0x20] sm:$0xf]
        %v3933 = vld [vmem:[%s3923 + $0x24] sm:$0xf]
        %v3934 = vld [vmem:[%s3923 + $0x28] sm:$0xf]
        %v3935 = vld [vmem:[%s3923 + $0x2c] sm:$0xf]
        %v3936 = vld [vmem:[%s3923 + $0x30] sm:$0xf]
        %v3937 = vld [vmem:[%s3923 + $0x34] sm:$0xf]
        %v3938 = vld [vmem:[%s3923 + $0x38] sm:$0xf]
        %v3939 = vld [vmem:[%s3923 + $0x3c] sm:$0xf]
        %v3972 = vunpack.c.l.b16 %v3891
        %v3973 = vunpack.c.l.b16 %v3892
        %v3974 = vunpack.c.l.b16 %v3893
        %v3975 = vunpack.c.l.b16 %v3894
        %v3976 = vunpack.c.l.b16 %v3895
        %v3977 = vunpack.c.l.b16 %v3896
        %v3978 = vunpack.c.l.b16 %v3897
        %v3979 = vunpack.c.l.b16 %v3898
        %v3980 = vunpack.c.l.b16 %v3899
        %v3981 = vunpack.c.l.b16 %v3900
        %v3982 = vunpack.c.l.b16 %v3901
        %v3983 = vunpack.c.l.b16 %v3902
        %v3984 = vunpack.c.l.b16 %v3903
        %v3985 = vunpack.c.l.b16 %v3904
        %v3986 = vunpack.c.l.b16 %v3905
        %v3987 = vunpack.c.l.b16 %v3906
        %v3988 = vunpack.c.l.b16 %v3907
        %v3989 = vunpack.c.l.b16 %v3908
        %v3990 = vunpack.c.l.b16 %v3909
        %v3991 = vunpack.c.l.b16 %v3910
        %v3992 = vunpack.c.l.b16 %v3911
        %v3993 = vunpack.c.l.b16 %v3912
        %v3994 = vunpack.c.l.b16 %v3913
        %v3995 = vunpack.c.l.b16 %v3914
        %v3996 = vunpack.c.l.b16 %v3915
        %v3997 = vunpack.c.l.b16 %v3916
        %v3998 = vunpack.c.l.b16 %v3917
        %v3999 = vunpack.c.l.b16 %v3918
        %v4000 = vunpack.c.l.b16 %v3919
        %v4001 = vunpack.c.l.b16 %v3920
        %v4002 = vunpack.c.l.b16 %v3921
        %v4003 = vunpack.c.l.b16 %v3922
        %v4004 = vpack.c.b16 %v3973, %v3972
        %v4005 = vpack.c.b16 %v3975, %v3974
        %v4006 = vpack.c.b16 %v3977, %v3976
        %v4007 = vpack.c.b16 %v3979, %v3978
        %v4008 = vpack.c.b16 %v3981, %v3980
        %v4009 = vpack.c.b16 %v3983, %v3982
        %v4010 = vpack.c.b16 %v3985, %v3984
        %v4011 = vpack.c.b16 %v3987, %v3986
        %v4012 = vpack.c.b16 %v3989, %v3988
        %v4013 = vpack.c.b16 %v3991, %v3990
        %v4014 = vpack.c.b16 %v3993, %v3992
        %v4015 = vpack.c.b16 %v3995, %v3994
        %v4016 = vpack.c.b16 %v3997, %v3996
        %v4017 = vpack.c.b16 %v3999, %v3998
        %v4018 = vpack.c.b16 %v4001, %v4000
        %v4019 = vpack.c.b16 %v4003, %v4002
        %v4052 = vunpack.c.l.b16 %v3924
        %v4053 = vunpack.c.l.b16 %v3925
        %v4054 = vunpack.c.l.b16 %v3926
        %v4055 = vunpack.c.l.b16 %v3927
        %v4056 = vunpack.c.l.b16 %v3928
        %v4057 = vunpack.c.l.b16 %v3929
        %v4058 = vunpack.c.l.b16 %v3930
        %v4059 = vunpack.c.l.b16 %v3931
        %v4060 = vunpack.c.l.b16 %v3932
        %v4061 = vunpack.c.l.b16 %v3933
        %v4062 = vunpack.c.l.b16 %v3934
        %v4063 = vunpack.c.l.b16 %v3935
        %v4064 = vunpack.c.l.b16 %v3936
        %v4065 = vunpack.c.l.b16 %v3937
        %v4066 = vunpack.c.l.b16 %v3938
        %v4067 = vunpack.c.l.b16 %v3939
        %v4068 = vpack.c.b16 %v4053, %v4052
        %v4069 = vpack.c.b16 %v4055, %v4054
        %v4070 = vpack.c.b16 %v4057, %v4056
        %v4071 = vpack.c.b16 %v4059, %v4058
        %v4072 = vpack.c.b16 %v4061, %v4060
        %v4073 = vpack.c.b16 %v4063, %v4062
        %v4074 = vpack.c.b16 %v4065, %v4064
        %v4075 = vpack.c.b16 %v4067, %v4066
        %4084 = vmatprep.subr.bf16.mxu0 0
        %4085 = vmatpush1.bf16.msra.mxu0 %v4068
        %4086 = vmatprep.subr.bf16.mxu0 0
        %4087 = vmatpush1.bf16.msra.mxu0 %v4069
        %4088 = vmatprep.subr.bf16.mxu0 0
        %4089 = vmatpush1.bf16.msra.mxu0 %v4070
        %4090 = vmatprep.subr.bf16.mxu0 0
        %4091 = vmatpush1.bf16.msra.mxu0 %v4071
        %4092 = vmatprep.subr.bf16.mxu0 0
        %4093 = vmatpush1.bf16.msra.mxu0 %v4072
        %4094 = vmatprep.subr.bf16.mxu0 0
        %4095 = vmatpush1.bf16.msra.mxu0 %v4073
        %4096 = vmatprep.subr.bf16.mxu0 0
        %4097 = vmatpush1.bf16.msra.mxu0 %v4074
        %4098 = vmatprep.subr.bf16.mxu0 0
        %4099 = vmatpush1.bf16.msra.mxu0 %v4075
        %4100 = vmatprep.subr.bf16.mxu0 0
        %4101 = vmatpush1.bf16.msra.mxu0 0
        %4102 = vmatprep.subr.bf16.mxu0 0
        %4103 = vmatpush1.bf16.msra.mxu0 0
        %4104 = vmatprep.subr.bf16.mxu0 0
        %4105 = vmatpush1.bf16.msra.mxu0 0
        %4106 = vmatprep.subr.bf16.mxu0 0
        %4107 = vmatpush1.bf16.msra.mxu0 0
        %4108 = vmatprep.subr.bf16.mxu0 0
        %4109 = vmatpush1.bf16.msra.mxu0 0
        %4110 = vmatprep.subr.bf16.mxu0 0
        %4111 = vmatpush1.bf16.msra.mxu0 0
        %4112 = vmatprep.subr.bf16.mxu0 0
        %4113 = vmatpush1.bf16.msra.mxu0 0
        %4114 = vmatprep.subr.bf16.mxu0 0
        %4115 = vmatpush1.bf16.msra.mxu0 0
        %4116 = vmatprep.mubr.bf16.mxu0 0
        %4117 = vmatmul.mubr.bf16.gmra.mrb[0].mxu0 %v4004
        %v4118 = vpop.f32.mrb[0].mxu0
        %v4119 = vadd.f32 0.0, %v4118
        %v4120 = vpop.f32.mrb[0].mxu0
        %v4121 = vpop.f32.mrb[0].mxu0
        %v4122 = vadd.f32 0.0, %v4121
        %v4123 = vpop.f32.mrb[0].mxu0
        %4124 = vmatprep.mubr.bf16.mxu0 0
        %4125 = vmatmul.mubr.bf16.gmra.mrb[0].mxu0 %v4005
        %v4126 = vpop.f32.mrb[0].mxu0
        %v4127 = vadd.f32 0.0, %v4126
        %v4128 = vpop.f32.mrb[0].mxu0
        %v4129 = vpop.f32.mrb[0].mxu0
        %v4130 = vadd.f32 0.0, %v4129
        %v4131 = vpop.f32.mrb[0].mxu0
        %4132 = vmatprep.mubr.bf16.mxu0 0
        %4133 = vmatmul.mubr.bf16.gmra.mrb[0].mxu0 %v4006
        %v4134 = vpop.f32.mrb[0].mxu0
        %v4135 = vadd.f32 0.0, %v4134
        %v4136 = vpop.f32.mrb[0].mxu0
        %v4137 = vpop.f32.mrb[0].mxu0
        %v4138 = vadd.f32 0.0, %v4137
        %v4139 = vpop.f32.mrb[0].mxu0
        %4140 = vmatprep.mubr.bf16.mxu0 0
        %4141 = vmatmul.mubr.bf16.gmra.mrb[0].mxu0 %v4007
        %v4142 = vpop.f32.mrb[0].mxu0
        %v4143 = vadd.f32 0.0, %v4142
        %v4144 = vpop.f32.mrb[0].mxu0
        %v4145 = vpop.f32.mrb[0].mxu0
        %v4146 = vadd.f32 0.0, %v4145
        %v4147 = vpop.f32.mrb[0].mxu0
        %4148 = vmatprep.mubr.bf16.mxu0 0
        %4149 = vmatmul.mubr.bf16.gmra.mrb[0].mxu0 %v4008
        %v4150 = vpop.f32.mrb[0].mxu0
        %v4151 = vadd.f32 0.0, %v4150
        %v4152 = vpop.f32.mrb[0].mxu0
        %v4153 = vpop.f32.mrb[0].mxu0
        %v4154 = vadd.f32 0.0, %v4153
        %v4155 = vpop.f32.mrb[0].mxu0
        %4156 = vmatprep.mubr.bf16.mxu0 0
        %4157 = vmatmul.mubr.bf16.gmra.mrb[0].mxu0 %v4009
        %v4158 = vpop.f32.mrb[0].mxu0
        %v4159 = vadd.f32 0.0, %v4158
        %v4160 = vpop.f32.mrb[0].mxu0
        %v4161 = vpop.f32.mrb[0].mxu0
        %v4162 = vadd.f32 0.0, %v4161
        %v4163 = vpop.f32.mrb[0].mxu0
        %4164 = vmatprep.mubr.bf16.mxu0 0
        %4165 = vmatmul.mubr.bf16.gmra.mrb[0].mxu0 %v4010
        %v4166 = vpop.f32.mrb[0].mxu0
        %v4167 = vadd.f32 0.0, %v4166
        %v4168 = vpop.f32.mrb[0].mxu0
        %v4169 = vpop.f32.mrb[0].mxu0
        %v4170 = vadd.f32 0.0, %v4169
        %v4171 = vpop.f32.mrb[0].mxu0
        %4172 = vmatprep.mubr.bf16.mxu0 0
        %4173 = vmatmul.mubr.bf16.gmra.mrb[0].mxu0 %v4011
        %v4174 = vpop.f32.mrb[0].mxu0
        %v4175 = vadd.f32 0.0, %v4174
        %v4176 = vpop.f32.mrb[0].mxu0
        %v4177 = vpop.f32.mrb[0].mxu0
        %v4178 = vadd.f32 0.0, %v4177
        %v4179 = vpop.f32.mrb[0].mxu0
        %4180 = vmatprep.mubr.bf16.mxu0 0
        %4181 = vmatmul.mubr.bf16.gmra.mrb[0].mxu0 %v4012
        %v4182 = vpop.f32.mrb[0].mxu0
        %v4183 = vadd.f32 0.0, %v4182
        %v4184 = vpop.f32.mrb[0].mxu0
        %v4185 = vpop.f32.mrb[0].mxu0
        %v4186 = vadd.f32 0.0, %v4185
        %v4187 = vpop.f32.mrb[0].mxu0
        %4188 = vmatprep.mubr.bf16.mxu0 0
        %4189 = vmatmul.mubr.bf16.gmra.mrb[0].mxu0 %v4013
        %v4190 = vpop.f32.mrb[0].mxu0
        %v4191 = vadd.f32 0.0, %v4190
        %v4192 = vpop.f32.mrb[0].mxu0
        %v4193 = vpop.f32.mrb[0].mxu0
        %v4194 = vadd.f32 0.0, %v4193
        %v4195 = vpop.f32.mrb[0].mxu0
        %4196 = vmatprep.mubr.bf16.mxu0 0
        %4197 = vmatmul.mubr.bf16.gmra.mrb[0].mxu0 %v4014
        %v4198 = vpop.f32.mrb[0].mxu0
        %v4199 = vadd.f32 0.0, %v4198
        %v4200 = vpop.f32.mrb[0].mxu0
        %v4201 = vpop.f32.mrb[0].mxu0
        %v4202 = vadd.f32 0.0, %v4201
        %v4203 = vpop.f32.mrb[0].mxu0
        %4204 = vmatprep.mubr.bf16.mxu0 0
        %4205 = vmatmul.mubr.bf16.gmra.mrb[0].mxu0 %v4015
        %v4206 = vpop.f32.mrb[0].mxu0
        %v4207 = vadd.f32 0.0, %v4206
        %v4208 = vpop.f32.mrb[0].mxu0
        %v4209 = vpop.f32.mrb[0].mxu0
        %v4210 = vadd.f32 0.0, %v4209
        %v4211 = vpop.f32.mrb[0].mxu0
        %4212 = vmatprep.mubr.bf16.mxu0 0
        %4213 = vmatmul.mubr.bf16.gmra.mrb[0].mxu0 %v4016
        %v4214 = vpop.f32.mrb[0].mxu0
        %v4215 = vadd.f32 0.0, %v4214
        %v4216 = vpop.f32.mrb[0].mxu0
        %v4217 = vpop.f32.mrb[0].mxu0
        %v4218 = vadd.f32 0.0, %v4217
        %v4219 = vpop.f32.mrb[0].mxu0
        %4220 = vmatprep.mubr.bf16.mxu0 0
        %4221 = vmatmul.mubr.bf16.gmra.mrb[0].mxu0 %v4017
        %v4222 = vpop.f32.mrb[0].mxu0
        %v4223 = vadd.f32 0.0, %v4222
        %v4224 = vpop.f32.mrb[0].mxu0
        %v4225 = vpop.f32.mrb[0].mxu0
        %v4226 = vadd.f32 0.0, %v4225
        %v4227 = vpop.f32.mrb[0].mxu0
        %4228 = vmatprep.mubr.bf16.mxu0 0
        %4229 = vmatmul.mubr.bf16.gmra.mrb[0].mxu0 %v4018
        %v4230 = vpop.f32.mrb[0].mxu0
        %v4231 = vadd.f32 0.0, %v4230
        %v4232 = vpop.f32.mrb[0].mxu0
        %v4233 = vpop.f32.mrb[0].mxu0
        %v4234 = vadd.f32 0.0, %v4233
        %v4235 = vpop.f32.mrb[0].mxu0
        %4236 = vmatprep.mubr.bf16.mxu0 0
        %4237 = vmatmul.mubr.bf16.gmra.mrb[0].mxu0 %v4019
        %v4238 = vpop.f32.mrb[0].mxu0
        %v4239 = vadd.f32 0.0, %v4238
        %v4240 = vpop.f32.mrb[0].mxu0
        %v4241 = vpop.f32.mrb[0].mxu0
        %v4242 = vadd.f32 0.0, %v4241
        %v4243 = vpop.f32.mrb[0].mxu0
        %4244 = vdwg.mxu0
        %v4245 = vld [vmem:[#allocation3] sm:$0xff]
        %v4246 = vld [vmem:[#allocation3 + $0x8] sm:$0xff]
        %v4247 = vld [vmem:[#allocation3 + $0x10] sm:$0xff]
        %v4248 = vld [vmem:[#allocation3 + $0x18] sm:$0xff]
        %v4249 = vld [vmem:[#allocation3 + $0x20] sm:$0xff]
        %v4250 = vld [vmem:[#allocation3 + $0x28] sm:$0xff]
        %v4251 = vld [vmem:[#allocation3 + $0x30] sm:$0xff]
        %v4252 = vld [vmem:[#allocation3 + $0x38] sm:$0xff]
        %v4253 = vld [vmem:[#allocation3 + $0x40] sm:$0xff]
        %v4254 = vld [vmem:[#allocation3 + $0x48] sm:$0xff]
        %v4255 = vld [vmem:[#allocation3 + $0x50] sm:$0xff]
        %v4256 = vld [vmem:[#allocation3 + $0x58] sm:$0xff]
        %v4257 = vld [vmem:[#allocation3 + $0x60] sm:$0xff]
        %v4258 = vld [vmem:[#allocation3 + $0x68] sm:$0xff]
        %v4259 = vld [vmem:[#allocation3 + $0x70] sm:$0xff]
        %v4260 = vld [vmem:[#allocation3 + $0x78] sm:$0xff]
        %v4261 = vld [vmem:[#allocation3 + $0x80] sm:$0xff]
        %v4262 = vld [vmem:[#allocation3 + $0x88] sm:$0xff]
        %v4263 = vld [vmem:[#allocation3 + $0x90] sm:$0xff]
        %v4264 = vld [vmem:[#allocation3 + $0x98] sm:$0xff]
        %v4265 = vld [vmem:[#allocation3 + $0xa0] sm:$0xff]
        %v4266 = vld [vmem:[#allocation3 + $0xa8] sm:$0xff]
        %v4267 = vld [vmem:[#allocation3 + $0xb0] sm:$0xff]
        %v4268 = vld [vmem:[#allocation3 + $0xb8] sm:$0xff]
        %v4269 = vld [vmem:[#allocation3 + $0xc0] sm:$0xff]
        %v4270 = vld [vmem:[#allocation3 + $0xc8] sm:$0xff]
        %v4271 = vld [vmem:[#allocation3 + $0xd0] sm:$0xff]
        %v4272 = vld [vmem:[#allocation3 + $0xd8] sm:$0xff]
        %v4273 = vld [vmem:[#allocation3 + $0xe0] sm:$0xff]
        %v4274 = vld [vmem:[#allocation3 + $0xe8] sm:$0xff]
        %v4275 = vld [vmem:[#allocation3 + $0xf0] sm:$0xff]
        %v4276 = vld [vmem:[#allocation3 + $0xf8] sm:$0xff]
        %v4277 = vadd.f32 %v4245, %v4119
        %v4278 = vadd.f32 %v4246, %v4122
        %v4279 = vadd.f32 %v4247, %v4127
        %v4280 = vadd.f32 %v4248, %v4130
        %v4281 = vadd.f32 %v4249, %v4135
        %v4282 = vadd.f32 %v4250, %v4138
        %v4283 = vadd.f32 %v4251, %v4143
        %v4284 = vadd.f32 %v4252, %v4146
        %v4285 = vadd.f32 %v4253, %v4151
        %v4286 = vadd.f32 %v4254, %v4154
        %v4287 = vadd.f32 %v4255, %v4159
        %v4288 = vadd.f32 %v4256, %v4162
        %v4289 = vadd.f32 %v4257, %v4167
        %v4290 = vadd.f32 %v4258, %v4170
        %v4291 = vadd.f32 %v4259, %v4175
        %v4292 = vadd.f32 %v4260, %v4178
        %v4293 = vadd.f32 %v4261, %v4183
        %v4294 = vadd.f32 %v4262, %v4186
        %v4295 = vadd.f32 %v4263, %v4191
        %v4296 = vadd.f32 %v4264, %v4194
        %v4297 = vadd.f32 %v4265, %v4199
        %v4298 = vadd.f32 %v4266, %v4202
        %v4299 = vadd.f32 %v4267, %v4207
        %v4300 = vadd.f32 %v4268, %v4210
        %v4301 = vadd.f32 %v4269, %v4215
        %v4302 = vadd.f32 %v4270, %v4218
        %v4303 = vadd.f32 %v4271, %v4223
        %v4304 = vadd.f32 %v4272, %v4226
        %v4305 = vadd.f32 %v4273, %v4231
        %v4306 = vadd.f32 %v4274, %v4234
        %v4307 = vadd.f32 %v4275, %v4239
        %v4308 = vadd.f32 %v4276, %v4242
        %4309 = vst [vmem:[#allocation3] sm:$0xff] %v4277
        %4310 = vst [vmem:[#allocation3 + $0x8] sm:$0xff] %v4278
        %4311 = vst [vmem:[#allocation3 + $0x10] sm:$0xff] %v4279
        %4312 = vst [vmem:[#allocation3 + $0x18] sm:$0xff] %v4280
        %4313 = vst [vmem:[#allocation3 + $0x20] sm:$0xff] %v4281
        %4314 = vst [vmem:[#allocation3 + $0x28] sm:$0xff] %v4282
        %4315 = vst [vmem:[#allocation3 + $0x30] sm:$0xff] %v4283
        %4316 = vst [vmem:[#allocation3 + $0x38] sm:$0xff] %v4284
        %4317 = vst [vmem:[#allocation3 + $0x40] sm:$0xff] %v4285
        %4318 = vst [vmem:[#allocation3 + $0x48] sm:$0xff] %v4286
        %4319 = vst [vmem:[#allocation3 + $0x50] sm:$0xff] %v4287
        %4320 = vst [vmem:[#allocation3 + $0x58] sm:$0xff] %v4288
        %4321 = vst [vmem:[#allocation3 + $0x60] sm:$0xff] %v4289
        %4322 = vst [vmem:[#allocation3 + $0x68] sm:$0xff] %v4290
        %4323 = vst [vmem:[#allocation3 + $0x70] sm:$0xff] %v4291
        %4324 = vst [vmem:[#allocation3 + $0x78] sm:$0xff] %v4292
        %4325 = vst [vmem:[#allocation3 + $0x80] sm:$0xff] %v4293
        %4326 = vst [vmem:[#allocation3 + $0x88] sm:$0xff] %v4294
        %4327 = vst [vmem:[#allocation3 + $0x90] sm:$0xff] %v4295
        %4328 = vst [vmem:[#allocation3 + $0x98] sm:$0xff] %v4296
        %4329 = vst [vmem:[#allocation3 + $0xa0] sm:$0xff] %v4297
        %4330 = vst [vmem:[#allocation3 + $0xa8] sm:$0xff] %v4298
        %4331 = vst [vmem:[#allocation3 + $0xb0] sm:$0xff] %v4299
        %4332 = vst [vmem:[#allocation3 + $0xb8] sm:$0xff] %v4300
        %4333 = vst [vmem:[#allocation3 + $0xc0] sm:$0xff] %v4301
        %4334 = vst [vmem:[#allocation3 + $0xc8] sm:$0xff] %v4302
        %4335 = vst [vmem:[#allocation3 + $0xd0] sm:$0xff] %v4303
        %4336 = vst [vmem:[#allocation3 + $0xd8] sm:$0xff] %v4304
        %4337 = vst [vmem:[#allocation3 + $0xe0] sm:$0xff] %v4305
        %4338 = vst [vmem:[#allocation3 + $0xe8] sm:$0xff] %v4306
        %4339 = vst [vmem:[#allocation3 + $0xf0] sm:$0xff] %v4307
        %4340 = vst [vmem:[#allocation3 + $0xf8] sm:$0xff] %v4308
        %v4341 = vld [vmem:[%s3890] sm:$0xf]
        %v4342 = vld [vmem:[%s3890 + $0x4] sm:$0xf]
        %v4343 = vld [vmem:[%s3890 + $0x8] sm:$0x1]
        %v4344 = vld [vmem:[%s3890 + $0xc] sm:$0xf]
        %v4345 = vld [vmem:[%s3890 + $0x10] sm:$0xf]
        %v4346 = vld [vmem:[%s3890 + $0x14] sm:$0x1]
        %v4347 = vld [vmem:[%s3890 + $0x18] sm:$0xf]
        %v4348 = vld [vmem:[%s3890 + $0x1c] sm:$0xf]
        %v4349 = vld [vmem:[%s3890 + $0x20] sm:$0x1]
        %v4350 = vld [vmem:[%s3890 + $0x24] sm:$0xf]
        %v4351 = vld [vmem:[%s3890 + $0x28] sm:$0xf]
        %v4352 = vld [vmem:[%s3890 + $0x2c] sm:$0x1]
        %v4353 = vld [vmem:[%s3890 + $0x30] sm:$0xf]
        %v4354 = vld [vmem:[%s3890 + $0x34] sm:$0xf]
        %v4355 = vld [vmem:[%s3890 + $0x38] sm:$0x1]
        %v4356 = vld [vmem:[%s3890 + $0x3c] sm:$0xf]
        %v4357 = vld [vmem:[%s3890 + $0x40] sm:$0xf]
        %v4358 = vld [vmem:[%s3890 + $0x44] sm:$0x1]
        %v4359 = vld [vmem:[%s3890 + $0x48] sm:$0xf]
        %v4360 = vld [vmem:[%s3890 + $0x4c] sm:$0xf]
        %v4361 = vld [vmem:[%s3890 + $0x50] sm:$0x1]
        %v4362 = vld [vmem:[%s3890 + $0x54] sm:$0xf]
        %v4363 = vld [vmem:[%s3890 + $0x58] sm:$0xf]
        %v4364 = vld [vmem:[%s3890 + $0x5c] sm:$0x1]
        %v4365 = vld [vmem:[%s3890 + $0x60] sm:$0xf]
        %v4366 = vld [vmem:[%s3890 + $0x64] sm:$0xf]
        %v4367 = vld [vmem:[%s3890 + $0x68] sm:$0x1]
        %v4368 = vld [vmem:[%s3890 + $0x6c] sm:$0xf]
        %v4369 = vld [vmem:[%s3890 + $0x70] sm:$0xf]
        %v4370 = vld [vmem:[%s3890 + $0x74] sm:$0x1]
        %v4371 = vld [vmem:[%s3890 + $0x78] sm:$0xf]
        %v4372 = vld [vmem:[%s3890 + $0x7c] sm:$0xf]
        %v4373 = vld [vmem:[%s3890 + $0x80] sm:$0x1]
        %v4374 = vld [vmem:[%s3890 + $0x84] sm:$0xf]
        %v4375 = vld [vmem:[%s3890 + $0x88] sm:$0xf]
        %v4376 = vld [vmem:[%s3890 + $0x8c] sm:$0x1]
        %v4377 = vld [vmem:[%s3890 + $0x90] sm:$0xf]
        %v4378 = vld [vmem:[%s3890 + $0x94] sm:$0xf]
        %v4379 = vld [vmem:[%s3890 + $0x98] sm:$0x1]
        %v4380 = vld [vmem:[%s3890 + $0x9c] sm:$0xf]
        %v4381 = vld [vmem:[%s3890 + $0xa0] sm:$0xf]
        %v4382 = vld [vmem:[%s3890 + $0xa4] sm:$0x1]
        %v4383 = vld [vmem:[%s3890 + $0xa8] sm:$0xf]
        %v4384 = vld [vmem:[%s3890 + $0xac] sm:$0xf]
        %v4385 = vld [vmem:[%s3890 + $0xb0] sm:$0x1]
        %v4386 = vld [vmem:[%s3890 + $0xb4] sm:$0xf]
        %v4387 = vld [vmem:[%s3890 + $0xb8] sm:$0xf]
        %v4388 = vld [vmem:[%s3890 + $0xbc] sm:$0x1]
        %v4390 = vshrl.u32 %v4341, 16
        %v4392 = vrot.slane %v4390, 4
        %v4393 = vshll.u32 %v4341, 16
        %v4395 = vrot.slane %v4393, 5
        %v4396 = vor.u32 %v4392, %v4395
        %v4397 = vrot.slane %v4396, 4
        %v4399 = vshll.u32 %v4342, 16
        %v4401 = vrot.slane %v4399, 5
        %v4402 = vsel %vm659, %v4397, %v4401
        %v4403 = vshrl.u32 %v4342, 16
        %v4405 = vrot.slane %v4403, 4
        %v4406 = vor.u32 %v4405, %v4401
        %v4407 = vrot.slane %v4406, 4
        %v4409 = vshll.u32 %v4343, 16
        %v4411 = vrot.slane %v4409, 5
        %v4412 = vsel %vm659, %v4407, %v4411
        %v4414 = vshrl.u32 %v4344, 16
        %v4416 = vrot.slane %v4414, 4
        %v4417 = vshll.u32 %v4344, 16
        %v4419 = vrot.slane %v4417, 5
        %v4420 = vor.u32 %v4416, %v4419
        %v4421 = vrot.slane %v4420, 4
        %v4423 = vshll.u32 %v4345, 16
        %v4425 = vrot.slane %v4423, 5
        %v4426 = vsel %vm659, %v4421, %v4425
        %v4427 = vshrl.u32 %v4345, 16
        %v4429 = vrot.slane %v4427, 4
        %v4430 = vor.u32 %v4429, %v4425
        %v4431 = vrot.slane %v4430, 4
        %v4433 = vshll.u32 %v4346, 16
        %v4435 = vrot.slane %v4433, 5
        %v4436 = vsel %vm659, %v4431, %v4435
        %v4438 = vshrl.u32 %v4347, 16
        %v4440 = vrot.slane %v4438, 4
        %v4441 = vshll.u32 %v4347, 16
        %v4443 = vrot.slane %v4441, 5
        %v4444 = vor.u32 %v4440, %v4443
        %v4445 = vrot.slane %v4444, 4
        %v4447 = vshll.u32 %v4348, 16
        %v4449 = vrot.slane %v4447, 5
        %v4450 = vsel %vm659, %v4445, %v4449
        %v4451 = vshrl.u32 %v4348, 16
        %v4453 = vrot.slane %v4451, 4
        %v4454 = vor.u32 %v4453, %v4449
        %v4455 = vrot.slane %v4454, 4
        %v4457 = vshll.u32 %v4349, 16
        %v4459 = vrot.slane %v4457, 5
        %v4460 = vsel %vm659, %v4455, %v4459
        %v4462 = vshrl.u32 %v4350, 16
        %v4464 = vrot.slane %v4462, 4
        %v4465 = vshll.u32 %v4350, 16
        %v4467 = vrot.slane %v4465, 5
        %v4468 = vor.u32 %v4464, %v4467
        %v4469 = vrot.slane %v4468, 4
        %v4471 = vshll.u32 %v4351, 16
        %v4473 = vrot.slane %v4471, 5
        %v4474 = vsel %vm659, %v4469, %v4473
        %v4475 = vshrl.u32 %v4351, 16
        %v4477 = vrot.slane %v4475, 4
        %v4478 = vor.u32 %v4477, %v4473
        %v4479 = vrot.slane %v4478, 4
        %v4481 = vshll.u32 %v4352, 16
        %v4483 = vrot.slane %v4481, 5
        %v4484 = vsel %vm659, %v4479, %v4483
        %v4486 = vshrl.u32 %v4353, 16
        %v4488 = vrot.slane %v4486, 4
        %v4489 = vshll.u32 %v4353, 16
        %v4491 = vrot.slane %v4489, 5
        %v4492 = vor.u32 %v4488, %v4491
        %v4493 = vrot.slane %v4492, 4
        %v4495 = vshll.u32 %v4354, 16
        %v4497 = vrot.slane %v4495, 5
        %v4498 = vsel %vm659, %v4493, %v4497
        %v4499 = vshrl.u32 %v4354, 16
        %v4501 = vrot.slane %v4499, 4
        %v4502 = vor.u32 %v4501, %v4497
        %v4503 = vrot.slane %v4502, 4
        %v4505 = vshll.u32 %v4355, 16
        %v4507 = vrot.slane %v4505, 5
        %v4508 = vsel %vm659, %v4503, %v4507
        %v4510 = vshrl.u32 %v4356, 16
        %v4512 = vrot.slane %v4510, 4
        %v4513 = vshll.u32 %v4356, 16
        %v4515 = vrot.slane %v4513, 5
        %v4516 = vor.u32 %v4512, %v4515
        %v4517 = vrot.slane %v4516, 4
        %v4519 = vshll.u32 %v4357, 16
        %v4521 = vrot.slane %v4519, 5
        %v4522 = vsel %vm659, %v4517, %v4521
        %v4523 = vshrl.u32 %v4357, 16
        %v4525 = vrot.slane %v4523, 4
        %v4526 = vor.u32 %v4525, %v4521
        %v4527 = vrot.slane %v4526, 4
        %v4529 = vshll.u32 %v4358, 16
        %v4531 = vrot.slane %v4529, 5
        %v4532 = vsel %vm659, %v4527, %v4531
        %v4534 = vshrl.u32 %v4359, 16
        %v4536 = vrot.slane %v4534, 4
        %v4537 = vshll.u32 %v4359, 16
        %v4539 = vrot.slane %v4537, 5
        %v4540 = vor.u32 %v4536, %v4539
        %v4541 = vrot.slane %v4540, 4
        %v4543 = vshll.u32 %v4360, 16
        %v4545 = vrot.slane %v4543, 5
        %v4546 = vsel %vm659, %v4541, %v4545
        %v4547 = vshrl.u32 %v4360, 16
        %v4549 = vrot.slane %v4547, 4
        %v4550 = vor.u32 %v4549, %v4545
        %v4551 = vrot.slane %v4550, 4
        %v4553 = vshll.u32 %v4361, 16
        %v4555 = vrot.slane %v4553, 5
        %v4556 = vsel %vm659, %v4551, %v4555
        %v4558 = vshrl.u32 %v4362, 16
        %v4560 = vrot.slane %v4558, 4
        %v4561 = vshll.u32 %v4362, 16
        %v4563 = vrot.slane %v4561, 5
        %v4564 = vor.u32 %v4560, %v4563
        %v4565 = vrot.slane %v4564, 4
        %v4567 = vshll.u32 %v4363, 16
        %v4569 = vrot.slane %v4567, 5
        %v4570 = vsel %vm659, %v4565, %v4569
        %v4571 = vshrl.u32 %v4363, 16
        %v4573 = vrot.slane %v4571, 4
        %v4574 = vor.u32 %v4573, %v4569
        %v4575 = vrot.slane %v4574, 4
        %v4577 = vshll.u32 %v4364, 16
        %v4579 = vrot.slane %v4577, 5
        %v4580 = vsel %vm659, %v4575, %v4579
        %v4582 = vshrl.u32 %v4365, 16
        %v4584 = vrot.slane %v4582, 4
        %v4585 = vshll.u32 %v4365, 16
        %v4587 = vrot.slane %v4585, 5
        %v4588 = vor.u32 %v4584, %v4587
        %v4589 = vrot.slane %v4588, 4
        %v4591 = vshll.u32 %v4366, 16
        %v4593 = vrot.slane %v4591, 5
        %v4594 = vsel %vm659, %v4589, %v4593
        %v4595 = vshrl.u32 %v4366, 16
        %v4597 = vrot.slane %v4595, 4
        %v4598 = vor.u32 %v4597, %v4593
        %v4599 = vrot.slane %v4598, 4
        %v4601 = vshll.u32 %v4367, 16
        %v4603 = vrot.slane %v4601, 5
        %v4604 = vsel %vm659, %v4599, %v4603
        %v4606 = vshrl.u32 %v4368, 16
        %v4608 = vrot.slane %v4606, 4
        %v4609 = vshll.u32 %v4368, 16
        %v4611 = vrot.slane %v4609, 5
        %v4612 = vor.u32 %v4608, %v4611
        %v4613 = vrot.slane %v4612, 4
        %v4615 = vshll.u32 %v4369, 16
        %v4617 = vrot.slane %v4615, 5
        %v4618 = vsel %vm659, %v4613, %v4617
        %v4619 = vshrl.u32 %v4369, 16
        %v4621 = vrot.slane %v4619, 4
        %v4622 = vor.u32 %v4621, %v4617
        %v4623 = vrot.slane %v4622, 4
        %v4625 = vshll.u32 %v4370, 16
        %v4627 = vrot.slane %v4625, 5
        %v4628 = vsel %vm659, %v4623, %v4627
        %v4630 = vshrl.u32 %v4371, 16
        %v4632 = vrot.slane %v4630, 4
        %v4633 = vshll.u32 %v4371, 16
        %v4635 = vrot.slane %v4633, 5
        %v4636 = vor.u32 %v4632, %v4635
        %v4637 = vrot.slane %v4636, 4
        %v4639 = vshll.u32 %v4372, 16
        %v4641 = vrot.slane %v4639, 5
        %v4642 = vsel %vm659, %v4637, %v4641
        %v4643 = vshrl.u32 %v4372, 16
        %v4645 = vrot.slane %v4643, 4
        %v4646 = vor.u32 %v4645, %v4641
        %v4647 = vrot.slane %v4646, 4
        %v4649 = vshll.u32 %v4373, 16
        %v4651 = vrot.slane %v4649, 5
        %v4652 = vsel %vm659, %v4647, %v4651
        %v4654 = vshrl.u32 %v4374, 16
        %v4656 = vrot.slane %v4654, 4
        %v4657 = vshll.u32 %v4374, 16
        %v4659 = vrot.slane %v4657, 5
        %v4660 = vor.u32 %v4656, %v4659
        %v4661 = vrot.slane %v4660, 4
        %v4663 = vshll.u32 %v4375, 16
        %v4665 = vrot.slane %v4663, 5
        %v4666 = vsel %vm659, %v4661, %v4665
        %v4667 = vshrl.u32 %v4375, 16
        %v4669 = vrot.slane %v4667, 4
        %v4670 = vor.u32 %v4669, %v4665
        %v4671 = vrot.slane %v4670, 4
        %v4673 = vshll.u32 %v4376, 16
        %v4675 = vrot.slane %v4673, 5
        %v4676 = vsel %vm659, %v4671, %v4675
        %v4678 = vshrl.u32 %v4377, 16
        %v4680 = vrot.slane %v4678, 4
        %v4681 = vshll.u32 %v4377, 16
        %v4683 = vrot.slane %v4681, 5
        %v4684 = vor.u32 %v4680, %v4683
        %v4685 = vrot.slane %v4684, 4
        %v4687 = vshll.u32 %v4378, 16
        %v4689 = vrot.slane %v4687, 5
        %v4690 = vsel %vm659, %v4685, %v4689
        %v4691 = vshrl.u32 %v4378, 16
        %v4693 = vrot.slane %v4691, 4
        %v4694 = vor.u32 %v4693, %v4689
        %v4695 = vrot.slane %v4694, 4
        %v4697 = vshll.u32 %v4379, 16
        %v4699 = vrot.slane %v4697, 5
        %v4700 = vsel %vm659, %v4695, %v4699
        %v4702 = vshrl.u32 %v4380, 16
        %v4704 = vrot.slane %v4702, 4
        %v4705 = vshll.u32 %v4380, 16
        %v4707 = vrot.slane %v4705, 5
        %v4708 = vor.u32 %v4704, %v4707
        %v4709 = vrot.slane %v4708, 4
        %v4711 = vshll.u32 %v4381, 16
        %v4713 = vrot.slane %v4711, 5
        %v4714 = vsel %vm659, %v4709, %v4713
        %v4715 = vshrl.u32 %v4381, 16
        %v4717 = vrot.slane %v4715, 4
        %v4718 = vor.u32 %v4717, %v4713
        %v4719 = vrot.slane %v4718, 4
        %v4721 = vshll.u32 %v4382, 16
        %v4723 = vrot.slane %v4721, 5
        %v4724 = vsel %vm659, %v4719, %v4723
        %v4726 = vshrl.u32 %v4383, 16
        %v4728 = vrot.slane %v4726, 4
        %v4729 = vshll.u32 %v4383, 16
        %v4731 = vrot.slane %v4729, 5
        %v4732 = vor.u32 %v4728, %v4731
        %v4733 = vrot.slane %v4732, 4
        %v4735 = vshll.u32 %v4384, 16
        %v4737 = vrot.slane %v4735, 5
        %v4738 = vsel %vm659, %v4733, %v4737
        %v4739 = vshrl.u32 %v4384, 16
        %v4741 = vrot.slane %v4739, 4
        %v4742 = vor.u32 %v4741, %v4737
        %v4743 = vrot.slane %v4742, 4
        %v4745 = vshll.u32 %v4385, 16
        %v4747 = vrot.slane %v4745, 5
        %v4748 = vsel %vm659, %v4743, %v4747
        %v4750 = vshrl.u32 %v4386, 16
        %v4752 = vrot.slane %v4750, 4
        %v4753 = vshll.u32 %v4386, 16
        %v4755 = vrot.slane %v4753, 5
        %v4756 = vor.u32 %v4752, %v4755
        %v4757 = vrot.slane %v4756, 4
        %v4759 = vshll.u32 %v4387, 16
        %v4761 = vrot.slane %v4759, 5
        %v4762 = vsel %vm659, %v4757, %v4761
        %v4763 = vshrl.u32 %v4387, 16
        %v4765 = vrot.slane %v4763, 4
        %v4766 = vor.u32 %v4765, %v4761
        %v4767 = vrot.slane %v4766, 4
        %v4769 = vshll.u32 %v4388, 16
        %v4771 = vrot.slane %v4769, 5
        %v4772 = vsel %vm659, %v4767, %v4771
        %s4773 = scalar_lea.vmem %s1, 448
        %v4774 = vld [vmem:[%s4773] sm:$0xf]
        %v4775 = vld [vmem:[%s4773 + $0x4] sm:$0xf]
        %v4776 = vld [vmem:[%s4773 + $0x8] sm:$0xf]
        %v4777 = vld [vmem:[%s4773 + $0xc] sm:$0xf]
        %v4778 = vld [vmem:[%s4773 + $0x10] sm:$0xf]
        %v4779 = vld [vmem:[%s4773 + $0x14] sm:$0xf]
        %v4780 = vld [vmem:[%s4773 + $0x18] sm:$0xf]
        %v4781 = vld [vmem:[%s4773 + $0x1c] sm:$0xf]
        %v4782 = vld [vmem:[%s4773 + $0x20] sm:$0xf]
        %v4783 = vld [vmem:[%s4773 + $0x24] sm:$0xf]
        %v4784 = vld [vmem:[%s4773 + $0x28] sm:$0xf]
        %v4785 = vld [vmem:[%s4773 + $0x2c] sm:$0xf]
        %v4786 = vld [vmem:[%s4773 + $0x30] sm:$0xf]
        %v4787 = vld [vmem:[%s4773 + $0x34] sm:$0xf]
        %v4788 = vld [vmem:[%s4773 + $0x38] sm:$0xf]
        %v4789 = vld [vmem:[%s4773 + $0x3c] sm:$0xf]
        %v4790 = vunpack.c.l.b16 %v4402
        %v4791 = vunpack.c.l.b16 %v4412
        %v4792 = vunpack.c.l.b16 %v4426
        %v4793 = vunpack.c.l.b16 %v4436
        %v4794 = vunpack.c.l.b16 %v4450
        %v4795 = vunpack.c.l.b16 %v4460
        %v4796 = vunpack.c.l.b16 %v4474
        %v4797 = vunpack.c.l.b16 %v4484
        %v4798 = vunpack.c.l.b16 %v4498
        %v4799 = vunpack.c.l.b16 %v4508
        %v4800 = vunpack.c.l.b16 %v4522
        %v4801 = vunpack.c.l.b16 %v4532
        %v4802 = vunpack.c.l.b16 %v4546
        %v4803 = vunpack.c.l.b16 %v4556
        %v4804 = vunpack.c.l.b16 %v4570
        %v4805 = vunpack.c.l.b16 %v4580
        %v4806 = vunpack.c.l.b16 %v4594
        %v4807 = vunpack.c.l.b16 %v4604
        %v4808 = vunpack.c.l.b16 %v4618
        %v4809 = vunpack.c.l.b16 %v4628
        %v4810 = vunpack.c.l.b16 %v4642
        %v4811 = vunpack.c.l.b16 %v4652
        %v4812 = vunpack.c.l.b16 %v4666
        %v4813 = vunpack.c.l.b16 %v4676
        %v4814 = vunpack.c.l.b16 %v4690
        %v4815 = vunpack.c.l.b16 %v4700
        %v4816 = vunpack.c.l.b16 %v4714
        %v4817 = vunpack.c.l.b16 %v4724
        %v4818 = vunpack.c.l.b16 %v4738
        %v4819 = vunpack.c.l.b16 %v4748
        %v4820 = vunpack.c.l.b16 %v4762
        %v4821 = vunpack.c.l.b16 %v4772
        %v4822 = vpack.c.b16 %v4791, %v4790
        %v4823 = vpack.c.b16 %v4793, %v4792
        %v4824 = vpack.c.b16 %v4795, %v4794
        %v4825 = vpack.c.b16 %v4797, %v4796
        %v4826 = vpack.c.b16 %v4799, %v4798
        %v4827 = vpack.c.b16 %v4801, %v4800
        %v4828 = vpack.c.b16 %v4803, %v4802
        %v4829 = vpack.c.b16 %v4805, %v4804
        %v4830 = vpack.c.b16 %v4807, %v4806
        %v4831 = vpack.c.b16 %v4809, %v4808
        %v4832 = vpack.c.b16 %v4811, %v4810
        %v4833 = vpack.c.b16 %v4813, %v4812
        %v4834 = vpack.c.b16 %v4815, %v4814
        %v4835 = vpack.c.b16 %v4817, %v4816
        %v4836 = vpack.c.b16 %v4819, %v4818
        %v4837 = vpack.c.b16 %v4821, %v4820
        %v4870 = vunpack.c.l.b16 %v4774
        %v4871 = vunpack.c.l.b16 %v4775
        %v4872 = vunpack.c.l.b16 %v4776
        %v4873 = vunpack.c.l.b16 %v4777
        %v4874 = vunpack.c.l.b16 %v4778
        %v4875 = vunpack.c.l.b16 %v4779
        %v4876 = vunpack.c.l.b16 %v4780
        %v4877 = vunpack.c.l.b16 %v4781
        %v4878 = vunpack.c.l.b16 %v4782
        %v4879 = vunpack.c.l.b16 %v4783
        %v4880 = vunpack.c.l.b16 %v4784
        %v4881 = vunpack.c.l.b16 %v4785
        %v4882 = vunpack.c.l.b16 %v4786
        %v4883 = vunpack.c.l.b16 %v4787
        %v4884 = vunpack.c.l.b16 %v4788
        %v4885 = vunpack.c.l.b16 %v4789
        %v4886 = vpack.c.b16 %v4871, %v4870
        %v4887 = vpack.c.b16 %v4873, %v4872
        %v4888 = vpack.c.b16 %v4875, %v4874
        %v4889 = vpack.c.b16 %v4877, %v4876
        %v4890 = vpack.c.b16 %v4879, %v4878
        %v4891 = vpack.c.b16 %v4881, %v4880
        %v4892 = vpack.c.b16 %v4883, %v4882
        %v4893 = vpack.c.b16 %v4885, %v4884
        %4902 = vmatprep.subr.bf16.mxu0 0
        %4903 = vmatpush1.bf16.msra.mxu0 %v4886
        %4904 = vmatprep.subr.bf16.mxu0 0
        %4905 = vmatpush1.bf16.msra.mxu0 %v4887
        %4906 = vmatprep.subr.bf16.mxu0 0
        %4907 = vmatpush1.bf16.msra.mxu0 %v4888
        %4908 = vmatprep.subr.bf16.mxu0 0
        %4909 = vmatpush1.bf16.msra.mxu0 %v4889
        %4910 = vmatprep.subr.bf16.mxu0 0
        %4911 = vmatpush1.bf16.msra.mxu0 %v4890
        %4912 = vmatprep.subr.bf16.mxu0 0
        %4913 = vmatpush1.bf16.msra.mxu0 %v4891
        %4914 = vmatprep.subr.bf16.mxu0 0
        %4915 = vmatpush1.bf16.msra.mxu0 %v4892
        %4916 = vmatprep.subr.bf16.mxu0 0
        %4917 = vmatpush1.bf16.msra.mxu0 %v4893
        %4918 = vmatprep.subr.bf16.mxu0 0
        %4919 = vmatpush1.bf16.msra.mxu0 0
        %4920 = vmatprep.subr.bf16.mxu0 0
        %4921 = vmatpush1.bf16.msra.mxu0 0
        %4922 = vmatprep.subr.bf16.mxu0 0
        %4923 = vmatpush1.bf16.msra.mxu0 0
        %4924 = vmatprep.subr.bf16.mxu0 0
        %4925 = vmatpush1.bf16.msra.mxu0 0
        %4926 = vmatprep.subr.bf16.mxu0 0
        %4927 = vmatpush1.bf16.msra.mxu0 0
        %4928 = vmatprep.subr.bf16.mxu0 0
        %4929 = vmatpush1.bf16.msra.mxu0 0
        %4930 = vmatprep.subr.bf16.mxu0 0
        %4931 = vmatpush1.bf16.msra.mxu0 0
        %4932 = vmatprep.subr.bf16.mxu0 0
        %4933 = vmatpush1.bf16.msra.mxu0 0
        %4934 = vmatprep.mubr.bf16.mxu0 0
        %4935 = vmatmul.mubr.bf16.gmra.mrb[0].mxu0 %v4822
        %v4936 = vpop.f32.mrb[0].mxu0
        %v4937 = vadd.f32 0.0, %v4936
        %v4938 = vpop.f32.mrb[0].mxu0
        %v4939 = vpop.f32.mrb[0].mxu0
        %v4940 = vadd.f32 0.0, %v4939
        %v4941 = vpop.f32.mrb[0].mxu0
        %4942 = vmatprep.mubr.bf16.mxu0 0
        %4943 = vmatmul.mubr.bf16.gmra.mrb[0].mxu0 %v4823
        %v4944 = vpop.f32.mrb[0].mxu0
        %v4945 = vadd.f32 0.0, %v4944
        %v4946 = vpop.f32.mrb[0].mxu0
        %v4947 = vpop.f32.mrb[0].mxu0
        %v4948 = vadd.f32 0.0, %v4947
        %v4949 = vpop.f32.mrb[0].mxu0
        %4950 = vmatprep.mubr.bf16.mxu0 0
        %4951 = vmatmul.mubr.bf16.gmra.mrb[0].mxu0 %v4824
        %v4952 = vpop.f32.mrb[0].mxu0
        %v4953 = vadd.f32 0.0, %v4952
        %v4954 = vpop.f32.mrb[0].mxu0
        %v4955 = vpop.f32.mrb[0].mxu0
        %v4956 = vadd.f32 0.0, %v4955
        %v4957 = vpop.f32.mrb[0].mxu0
        %4958 = vmatprep.mubr.bf16.mxu0 0
        %4959 = vmatmul.mubr.bf16.gmra.mrb[0].mxu0 %v4825
        %v4960 = vpop.f32.mrb[0].mxu0
        %v4961 = vadd.f32 0.0, %v4960
        %v4962 = vpop.f32.mrb[0].mxu0
        %v4963 = vpop.f32.mrb[0].mxu0
        %v4964 = vadd.f32 0.0, %v4963
        %v4965 = vpop.f32.mrb[0].mxu0
        %4966 = vmatprep.mubr.bf16.mxu0 0
        %4967 = vmatmul.mubr.bf16.gmra.mrb[0].mxu0 %v4826
        %v4968 = vpop.f32.mrb[0].mxu0
        %v4969 = vadd.f32 0.0, %v4968
        %v4970 = vpop.f32.mrb[0].mxu0
        %v4971 = vpop.f32.mrb[0].mxu0
        %v4972 = vadd.f32 0.0, %v4971
        %v4973 = vpop.f32.mrb[0].mxu0
        %4974 = vmatprep.mubr.bf16.mxu0 0
        %4975 = vmatmul.mubr.bf16.gmra.mrb[0].mxu0 %v4827
        %v4976 = vpop.f32.mrb[0].mxu0
        %v4977 = vadd.f32 0.0, %v4976
        %v4978 = vpop.f32.mrb[0].mxu0
        %v4979 = vpop.f32.mrb[0].mxu0
        %v4980 = vadd.f32 0.0, %v4979
        %v4981 = vpop.f32.mrb[0].mxu0
        %4982 = vmatprep.mubr.bf16.mxu0 0
        %4983 = vmatmul.mubr.bf16.gmra.mrb[0].mxu0 %v4828
        %v4984 = vpop.f32.mrb[0].mxu0
        %v4985 = vadd.f32 0.0, %v4984
        %v4986 = vpop.f32.mrb[0].mxu0
        %v4987 = vpop.f32.mrb[0].mxu0
        %v4988 = vadd.f32 0.0, %v4987
        %v4989 = vpop.f32.mrb[0].mxu0
        %4990 = vmatprep.mubr.bf16.mxu0 0
        %4991 = vmatmul.mubr.bf16.gmra.mrb[0].mxu0 %v4829
        %v4992 = vpop.f32.mrb[0].mxu0
        %v4993 = vadd.f32 0.0, %v4992
        %v4994 = vpop.f32.mrb[0].mxu0
        %v4995 = vpop.f32.mrb[0].mxu0
        %v4996 = vadd.f32 0.0, %v4995
        %v4997 = vpop.f32.mrb[0].mxu0
        %4998 = vmatprep.mubr.bf16.mxu0 0
        %4999 = vmatmul.mubr.bf16.gmra.mrb[0].mxu0 %v4830
        %v5000 = vpop.f32.mrb[0].mxu0
        %v5001 = vadd.f32 0.0, %v5000
        %v5002 = vpop.f32.mrb[0].mxu0
        %v5003 = vpop.f32.mrb[0].mxu0
        %v5004 = vadd.f32 0.0, %v5003
        %v5005 = vpop.f32.mrb[0].mxu0
        %5006 = vmatprep.mubr.bf16.mxu0 0
        %5007 = vmatmul.mubr.bf16.gmra.mrb[0].mxu0 %v4831
        %v5008 = vpop.f32.mrb[0].mxu0
        %v5009 = vadd.f32 0.0, %v5008
        %v5010 = vpop.f32.mrb[0].mxu0
        %v5011 = vpop.f32.mrb[0].mxu0
        %v5012 = vadd.f32 0.0, %v5011
        %v5013 = vpop.f32.mrb[0].mxu0
        %5014 = vmatprep.mubr.bf16.mxu0 0
        %5015 = vmatmul.mubr.bf16.gmra.mrb[0].mxu0 %v4832
        %v5016 = vpop.f32.mrb[0].mxu0
        %v5017 = vadd.f32 0.0, %v5016
        %v5018 = vpop.f32.mrb[0].mxu0
        %v5019 = vpop.f32.mrb[0].mxu0
        %v5020 = vadd.f32 0.0, %v5019
        %v5021 = vpop.f32.mrb[0].mxu0
        %5022 = vmatprep.mubr.bf16.mxu0 0
        %5023 = vmatmul.mubr.bf16.gmra.mrb[0].mxu0 %v4833
        %v5024 = vpop.f32.mrb[0].mxu0
        %v5025 = vadd.f32 0.0, %v5024
        %v5026 = vpop.f32.mrb[0].mxu0
        %v5027 = vpop.f32.mrb[0].mxu0
        %v5028 = vadd.f32 0.0, %v5027
        %v5029 = vpop.f32.mrb[0].mxu0
        %5030 = vmatprep.mubr.bf16.mxu0 0
        %5031 = vmatmul.mubr.bf16.gmra.mrb[0].mxu0 %v4834
        %v5032 = vpop.f32.mrb[0].mxu0
        %v5033 = vadd.f32 0.0, %v5032
        %v5034 = vpop.f32.mrb[0].mxu0
        %v5035 = vpop.f32.mrb[0].mxu0
        %v5036 = vadd.f32 0.0, %v5035
        %v5037 = vpop.f32.mrb[0].mxu0
        %5038 = vmatprep.mubr.bf16.mxu0 0
        %5039 = vmatmul.mubr.bf16.gmra.mrb[0].mxu0 %v4835
        %v5040 = vpop.f32.mrb[0].mxu0
        %v5041 = vadd.f32 0.0, %v5040
        %v5042 = vpop.f32.mrb[0].mxu0
        %v5043 = vpop.f32.mrb[0].mxu0
        %v5044 = vadd.f32 0.0, %v5043
        %v5045 = vpop.f32.mrb[0].mxu0
        %5046 = vmatprep.mubr.bf16.mxu0 0
        %5047 = vmatmul.mubr.bf16.gmra.mrb[0].mxu0 %v4836
        %v5048 = vpop.f32.mrb[0].mxu0
        %v5049 = vadd.f32 0.0, %v5048
        %v5050 = vpop.f32.mrb[0].mxu0
        %v5051 = vpop.f32.mrb[0].mxu0
        %v5052 = vadd.f32 0.0, %v5051
        %v5053 = vpop.f32.mrb[0].mxu0
        %5054 = vmatprep.mubr.bf16.mxu0 0
        %5055 = vmatmul.mubr.bf16.gmra.mrb[0].mxu0 %v4837
        %v5056 = vpop.f32.mrb[0].mxu0
        %v5057 = vadd.f32 0.0, %v5056
        %v5058 = vpop.f32.mrb[0].mxu0
        %v5059 = vpop.f32.mrb[0].mxu0
        %v5060 = vadd.f32 0.0, %v5059
        %v5061 = vpop.f32.mrb[0].mxu0
        %5062 = vdwg.mxu0
        %v5063 = vld [vmem:[#allocation3] sm:$0xff]
        %v5064 = vld [vmem:[#allocation3 + $0x8] sm:$0xff]
        %v5065 = vld [vmem:[#allocation3 + $0x10] sm:$0xff]
        %v5066 = vld [vmem:[#allocation3 + $0x18] sm:$0xff]
        %v5067 = vld [vmem:[#allocation3 + $0x20] sm:$0xff]
        %v5068 = vld [vmem:[#allocation3 + $0x28] sm:$0xff]
        %v5069 = vld [vmem:[#allocation3 + $0x30] sm:$0xff]
        %v5070 = vld [vmem:[#allocation3 + $0x38] sm:$0xff]
        %v5071 = vld [vmem:[#allocation3 + $0x40] sm:$0xff]
        %v5072 = vld [vmem:[#allocation3 + $0x48] sm:$0xff]
        %v5073 = vld [vmem:[#allocation3 + $0x50] sm:$0xff]
        %v5074 = vld [vmem:[#allocation3 + $0x58] sm:$0xff]
        %v5075 = vld [vmem:[#allocation3 + $0x60] sm:$0xff]
        %v5076 = vld [vmem:[#allocation3 + $0x68] sm:$0xff]
        %v5077 = vld [vmem:[#allocation3 + $0x70] sm:$0xff]
        %v5078 = vld [vmem:[#allocation3 + $0x78] sm:$0xff]
        %v5079 = vld [vmem:[#allocation3 + $0x80] sm:$0xff]
        %v5080 = vld [vmem:[#allocation3 + $0x88] sm:$0xff]
        %v5081 = vld [vmem:[#allocation3 + $0x90] sm:$0xff]
        %v5082 = vld [vmem:[#allocation3 + $0x98] sm:$0xff]
        %v5083 = vld [vmem:[#allocation3 + $0xa0] sm:$0xff]
        %v5084 = vld [vmem:[#allocation3 + $0xa8] sm:$0xff]
        %v5085 = vld [vmem:[#allocation3 + $0xb0] sm:$0xff]
        %v5086 = vld [vmem:[#allocation3 + $0xb8] sm:$0xff]
        %v5087 = vld [vmem:[#allocation3 + $0xc0] sm:$0xff]
        %v5088 = vld [vmem:[#allocation3 + $0xc8] sm:$0xff]
        %v5089 = vld [vmem:[#allocation3 + $0xd0] sm:$0xff]
        %v5090 = vld [vmem:[#allocation3 + $0xd8] sm:$0xff]
        %v5091 = vld [vmem:[#allocation3 + $0xe0] sm:$0xff]
        %v5092 = vld [vmem:[#allocation3 + $0xe8] sm:$0xff]
        %v5093 = vld [vmem:[#allocation3 + $0xf0] sm:$0xff]
        %v5094 = vld [vmem:[#allocation3 + $0xf8] sm:$0xff]
        %v5095 = vadd.f32 %v5063, %v4937
        %v5096 = vadd.f32 %v5064, %v4940
        %v5097 = vadd.f32 %v5065, %v4945
        %v5098 = vadd.f32 %v5066, %v4948
        %v5099 = vadd.f32 %v5067, %v4953
        %v5100 = vadd.f32 %v5068, %v4956
        %v5101 = vadd.f32 %v5069, %v4961
        %v5102 = vadd.f32 %v5070, %v4964
        %v5103 = vadd.f32 %v5071, %v4969
        %v5104 = vadd.f32 %v5072, %v4972
        %v5105 = vadd.f32 %v5073, %v4977
        %v5106 = vadd.f32 %v5074, %v4980
        %v5107 = vadd.f32 %v5075, %v4985
        %v5108 = vadd.f32 %v5076, %v4988
        %v5109 = vadd.f32 %v5077, %v4993
        %v5110 = vadd.f32 %v5078, %v4996
        %v5111 = vadd.f32 %v5079, %v5001
        %v5112 = vadd.f32 %v5080, %v5004
        %v5113 = vadd.f32 %v5081, %v5009
        %v5114 = vadd.f32 %v5082, %v5012
        %v5115 = vadd.f32 %v5083, %v5017
        %v5116 = vadd.f32 %v5084, %v5020
        %v5117 = vadd.f32 %v5085, %v5025
        %v5118 = vadd.f32 %v5086, %v5028
        %v5119 = vadd.f32 %v5087, %v5033
        %v5120 = vadd.f32 %v5088, %v5036
        %v5121 = vadd.f32 %v5089, %v5041
        %v5122 = vadd.f32 %v5090, %v5044
        %v5123 = vadd.f32 %v5091, %v5049
        %v5124 = vadd.f32 %v5092, %v5052
        %v5125 = vadd.f32 %v5093, %v5057
        %v5126 = vadd.f32 %v5094, %v5060
        %5127 = vst [vmem:[#allocation3] sm:$0xff] %v5095
        %5128 = vst [vmem:[#allocation3 + $0x8] sm:$0xff] %v5096
        %5129 = vst [vmem:[#allocation3 + $0x10] sm:$0xff] %v5097
        %5130 = vst [vmem:[#allocation3 + $0x18] sm:$0xff] %v5098
        %5131 = vst [vmem:[#allocation3 + $0x20] sm:$0xff] %v5099
        %5132 = vst [vmem:[#allocation3 + $0x28] sm:$0xff] %v5100
        %5133 = vst [vmem:[#allocation3 + $0x30] sm:$0xff] %v5101
        %5134 = vst [vmem:[#allocation3 + $0x38] sm:$0xff] %v5102
        %5135 = vst [vmem:[#allocation3 + $0x40] sm:$0xff] %v5103
        %5136 = vst [vmem:[#allocation3 + $0x48] sm:$0xff] %v5104
        %5137 = vst [vmem:[#allocation3 + $0x50] sm:$0xff] %v5105
        %5138 = vst [vmem:[#allocation3 + $0x58] sm:$0xff] %v5106
        %5139 = vst [vmem:[#allocation3 + $0x60] sm:$0xff] %v5107
        %5140 = vst [vmem:[#allocation3 + $0x68] sm:$0xff] %v5108
        %5141 = vst [vmem:[#allocation3 + $0x70] sm:$0xff] %v5109
        %5142 = vst [vmem:[#allocation3 + $0x78] sm:$0xff] %v5110
        %5143 = vst [vmem:[#allocation3 + $0x80] sm:$0xff] %v5111
        %5144 = vst [vmem:[#allocation3 + $0x88] sm:$0xff] %v5112
        %5145 = vst [vmem:[#allocation3 + $0x90] sm:$0xff] %v5113
        %5146 = vst [vmem:[#allocation3 + $0x98] sm:$0xff] %v5114
        %5147 = vst [vmem:[#allocation3 + $0xa0] sm:$0xff] %v5115
        %5148 = vst [vmem:[#allocation3 + $0xa8] sm:$0xff] %v5116
        %5149 = vst [vmem:[#allocation3 + $0xb0] sm:$0xff] %v5117
        %5150 = vst [vmem:[#allocation3 + $0xb8] sm:$0xff] %v5118
        %5151 = vst [vmem:[#allocation3 + $0xc0] sm:$0xff] %v5119
        %5152 = vst [vmem:[#allocation3 + $0xc8] sm:$0xff] %v5120
        %5153 = vst [vmem:[#allocation3 + $0xd0] sm:$0xff] %v5121
        %5154 = vst [vmem:[#allocation3 + $0xd8] sm:$0xff] %v5122
        %5155 = vst [vmem:[#allocation3 + $0xe0] sm:$0xff] %v5123
        %5156 = vst [vmem:[#allocation3 + $0xe8] sm:$0xff] %v5124
        %5157 = vst [vmem:[#allocation3 + $0xf0] sm:$0xff] %v5125
        %5158 = vst [vmem:[#allocation3 + $0xf8] sm:$0xff] %v5126
        %v5159 = vld [vmem:[%s3890] sm:$0xe]
        %v5160 = vld [vmem:[%s3890 + $0x4] sm:$0xf]
        %v5161 = vld [vmem:[%s3890 + $0x8] sm:$0x1]
        %v5162 = vld [vmem:[%s3890 + $0xc] sm:$0xe]
        %v5163 = vld [vmem:[%s3890 + $0x10] sm:$0xf]
        %v5164 = vld [vmem:[%s3890 + $0x14] sm:$0x1]
        %v5165 = vld [vmem:[%s3890 + $0x18] sm:$0xe]
        %v5166 = vld [vmem:[%s3890 + $0x1c] sm:$0xf]
        %v5167 = vld [vmem:[%s3890 + $0x20] sm:$0x1]
        %v5168 = vld [vmem:[%s3890 + $0x24] sm:$0xe]
        %v5169 = vld [vmem:[%s3890 + $0x28] sm:$0xf]
        %v5170 = vld [vmem:[%s3890 + $0x2c] sm:$0x1]
        %v5171 = vld [vmem:[%s3890 + $0x30] sm:$0xe]
        %v5172 = vld [vmem:[%s3890 + $0x34] sm:$0xf]
        %v5173 = vld [vmem:[%s3890 + $0x38] sm:$0x1]
        %v5174 = vld [vmem:[%s3890 + $0x3c] sm:$0xe]
        %v5175 = vld [vmem:[%s3890 + $0x40] sm:$0xf]
        %v5176 = vld [vmem:[%s3890 + $0x44] sm:$0x1]
        %v5177 = vld [vmem:[%s3890 + $0x48] sm:$0xe]
        %v5178 = vld [vmem:[%s3890 + $0x4c] sm:$0xf]
        %v5179 = vld [vmem:[%s3890 + $0x50] sm:$0x1]
        %v5180 = vld [vmem:[%s3890 + $0x54] sm:$0xe]
        %v5181 = vld [vmem:[%s3890 + $0x58] sm:$0xf]
        %v5182 = vld [vmem:[%s3890 + $0x5c] sm:$0x1]
        %v5183 = vld [vmem:[%s3890 + $0x60] sm:$0xe]
        %v5184 = vld [vmem:[%s3890 + $0x64] sm:$0xf]
        %v5185 = vld [vmem:[%s3890 + $0x68] sm:$0x1]
        %v5186 = vld [vmem:[%s3890 + $0x6c] sm:$0xe]
        %v5187 = vld [vmem:[%s3890 + $0x70] sm:$0xf]
        %v5188 = vld [vmem:[%s3890 + $0x74] sm:$0x1]
        %v5189 = vld [vmem:[%s3890 + $0x78] sm:$0xe]
        %v5190 = vld [vmem:[%s3890 + $0x7c] sm:$0xf]
        %v5191 = vld [vmem:[%s3890 + $0x80] sm:$0x1]
        %v5192 = vld [vmem:[%s3890 + $0x84] sm:$0xe]
        %v5193 = vld [vmem:[%s3890 + $0x88] sm:$0xf]
        %v5194 = vld [vmem:[%s3890 + $0x8c] sm:$0x1]
        %v5195 = vld [vmem:[%s3890 + $0x90] sm:$0xe]
        %v5196 = vld [vmem:[%s3890 + $0x94] sm:$0xf]
        %v5197 = vld [vmem:[%s3890 + $0x98] sm:$0x1]
        %v5198 = vld [vmem:[%s3890 + $0x9c] sm:$0xe]
        %v5199 = vld [vmem:[%s3890 + $0xa0] sm:$0xf]
        %v5200 = vld [vmem:[%s3890 + $0xa4] sm:$0x1]
        %v5201 = vld [vmem:[%s3890 + $0xa8] sm:$0xe]
        %v5202 = vld [vmem:[%s3890 + $0xac] sm:$0xf]
        %v5203 = vld [vmem:[%s3890 + $0xb0] sm:$0x1]
        %v5204 = vld [vmem:[%s3890 + $0xb4] sm:$0xe]
        %v5205 = vld [vmem:[%s3890 + $0xb8] sm:$0xf]
        %v5206 = vld [vmem:[%s3890 + $0xbc] sm:$0x1]
        %v5255 = vrot.slane %v5159, 5
        %v5256 = vrot.slane %v5255, 4
        %v5257 = vrot.slane %v5160, 5
        %v5258 = vsel %vm1528, %v5256, %v5257
        %v5259 = vrot.slane %v5257, 4
        %v5260 = vrot.slane %v5161, 5
        %v5261 = vsel %vm1528, %v5259, %v5260
        %v5262 = vrot.slane %v5162, 5
        %v5263 = vrot.slane %v5262, 4
        %v5264 = vrot.slane %v5163, 5
        %v5265 = vsel %vm1528, %v5263, %v5264
        %v5266 = vrot.slane %v5264, 4
        %v5267 = vrot.slane %v5164, 5
        %v5268 = vsel %vm1528, %v5266, %v5267
        %v5269 = vrot.slane %v5165, 5
        %v5270 = vrot.slane %v5269, 4
        %v5271 = vrot.slane %v5166, 5
        %v5272 = vsel %vm1528, %v5270, %v5271
        %v5273 = vrot.slane %v5271, 4
        %v5274 = vrot.slane %v5167, 5
        %v5275 = vsel %vm1528, %v5273, %v5274
        %v5276 = vrot.slane %v5168, 5
        %v5277 = vrot.slane %v5276, 4
        %v5278 = vrot.slane %v5169, 5
        %v5279 = vsel %vm1528, %v5277, %v5278
        %v5280 = vrot.slane %v5278, 4
        %v5281 = vrot.slane %v5170, 5
        %v5282 = vsel %vm1528, %v5280, %v5281
        %v5283 = vrot.slane %v5171, 5
        %v5284 = vrot.slane %v5283, 4
        %v5285 = vrot.slane %v5172, 5
        %v5286 = vsel %vm1528, %v5284, %v5285
        %v5287 = vrot.slane %v5285, 4
        %v5288 = vrot.slane %v5173, 5
        %v5289 = vsel %vm1528, %v5287, %v5288
        %v5290 = vrot.slane %v5174, 5
        %v5291 = vrot.slane %v5290, 4
        %v5292 = vrot.slane %v5175, 5
        %v5293 = vsel %vm1528, %v5291, %v5292
        %v5294 = vrot.slane %v5292, 4
        %v5295 = vrot.slane %v5176, 5
        %v5296 = vsel %vm1528, %v5294, %v5295
        %v5297 = vrot.slane %v5177, 5
        %v5298 = vrot.slane %v5297, 4
        %v5299 = vrot.slane %v5178, 5
        %v5300 = vsel %vm1528, %v5298, %v5299
        %v5301 = vrot.slane %v5299, 4
        %v5302 = vrot.slane %v5179, 5
        %v5303 = vsel %vm1528, %v5301, %v5302
        %v5304 = vrot.slane %v5180, 5
        %v5305 = vrot.slane %v5304, 4
        %v5306 = vrot.slane %v5181, 5
        %v5307 = vsel %vm1528, %v5305, %v5306
        %v5308 = vrot.slane %v5306, 4
        %v5309 = vrot.slane %v5182, 5
        %v5310 = vsel %vm1528, %v5308, %v5309
        %v5311 = vrot.slane %v5183, 5
        %v5312 = vrot.slane %v5311, 4
        %v5313 = vrot.slane %v5184, 5
        %v5314 = vsel %vm1528, %v5312, %v5313
        %v5315 = vrot.slane %v5313, 4
        %v5316 = vrot.slane %v5185, 5
        %v5317 = vsel %vm1528, %v5315, %v5316
        %v5318 = vrot.slane %v5186, 5
        %v5319 = vrot.slane %v5318, 4
        %v5320 = vrot.slane %v5187, 5
        %v5321 = vsel %vm1528, %v5319, %v5320
        %v5322 = vrot.slane %v5320, 4
        %v5323 = vrot.slane %v5188, 5
        %v5324 = vsel %vm1528, %v5322, %v5323
        %v5325 = vrot.slane %v5189, 5
        %v5326 = vrot.slane %v5325, 4
        %v5327 = vrot.slane %v5190, 5
        %v5328 = vsel %vm1528, %v5326, %v5327
        %v5329 = vrot.slane %v5327, 4
        %v5330 = vrot.slane %v5191, 5
        %v5331 = vsel %vm1528, %v5329, %v5330
        %v5332 = vrot.slane %v5192, 5
        %v5333 = vrot.slane %v5332, 4
        %v5334 = vrot.slane %v5193, 5
        %v5335 = vsel %vm1528, %v5333, %v5334
        %v5336 = vrot.slane %v5334, 4
        %v5337 = vrot.slane %v5194, 5
        %v5338 = vsel %vm1528, %v5336, %v5337
        %v5339 = vrot.slane %v5195, 5
        %v5340 = vrot.slane %v5339, 4
        %v5341 = vrot.slane %v5196, 5
        %v5342 = vsel %vm1528, %v5340, %v5341
        %v5343 = vrot.slane %v5341, 4
        %v5344 = vrot.slane %v5197, 5
        %v5345 = vsel %vm1528, %v5343, %v5344
        %v5346 = vrot.slane %v5198, 5
        %v5347 = vrot.slane %v5346, 4
        %v5348 = vrot.slane %v5199, 5
        %v5349 = vsel %vm1528, %v5347, %v5348
        %v5350 = vrot.slane %v5348, 4
        %v5351 = vrot.slane %v5200, 5
        %v5352 = vsel %vm1528, %v5350, %v5351
        %v5353 = vrot.slane %v5201, 5
        %v5354 = vrot.slane %v5353, 4
        %v5355 = vrot.slane %v5202, 5
        %v5356 = vsel %vm1528, %v5354, %v5355
        %v5357 = vrot.slane %v5355, 4
        %v5358 = vrot.slane %v5203, 5
        %v5359 = vsel %vm1528, %v5357, %v5358
        %v5360 = vrot.slane %v5204, 5
        %v5361 = vrot.slane %v5360, 4
        %v5362 = vrot.slane %v5205, 5
        %v5363 = vsel %vm1528, %v5361, %v5362
        %v5364 = vrot.slane %v5362, 4
        %v5365 = vrot.slane %v5206, 5
        %v5366 = vsel %vm1528, %v5364, %v5365
        %s5367 = scalar_lea.vmem %s1, 512
        %v5368 = vld [vmem:[%s5367] sm:$0xf]
        %v5369 = vld [vmem:[%s5367 + $0x4] sm:$0xf]
        %v5370 = vld [vmem:[%s5367 + $0x8] sm:$0xf]
        %v5371 = vld [vmem:[%s5367 + $0xc] sm:$0xf]
        %v5372 = vld [vmem:[%s5367 + $0x10] sm:$0xf]
        %v5373 = vld [vmem:[%s5367 + $0x14] sm:$0xf]
        %v5374 = vld [vmem:[%s5367 + $0x18] sm:$0xf]
        %v5375 = vld [vmem:[%s5367 + $0x1c] sm:$0xf]
        %v5376 = vld [vmem:[%s5367 + $0x20] sm:$0xf]
        %v5377 = vld [vmem:[%s5367 + $0x24] sm:$0xf]
        %v5378 = vld [vmem:[%s5367 + $0x28] sm:$0xf]
        %v5379 = vld [vmem:[%s5367 + $0x2c] sm:$0xf]
        %v5380 = vld [vmem:[%s5367 + $0x30] sm:$0xf]
        %v5381 = vld [vmem:[%s5367 + $0x34] sm:$0xf]
        %v5382 = vld [vmem:[%s5367 + $0x38] sm:$0xf]
        %v5383 = vld [vmem:[%s5367 + $0x3c] sm:$0xf]
        %v5384 = vunpack.c.l.b16 %v5258
        %v5385 = vunpack.c.l.b16 %v5261
        %v5386 = vunpack.c.l.b16 %v5265
        %v5387 = vunpack.c.l.b16 %v5268
        %v5388 = vunpack.c.l.b16 %v5272
        %v5389 = vunpack.c.l.b16 %v5275
        %v5390 = vunpack.c.l.b16 %v5279
        %v5391 = vunpack.c.l.b16 %v5282
        %v5392 = vunpack.c.l.b16 %v5286
        %v5393 = vunpack.c.l.b16 %v5289
        %v5394 = vunpack.c.l.b16 %v5293
        %v5395 = vunpack.c.l.b16 %v5296
        %v5396 = vunpack.c.l.b16 %v5300
        %v5397 = vunpack.c.l.b16 %v5303
        %v5398 = vunpack.c.l.b16 %v5307
        %v5399 = vunpack.c.l.b16 %v5310
        %v5400 = vunpack.c.l.b16 %v5314
        %v5401 = vunpack.c.l.b16 %v5317
        %v5402 = vunpack.c.l.b16 %v5321
        %v5403 = vunpack.c.l.b16 %v5324
        %v5404 = vunpack.c.l.b16 %v5328
        %v5405 = vunpack.c.l.b16 %v5331
        %v5406 = vunpack.c.l.b16 %v5335
        %v5407 = vunpack.c.l.b16 %v5338
        %v5408 = vunpack.c.l.b16 %v5342
        %v5409 = vunpack.c.l.b16 %v5345
        %v5410 = vunpack.c.l.b16 %v5349
        %v5411 = vunpack.c.l.b16 %v5352
        %v5412 = vunpack.c.l.b16 %v5356
        %v5413 = vunpack.c.l.b16 %v5359
        %v5414 = vunpack.c.l.b16 %v5363
        %v5415 = vunpack.c.l.b16 %v5366
        %v5416 = vpack.c.b16 %v5385, %v5384
        %v5417 = vpack.c.b16 %v5387, %v5386
        %v5418 = vpack.c.b16 %v5389, %v5388
        %v5419 = vpack.c.b16 %v5391, %v5390
        %v5420 = vpack.c.b16 %v5393, %v5392
        %v5421 = vpack.c.b16 %v5395, %v5394
        %v5422 = vpack.c.b16 %v5397, %v5396
        %v5423 = vpack.c.b16 %v5399, %v5398
        %v5424 = vpack.c.b16 %v5401, %v5400
        %v5425 = vpack.c.b16 %v5403, %v5402
        %v5426 = vpack.c.b16 %v5405, %v5404
        %v5427 = vpack.c.b16 %v5407, %v5406
        %v5428 = vpack.c.b16 %v5409, %v5408
        %v5429 = vpack.c.b16 %v5411, %v5410
        %v5430 = vpack.c.b16 %v5413, %v5412
        %v5431 = vpack.c.b16 %v5415, %v5414
        %v5464 = vunpack.c.l.b16 %v5368
        %v5465 = vunpack.c.l.b16 %v5369
        %v5466 = vunpack.c.l.b16 %v5370
        %v5467 = vunpack.c.l.b16 %v5371
        %v5468 = vunpack.c.l.b16 %v5372
        %v5469 = vunpack.c.l.b16 %v5373
        %v5470 = vunpack.c.l.b16 %v5374
        %v5471 = vunpack.c.l.b16 %v5375
        %v5472 = vunpack.c.l.b16 %v5376
        %v5473 = vunpack.c.l.b16 %v5377
        %v5474 = vunpack.c.l.b16 %v5378
        %v5475 = vunpack.c.l.b16 %v5379
        %v5476 = vunpack.c.l.b16 %v5380
        %v5477 = vunpack.c.l.b16 %v5381
        %v5478 = vunpack.c.l.b16 %v5382
        %v5479 = vunpack.c.l.b16 %v5383
        %v5480 = vpack.c.b16 %v5465, %v5464
        %v5481 = vpack.c.b16 %v5467, %v5466
        %v5482 = vpack.c.b16 %v5469, %v5468
        %v5483 = vpack.c.b16 %v5471, %v5470
        %v5484 = vpack.c.b16 %v5473, %v5472
        %v5485 = vpack.c.b16 %v5475, %v5474
        %v5486 = vpack.c.b16 %v5477, %v5476
        %v5487 = vpack.c.b16 %v5479, %v5478
        %5496 = vmatprep.subr.bf16.mxu0 0
        %5497 = vmatpush1.bf16.msra.mxu0 %v5480
        %5498 = vmatprep.subr.bf16.mxu0 0
        %5499 = vmatpush1.bf16.msra.mxu0 %v5481
        %5500 = vmatprep.subr.bf16.mxu0 0
        %5501 = vmatpush1.bf16.msra.mxu0 %v5482
        %5502 = vmatprep.subr.bf16.mxu0 0
        %5503 = vmatpush1.bf16.msra.mxu0 %v5483
        %5504 = vmatprep.subr.bf16.mxu0 0
        %5505 = vmatpush1.bf16.msra.mxu0 %v5484
        %5506 = vmatprep.subr.bf16.mxu0 0
        %5507 = vmatpush1.bf16.msra.mxu0 %v5485
        %5508 = vmatprep.subr.bf16.mxu0 0
        %5509 = vmatpush1.bf16.msra.mxu0 %v5486
        %5510 = vmatprep.subr.bf16.mxu0 0
        %5511 = vmatpush1.bf16.msra.mxu0 %v5487
        %5512 = vmatprep.subr.bf16.mxu0 0
        %5513 = vmatpush1.bf16.msra.mxu0 0
        %5514 = vmatprep.subr.bf16.mxu0 0
        %5515 = vmatpush1.bf16.msra.mxu0 0
        %5516 = vmatprep.subr.bf16.mxu0 0
        %5517 = vmatpush1.bf16.msra.mxu0 0
        %5518 = vmatprep.subr.bf16.mxu0 0
        %5519 = vmatpush1.bf16.msra.mxu0 0
        %5520 = vmatprep.subr.bf16.mxu0 0
        %5521 = vmatpush1.bf16.msra.mxu0 0
        %5522 = vmatprep.subr.bf16.mxu0 0
        %5523 = vmatpush1.bf16.msra.mxu0 0
        %5524 = vmatprep.subr.bf16.mxu0 0
        %5525 = vmatpush1.bf16.msra.mxu0 0
        %5526 = vmatprep.subr.bf16.mxu0 0
        %5527 = vmatpush1.bf16.msra.mxu0 0
        %5528 = vmatprep.mubr.bf16.mxu0 0
        %5529 = vmatmul.mubr.bf16.gmra.mrb[0].mxu0 %v5416
        %v5530 = vpop.f32.mrb[0].mxu0
        %v5531 = vadd.f32 0.0, %v5530
        %v5532 = vpop.f32.mrb[0].mxu0
        %v5533 = vpop.f32.mrb[0].mxu0
        %v5534 = vadd.f32 0.0, %v5533
        %v5535 = vpop.f32.mrb[0].mxu0
        %5536 = vmatprep.mubr.bf16.mxu0 0
        %5537 = vmatmul.mubr.bf16.gmra.mrb[0].mxu0 %v5417
        %v5538 = vpop.f32.mrb[0].mxu0
        %v5539 = vadd.f32 0.0, %v5538
        %v5540 = vpop.f32.mrb[0].mxu0
        %v5541 = vpop.f32.mrb[0].mxu0
        %v5542 = vadd.f32 0.0, %v5541
        %v5543 = vpop.f32.mrb[0].mxu0
        %5544 = vmatprep.mubr.bf16.mxu0 0
        %5545 = vmatmul.mubr.bf16.gmra.mrb[0].mxu0 %v5418
        %v5546 = vpop.f32.mrb[0].mxu0
        %v5547 = vadd.f32 0.0, %v5546
        %v5548 = vpop.f32.mrb[0].mxu0
        %v5549 = vpop.f32.mrb[0].mxu0
        %v5550 = vadd.f32 0.0, %v5549
        %v5551 = vpop.f32.mrb[0].mxu0
        %5552 = vmatprep.mubr.bf16.mxu0 0
        %5553 = vmatmul.mubr.bf16.gmra.mrb[0].mxu0 %v5419
        %v5554 = vpop.f32.mrb[0].mxu0
        %v5555 = vadd.f32 0.0, %v5554
        %v5556 = vpop.f32.mrb[0].mxu0
        %v5557 = vpop.f32.mrb[0].mxu0
        %v5558 = vadd.f32 0.0, %v5557
        %v5559 = vpop.f32.mrb[0].mxu0
        %5560 = vmatprep.mubr.bf16.mxu0 0
        %5561 = vmatmul.mubr.bf16.gmra.mrb[0].mxu0 %v5420
        %v5562 = vpop.f32.mrb[0].mxu0
        %v5563 = vadd.f32 0.0, %v5562
        %v5564 = vpop.f32.mrb[0].mxu0
        %v5565 = vpop.f32.mrb[0].mxu0
        %v5566 = vadd.f32 0.0, %v5565
        %v5567 = vpop.f32.mrb[0].mxu0
        %5568 = vmatprep.mubr.bf16.mxu0 0
        %5569 = vmatmul.mubr.bf16.gmra.mrb[0].mxu0 %v5421
        %v5570 = vpop.f32.mrb[0].mxu0
        %v5571 = vadd.f32 0.0, %v5570
        %v5572 = vpop.f32.mrb[0].mxu0
        %v5573 = vpop.f32.mrb[0].mxu0
        %v5574 = vadd.f32 0.0, %v5573
        %v5575 = vpop.f32.mrb[0].mxu0
        %5576 = vmatprep.mubr.bf16.mxu0 0
        %5577 = vmatmul.mubr.bf16.gmra.mrb[0].mxu0 %v5422
        %v5578 = vpop.f32.mrb[0].mxu0
        %v5579 = vadd.f32 0.0, %v5578
        %v5580 = vpop.f32.mrb[0].mxu0
        %v5581 = vpop.f32.mrb[0].mxu0
        %v5582 = vadd.f32 0.0, %v5581
        %v5583 = vpop.f32.mrb[0].mxu0
        %5584 = vmatprep.mubr.bf16.mxu0 0
        %5585 = vmatmul.mubr.bf16.gmra.mrb[0].mxu0 %v5423
        %v5586 = vpop.f32.mrb[0].mxu0
        %v5587 = vadd.f32 0.0, %v5586
        %v5588 = vpop.f32.mrb[0].mxu0
        %v5589 = vpop.f32.mrb[0].mxu0
        %v5590 = vadd.f32 0.0, %v5589
        %v5591 = vpop.f32.mrb[0].mxu0
        %5592 = vmatprep.mubr.bf16.mxu0 0
        %5593 = vmatmul.mubr.bf16.gmra.mrb[0].mxu0 %v5424
        %v5594 = vpop.f32.mrb[0].mxu0
        %v5595 = vadd.f32 0.0, %v5594
        %v5596 = vpop.f32.mrb[0].mxu0
        %v5597 = vpop.f32.mrb[0].mxu0
        %v5598 = vadd.f32 0.0, %v5597
        %v5599 = vpop.f32.mrb[0].mxu0
        %5600 = vmatprep.mubr.bf16.mxu0 0
        %5601 = vmatmul.mubr.bf16.gmra.mrb[0].mxu0 %v5425
        %v5602 = vpop.f32.mrb[0].mxu0
        %v5603 = vadd.f32 0.0, %v5602
        %v5604 = vpop.f32.mrb[0].mxu0
        %v5605 = vpop.f32.mrb[0].mxu0
        %v5606 = vadd.f32 0.0, %v5605
        %v5607 = vpop.f32.mrb[0].mxu0
        %5608 = vmatprep.mubr.bf16.mxu0 0
        %5609 = vmatmul.mubr.bf16.gmra.mrb[0].mxu0 %v5426
        %v5610 = vpop.f32.mrb[0].mxu0
        %v5611 = vadd.f32 0.0, %v5610
        %v5612 = vpop.f32.mrb[0].mxu0
        %v5613 = vpop.f32.mrb[0].mxu0
        %v5614 = vadd.f32 0.0, %v5613
        %v5615 = vpop.f32.mrb[0].mxu0
        %5616 = vmatprep.mubr.bf16.mxu0 0
        %5617 = vmatmul.mubr.bf16.gmra.mrb[0].mxu0 %v5427
        %v5618 = vpop.f32.mrb[0].mxu0
        %v5619 = vadd.f32 0.0, %v5618
        %v5620 = vpop.f32.mrb[0].mxu0
        %v5621 = vpop.f32.mrb[0].mxu0
        %v5622 = vadd.f32 0.0, %v5621
        %v5623 = vpop.f32.mrb[0].mxu0
        %5624 = vmatprep.mubr.bf16.mxu0 0
        %5625 = vmatmul.mubr.bf16.gmra.mrb[0].mxu0 %v5428
        %v5626 = vpop.f32.mrb[0].mxu0
        %v5627 = vadd.f32 0.0, %v5626
        %v5628 = vpop.f32.mrb[0].mxu0
        %v5629 = vpop.f32.mrb[0].mxu0
        %v5630 = vadd.f32 0.0, %v5629
        %v5631 = vpop.f32.mrb[0].mxu0
        %5632 = vmatprep.mubr.bf16.mxu0 0
        %5633 = vmatmul.mubr.bf16.gmra.mrb[0].mxu0 %v5429
        %v5634 = vpop.f32.mrb[0].mxu0
        %v5635 = vadd.f32 0.0, %v5634
        %v5636 = vpop.f32.mrb[0].mxu0
        %v5637 = vpop.f32.mrb[0].mxu0
        %v5638 = vadd.f32 0.0, %v5637
        %v5639 = vpop.f32.mrb[0].mxu0
        %5640 = vmatprep.mubr.bf16.mxu0 0
        %5641 = vmatmul.mubr.bf16.gmra.mrb[0].mxu0 %v5430
        %v5642 = vpop.f32.mrb[0].mxu0
        %v5643 = vadd.f32 0.0, %v5642
        %v5644 = vpop.f32.mrb[0].mxu0
        %v5645 = vpop.f32.mrb[0].mxu0
        %v5646 = vadd.f32 0.0, %v5645
        %v5647 = vpop.f32.mrb[0].mxu0
        %5648 = vmatprep.mubr.bf16.mxu0 0
        %5649 = vmatmul.mubr.bf16.gmra.mrb[0].mxu0 %v5431
        %v5650 = vpop.f32.mrb[0].mxu0
        %v5651 = vadd.f32 0.0, %v5650
        %v5652 = vpop.f32.mrb[0].mxu0
        %v5653 = vpop.f32.mrb[0].mxu0
        %v5654 = vadd.f32 0.0, %v5653
        %v5655 = vpop.f32.mrb[0].mxu0
        %5656 = vdwg.mxu0
        %v5657 = vld [vmem:[#allocation3] sm:$0xff]
        %v5658 = vld [vmem:[#allocation3 + $0x8] sm:$0xff]
        %v5659 = vld [vmem:[#allocation3 + $0x10] sm:$0xff]
        %v5660 = vld [vmem:[#allocation3 + $0x18] sm:$0xff]
        %v5661 = vld [vmem:[#allocation3 + $0x20] sm:$0xff]
        %v5662 = vld [vmem:[#allocation3 + $0x28] sm:$0xff]
        %v5663 = vld [vmem:[#allocation3 + $0x30] sm:$0xff]
        %v5664 = vld [vmem:[#allocation3 + $0x38] sm:$0xff]
        %v5665 = vld [vmem:[#allocation3 + $0x40] sm:$0xff]
        %v5666 = vld [vmem:[#allocation3 + $0x48] sm:$0xff]
        %v5667 = vld [vmem:[#allocation3 + $0x50] sm:$0xff]
        %v5668 = vld [vmem:[#allocation3 + $0x58] sm:$0xff]
        %v5669 = vld [vmem:[#allocation3 + $0x60] sm:$0xff]
        %v5670 = vld [vmem:[#allocation3 + $0x68] sm:$0xff]
        %v5671 = vld [vmem:[#allocation3 + $0x70] sm:$0xff]
        %v5672 = vld [vmem:[#allocation3 + $0x78] sm:$0xff]
        %v5673 = vld [vmem:[#allocation3 + $0x80] sm:$0xff]
        %v5674 = vld [vmem:[#allocation3 + $0x88] sm:$0xff]
        %v5675 = vld [vmem:[#allocation3 + $0x90] sm:$0xff]
        %v5676 = vld [vmem:[#allocation3 + $0x98] sm:$0xff]
        %v5677 = vld [vmem:[#allocation3 + $0xa0] sm:$0xff]
        %v5678 = vld [vmem:[#allocation3 + $0xa8] sm:$0xff]
        %v5679 = vld [vmem:[#allocation3 + $0xb0] sm:$0xff]
        %v5680 = vld [vmem:[#allocation3 + $0xb8] sm:$0xff]
        %v5681 = vld [vmem:[#allocation3 + $0xc0] sm:$0xff]
        %v5682 = vld [vmem:[#allocation3 + $0xc8] sm:$0xff]
        %v5683 = vld [vmem:[#allocation3 + $0xd0] sm:$0xff]
        %v5684 = vld [vmem:[#allocation3 + $0xd8] sm:$0xff]
        %v5685 = vld [vmem:[#allocation3 + $0xe0] sm:$0xff]
        %v5686 = vld [vmem:[#allocation3 + $0xe8] sm:$0xff]
        %v5687 = vld [vmem:[#allocation3 + $0xf0] sm:$0xff]
        %v5688 = vld [vmem:[#allocation3 + $0xf8] sm:$0xff]
        %v5689 = vadd.f32 %v5657, %v5531
        %v5690 = vadd.f32 %v5658, %v5534
        %v5691 = vadd.f32 %v5659, %v5539
        %v5692 = vadd.f32 %v5660, %v5542
        %v5693 = vadd.f32 %v5661, %v5547
        %v5694 = vadd.f32 %v5662, %v5550
        %v5695 = vadd.f32 %v5663, %v5555
        %v5696 = vadd.f32 %v5664, %v5558
        %v5697 = vadd.f32 %v5665, %v5563
        %v5698 = vadd.f32 %v5666, %v5566
        %v5699 = vadd.f32 %v5667, %v5571
        %v5700 = vadd.f32 %v5668, %v5574
        %v5701 = vadd.f32 %v5669, %v5579
        %v5702 = vadd.f32 %v5670, %v5582
        %v5703 = vadd.f32 %v5671, %v5587
        %v5704 = vadd.f32 %v5672, %v5590
        %v5705 = vadd.f32 %v5673, %v5595
        %v5706 = vadd.f32 %v5674, %v5598
        %v5707 = vadd.f32 %v5675, %v5603
        %v5708 = vadd.f32 %v5676, %v5606
        %v5709 = vadd.f32 %v5677, %v5611
        %v5710 = vadd.f32 %v5678, %v5614
        %v5711 = vadd.f32 %v5679, %v5619
        %v5712 = vadd.f32 %v5680, %v5622
        %v5713 = vadd.f32 %v5681, %v5627
        %v5714 = vadd.f32 %v5682, %v5630
        %v5715 = vadd.f32 %v5683, %v5635
        %v5716 = vadd.f32 %v5684, %v5638
        %v5717 = vadd.f32 %v5685, %v5643
        %v5718 = vadd.f32 %v5686, %v5646
        %v5719 = vadd.f32 %v5687, %v5651
        %v5720 = vadd.f32 %v5688, %v5654
        %5721 = vst [vmem:[#allocation3] sm:$0xff] %v5689
        %5722 = vst [vmem:[#allocation3 + $0x8] sm:$0xff] %v5690
        %5723 = vst [vmem:[#allocation3 + $0x10] sm:$0xff] %v5691
        %5724 = vst [vmem:[#allocation3 + $0x18] sm:$0xff] %v5692
        %5725 = vst [vmem:[#allocation3 + $0x20] sm:$0xff] %v5693
        %5726 = vst [vmem:[#allocation3 + $0x28] sm:$0xff] %v5694
        %5727 = vst [vmem:[#allocation3 + $0x30] sm:$0xff] %v5695
        %5728 = vst [vmem:[#allocation3 + $0x38] sm:$0xff] %v5696
        %5729 = vst [vmem:[#allocation3 + $0x40] sm:$0xff] %v5697
        %5730 = vst [vmem:[#allocation3 + $0x48] sm:$0xff] %v5698
        %5731 = vst [vmem:[#allocation3 + $0x50] sm:$0xff] %v5699
        %5732 = vst [vmem:[#allocation3 + $0x58] sm:$0xff] %v5700
        %5733 = vst [vmem:[#allocation3 + $0x60] sm:$0xff] %v5701
        %5734 = vst [vmem:[#allocation3 + $0x68] sm:$0xff] %v5702
        %5735 = vst [vmem:[#allocation3 + $0x70] sm:$0xff] %v5703
        %5736 = vst [vmem:[#allocation3 + $0x78] sm:$0xff] %v5704
        %5737 = vst [vmem:[#allocation3 + $0x80] sm:$0xff] %v5705
        %5738 = vst [vmem:[#allocation3 + $0x88] sm:$0xff] %v5706
        %5739 = vst [vmem:[#allocation3 + $0x90] sm:$0xff] %v5707
        %5740 = vst [vmem:[#allocation3 + $0x98] sm:$0xff] %v5708
        %5741 = vst [vmem:[#allocation3 + $0xa0] sm:$0xff] %v5709
        %5742 = vst [vmem:[#allocation3 + $0xa8] sm:$0xff] %v5710
        %5743 = vst [vmem:[#allocation3 + $0xb0] sm:$0xff] %v5711
        %5744 = vst [vmem:[#allocation3 + $0xb8] sm:$0xff] %v5712
        %5745 = vst [vmem:[#allocation3 + $0xc0] sm:$0xff] %v5713
        %5746 = vst [vmem:[#allocation3 + $0xc8] sm:$0xff] %v5714
        %5747 = vst [vmem:[#allocation3 + $0xd0] sm:$0xff] %v5715
        %5748 = vst [vmem:[#allocation3 + $0xd8] sm:$0xff] %v5716
        %5749 = vst [vmem:[#allocation3 + $0xe0] sm:$0xff] %v5717
        %5750 = vst [vmem:[#allocation3 + $0xe8] sm:$0xff] %v5718
        %5751 = vst [vmem:[#allocation3 + $0xf0] sm:$0xff] %v5719
        %5752 = vst [vmem:[#allocation3 + $0xf8] sm:$0xff] %v5720
        %v5753 = vld [vmem:[#allocation3] sm:$0xff]
        %v5754 = vld [vmem:[#allocation3 + $0x8] sm:$0xff]
        %v5755 = vld [vmem:[#allocation3 + $0x10] sm:$0xff]
        %v5756 = vld [vmem:[#allocation3 + $0x18] sm:$0xff]
        %v5757 = vld [vmem:[#allocation3 + $0x20] sm:$0xff]
        %v5758 = vld [vmem:[#allocation3 + $0x28] sm:$0xff]
        %v5759 = vld [vmem:[#allocation3 + $0x30] sm:$0xff]
        %v5760 = vld [vmem:[#allocation3 + $0x38] sm:$0xff]
        %v5761 = vld [vmem:[#allocation3 + $0x40] sm:$0xff]
        %v5762 = vld [vmem:[#allocation3 + $0x48] sm:$0xff]
        %v5763 = vld [vmem:[#allocation3 + $0x50] sm:$0xff]
        %v5764 = vld [vmem:[#allocation3 + $0x58] sm:$0xff]
        %v5765 = vld [vmem:[#allocation3 + $0x60] sm:$0xff]
        %v5766 = vld [vmem:[#allocation3 + $0x68] sm:$0xff]
        %v5767 = vld [vmem:[#allocation3 + $0x70] sm:$0xff]
        %v5768 = vld [vmem:[#allocation3 + $0x78] sm:$0xff]
        %v5769 = vld [vmem:[#allocation3 + $0x80] sm:$0xff]
        %v5770 = vld [vmem:[#allocation3 + $0x88] sm:$0xff]
        %v5771 = vld [vmem:[#allocation3 + $0x90] sm:$0xff]
        %v5772 = vld [vmem:[#allocation3 + $0x98] sm:$0xff]
        %v5773 = vld [vmem:[#allocation3 + $0xa0] sm:$0xff]
        %v5774 = vld [vmem:[#allocation3 + $0xa8] sm:$0xff]
        %v5775 = vld [vmem:[#allocation3 + $0xb0] sm:$0xff]
        %v5776 = vld [vmem:[#allocation3 + $0xb8] sm:$0xff]
        %v5777 = vld [vmem:[#allocation3 + $0xc0] sm:$0xff]
        %v5778 = vld [vmem:[#allocation3 + $0xc8] sm:$0xff]
        %v5779 = vld [vmem:[#allocation3 + $0xd0] sm:$0xff]
        %v5780 = vld [vmem:[#allocation3 + $0xd8] sm:$0xff]
        %v5781 = vld [vmem:[#allocation3 + $0xe0] sm:$0xff]
        %v5782 = vld [vmem:[#allocation3 + $0xe8] sm:$0xff]
        %v5783 = vld [vmem:[#allocation3 + $0xf0] sm:$0xff]
        %v5784 = vld [vmem:[#allocation3 + $0xf8] sm:$0xff]
        %v5785 = vld [vmem:[%s2] sm:$0x1]
        %v5787 = vlaneseq
        %v5788 = vshrl.u32 %v5787, 7
        %v5789 = vsub.s32 0, %v5788
        %v5790 = vrot.slane %v5785, %v5789
        %v5792 = vadd.f32 %v5753, %v5790
        %v5793 = vadd.f32 %v5754, %v5790
        %v5794 = vadd.f32 %v5755, %v5790
        %v5795 = vadd.f32 %v5756, %v5790
        %v5796 = vadd.f32 %v5757, %v5790
        %v5797 = vadd.f32 %v5758, %v5790
        %v5798 = vadd.f32 %v5759, %v5790
        %v5799 = vadd.f32 %v5760, %v5790
        %v5800 = vadd.f32 %v5761, %v5790
        %v5801 = vadd.f32 %v5762, %v5790
        %v5802 = vadd.f32 %v5763, %v5790
        %v5803 = vadd.f32 %v5764, %v5790
        %v5804 = vadd.f32 %v5765, %v5790
        %v5805 = vadd.f32 %v5766, %v5790
        %v5806 = vadd.f32 %v5767, %v5790
        %v5807 = vadd.f32 %v5768, %v5790
        %v5808 = vadd.f32 %v5769, %v5790
        %v5809 = vadd.f32 %v5770, %v5790
        %v5810 = vadd.f32 %v5771, %v5790
        %v5811 = vadd.f32 %v5772, %v5790
        %v5812 = vadd.f32 %v5773, %v5790
        %v5813 = vadd.f32 %v5774, %v5790
        %v5814 = vadd.f32 %v5775, %v5790
        %v5815 = vadd.f32 %v5776, %v5790
        %v5816 = vadd.f32 %v5777, %v5790
        %v5817 = vadd.f32 %v5778, %v5790
        %v5818 = vadd.f32 %v5779, %v5790
        %v5819 = vadd.f32 %v5780, %v5790
        %v5820 = vadd.f32 %v5781, %v5790
        %v5821 = vadd.f32 %v5782, %v5790
        %v5822 = vadd.f32 %v5783, %v5790
        %v5823 = vadd.f32 %v5784, %v5790
        %v5824 = vmax.f32 %v5792, 0.0
        %v5825 = vmax.f32 %v5793, 0.0
        %v5826 = vmax.f32 %v5794, 0.0
        %v5827 = vmax.f32 %v5795, 0.0
        %v5828 = vmax.f32 %v5796, 0.0
        %v5829 = vmax.f32 %v5797, 0.0
        %v5830 = vmax.f32 %v5798, 0.0
        %v5831 = vmax.f32 %v5799, 0.0
        %v5832 = vmax.f32 %v5800, 0.0
        %v5833 = vmax.f32 %v5801, 0.0
        %v5834 = vmax.f32 %v5802, 0.0
        %v5835 = vmax.f32 %v5803, 0.0
        %v5836 = vmax.f32 %v5804, 0.0
        %v5837 = vmax.f32 %v5805, 0.0
        %v5838 = vmax.f32 %v5806, 0.0
        %v5839 = vmax.f32 %v5807, 0.0
        %v5840 = vmax.f32 %v5808, 0.0
        %v5841 = vmax.f32 %v5809, 0.0
        %v5842 = vmax.f32 %v5810, 0.0
        %v5843 = vmax.f32 %v5811, 0.0
        %v5844 = vmax.f32 %v5812, 0.0
        %v5845 = vmax.f32 %v5813, 0.0
        %v5846 = vmax.f32 %v5814, 0.0
        %v5847 = vmax.f32 %v5815, 0.0
        %v5848 = vmax.f32 %v5816, 0.0
        %v5849 = vmax.f32 %v5817, 0.0
        %v5850 = vmax.f32 %v5818, 0.0
        %v5851 = vmax.f32 %v5819, 0.0
        %v5852 = vmax.f32 %v5820, 0.0
        %v5853 = vmax.f32 %v5821, 0.0
        %v5854 = vmax.f32 %v5822, 0.0
        %v5855 = vmax.f32 %v5823, 0.0
        %5856 = vst [vmem:[#allocation2] sm:$0xff] 0.0
        %5857 = vst [vmem:[#allocation2 + $0x8] sm:$0xff] 0.0
        %5858 = vst [vmem:[#allocation2 + $0x10] sm:$0x3] 0.0
        %5859 = vst [vmem:[#allocation2 + $0x18] sm:$0xff] 0.0
        %5860 = vst [vmem:[#allocation2 + $0x20] sm:$0xff] 0.0
        %5861 = vst [vmem:[#allocation2 + $0x28] sm:$0x3] 0.0
        %5862 = vst [vmem:[#allocation2 + $0x30] sm:$0xff] 0.0
        %5863 = vst [vmem:[#allocation2 + $0x38] sm:$0xff] 0.0
        %5864 = vst [vmem:[#allocation2 + $0x40] sm:$0x3] 0.0
        %5865 = vst [vmem:[#allocation2 + $0x48] sm:$0xff] 0.0
        %5866 = vst [vmem:[#allocation2 + $0x50] sm:$0xff] 0.0
        %5867 = vst [vmem:[#allocation2 + $0x58] sm:$0x3] 0.0
        %5868 = vst [vmem:[#allocation2 + $0x60] sm:$0xff] 0.0
        %5869 = vst [vmem:[#allocation2 + $0x68] sm:$0xff] 0.0
        %5870 = vst [vmem:[#allocation2 + $0x70] sm:$0x3] 0.0
        %5871 = vst [vmem:[#allocation2 + $0x78] sm:$0xff] 0.0
        %5872 = vst [vmem:[#allocation2 + $0x80] sm:$0xff] 0.0
        %5873 = vst [vmem:[#allocation2 + $0x88] sm:$0x3] 0.0
        %5874 = vst [vmem:[#allocation2 + $0x90] sm:$0xff] 0.0
        %5875 = vst [vmem:[#allocation2 + $0x98] sm:$0xff] 0.0
        %5876 = vst [vmem:[#allocation2 + $0xa0] sm:$0x3] 0.0
        %5877 = vst [vmem:[#allocation2 + $0xa8] sm:$0xff] 0.0
        %5878 = vst [vmem:[#allocation2 + $0xb0] sm:$0xff] 0.0
        %5879 = vst [vmem:[#allocation2 + $0xb8] sm:$0x3] 0.0
        %5880 = vst [vmem:[#allocation2 + $0xc0] sm:$0xff] 0.0
        %5881 = vst [vmem:[#allocation2 + $0xc8] sm:$0xff] 0.0
        %5882 = vst [vmem:[#allocation2 + $0xd0] sm:$0x3] 0.0
        %5883 = vst [vmem:[#allocation2 + $0xd8] sm:$0xff] 0.0
        %5884 = vst [vmem:[#allocation2 + $0xe0] sm:$0xff] 0.0
        %5885 = vst [vmem:[#allocation2 + $0xe8] sm:$0x3] 0.0
        %5886 = vst [vmem:[#allocation2 + $0xf0] sm:$0xff] 0.0
        %5887 = vst [vmem:[#allocation2 + $0xf8] sm:$0xff] 0.0
        %5888 = vst [vmem:[#allocation2 + $0x100] sm:$0x3] 0.0
        %5889 = vst [vmem:[#allocation2 + $0x108] sm:$0xff] 0.0
        %5890 = vst [vmem:[#allocation2 + $0x110] sm:$0xff] 0.0
        %5891 = vst [vmem:[#allocation2 + $0x118] sm:$0x3] 0.0
        %5892 = vst [vmem:[#allocation2 + $0x120] sm:$0xff] 0.0
        %5893 = vst [vmem:[#allocation2 + $0x128] sm:$0xff] 0.0
        %5894 = vst [vmem:[#allocation2 + $0x130] sm:$0x3] 0.0
        %5895 = vst [vmem:[#allocation2 + $0x138] sm:$0xff] 0.0
        %5896 = vst [vmem:[#allocation2 + $0x140] sm:$0xff] 0.0
        %5897 = vst [vmem:[#allocation2 + $0x148] sm:$0x3] 0.0
        %5898 = vst [vmem:[#allocation2 + $0x150] sm:$0xff] 0.0
        %5899 = vst [vmem:[#allocation2 + $0x158] sm:$0xff] 0.0
        %5900 = vst [vmem:[#allocation2 + $0x160] sm:$0x3] 0.0
        %5901 = vst [vmem:[#allocation2 + $0x168] sm:$0xff] 0.0
        %5902 = vst [vmem:[#allocation2 + $0x170] sm:$0xff] 0.0
        %5903 = vst [vmem:[#allocation2 + $0x178] sm:$0x3] 0.0
        %5904 = vst [vmem:[#allocation2 + $0x180] sm:$0xff] 0.0
        %5905 = vst [vmem:[#allocation2 + $0x188] sm:$0xff] 0.0
        %5906 = vst [vmem:[#allocation2 + $0x190] sm:$0x3] 0.0
        %5907 = vst [vmem:[#allocation2 + $0x198] sm:$0xff] 0.0
        %5908 = vst [vmem:[#allocation2 + $0x1a0] sm:$0xff] 0.0
        %5909 = vst [vmem:[#allocation2 + $0x1a8] sm:$0x3] 0.0
        %s5910 = scalar_lea.vmem [#allocation2], 24
        %5911 = vst [vmem:[%s5910 + $0x1] sm:$0xff] %v5824
        %5912 = vst [vmem:[%s5910 + $0x9] sm:$0xff] %v5825
        %5913 = vst [vmem:[%s5910 + $0x19] sm:$0xff] %v5826
        %5914 = vst [vmem:[%s5910 + $0x21] sm:$0xff] %v5827
        %5915 = vst [vmem:[%s5910 + $0x31] sm:$0xff] %v5828
        %5916 = vst [vmem:[%s5910 + $0x39] sm:$0xff] %v5829
        %5917 = vst [vmem:[%s5910 + $0x49] sm:$0xff] %v5830
        %5918 = vst [vmem:[%s5910 + $0x51] sm:$0xff] %v5831
        %5919 = vst [vmem:[%s5910 + $0x61] sm:$0xff] %v5832
        %5920 = vst [vmem:[%s5910 + $0x69] sm:$0xff] %v5833
        %5921 = vst [vmem:[%s5910 + $0x79] sm:$0xff] %v5834
        %5922 = vst [vmem:[%s5910 + $0x81] sm:$0xff] %v5835
        %5923 = vst [vmem:[%s5910 + $0x91] sm:$0xff] %v5836
        %5924 = vst [vmem:[%s5910 + $0x99] sm:$0xff] %v5837
        %5925 = vst [vmem:[%s5910 + $0xa9] sm:$0xff] %v5838
        %5926 = vst [vmem:[%s5910 + $0xb1] sm:$0xff] %v5839
        %5927 = vst [vmem:[%s5910 + $0xc1] sm:$0xff] %v5840
        %5928 = vst [vmem:[%s5910 + $0xc9] sm:$0xff] %v5841
        %5929 = vst [vmem:[%s5910 + $0xd9] sm:$0xff] %v5842
        %5930 = vst [vmem:[%s5910 + $0xe1] sm:$0xff] %v5843
        %5931 = vst [vmem:[%s5910 + $0xf1] sm:$0xff] %v5844
        %5932 = vst [vmem:[%s5910 + $0xf9] sm:$0xff] %v5845
        %5933 = vst [vmem:[%s5910 + $0x109] sm:$0xff] %v5846
        %5934 = vst [vmem:[%s5910 + $0x111] sm:$0xff] %v5847
        %5935 = vst [vmem:[%s5910 + $0x121] sm:$0xff] %v5848
        %5936 = vst [vmem:[%s5910 + $0x129] sm:$0xff] %v5849
        %5937 = vst [vmem:[%s5910 + $0x139] sm:$0xff] %v5850
        %5938 = vst [vmem:[%s5910 + $0x141] sm:$0xff] %v5851
        %5939 = vst [vmem:[%s5910 + $0x151] sm:$0xff] %v5852
        %5940 = vst [vmem:[%s5910 + $0x159] sm:$0xff] %v5853
        %5941 = vst [vmem:[%s5910 + $0x169] sm:$0xff] %v5854
        %5942 = vst [vmem:[%s5910 + $0x171] sm:$0xff] %v5855
        %v5943 = vld [vmem:[#allocation2] sm:$0xff]
        %v5944 = vld [vmem:[#allocation2 + $0x8] sm:$0xff]
        %v5945 = vld [vmem:[#allocation2 + $0x18] sm:$0xff]
        %v5946 = vld [vmem:[#allocation2 + $0x20] sm:$0xff]
        %v5947 = vld [vmem:[#allocation2 + $0x30] sm:$0xff]
        %v5948 = vld [vmem:[#allocation2 + $0x38] sm:$0xff]
        %v5949 = vld [vmem:[#allocation2 + $0x48] sm:$0xff]
        %v5950 = vld [vmem:[#allocation2 + $0x50] sm:$0xff]
        %v5951 = vld [vmem:[#allocation2 + $0x60] sm:$0xff]
        %v5952 = vld [vmem:[#allocation2 + $0x68] sm:$0xff]
        %v5953 = vld [vmem:[#allocation2 + $0x78] sm:$0xff]
        %v5954 = vld [vmem:[#allocation2 + $0x80] sm:$0xff]
        %v5955 = vld [vmem:[#allocation2 + $0x90] sm:$0xff]
        %v5956 = vld [vmem:[#allocation2 + $0x98] sm:$0xff]
        %v5957 = vld [vmem:[#allocation2 + $0xa8] sm:$0xff]
        %v5958 = vld [vmem:[#allocation2 + $0xb0] sm:$0xff]
        %v5959 = vld [vmem:[#allocation2 + $0xc0] sm:$0xff]
        %v5960 = vld [vmem:[#allocation2 + $0xc8] sm:$0xff]
        %v5961 = vld [vmem:[#allocation2 + $0xd8] sm:$0xff]
        %v5962 = vld [vmem:[#allocation2 + $0xe0] sm:$0xff]
        %v5963 = vld [vmem:[#allocation2 + $0xf0] sm:$0xff]
        %v5964 = vld [vmem:[#allocation2 + $0xf8] sm:$0xff]
        %v5965 = vld [vmem:[#allocation2 + $0x108] sm:$0xff]
        %v5966 = vld [vmem:[#allocation2 + $0x110] sm:$0xff]
        %v5967 = vld [vmem:[#allocation2 + $0x120] sm:$0xff]
        %v5968 = vld [vmem:[#allocation2 + $0x128] sm:$0xff]
        %v5969 = vld [vmem:[#allocation2 + $0x138] sm:$0xff]
        %v5970 = vld [vmem:[#allocation2 + $0x140] sm:$0xff]
        %v5971 = vld [vmem:[#allocation2 + $0x150] sm:$0xff]
        %v5972 = vld [vmem:[#allocation2 + $0x158] sm:$0xff]
        %v5973 = vld [vmem:[#allocation2 + $0x168] sm:$0xff]
        %v5974 = vld [vmem:[#allocation2 + $0x170] sm:$0xff]
        %v5975 = vpack.c.bf16 %v5944, %v5943
        %v5976 = vpack.c.bf16 %v5946, %v5945
        %v5977 = vpack.c.bf16 %v5948, %v5947
        %v5978 = vpack.c.bf16 %v5950, %v5949
        %v5979 = vpack.c.bf16 %v5952, %v5951
        %v5980 = vpack.c.bf16 %v5954, %v5953
        %v5981 = vpack.c.bf16 %v5956, %v5955
        %v5982 = vpack.c.bf16 %v5958, %v5957
        %v5983 = vpack.c.bf16 %v5960, %v5959
        %v5984 = vpack.c.bf16 %v5962, %v5961
        %v5985 = vpack.c.bf16 %v5964, %v5963
        %v5986 = vpack.c.bf16 %v5966, %v5965
        %v5987 = vpack.c.bf16 %v5968, %v5967
        %v5988 = vpack.c.bf16 %v5970, %v5969
        %v5989 = vpack.c.bf16 %v5972, %v5971
        %v5990 = vpack.c.bf16 %v5974, %v5973
        %v5991 = vld [vmem:[%s3] sm:$0xf]
        %v5992 = vld [vmem:[%s3 + $0x4] sm:$0xf]
        %v5993 = vld [vmem:[%s3 + $0x8] sm:$0xf]
        %v5994 = vld [vmem:[%s3 + $0xc] sm:$0xf]
        %v5995 = vld [vmem:[%s3 + $0x10] sm:$0xf]
        %v5996 = vld [vmem:[%s3 + $0x14] sm:$0xf]
        %v5997 = vld [vmem:[%s3 + $0x18] sm:$0xf]
        %v5998 = vld [vmem:[%s3 + $0x1c] sm:$0xf]
        %v5999 = vld [vmem:[%s3 + $0x20] sm:$0xf]
        %v6000 = vld [vmem:[%s3 + $0x24] sm:$0xf]
        %v6001 = vld [vmem:[%s3 + $0x28] sm:$0xf]
        %v6002 = vld [vmem:[%s3 + $0x2c] sm:$0xf]
        %v6003 = vld [vmem:[%s3 + $0x30] sm:$0xf]
        %v6004 = vld [vmem:[%s3 + $0x34] sm:$0xf]
        %v6005 = vld [vmem:[%s3 + $0x38] sm:$0xf]
        %v6006 = vld [vmem:[%s3 + $0x3c] sm:$0xf]
        %v6023 = vunpack.c.l.b16 %v5991
        %v6024 = vunpack.c.l.b16 %v5992
        %v6025 = vunpack.c.l.b16 %v5993
        %v6026 = vunpack.c.l.b16 %v5994
        %v6027 = vunpack.c.l.b16 %v5995
        %v6028 = vunpack.c.l.b16 %v5996
        %v6029 = vunpack.c.l.b16 %v5997
        %v6030 = vunpack.c.l.b16 %v5998
        %v6031 = vunpack.c.l.b16 %v5999
        %v6032 = vunpack.c.l.b16 %v6000
        %v6033 = vunpack.c.l.b16 %v6001
        %v6034 = vunpack.c.l.b16 %v6002
        %v6035 = vunpack.c.l.b16 %v6003
        %v6036 = vunpack.c.l.b16 %v6004
        %v6037 = vunpack.c.l.b16 %v6005
        %v6038 = vunpack.c.l.b16 %v6006
        %v6039 = vpack.c.b16 %v6024, %v6023
        %v6040 = vpack.c.b16 %v6026, %v6025
        %v6041 = vpack.c.b16 %v6028, %v6027
        %v6042 = vpack.c.b16 %v6030, %v6029
        %v6043 = vpack.c.b16 %v6032, %v6031
        %v6044 = vpack.c.b16 %v6034, %v6033
        %v6045 = vpack.c.b16 %v6036, %v6035
        %v6046 = vpack.c.b16 %v6038, %v6037
        %6055 = vmatprep.subr.bf16.mxu0 0
        %6056 = vmatpush1.bf16.msra.mxu0 %v6039
        %6057 = vmatprep.subr.bf16.mxu0 0
        %6058 = vmatpush1.bf16.msra.mxu0 %v6040
        %6059 = vmatprep.subr.bf16.mxu0 0
        %6060 = vmatpush1.bf16.msra.mxu0 %v6041
        %6061 = vmatprep.subr.bf16.mxu0 0
        %6062 = vmatpush1.bf16.msra.mxu0 %v6042
        %6063 = vmatprep.subr.bf16.mxu0 0
        %6064 = vmatpush1.bf16.msra.mxu0 %v6043
        %6065 = vmatprep.subr.bf16.mxu0 0
        %6066 = vmatpush1.bf16.msra.mxu0 %v6044
        %6067 = vmatprep.subr.bf16.mxu0 0
        %6068 = vmatpush1.bf16.msra.mxu0 %v6045
        %6069 = vmatprep.subr.bf16.mxu0 0
        %6070 = vmatpush1.bf16.msra.mxu0 %v6046
        %6071 = vmatprep.subr.bf16.mxu0 0
        %6072 = vmatpush1.bf16.msra.mxu0 0
        %6073 = vmatprep.subr.bf16.mxu0 0
        %6074 = vmatpush1.bf16.msra.mxu0 0
        %6075 = vmatprep.subr.bf16.mxu0 0
        %6076 = vmatpush1.bf16.msra.mxu0 0
        %6077 = vmatprep.subr.bf16.mxu0 0
        %6078 = vmatpush1.bf16.msra.mxu0 0
        %6079 = vmatprep.subr.bf16.mxu0 0
        %6080 = vmatpush1.bf16.msra.mxu0 0
        %6081 = vmatprep.subr.bf16.mxu0 0
        %6082 = vmatpush1.bf16.msra.mxu0 0
        %6083 = vmatprep.subr.bf16.mxu0 0
        %6084 = vmatpush1.bf16.msra.mxu0 0
        %6085 = vmatprep.subr.bf16.mxu0 0
        %6086 = vmatpush1.bf16.msra.mxu0 0
        %6087 = vmatprep.mubr.bf16.mxu0 0
        %6088 = vmatmul.mubr.bf16.gmra.mrb[0].mxu0 %v5975
        %v6089 = vpop.f32.mrb[0].mxu0
        %v6090 = vadd.f32 0.0, %v6089
        %v6091 = vpop.f32.mrb[0].mxu0
        %v6092 = vpop.f32.mrb[0].mxu0
        %v6093 = vadd.f32 0.0, %v6092
        %v6094 = vpop.f32.mrb[0].mxu0
        %6095 = vmatprep.mubr.bf16.mxu0 0
        %6096 = vmatmul.mubr.bf16.gmra.mrb[0].mxu0 %v5976
        %v6097 = vpop.f32.mrb[0].mxu0
        %v6098 = vadd.f32 0.0, %v6097
        %v6099 = vpop.f32.mrb[0].mxu0
        %v6100 = vpop.f32.mrb[0].mxu0
        %v6101 = vadd.f32 0.0, %v6100
        %v6102 = vpop.f32.mrb[0].mxu0
        %6103 = vmatprep.mubr.bf16.mxu0 0
        %6104 = vmatmul.mubr.bf16.gmra.mrb[0].mxu0 %v5977
        %v6105 = vpop.f32.mrb[0].mxu0
        %v6106 = vadd.f32 0.0, %v6105
        %v6107 = vpop.f32.mrb[0].mxu0
        %v6108 = vpop.f32.mrb[0].mxu0
        %v6109 = vadd.f32 0.0, %v6108
        %v6110 = vpop.f32.mrb[0].mxu0
        %6111 = vmatprep.mubr.bf16.mxu0 0
        %6112 = vmatmul.mubr.bf16.gmra.mrb[0].mxu0 %v5978
        %v6113 = vpop.f32.mrb[0].mxu0
        %v6114 = vadd.f32 0.0, %v6113
        %v6115 = vpop.f32.mrb[0].mxu0
        %v6116 = vpop.f32.mrb[0].mxu0
        %v6117 = vadd.f32 0.0, %v6116
        %v6118 = vpop.f32.mrb[0].mxu0
        %6119 = vmatprep.mubr.bf16.mxu0 0
        %6120 = vmatmul.mubr.bf16.gmra.mrb[0].mxu0 %v5979
        %v6121 = vpop.f32.mrb[0].mxu0
        %v6122 = vadd.f32 0.0, %v6121
        %v6123 = vpop.f32.mrb[0].mxu0
        %v6124 = vpop.f32.mrb[0].mxu0
        %v6125 = vadd.f32 0.0, %v6124
        %v6126 = vpop.f32.mrb[0].mxu0
        %6127 = vmatprep.mubr.bf16.mxu0 0
        %6128 = vmatmul.mubr.bf16.gmra.mrb[0].mxu0 %v5980
        %v6129 = vpop.f32.mrb[0].mxu0
        %v6130 = vadd.f32 0.0, %v6129
        %v6131 = vpop.f32.mrb[0].mxu0
        %v6132 = vpop.f32.mrb[0].mxu0
        %v6133 = vadd.f32 0.0, %v6132
        %v6134 = vpop.f32.mrb[0].mxu0
        %6135 = vmatprep.mubr.bf16.mxu0 0
        %6136 = vmatmul.mubr.bf16.gmra.mrb[0].mxu0 %v5981
        %v6137 = vpop.f32.mrb[0].mxu0
        %v6138 = vadd.f32 0.0, %v6137
        %v6139 = vpop.f32.mrb[0].mxu0
        %v6140 = vpop.f32.mrb[0].mxu0
        %v6141 = vadd.f32 0.0, %v6140
        %v6142 = vpop.f32.mrb[0].mxu0
        %6143 = vmatprep.mubr.bf16.mxu0 0
        %6144 = vmatmul.mubr.bf16.gmra.mrb[0].mxu0 %v5982
        %v6145 = vpop.f32.mrb[0].mxu0
        %v6146 = vadd.f32 0.0, %v6145
        %v6147 = vpop.f32.mrb[0].mxu0
        %v6148 = vpop.f32.mrb[0].mxu0
        %v6149 = vadd.f32 0.0, %v6148
        %v6150 = vpop.f32.mrb[0].mxu0
        %6151 = vmatprep.mubr.bf16.mxu0 0
        %6152 = vmatmul.mubr.bf16.gmra.mrb[0].mxu0 %v5983
        %v6153 = vpop.f32.mrb[0].mxu0
        %v6154 = vadd.f32 0.0, %v6153
        %v6155 = vpop.f32.mrb[0].mxu0
        %v6156 = vpop.f32.mrb[0].mxu0
        %v6157 = vadd.f32 0.0, %v6156
        %v6158 = vpop.f32.mrb[0].mxu0
        %6159 = vmatprep.mubr.bf16.mxu0 0
        %6160 = vmatmul.mubr.bf16.gmra.mrb[0].mxu0 %v5984
        %v6161 = vpop.f32.mrb[0].mxu0
        %v6162 = vadd.f32 0.0, %v6161
        %v6163 = vpop.f32.mrb[0].mxu0
        %v6164 = vpop.f32.mrb[0].mxu0
        %v6165 = vadd.f32 0.0, %v6164
        %v6166 = vpop.f32.mrb[0].mxu0
        %6167 = vmatprep.mubr.bf16.mxu0 0
        %6168 = vmatmul.mubr.bf16.gmra.mrb[0].mxu0 %v5985
        %v6169 = vpop.f32.mrb[0].mxu0
        %v6170 = vadd.f32 0.0, %v6169
        %v6171 = vpop.f32.mrb[0].mxu0
        %v6172 = vpop.f32.mrb[0].mxu0
        %v6173 = vadd.f32 0.0, %v6172
        %v6174 = vpop.f32.mrb[0].mxu0
        %6175 = vmatprep.mubr.bf16.mxu0 0
        %6176 = vmatmul.mubr.bf16.gmra.mrb[0].mxu0 %v5986
        %v6177 = vpop.f32.mrb[0].mxu0
        %v6178 = vadd.f32 0.0, %v6177
        %v6179 = vpop.f32.mrb[0].mxu0
        %v6180 = vpop.f32.mrb[0].mxu0
        %v6181 = vadd.f32 0.0, %v6180
        %v6182 = vpop.f32.mrb[0].mxu0
        %6183 = vmatprep.mubr.bf16.mxu0 0
        %6184 = vmatmul.mubr.bf16.gmra.mrb[0].mxu0 %v5987
        %v6185 = vpop.f32.mrb[0].mxu0
        %v6186 = vadd.f32 0.0, %v6185
        %v6187 = vpop.f32.mrb[0].mxu0
        %v6188 = vpop.f32.mrb[0].mxu0
        %v6189 = vadd.f32 0.0, %v6188
        %v6190 = vpop.f32.mrb[0].mxu0
        %6191 = vmatprep.mubr.bf16.mxu0 0
        %6192 = vmatmul.mubr.bf16.gmra.mrb[0].mxu0 %v5988
        %v6193 = vpop.f32.mrb[0].mxu0
        %v6194 = vadd.f32 0.0, %v6193
        %v6195 = vpop.f32.mrb[0].mxu0
        %v6196 = vpop.f32.mrb[0].mxu0
        %v6197 = vadd.f32 0.0, %v6196
        %v6198 = vpop.f32.mrb[0].mxu0
        %6199 = vmatprep.mubr.bf16.mxu0 0
        %6200 = vmatmul.mubr.bf16.gmra.mrb[0].mxu0 %v5989
        %v6201 = vpop.f32.mrb[0].mxu0
        %v6202 = vadd.f32 0.0, %v6201
        %v6203 = vpop.f32.mrb[0].mxu0
        %v6204 = vpop.f32.mrb[0].mxu0
        %v6205 = vadd.f32 0.0, %v6204
        %v6206 = vpop.f32.mrb[0].mxu0
        %6207 = vmatprep.mubr.bf16.mxu0 0
        %6208 = vmatmul.mubr.bf16.gmra.mrb[0].mxu0 %v5990
        %v6209 = vpop.f32.mrb[0].mxu0
        %v6210 = vadd.f32 0.0, %v6209
        %v6211 = vpop.f32.mrb[0].mxu0
        %v6212 = vpop.f32.mrb[0].mxu0
        %v6213 = vadd.f32 0.0, %v6212
        %v6214 = vpop.f32.mrb[0].mxu0
        %6215 = vdwg.mxu0
        %6216 = vst [vmem:[#allocation3] sm:$0xff] %v6090
        %6217 = vst [vmem:[#allocation3 + $0x8] sm:$0xff] %v6093
        %6218 = vst [vmem:[#allocation3 + $0x10] sm:$0xff] %v6098
        %6219 = vst [vmem:[#allocation3 + $0x18] sm:$0xff] %v6101
        %6220 = vst [vmem:[#allocation3 + $0x20] sm:$0xff] %v6106
        %6221 = vst [vmem:[#allocation3 + $0x28] sm:$0xff] %v6109
        %6222 = vst [vmem:[#allocation3 + $0x30] sm:$0xff] %v6114
        %6223 = vst [vmem:[#allocation3 + $0x38] sm:$0xff] %v6117
        %6224 = vst [vmem:[#allocation3 + $0x40] sm:$0xff] %v6122
        %6225 = vst [vmem:[#allocation3 + $0x48] sm:$0xff] %v6125
        %6226 = vst [vmem:[#allocation3 + $0x50] sm:$0xff] %v6130
        %6227 = vst [vmem:[#allocation3 + $0x58] sm:$0xff] %v6133
        %6228 = vst [vmem:[#allocation3 + $0x60] sm:$0xff] %v6138
        %6229 = vst [vmem:[#allocation3 + $0x68] sm:$0xff] %v6141
        %6230 = vst [vmem:[#allocation3 + $0x70] sm:$0xff] %v6146
        %6231 = vst [vmem:[#allocation3 + $0x78] sm:$0xff] %v6149
        %6232 = vst [vmem:[#allocation3 + $0x80] sm:$0xff] %v6154
        %6233 = vst [vmem:[#allocation3 + $0x88] sm:$0xff] %v6157
        %6234 = vst [vmem:[#allocation3 + $0x90] sm:$0xff] %v6162
        %6235 = vst [vmem:[#allocation3 + $0x98] sm:$0xff] %v6165
        %6236 = vst [vmem:[#allocation3 + $0xa0] sm:$0xff] %v6170
        %6237 = vst [vmem:[#allocation3 + $0xa8] sm:$0xff] %v6173
        %6238 = vst [vmem:[#allocation3 + $0xb0] sm:$0xff] %v6178
        %6239 = vst [vmem:[#allocation3 + $0xb8] sm:$0xff] %v6181
        %6240 = vst [vmem:[#allocation3 + $0xc0] sm:$0xff] %v6186
        %6241 = vst [vmem:[#allocation3 + $0xc8] sm:$0xff] %v6189
        %6242 = vst [vmem:[#allocation3 + $0xd0] sm:$0xff] %v6194
        %6243 = vst [vmem:[#allocation3 + $0xd8] sm:$0xff] %v6197
        %6244 = vst [vmem:[#allocation3 + $0xe0] sm:$0xff] %v6202
        %6245 = vst [vmem:[#allocation3 + $0xe8] sm:$0xff] %v6205
        %6246 = vst [vmem:[#allocation3 + $0xf0] sm:$0xff] %v6210
        %6247 = vst [vmem:[#allocation3 + $0xf8] sm:$0xff] %v6213
        %v6248 = vld [vmem:[#allocation2 + $0x1] sm:$0xff]
        %v6249 = vld [vmem:[#allocation2 + $0x9] sm:$0xff]
        %v6250 = vld [vmem:[#allocation2 + $0x19] sm:$0xff]
        %v6251 = vld [vmem:[#allocation2 + $0x21] sm:$0xff]
        %v6252 = vld [vmem:[#allocation2 + $0x31] sm:$0xff]
        %v6253 = vld [vmem:[#allocation2 + $0x39] sm:$0xff]
        %v6254 = vld [vmem:[#allocation2 + $0x49] sm:$0xff]
        %v6255 = vld [vmem:[#allocation2 + $0x51] sm:$0xff]
        %v6256 = vld [vmem:[#allocation2 + $0x61] sm:$0xff]
        %v6257 = vld [vmem:[#allocation2 + $0x69] sm:$0xff]
        %v6258 = vld [vmem:[#allocation2 + $0x79] sm:$0xff]
        %v6259 = vld [vmem:[#allocation2 + $0x81] sm:$0xff]
        %v6260 = vld [vmem:[#allocation2 + $0x91] sm:$0xff]
        %v6261 = vld [vmem:[#allocation2 + $0x99] sm:$0xff]
        %v6262 = vld [vmem:[#allocation2 + $0xa9] sm:$0xff]
        %v6263 = vld [vmem:[#allocation2 + $0xb1] sm:$0xff]
        %v6264 = vld [vmem:[#allocation2 + $0xc1] sm:$0xff]
        %v6265 = vld [vmem:[#allocation2 + $0xc9] sm:$0xff]
        %v6266 = vld [vmem:[#allocation2 + $0xd9] sm:$0xff]
        %v6267 = vld [vmem:[#allocation2 + $0xe1] sm:$0xff]
        %v6268 = vld [vmem:[#allocation2 + $0xf1] sm:$0xff]
        %v6269 = vld [vmem:[#allocation2 + $0xf9] sm:$0xff]
        %v6270 = vld [vmem:[#allocation2 + $0x109] sm:$0xff]
        %v6271 = vld [vmem:[#allocation2 + $0x111] sm:$0xff]
        %v6272 = vld [vmem:[#allocation2 + $0x121] sm:$0xff]
        %v6273 = vld [vmem:[#allocation2 + $0x129] sm:$0xff]
        %v6274 = vld [vmem:[#allocation2 + $0x139] sm:$0xff]
        %v6275 = vld [vmem:[#allocation2 + $0x141] sm:$0xff]
        %v6276 = vld [vmem:[#allocation2 + $0x151] sm:$0xff]
        %v6277 = vld [vmem:[#allocation2 + $0x159] sm:$0xff]
        %v6278 = vld [vmem:[#allocation2 + $0x169] sm:$0xff]
        %v6279 = vld [vmem:[#allocation2 + $0x171] sm:$0xff]
        %v6280 = vpack.c.bf16 %v6249, %v6248
        %v6281 = vpack.c.bf16 %v6251, %v6250
        %v6282 = vpack.c.bf16 %v6253, %v6252
        %v6283 = vpack.c.bf16 %v6255, %v6254
        %v6284 = vpack.c.bf16 %v6257, %v6256
        %v6285 = vpack.c.bf16 %v6259, %v6258
        %v6286 = vpack.c.bf16 %v6261, %v6260
        %v6287 = vpack.c.bf16 %v6263, %v6262
        %v6288 = vpack.c.bf16 %v6265, %v6264
        %v6289 = vpack.c.bf16 %v6267, %v6266
        %v6290 = vpack.c.bf16 %v6269, %v6268
        %v6291 = vpack.c.bf16 %v6271, %v6270
        %v6292 = vpack.c.bf16 %v6273, %v6272
        %v6293 = vpack.c.bf16 %v6275, %v6274
        %v6294 = vpack.c.bf16 %v6277, %v6276
        %v6295 = vpack.c.bf16 %v6279, %v6278
        %s6296 = scalar_lea.vmem %s3, 64
        %v6297 = vld [vmem:[%s6296] sm:$0xf]
        %v6298 = vld [vmem:[%s6296 + $0x4] sm:$0xf]
        %v6299 = vld [vmem:[%s6296 + $0x8] sm:$0xf]
        %v6300 = vld [vmem:[%s6296 + $0xc] sm:$0xf]
        %v6301 = vld [vmem:[%s6296 + $0x10] sm:$0xf]
        %v6302 = vld [vmem:[%s6296 + $0x14] sm:$0xf]
        %v6303 = vld [vmem:[%s6296 + $0x18] sm:$0xf]
        %v6304 = vld [vmem:[%s6296 + $0x1c] sm:$0xf]
        %v6305 = vld [vmem:[%s6296 + $0x20] sm:$0xf]
        %v6306 = vld [vmem:[%s6296 + $0x24] sm:$0xf]
        %v6307 = vld [vmem:[%s6296 + $0x28] sm:$0xf]
        %v6308 = vld [vmem:[%s6296 + $0x2c] sm:$0xf]
        %v6309 = vld [vmem:[%s6296 + $0x30] sm:$0xf]
        %v6310 = vld [vmem:[%s6296 + $0x34] sm:$0xf]
        %v6311 = vld [vmem:[%s6296 + $0x38] sm:$0xf]
        %v6312 = vld [vmem:[%s6296 + $0x3c] sm:$0xf]
        %v6329 = vunpack.c.l.b16 %v6297
        %v6330 = vunpack.c.l.b16 %v6298
        %v6331 = vunpack.c.l.b16 %v6299
        %v6332 = vunpack.c.l.b16 %v6300
        %v6333 = vunpack.c.l.b16 %v6301
        %v6334 = vunpack.c.l.b16 %v6302
        %v6335 = vunpack.c.l.b16 %v6303
        %v6336 = vunpack.c.l.b16 %v6304
        %v6337 = vunpack.c.l.b16 %v6305
        %v6338 = vunpack.c.l.b16 %v6306
        %v6339 = vunpack.c.l.b16 %v6307
        %v6340 = vunpack.c.l.b16 %v6308
        %v6341 = vunpack.c.l.b16 %v6309
        %v6342 = vunpack.c.l.b16 %v6310
        %v6343 = vunpack.c.l.b16 %v6311
        %v6344 = vunpack.c.l.b16 %v6312
        %v6345 = vpack.c.b16 %v6330, %v6329
        %v6346 = vpack.c.b16 %v6332, %v6331
        %v6347 = vpack.c.b16 %v6334, %v6333
        %v6348 = vpack.c.b16 %v6336, %v6335
        %v6349 = vpack.c.b16 %v6338, %v6337
        %v6350 = vpack.c.b16 %v6340, %v6339
        %v6351 = vpack.c.b16 %v6342, %v6341
        %v6352 = vpack.c.b16 %v6344, %v6343
        %6361 = vmatprep.subr.bf16.mxu0 0
        %6362 = vmatpush1.bf16.msra.mxu0 %v6345
        %6363 = vmatprep.subr.bf16.mxu0 0
        %6364 = vmatpush1.bf16.msra.mxu0 %v6346
        %6365 = vmatprep.subr.bf16.mxu0 0
        %6366 = vmatpush1.bf16.msra.mxu0 %v6347
        %6367 = vmatprep.subr.bf16.mxu0 0
        %6368 = vmatpush1.bf16.msra.mxu0 %v6348
        %6369 = vmatprep.subr.bf16.mxu0 0
        %6370 = vmatpush1.bf16.msra.mxu0 %v6349
        %6371 = vmatprep.subr.bf16.mxu0 0
        %6372 = vmatpush1.bf16.msra.mxu0 %v6350
        %6373 = vmatprep.subr.bf16.mxu0 0
        %6374 = vmatpush1.bf16.msra.mxu0 %v6351
        %6375 = vmatprep.subr.bf16.mxu0 0
        %6376 = vmatpush1.bf16.msra.mxu0 %v6352
        %6377 = vmatprep.subr.bf16.mxu0 0
        %6378 = vmatpush1.bf16.msra.mxu0 0
        %6379 = vmatprep.subr.bf16.mxu0 0
        %6380 = vmatpush1.bf16.msra.mxu0 0
        %6381 = vmatprep.subr.bf16.mxu0 0
        %6382 = vmatpush1.bf16.msra.mxu0 0
        %6383 = vmatprep.subr.bf16.mxu0 0
        %6384 = vmatpush1.bf16.msra.mxu0 0
        %6385 = vmatprep.subr.bf16.mxu0 0
        %6386 = vmatpush1.bf16.msra.mxu0 0
        %6387 = vmatprep.subr.bf16.mxu0 0
        %6388 = vmatpush1.bf16.msra.mxu0 0
        %6389 = vmatprep.subr.bf16.mxu0 0
        %6390 = vmatpush1.bf16.msra.mxu0 0
        %6391 = vmatprep.subr.bf16.mxu0 0
        %6392 = vmatpush1.bf16.msra.mxu0 0
        %6393 = vmatprep.mubr.bf16.mxu0 0
        %6394 = vmatmul.mubr.bf16.gmra.mrb[0].mxu0 %v6280
        %v6395 = vpop.f32.mrb[0].mxu0
        %v6396 = vadd.f32 0.0, %v6395
        %v6397 = vpop.f32.mrb[0].mxu0
        %v6398 = vpop.f32.mrb[0].mxu0
        %v6399 = vadd.f32 0.0, %v6398
        %v6400 = vpop.f32.mrb[0].mxu0
        %6401 = vmatprep.mubr.bf16.mxu0 0
        %6402 = vmatmul.mubr.bf16.gmra.mrb[0].mxu0 %v6281
        %v6403 = vpop.f32.mrb[0].mxu0
        %v6404 = vadd.f32 0.0, %v6403
        %v6405 = vpop.f32.mrb[0].mxu0
        %v6406 = vpop.f32.mrb[0].mxu0
        %v6407 = vadd.f32 0.0, %v6406
        %v6408 = vpop.f32.mrb[0].mxu0
        %6409 = vmatprep.mubr.bf16.mxu0 0
        %6410 = vmatmul.mubr.bf16.gmra.mrb[0].mxu0 %v6282
        %v6411 = vpop.f32.mrb[0].mxu0
        %v6412 = vadd.f32 0.0, %v6411
        %v6413 = vpop.f32.mrb[0].mxu0
        %v6414 = vpop.f32.mrb[0].mxu0
        %v6415 = vadd.f32 0.0, %v6414
        %v6416 = vpop.f32.mrb[0].mxu0
        %6417 = vmatprep.mubr.bf16.mxu0 0
        %6418 = vmatmul.mubr.bf16.gmra.mrb[0].mxu0 %v6283
        %v6419 = vpop.f32.mrb[0].mxu0
        %v6420 = vadd.f32 0.0, %v6419
        %v6421 = vpop.f32.mrb[0].mxu0
        %v6422 = vpop.f32.mrb[0].mxu0
        %v6423 = vadd.f32 0.0, %v6422
        %v6424 = vpop.f32.mrb[0].mxu0
        %6425 = vmatprep.mubr.bf16.mxu0 0
        %6426 = vmatmul.mubr.bf16.gmra.mrb[0].mxu0 %v6284
        %v6427 = vpop.f32.mrb[0].mxu0
        %v6428 = vadd.f32 0.0, %v6427
        %v6429 = vpop.f32.mrb[0].mxu0
        %v6430 = vpop.f32.mrb[0].mxu0
        %v6431 = vadd.f32 0.0, %v6430
        %v6432 = vpop.f32.mrb[0].mxu0
        %6433 = vmatprep.mubr.bf16.mxu0 0
        %6434 = vmatmul.mubr.bf16.gmra.mrb[0].mxu0 %v6285
        %v6435 = vpop.f32.mrb[0].mxu0
        %v6436 = vadd.f32 0.0, %v6435
        %v6437 = vpop.f32.mrb[0].mxu0
        %v6438 = vpop.f32.mrb[0].mxu0
        %v6439 = vadd.f32 0.0, %v6438
        %v6440 = vpop.f32.mrb[0].mxu0
        %6441 = vmatprep.mubr.bf16.mxu0 0
        %6442 = vmatmul.mubr.bf16.gmra.mrb[0].mxu0 %v6286
        %v6443 = vpop.f32.mrb[0].mxu0
        %v6444 = vadd.f32 0.0, %v6443
        %v6445 = vpop.f32.mrb[0].mxu0
        %v6446 = vpop.f32.mrb[0].mxu0
        %v6447 = vadd.f32 0.0, %v6446
        %v6448 = vpop.f32.mrb[0].mxu0
        %6449 = vmatprep.mubr.bf16.mxu0 0
        %6450 = vmatmul.mubr.bf16.gmra.mrb[0].mxu0 %v6287
        %v6451 = vpop.f32.mrb[0].mxu0
        %v6452 = vadd.f32 0.0, %v6451
        %v6453 = vpop.f32.mrb[0].mxu0
        %v6454 = vpop.f32.mrb[0].mxu0
        %v6455 = vadd.f32 0.0, %v6454
        %v6456 = vpop.f32.mrb[0].mxu0
        %6457 = vmatprep.mubr.bf16.mxu0 0
        %6458 = vmatmul.mubr.bf16.gmra.mrb[0].mxu0 %v6288
        %v6459 = vpop.f32.mrb[0].mxu0
        %v6460 = vadd.f32 0.0, %v6459
        %v6461 = vpop.f32.mrb[0].mxu0
        %v6462 = vpop.f32.mrb[0].mxu0
        %v6463 = vadd.f32 0.0, %v6462
        %v6464 = vpop.f32.mrb[0].mxu0
        %6465 = vmatprep.mubr.bf16.mxu0 0
        %6466 = vmatmul.mubr.bf16.gmra.mrb[0].mxu0 %v6289
        %v6467 = vpop.f32.mrb[0].mxu0
        %v6468 = vadd.f32 0.0, %v6467
        %v6469 = vpop.f32.mrb[0].mxu0
        %v6470 = vpop.f32.mrb[0].mxu0
        %v6471 = vadd.f32 0.0, %v6470
        %v6472 = vpop.f32.mrb[0].mxu0
        %6473 = vmatprep.mubr.bf16.mxu0 0
        %6474 = vmatmul.mubr.bf16.gmra.mrb[0].mxu0 %v6290
        %v6475 = vpop.f32.mrb[0].mxu0
        %v6476 = vadd.f32 0.0, %v6475
        %v6477 = vpop.f32.mrb[0].mxu0
        %v6478 = vpop.f32.mrb[0].mxu0
        %v6479 = vadd.f32 0.0, %v6478
        %v6480 = vpop.f32.mrb[0].mxu0
        %6481 = vmatprep.mubr.bf16.mxu0 0
        %6482 = vmatmul.mubr.bf16.gmra.mrb[0].mxu0 %v6291
        %v6483 = vpop.f32.mrb[0].mxu0
        %v6484 = vadd.f32 0.0, %v6483
        %v6485 = vpop.f32.mrb[0].mxu0
        %v6486 = vpop.f32.mrb[0].mxu0
        %v6487 = vadd.f32 0.0, %v6486
        %v6488 = vpop.f32.mrb[0].mxu0
        %6489 = vmatprep.mubr.bf16.mxu0 0
        %6490 = vmatmul.mubr.bf16.gmra.mrb[0].mxu0 %v6292
        %v6491 = vpop.f32.mrb[0].mxu0
        %v6492 = vadd.f32 0.0, %v6491
        %v6493 = vpop.f32.mrb[0].mxu0
        %v6494 = vpop.f32.mrb[0].mxu0
        %v6495 = vadd.f32 0.0, %v6494
        %v6496 = vpop.f32.mrb[0].mxu0
        %6497 = vmatprep.mubr.bf16.mxu0 0
        %6498 = vmatmul.mubr.bf16.gmra.mrb[0].mxu0 %v6293
        %v6499 = vpop.f32.mrb[0].mxu0
        %v6500 = vadd.f32 0.0, %v6499
        %v6501 = vpop.f32.mrb[0].mxu0
        %v6502 = vpop.f32.mrb[0].mxu0
        %v6503 = vadd.f32 0.0, %v6502
        %v6504 = vpop.f32.mrb[0].mxu0
        %6505 = vmatprep.mubr.bf16.mxu0 0
        %6506 = vmatmul.mubr.bf16.gmra.mrb[0].mxu0 %v6294
        %v6507 = vpop.f32.mrb[0].mxu0
        %v6508 = vadd.f32 0.0, %v6507
        %v6509 = vpop.f32.mrb[0].mxu0
        %v6510 = vpop.f32.mrb[0].mxu0
        %v6511 = vadd.f32 0.0, %v6510
        %v6512 = vpop.f32.mrb[0].mxu0
        %6513 = vmatprep.mubr.bf16.mxu0 0
        %6514 = vmatmul.mubr.bf16.gmra.mrb[0].mxu0 %v6295
        %v6515 = vpop.f32.mrb[0].mxu0
        %v6516 = vadd.f32 0.0, %v6515
        %v6517 = vpop.f32.mrb[0].mxu0
        %v6518 = vpop.f32.mrb[0].mxu0
        %v6519 = vadd.f32 0.0, %v6518
        %v6520 = vpop.f32.mrb[0].mxu0
        %6521 = vdwg.mxu0
        %v6522 = vld [vmem:[#allocation3] sm:$0xff]
        %v6523 = vld [vmem:[#allocation3 + $0x8] sm:$0xff]
        %v6524 = vld [vmem:[#allocation3 + $0x10] sm:$0xff]
        %v6525 = vld [vmem:[#allocation3 + $0x18] sm:$0xff]
        %v6526 = vld [vmem:[#allocation3 + $0x20] sm:$0xff]
        %v6527 = vld [vmem:[#allocation3 + $0x28] sm:$0xff]
        %v6528 = vld [vmem:[#allocation3 + $0x30] sm:$0xff]
        %v6529 = vld [vmem:[#allocation3 + $0x38] sm:$0xff]
        %v6530 = vld [vmem:[#allocation3 + $0x40] sm:$0xff]
        %v6531 = vld [vmem:[#allocation3 + $0x48] sm:$0xff]
        %v6532 = vld [vmem:[#allocation3 + $0x50] sm:$0xff]
        %v6533 = vld [vmem:[#allocation3 + $0x58] sm:$0xff]
        %v6534 = vld [vmem:[#allocation3 + $0x60] sm:$0xff]
        %v6535 = vld [vmem:[#allocation3 + $0x68] sm:$0xff]
        %v6536 = vld [vmem:[#allocation3 + $0x70] sm:$0xff]
        %v6537 = vld [vmem:[#allocation3 + $0x78] sm:$0xff]
        %v6538 = vld [vmem:[#allocation3 + $0x80] sm:$0xff]
        %v6539 = vld [vmem:[#allocation3 + $0x88] sm:$0xff]
        %v6540 = vld [vmem:[#allocation3 + $0x90] sm:$0xff]
        %v6541 = vld [vmem:[#allocation3 + $0x98] sm:$0xff]
        %v6542 = vld [vmem:[#allocation3 + $0xa0] sm:$0xff]
        %v6543 = vld [vmem:[#allocation3 + $0xa8] sm:$0xff]
        %v6544 = vld [vmem:[#allocation3 + $0xb0] sm:$0xff]
        %v6545 = vld [vmem:[#allocation3 + $0xb8] sm:$0xff]
        %v6546 = vld [vmem:[#allocation3 + $0xc0] sm:$0xff]
        %v6547 = vld [vmem:[#allocation3 + $0xc8] sm:$0xff]
        %v6548 = vld [vmem:[#allocation3 + $0xd0] sm:$0xff]
        %v6549 = vld [vmem:[#allocation3 + $0xd8] sm:$0xff]
        %v6550 = vld [vmem:[#allocation3 + $0xe0] sm:$0xff]
        %v6551 = vld [vmem:[#allocation3 + $0xe8] sm:$0xff]
        %v6552 = vld [vmem:[#allocation3 + $0xf0] sm:$0xff]
        %v6553 = vld [vmem:[#allocation3 + $0xf8] sm:$0xff]
        %v6554 = vadd.f32 %v6522, %v6396
        %v6555 = vadd.f32 %v6523, %v6399
        %v6556 = vadd.f32 %v6524, %v6404
        %v6557 = vadd.f32 %v6525, %v6407
        %v6558 = vadd.f32 %v6526, %v6412
        %v6559 = vadd.f32 %v6527, %v6415
        %v6560 = vadd.f32 %v6528, %v6420
        %v6561 = vadd.f32 %v6529, %v6423
        %v6562 = vadd.f32 %v6530, %v6428
        %v6563 = vadd.f32 %v6531, %v6431
        %v6564 = vadd.f32 %v6532, %v6436
        %v6565 = vadd.f32 %v6533, %v6439
        %v6566 = vadd.f32 %v6534, %v6444
        %v6567 = vadd.f32 %v6535, %v6447
        %v6568 = vadd.f32 %v6536, %v6452
        %v6569 = vadd.f32 %v6537, %v6455
        %v6570 = vadd.f32 %v6538, %v6460
        %v6571 = vadd.f32 %v6539, %v6463
        %v6572 = vadd.f32 %v6540, %v6468
        %v6573 = vadd.f32 %v6541, %v6471
        %v6574 = vadd.f32 %v6542, %v6476
        %v6575 = vadd.f32 %v6543, %v6479
        %v6576 = vadd.f32 %v6544, %v6484
        %v6577 = vadd.f32 %v6545, %v6487
        %v6578 = vadd.f32 %v6546, %v6492
        %v6579 = vadd.f32 %v6547, %v6495
        %v6580 = vadd.f32 %v6548, %v6500
        %v6581 = vadd.f32 %v6549, %v6503
        %v6582 = vadd.f32 %v6550, %v6508
        %v6583 = vadd.f32 %v6551, %v6511
        %v6584 = vadd.f32 %v6552, %v6516
        %v6585 = vadd.f32 %v6553, %v6519
        %6586 = vst [vmem:[#allocation3] sm:$0xff] %v6554
        %6587 = vst [vmem:[#allocation3 + $0x8] sm:$0xff] %v6555
        %6588 = vst [vmem:[#allocation3 + $0x10] sm:$0xff] %v6556
        %6589 = vst [vmem:[#allocation3 + $0x18] sm:$0xff] %v6557
        %6590 = vst [vmem:[#allocation3 + $0x20] sm:$0xff] %v6558
        %6591 = vst [vmem:[#allocation3 + $0x28] sm:$0xff] %v6559
        %6592 = vst [vmem:[#allocation3 + $0x30] sm:$0xff] %v6560
        %6593 = vst [vmem:[#allocation3 + $0x38] sm:$0xff] %v6561
        %6594 = vst [vmem:[#allocation3 + $0x40] sm:$0xff] %v6562
        %6595 = vst [vmem:[#allocation3 + $0x48] sm:$0xff] %v6563
        %6596 = vst [vmem:[#allocation3 + $0x50] sm:$0xff] %v6564
        %6597 = vst [vmem:[#allocation3 + $0x58] sm:$0xff] %v6565
        %6598 = vst [vmem:[#allocation3 + $0x60] sm:$0xff] %v6566
        %6599 = vst [vmem:[#allocation3 + $0x68] sm:$0xff] %v6567
        %6600 = vst [vmem:[#allocation3 + $0x70] sm:$0xff] %v6568
        %6601 = vst [vmem:[#allocation3 + $0x78] sm:$0xff] %v6569
        %6602 = vst [vmem:[#allocation3 + $0x80] sm:$0xff] %v6570
        %6603 = vst [vmem:[#allocation3 + $0x88] sm:$0xff] %v6571
        %6604 = vst [vmem:[#allocation3 + $0x90] sm:$0xff] %v6572
        %6605 = vst [vmem:[#allocation3 + $0x98] sm:$0xff] %v6573
        %6606 = vst [vmem:[#allocation3 + $0xa0] sm:$0xff] %v6574
        %6607 = vst [vmem:[#allocation3 + $0xa8] sm:$0xff] %v6575
        %6608 = vst [vmem:[#allocation3 + $0xb0] sm:$0xff] %v6576
        %6609 = vst [vmem:[#allocation3 + $0xb8] sm:$0xff] %v6577
        %6610 = vst [vmem:[#allocation3 + $0xc0] sm:$0xff] %v6578
        %6611 = vst [vmem:[#allocation3 + $0xc8] sm:$0xff] %v6579
        %6612 = vst [vmem:[#allocation3 + $0xd0] sm:$0xff] %v6580
        %6613 = vst [vmem:[#allocation3 + $0xd8] sm:$0xff] %v6581
        %6614 = vst [vmem:[#allocation3 + $0xe0] sm:$0xff] %v6582
        %6615 = vst [vmem:[#allocation3 + $0xe8] sm:$0xff] %v6583
        %6616 = vst [vmem:[#allocation3 + $0xf0] sm:$0xff] %v6584
        %6617 = vst [vmem:[#allocation3 + $0xf8] sm:$0xff] %v6585
        %v6618 = vld [vmem:[#allocation2 + $0x2] sm:$0xff]
        %v6619 = vld [vmem:[#allocation2 + $0xa] sm:$0xff]
        %v6620 = vld [vmem:[#allocation2 + $0x1a] sm:$0xff]
        %v6621 = vld [vmem:[#allocation2 + $0x22] sm:$0xff]
        %v6622 = vld [vmem:[#allocation2 + $0x32] sm:$0xff]
        %v6623 = vld [vmem:[#allocation2 + $0x3a] sm:$0xff]
        %v6624 = vld [vmem:[#allocation2 + $0x4a] sm:$0xff]
        %v6625 = vld [vmem:[#allocation2 + $0x52] sm:$0xff]
        %v6626 = vld [vmem:[#allocation2 + $0x62] sm:$0xff]
        %v6627 = vld [vmem:[#allocation2 + $0x6a] sm:$0xff]
        %v6628 = vld [vmem:[#allocation2 + $0x7a] sm:$0xff]
        %v6629 = vld [vmem:[#allocation2 + $0x82] sm:$0xff]
        %v6630 = vld [vmem:[#allocation2 + $0x92] sm:$0xff]
        %v6631 = vld [vmem:[#allocation2 + $0x9a] sm:$0xff]
        %v6632 = vld [vmem:[#allocation2 + $0xaa] sm:$0xff]
        %v6633 = vld [vmem:[#allocation2 + $0xb2] sm:$0xff]
        %v6634 = vld [vmem:[#allocation2 + $0xc2] sm:$0xff]
        %v6635 = vld [vmem:[#allocation2 + $0xca] sm:$0xff]
        %v6636 = vld [vmem:[#allocation2 + $0xda] sm:$0xff]
        %v6637 = vld [vmem:[#allocation2 + $0xe2] sm:$0xff]
        %v6638 = vld [vmem:[#allocation2 + $0xf2] sm:$0xff]
        %v6639 = vld [vmem:[#allocation2 + $0xfa] sm:$0xff]
        %v6640 = vld [vmem:[#allocation2 + $0x10a] sm:$0xff]
        %v6641 = vld [vmem:[#allocation2 + $0x112] sm:$0xff]
        %v6642 = vld [vmem:[#allocation2 + $0x122] sm:$0xff]
        %v6643 = vld [vmem:[#allocation2 + $0x12a] sm:$0xff]
        %v6644 = vld [vmem:[#allocation2 + $0x13a] sm:$0xff]
        %v6645 = vld [vmem:[#allocation2 + $0x142] sm:$0xff]
        %v6646 = vld [vmem:[#allocation2 + $0x152] sm:$0xff]
        %v6647 = vld [vmem:[#allocation2 + $0x15a] sm:$0xff]
        %v6648 = vld [vmem:[#allocation2 + $0x16a] sm:$0xff]
        %v6649 = vld [vmem:[#allocation2 + $0x172] sm:$0xff]
        %v6650 = vpack.c.bf16 %v6619, %v6618
        %v6651 = vpack.c.bf16 %v6621, %v6620
        %v6652 = vpack.c.bf16 %v6623, %v6622
        %v6653 = vpack.c.bf16 %v6625, %v6624
        %v6654 = vpack.c.bf16 %v6627, %v6626
        %v6655 = vpack.c.bf16 %v6629, %v6628
        %v6656 = vpack.c.bf16 %v6631, %v6630
        %v6657 = vpack.c.bf16 %v6633, %v6632
        %v6658 = vpack.c.bf16 %v6635, %v6634
        %v6659 = vpack.c.bf16 %v6637, %v6636
        %v6660 = vpack.c.bf16 %v6639, %v6638
        %v6661 = vpack.c.bf16 %v6641, %v6640
        %v6662 = vpack.c.bf16 %v6643, %v6642
        %v6663 = vpack.c.bf16 %v6645, %v6644
        %v6664 = vpack.c.bf16 %v6647, %v6646
        %v6665 = vpack.c.bf16 %v6649, %v6648
        %s6666 = scalar_lea.vmem %s3, 128
        %v6667 = vld [vmem:[%s6666] sm:$0xf]
        %v6668 = vld [vmem:[%s6666 + $0x4] sm:$0xf]
        %v6669 = vld [vmem:[%s6666 + $0x8] sm:$0xf]
        %v6670 = vld [vmem:[%s6666 + $0xc] sm:$0xf]
        %v6671 = vld [vmem:[%s6666 + $0x10] sm:$0xf]
        %v6672 = vld [vmem:[%s6666 + $0x14] sm:$0xf]
        %v6673 = vld [vmem:[%s6666 + $0x18] sm:$0xf]
        %v6674 = vld [vmem:[%s6666 + $0x1c] sm:$0xf]
        %v6675 = vld [vmem:[%s6666 + $0x20] sm:$0xf]
        %v6676 = vld [vmem:[%s6666 + $0x24] sm:$0xf]
        %v6677 = vld [vmem:[%s6666 + $0x28] sm:$0xf]
        %v6678 = vld [vmem:[%s6666 + $0x2c] sm:$0xf]
        %v6679 = vld [vmem:[%s6666 + $0x30] sm:$0xf]
        %v6680 = vld [vmem:[%s6666 + $0x34] sm:$0xf]
        %v6681 = vld [vmem:[%s6666 + $0x38] sm:$0xf]
        %v6682 = vld [vmem:[%s6666 + $0x3c] sm:$0xf]
        %v6699 = vunpack.c.l.b16 %v6667
        %v6700 = vunpack.c.l.b16 %v6668
        %v6701 = vunpack.c.l.b16 %v6669
        %v6702 = vunpack.c.l.b16 %v6670
        %v6703 = vunpack.c.l.b16 %v6671
        %v6704 = vunpack.c.l.b16 %v6672
        %v6705 = vunpack.c.l.b16 %v6673
        %v6706 = vunpack.c.l.b16 %v6674
        %v6707 = vunpack.c.l.b16 %v6675
        %v6708 = vunpack.c.l.b16 %v6676
        %v6709 = vunpack.c.l.b16 %v6677
        %v6710 = vunpack.c.l.b16 %v6678
        %v6711 = vunpack.c.l.b16 %v6679
        %v6712 = vunpack.c.l.b16 %v6680
        %v6713 = vunpack.c.l.b16 %v6681
        %v6714 = vunpack.c.l.b16 %v6682
        %v6715 = vpack.c.b16 %v6700, %v6699
        %v6716 = vpack.c.b16 %v6702, %v6701
        %v6717 = vpack.c.b16 %v6704, %v6703
        %v6718 = vpack.c.b16 %v6706, %v6705
        %v6719 = vpack.c.b16 %v6708, %v6707
        %v6720 = vpack.c.b16 %v6710, %v6709
        %v6721 = vpack.c.b16 %v6712, %v6711
        %v6722 = vpack.c.b16 %v6714, %v6713
        %6731 = vmatprep.subr.bf16.mxu0 0
        %6732 = vmatpush1.bf16.msra.mxu0 %v6715
        %6733 = vmatprep.subr.bf16.mxu0 0
        %6734 = vmatpush1.bf16.msra.mxu0 %v6716
        %6735 = vmatprep.subr.bf16.mxu0 0
        %6736 = vmatpush1.bf16.msra.mxu0 %v6717
        %6737 = vmatprep.subr.bf16.mxu0 0
        %6738 = vmatpush1.bf16.msra.mxu0 %v6718
        %6739 = vmatprep.subr.bf16.mxu0 0
        %6740 = vmatpush1.bf16.msra.mxu0 %v6719
        %6741 = vmatprep.subr.bf16.mxu0 0
        %6742 = vmatpush1.bf16.msra.mxu0 %v6720
        %6743 = vmatprep.subr.bf16.mxu0 0
        %6744 = vmatpush1.bf16.msra.mxu0 %v6721
        %6745 = vmatprep.subr.bf16.mxu0 0
        %6746 = vmatpush1.bf16.msra.mxu0 %v6722
        %6747 = vmatprep.subr.bf16.mxu0 0
        %6748 = vmatpush1.bf16.msra.mxu0 0
        %6749 = vmatprep.subr.bf16.mxu0 0
        %6750 = vmatpush1.bf16.msra.mxu0 0
        %6751 = vmatprep.subr.bf16.mxu0 0
        %6752 = vmatpush1.bf16.msra.mxu0 0
        %6753 = vmatprep.subr.bf16.mxu0 0
        %6754 = vmatpush1.bf16.msra.mxu0 0
        %6755 = vmatprep.subr.bf16.mxu0 0
        %6756 = vmatpush1.bf16.msra.mxu0 0
        %6757 = vmatprep.subr.bf16.mxu0 0
        %6758 = vmatpush1.bf16.msra.mxu0 0
        %6759 = vmatprep.subr.bf16.mxu0 0
        %6760 = vmatpush1.bf16.msra.mxu0 0
        %6761 = vmatprep.subr.bf16.mxu0 0
        %6762 = vmatpush1.bf16.msra.mxu0 0
        %6763 = vmatprep.mubr.bf16.mxu0 0
        %6764 = vmatmul.mubr.bf16.gmra.mrb[0].mxu0 %v6650
        %v6765 = vpop.f32.mrb[0].mxu0
        %v6766 = vadd.f32 0.0, %v6765
        %v6767 = vpop.f32.mrb[0].mxu0
        %v6768 = vpop.f32.mrb[0].mxu0
        %v6769 = vadd.f32 0.0, %v6768
        %v6770 = vpop.f32.mrb[0].mxu0
        %6771 = vmatprep.mubr.bf16.mxu0 0
        %6772 = vmatmul.mubr.bf16.gmra.mrb[0].mxu0 %v6651
        %v6773 = vpop.f32.mrb[0].mxu0
        %v6774 = vadd.f32 0.0, %v6773
        %v6775 = vpop.f32.mrb[0].mxu0
        %v6776 = vpop.f32.mrb[0].mxu0
        %v6777 = vadd.f32 0.0, %v6776
        %v6778 = vpop.f32.mrb[0].mxu0
        %6779 = vmatprep.mubr.bf16.mxu0 0
        %6780 = vmatmul.mubr.bf16.gmra.mrb[0].mxu0 %v6652
        %v6781 = vpop.f32.mrb[0].mxu0
        %v6782 = vadd.f32 0.0, %v6781
        %v6783 = vpop.f32.mrb[0].mxu0
        %v6784 = vpop.f32.mrb[0].mxu0
        %v6785 = vadd.f32 0.0, %v6784
        %v6786 = vpop.f32.mrb[0].mxu0
        %6787 = vmatprep.mubr.bf16.mxu0 0
        %6788 = vmatmul.mubr.bf16.gmra.mrb[0].mxu0 %v6653
        %v6789 = vpop.f32.mrb[0].mxu0
        %v6790 = vadd.f32 0.0, %v6789
        %v6791 = vpop.f32.mrb[0].mxu0
        %v6792 = vpop.f32.mrb[0].mxu0
        %v6793 = vadd.f32 0.0, %v6792
        %v6794 = vpop.f32.mrb[0].mxu0
        %6795 = vmatprep.mubr.bf16.mxu0 0
        %6796 = vmatmul.mubr.bf16.gmra.mrb[0].mxu0 %v6654
        %v6797 = vpop.f32.mrb[0].mxu0
        %v6798 = vadd.f32 0.0, %v6797
        %v6799 = vpop.f32.mrb[0].mxu0
        %v6800 = vpop.f32.mrb[0].mxu0
        %v6801 = vadd.f32 0.0, %v6800
        %v6802 = vpop.f32.mrb[0].mxu0
        %6803 = vmatprep.mubr.bf16.mxu0 0
        %6804 = vmatmul.mubr.bf16.gmra.mrb[0].mxu0 %v6655
        %v6805 = vpop.f32.mrb[0].mxu0
        %v6806 = vadd.f32 0.0, %v6805
        %v6807 = vpop.f32.mrb[0].mxu0
        %v6808 = vpop.f32.mrb[0].mxu0
        %v6809 = vadd.f32 0.0, %v6808
        %v6810 = vpop.f32.mrb[0].mxu0
        %6811 = vmatprep.mubr.bf16.mxu0 0
        %6812 = vmatmul.mubr.bf16.gmra.mrb[0].mxu0 %v6656
        %v6813 = vpop.f32.mrb[0].mxu0
        %v6814 = vadd.f32 0.0, %v6813
        %v6815 = vpop.f32.mrb[0].mxu0
        %v6816 = vpop.f32.mrb[0].mxu0
        %v6817 = vadd.f32 0.0, %v6816
        %v6818 = vpop.f32.mrb[0].mxu0
        %6819 = vmatprep.mubr.bf16.mxu0 0
        %6820 = vmatmul.mubr.bf16.gmra.mrb[0].mxu0 %v6657
        %v6821 = vpop.f32.mrb[0].mxu0
        %v6822 = vadd.f32 0.0, %v6821
        %v6823 = vpop.f32.mrb[0].mxu0
        %v6824 = vpop.f32.mrb[0].mxu0
        %v6825 = vadd.f32 0.0, %v6824
        %v6826 = vpop.f32.mrb[0].mxu0
        %6827 = vmatprep.mubr.bf16.mxu0 0
        %6828 = vmatmul.mubr.bf16.gmra.mrb[0].mxu0 %v6658
        %v6829 = vpop.f32.mrb[0].mxu0
        %v6830 = vadd.f32 0.0, %v6829
        %v6831 = vpop.f32.mrb[0].mxu0
        %v6832 = vpop.f32.mrb[0].mxu0
        %v6833 = vadd.f32 0.0, %v6832
        %v6834 = vpop.f32.mrb[0].mxu0
        %6835 = vmatprep.mubr.bf16.mxu0 0
        %6836 = vmatmul.mubr.bf16.gmra.mrb[0].mxu0 %v6659
        %v6837 = vpop.f32.mrb[0].mxu0
        %v6838 = vadd.f32 0.0, %v6837
        %v6839 = vpop.f32.mrb[0].mxu0
        %v6840 = vpop.f32.mrb[0].mxu0
        %v6841 = vadd.f32 0.0, %v6840
        %v6842 = vpop.f32.mrb[0].mxu0
        %6843 = vmatprep.mubr.bf16.mxu0 0
        %6844 = vmatmul.mubr.bf16.gmra.mrb[0].mxu0 %v6660
        %v6845 = vpop.f32.mrb[0].mxu0
        %v6846 = vadd.f32 0.0, %v6845
        %v6847 = vpop.f32.mrb[0].mxu0
        %v6848 = vpop.f32.mrb[0].mxu0
        %v6849 = vadd.f32 0.0, %v6848
        %v6850 = vpop.f32.mrb[0].mxu0
        %6851 = vmatprep.mubr.bf16.mxu0 0
        %6852 = vmatmul.mubr.bf16.gmra.mrb[0].mxu0 %v6661
        %v6853 = vpop.f32.mrb[0].mxu0
        %v6854 = vadd.f32 0.0, %v6853
        %v6855 = vpop.f32.mrb[0].mxu0
        %v6856 = vpop.f32.mrb[0].mxu0
        %v6857 = vadd.f32 0.0, %v6856
        %v6858 = vpop.f32.mrb[0].mxu0
        %6859 = vmatprep.mubr.bf16.mxu0 0
        %6860 = vmatmul.mubr.bf16.gmra.mrb[0].mxu0 %v6662
        %v6861 = vpop.f32.mrb[0].mxu0
        %v6862 = vadd.f32 0.0, %v6861
        %v6863 = vpop.f32.mrb[0].mxu0
        %v6864 = vpop.f32.mrb[0].mxu0
        %v6865 = vadd.f32 0.0, %v6864
        %v6866 = vpop.f32.mrb[0].mxu0
        %6867 = vmatprep.mubr.bf16.mxu0 0
        %6868 = vmatmul.mubr.bf16.gmra.mrb[0].mxu0 %v6663
        %v6869 = vpop.f32.mrb[0].mxu0
        %v6870 = vadd.f32 0.0, %v6869
        %v6871 = vpop.f32.mrb[0].mxu0
        %v6872 = vpop.f32.mrb[0].mxu0
        %v6873 = vadd.f32 0.0, %v6872
        %v6874 = vpop.f32.mrb[0].mxu0
        %6875 = vmatprep.mubr.bf16.mxu0 0
        %6876 = vmatmul.mubr.bf16.gmra.mrb[0].mxu0 %v6664
        %v6877 = vpop.f32.mrb[0].mxu0
        %v6878 = vadd.f32 0.0, %v6877
        %v6879 = vpop.f32.mrb[0].mxu0
        %v6880 = vpop.f32.mrb[0].mxu0
        %v6881 = vadd.f32 0.0, %v6880
        %v6882 = vpop.f32.mrb[0].mxu0
        %6883 = vmatprep.mubr.bf16.mxu0 0
        %6884 = vmatmul.mubr.bf16.gmra.mrb[0].mxu0 %v6665
        %v6885 = vpop.f32.mrb[0].mxu0
        %v6886 = vadd.f32 0.0, %v6885
        %v6887 = vpop.f32.mrb[0].mxu0
        %v6888 = vpop.f32.mrb[0].mxu0
        %v6889 = vadd.f32 0.0, %v6888
        %v6890 = vpop.f32.mrb[0].mxu0
        %6891 = vdwg.mxu0
        %v6892 = vld [vmem:[#allocation3] sm:$0xff]
        %v6893 = vld [vmem:[#allocation3 + $0x8] sm:$0xff]
        %v6894 = vld [vmem:[#allocation3 + $0x10] sm:$0xff]
        %v6895 = vld [vmem:[#allocation3 + $0x18] sm:$0xff]
        %v6896 = vld [vmem:[#allocation3 + $0x20] sm:$0xff]
        %v6897 = vld [vmem:[#allocation3 + $0x28] sm:$0xff]
        %v6898 = vld [vmem:[#allocation3 + $0x30] sm:$0xff]
        %v6899 = vld [vmem:[#allocation3 + $0x38] sm:$0xff]
        %v6900 = vld [vmem:[#allocation3 + $0x40] sm:$0xff]
        %v6901 = vld [vmem:[#allocation3 + $0x48] sm:$0xff]
        %v6902 = vld [vmem:[#allocation3 + $0x50] sm:$0xff]
        %v6903 = vld [vmem:[#allocation3 + $0x58] sm:$0xff]
        %v6904 = vld [vmem:[#allocation3 + $0x60] sm:$0xff]
        %v6905 = vld [vmem:[#allocation3 + $0x68] sm:$0xff]
        %v6906 = vld [vmem:[#allocation3 + $0x70] sm:$0xff]
        %v6907 = vld [vmem:[#allocation3 + $0x78] sm:$0xff]
        %v6908 = vld [vmem:[#allocation3 + $0x80] sm:$0xff]
        %v6909 = vld [vmem:[#allocation3 + $0x88] sm:$0xff]
        %v6910 = vld [vmem:[#allocation3 + $0x90] sm:$0xff]
        %v6911 = vld [vmem:[#allocation3 + $0x98] sm:$0xff]
        %v6912 = vld [vmem:[#allocation3 + $0xa0] sm:$0xff]
        %v6913 = vld [vmem:[#allocation3 + $0xa8] sm:$0xff]
        %v6914 = vld [vmem:[#allocation3 + $0xb0] sm:$0xff]
        %v6915 = vld [vmem:[#allocation3 + $0xb8] sm:$0xff]
        %v6916 = vld [vmem:[#allocation3 + $0xc0] sm:$0xff]
        %v6917 = vld [vmem:[#allocation3 + $0xc8] sm:$0xff]
        %v6918 = vld [vmem:[#allocation3 + $0xd0] sm:$0xff]
        %v6919 = vld [vmem:[#allocation3 + $0xd8] sm:$0xff]
        %v6920 = vld [vmem:[#allocation3 + $0xe0] sm:$0xff]
        %v6921 = vld [vmem:[#allocation3 + $0xe8] sm:$0xff]
        %v6922 = vld [vmem:[#allocation3 + $0xf0] sm:$0xff]
        %v6923 = vld [vmem:[#allocation3 + $0xf8] sm:$0xff]
        %v6924 = vadd.f32 %v6892, %v6766
        %v6925 = vadd.f32 %v6893, %v6769
        %v6926 = vadd.f32 %v6894, %v6774
        %v6927 = vadd.f32 %v6895, %v6777
        %v6928 = vadd.f32 %v6896, %v6782
        %v6929 = vadd.f32 %v6897, %v6785
        %v6930 = vadd.f32 %v6898, %v6790
        %v6931 = vadd.f32 %v6899, %v6793
        %v6932 = vadd.f32 %v6900, %v6798
        %v6933 = vadd.f32 %v6901, %v6801
        %v6934 = vadd.f32 %v6902, %v6806
        %v6935 = vadd.f32 %v6903, %v6809
        %v6936 = vadd.f32 %v6904, %v6814
        %v6937 = vadd.f32 %v6905, %v6817
        %v6938 = vadd.f32 %v6906, %v6822
        %v6939 = vadd.f32 %v6907, %v6825
        %v6940 = vadd.f32 %v6908, %v6830
        %v6941 = vadd.f32 %v6909, %v6833
        %v6942 = vadd.f32 %v6910, %v6838
        %v6943 = vadd.f32 %v6911, %v6841
        %v6944 = vadd.f32 %v6912, %v6846
        %v6945 = vadd.f32 %v6913, %v6849
        %v6946 = vadd.f32 %v6914, %v6854
        %v6947 = vadd.f32 %v6915, %v6857
        %v6948 = vadd.f32 %v6916, %v6862
        %v6949 = vadd.f32 %v6917, %v6865
        %v6950 = vadd.f32 %v6918, %v6870
        %v6951 = vadd.f32 %v6919, %v6873
        %v6952 = vadd.f32 %v6920, %v6878
        %v6953 = vadd.f32 %v6921, %v6881
        %v6954 = vadd.f32 %v6922, %v6886
        %v6955 = vadd.f32 %v6923, %v6889
        %6956 = vst [vmem:[#allocation3] sm:$0xff] %v6924
        %6957 = vst [vmem:[#allocation3 + $0x8] sm:$0xff] %v6925
        %6958 = vst [vmem:[#allocation3 + $0x10] sm:$0xff] %v6926
        %6959 = vst [vmem:[#allocation3 + $0x18] sm:$0xff] %v6927
        %6960 = vst [vmem:[#allocation3 + $0x20] sm:$0xff] %v6928
        %6961 = vst [vmem:[#allocation3 + $0x28] sm:$0xff] %v6929
        %6962 = vst [vmem:[#allocation3 + $0x30] sm:$0xff] %v6930
        %6963 = vst [vmem:[#allocation3 + $0x38] sm:$0xff] %v6931
        %6964 = vst [vmem:[#allocation3 + $0x40] sm:$0xff] %v6932
        %6965 = vst [vmem:[#allocation3 + $0x48] sm:$0xff] %v6933
        %6966 = vst [vmem:[#allocation3 + $0x50] sm:$0xff] %v6934
        %6967 = vst [vmem:[#allocation3 + $0x58] sm:$0xff] %v6935
        %6968 = vst [vmem:[#allocation3 + $0x60] sm:$0xff] %v6936
        %6969 = vst [vmem:[#allocation3 + $0x68] sm:$0xff] %v6937
        %6970 = vst [vmem:[#allocation3 + $0x70] sm:$0xff] %v6938
        %6971 = vst [vmem:[#allocation3 + $0x78] sm:$0xff] %v6939
        %6972 = vst [vmem:[#allocation3 + $0x80] sm:$0xff] %v6940
        %6973 = vst [vmem:[#allocation3 + $0x88] sm:$0xff] %v6941
        %6974 = vst [vmem:[#allocation3 + $0x90] sm:$0xff] %v6942
        %6975 = vst [vmem:[#allocation3 + $0x98] sm:$0xff] %v6943
        %6976 = vst [vmem:[#allocation3 + $0xa0] sm:$0xff] %v6944
        %6977 = vst [vmem:[#allocation3 + $0xa8] sm:$0xff] %v6945
        %6978 = vst [vmem:[#allocation3 + $0xb0] sm:$0xff] %v6946
        %6979 = vst [vmem:[#allocation3 + $0xb8] sm:$0xff] %v6947
        %6980 = vst [vmem:[#allocation3 + $0xc0] sm:$0xff] %v6948
        %6981 = vst [vmem:[#allocation3 + $0xc8] sm:$0xff] %v6949
        %6982 = vst [vmem:[#allocation3 + $0xd0] sm:$0xff] %v6950
        %6983 = vst [vmem:[#allocation3 + $0xd8] sm:$0xff] %v6951
        %6984 = vst [vmem:[#allocation3 + $0xe0] sm:$0xff] %v6952
        %6985 = vst [vmem:[#allocation3 + $0xe8] sm:$0xff] %v6953
        %6986 = vst [vmem:[#allocation3 + $0xf0] sm:$0xff] %v6954
        %6987 = vst [vmem:[#allocation3 + $0xf8] sm:$0xff] %v6955
        %v6988 = vld [vmem:[%s5910] sm:$0xff]
        %v6989 = vld [vmem:[%s5910 + $0x8] sm:$0xff]
        %v6990 = vld [vmem:[%s5910 + $0x18] sm:$0xff]
        %v6991 = vld [vmem:[%s5910 + $0x20] sm:$0xff]
        %v6992 = vld [vmem:[%s5910 + $0x30] sm:$0xff]
        %v6993 = vld [vmem:[%s5910 + $0x38] sm:$0xff]
        %v6994 = vld [vmem:[%s5910 + $0x48] sm:$0xff]
        %v6995 = vld [vmem:[%s5910 + $0x50] sm:$0xff]
        %v6996 = vld [vmem:[%s5910 + $0x60] sm:$0xff]
        %v6997 = vld [vmem:[%s5910 + $0x68] sm:$0xff]
        %v6998 = vld [vmem:[%s5910 + $0x78] sm:$0xff]
        %v6999 = vld [vmem:[%s5910 + $0x80] sm:$0xff]
        %v7000 = vld [vmem:[%s5910 + $0x90] sm:$0xff]
        %v7001 = vld [vmem:[%s5910 + $0x98] sm:$0xff]
        %v7002 = vld [vmem:[%s5910 + $0xa8] sm:$0xff]
        %v7003 = vld [vmem:[%s5910 + $0xb0] sm:$0xff]
        %v7004 = vld [vmem:[%s5910 + $0xc0] sm:$0xff]
        %v7005 = vld [vmem:[%s5910 + $0xc8] sm:$0xff]
        %v7006 = vld [vmem:[%s5910 + $0xd8] sm:$0xff]
        %v7007 = vld [vmem:[%s5910 + $0xe0] sm:$0xff]
        %v7008 = vld [vmem:[%s5910 + $0xf0] sm:$0xff]
        %v7009 = vld [vmem:[%s5910 + $0xf8] sm:$0xff]
        %v7010 = vld [vmem:[%s5910 + $0x108] sm:$0xff]
        %v7011 = vld [vmem:[%s5910 + $0x110] sm:$0xff]
        %v7012 = vld [vmem:[%s5910 + $0x120] sm:$0xff]
        %v7013 = vld [vmem:[%s5910 + $0x128] sm:$0xff]
        %v7014 = vld [vmem:[%s5910 + $0x138] sm:$0xff]
        %v7015 = vld [vmem:[%s5910 + $0x140] sm:$0xff]
        %v7016 = vld [vmem:[%s5910 + $0x150] sm:$0xff]
        %v7017 = vld [vmem:[%s5910 + $0x158] sm:$0xff]
        %v7018 = vld [vmem:[%s5910 + $0x168] sm:$0xff]
        %v7019 = vld [vmem:[%s5910 + $0x170] sm:$0xff]
        %v7020 = vpack.c.bf16 %v6989, %v6988
        %v7021 = vpack.c.bf16 %v6991, %v6990
        %v7022 = vpack.c.bf16 %v6993, %v6992
        %v7023 = vpack.c.bf16 %v6995, %v6994
        %v7024 = vpack.c.bf16 %v6997, %v6996
        %v7025 = vpack.c.bf16 %v6999, %v6998
        %v7026 = vpack.c.bf16 %v7001, %v7000
        %v7027 = vpack.c.bf16 %v7003, %v7002
        %v7028 = vpack.c.bf16 %v7005, %v7004
        %v7029 = vpack.c.bf16 %v7007, %v7006
        %v7030 = vpack.c.bf16 %v7009, %v7008
        %v7031 = vpack.c.bf16 %v7011, %v7010
        %v7032 = vpack.c.bf16 %v7013, %v7012
        %v7033 = vpack.c.bf16 %v7015, %v7014
        %v7034 = vpack.c.bf16 %v7017, %v7016
        %v7035 = vpack.c.bf16 %v7019, %v7018
        %s7036 = scalar_lea.vmem %s3, 192
        %v7037 = vld [vmem:[%s7036] sm:$0xf]
        %v7038 = vld [vmem:[%s7036 + $0x4] sm:$0xf]
        %v7039 = vld [vmem:[%s7036 + $0x8] sm:$0xf]
        %v7040 = vld [vmem:[%s7036 + $0xc] sm:$0xf]
        %v7041 = vld [vmem:[%s7036 + $0x10] sm:$0xf]
        %v7042 = vld [vmem:[%s7036 + $0x14] sm:$0xf]
        %v7043 = vld [vmem:[%s7036 + $0x18] sm:$0xf]
        %v7044 = vld [vmem:[%s7036 + $0x1c] sm:$0xf]
        %v7045 = vld [vmem:[%s7036 + $0x20] sm:$0xf]
        %v7046 = vld [vmem:[%s7036 + $0x24] sm:$0xf]
        %v7047 = vld [vmem:[%s7036 + $0x28] sm:$0xf]
        %v7048 = vld [vmem:[%s7036 + $0x2c] sm:$0xf]
        %v7049 = vld [vmem:[%s7036 + $0x30] sm:$0xf]
        %v7050 = vld [vmem:[%s7036 + $0x34] sm:$0xf]
        %v7051 = vld [vmem:[%s7036 + $0x38] sm:$0xf]
        %v7052 = vld [vmem:[%s7036 + $0x3c] sm:$0xf]
        %v7069 = vunpack.c.l.b16 %v7037
        %v7070 = vunpack.c.l.b16 %v7038
        %v7071 = vunpack.c.l.b16 %v7039
        %v7072 = vunpack.c.l.b16 %v7040
        %v7073 = vunpack.c.l.b16 %v7041
        %v7074 = vunpack.c.l.b16 %v7042
        %v7075 = vunpack.c.l.b16 %v7043
        %v7076 = vunpack.c.l.b16 %v7044
        %v7077 = vunpack.c.l.b16 %v7045
        %v7078 = vunpack.c.l.b16 %v7046
        %v7079 = vunpack.c.l.b16 %v7047
        %v7080 = vunpack.c.l.b16 %v7048
        %v7081 = vunpack.c.l.b16 %v7049
        %v7082 = vunpack.c.l.b16 %v7050
        %v7083 = vunpack.c.l.b16 %v7051
        %v7084 = vunpack.c.l.b16 %v7052
        %v7085 = vpack.c.b16 %v7070, %v7069
        %v7086 = vpack.c.b16 %v7072, %v7071
        %v7087 = vpack.c.b16 %v7074, %v7073
        %v7088 = vpack.c.b16 %v7076, %v7075
        %v7089 = vpack.c.b16 %v7078, %v7077
        %v7090 = vpack.c.b16 %v7080, %v7079
        %v7091 = vpack.c.b16 %v7082, %v7081
        %v7092 = vpack.c.b16 %v7084, %v7083
        %7101 = vmatprep.subr.bf16.mxu0 0
        %7102 = vmatpush1.bf16.msra.mxu0 %v7085
        %7103 = vmatprep.subr.bf16.mxu0 0
        %7104 = vmatpush1.bf16.msra.mxu0 %v7086
        %7105 = vmatprep.subr.bf16.mxu0 0
        %7106 = vmatpush1.bf16.msra.mxu0 %v7087
        %7107 = vmatprep.subr.bf16.mxu0 0
        %7108 = vmatpush1.bf16.msra.mxu0 %v7088
        %7109 = vmatprep.subr.bf16.mxu0 0
        %7110 = vmatpush1.bf16.msra.mxu0 %v7089
        %7111 = vmatprep.subr.bf16.mxu0 0
        %7112 = vmatpush1.bf16.msra.mxu0 %v7090
        %7113 = vmatprep.subr.bf16.mxu0 0
        %7114 = vmatpush1.bf16.msra.mxu0 %v7091
        %7115 = vmatprep.subr.bf16.mxu0 0
        %7116 = vmatpush1.bf16.msra.mxu0 %v7092
        %7117 = vmatprep.subr.bf16.mxu0 0
        %7118 = vmatpush1.bf16.msra.mxu0 0
        %7119 = vmatprep.subr.bf16.mxu0 0
        %7120 = vmatpush1.bf16.msra.mxu0 0
        %7121 = vmatprep.subr.bf16.mxu0 0
        %7122 = vmatpush1.bf16.msra.mxu0 0
        %7123 = vmatprep.subr.bf16.mxu0 0
        %7124 = vmatpush1.bf16.msra.mxu0 0
        %7125 = vmatprep.subr.bf16.mxu0 0
        %7126 = vmatpush1.bf16.msra.mxu0 0
        %7127 = vmatprep.subr.bf16.mxu0 0
        %7128 = vmatpush1.bf16.msra.mxu0 0
        %7129 = vmatprep.subr.bf16.mxu0 0
        %7130 = vmatpush1.bf16.msra.mxu0 0
        %7131 = vmatprep.subr.bf16.mxu0 0
        %7132 = vmatpush1.bf16.msra.mxu0 0
        %7133 = vmatprep.mubr.bf16.mxu0 0
        %7134 = vmatmul.mubr.bf16.gmra.mrb[0].mxu0 %v7020
        %v7135 = vpop.f32.mrb[0].mxu0
        %v7136 = vadd.f32 0.0, %v7135
        %v7137 = vpop.f32.mrb[0].mxu0
        %v7138 = vpop.f32.mrb[0].mxu0
        %v7139 = vadd.f32 0.0, %v7138
        %v7140 = vpop.f32.mrb[0].mxu0
        %7141 = vmatprep.mubr.bf16.mxu0 0
        %7142 = vmatmul.mubr.bf16.gmra.mrb[0].mxu0 %v7021
        %v7143 = vpop.f32.mrb[0].mxu0
        %v7144 = vadd.f32 0.0, %v7143
        %v7145 = vpop.f32.mrb[0].mxu0
        %v7146 = vpop.f32.mrb[0].mxu0
        %v7147 = vadd.f32 0.0, %v7146
        %v7148 = vpop.f32.mrb[0].mxu0
        %7149 = vmatprep.mubr.bf16.mxu0 0
        %7150 = vmatmul.mubr.bf16.gmra.mrb[0].mxu0 %v7022
        %v7151 = vpop.f32.mrb[0].mxu0
        %v7152 = vadd.f32 0.0, %v7151
        %v7153 = vpop.f32.mrb[0].mxu0
        %v7154 = vpop.f32.mrb[0].mxu0
        %v7155 = vadd.f32 0.0, %v7154
        %v7156 = vpop.f32.mrb[0].mxu0
        %7157 = vmatprep.mubr.bf16.mxu0 0
        %7158 = vmatmul.mubr.bf16.gmra.mrb[0].mxu0 %v7023
        %v7159 = vpop.f32.mrb[0].mxu0
        %v7160 = vadd.f32 0.0, %v7159
        %v7161 = vpop.f32.mrb[0].mxu0
        %v7162 = vpop.f32.mrb[0].mxu0
        %v7163 = vadd.f32 0.0, %v7162
        %v7164 = vpop.f32.mrb[0].mxu0
        %7165 = vmatprep.mubr.bf16.mxu0 0
        %7166 = vmatmul.mubr.bf16.gmra.mrb[0].mxu0 %v7024
        %v7167 = vpop.f32.mrb[0].mxu0
        %v7168 = vadd.f32 0.0, %v7167
        %v7169 = vpop.f32.mrb[0].mxu0
        %v7170 = vpop.f32.mrb[0].mxu0
        %v7171 = vadd.f32 0.0, %v7170
        %v7172 = vpop.f32.mrb[0].mxu0
        %7173 = vmatprep.mubr.bf16.mxu0 0
        %7174 = vmatmul.mubr.bf16.gmra.mrb[0].mxu0 %v7025
        %v7175 = vpop.f32.mrb[0].mxu0
        %v7176 = vadd.f32 0.0, %v7175
        %v7177 = vpop.f32.mrb[0].mxu0
        %v7178 = vpop.f32.mrb[0].mxu0
        %v7179 = vadd.f32 0.0, %v7178
        %v7180 = vpop.f32.mrb[0].mxu0
        %7181 = vmatprep.mubr.bf16.mxu0 0
        %7182 = vmatmul.mubr.bf16.gmra.mrb[0].mxu0 %v7026
        %v7183 = vpop.f32.mrb[0].mxu0
        %v7184 = vadd.f32 0.0, %v7183
        %v7185 = vpop.f32.mrb[0].mxu0
        %v7186 = vpop.f32.mrb[0].mxu0
        %v7187 = vadd.f32 0.0, %v7186
        %v7188 = vpop.f32.mrb[0].mxu0
        %7189 = vmatprep.mubr.bf16.mxu0 0
        %7190 = vmatmul.mubr.bf16.gmra.mrb[0].mxu0 %v7027
        %v7191 = vpop.f32.mrb[0].mxu0
        %v7192 = vadd.f32 0.0, %v7191
        %v7193 = vpop.f32.mrb[0].mxu0
        %v7194 = vpop.f32.mrb[0].mxu0
        %v7195 = vadd.f32 0.0, %v7194
        %v7196 = vpop.f32.mrb[0].mxu0
        %7197 = vmatprep.mubr.bf16.mxu0 0
        %7198 = vmatmul.mubr.bf16.gmra.mrb[0].mxu0 %v7028
        %v7199 = vpop.f32.mrb[0].mxu0
        %v7200 = vadd.f32 0.0, %v7199
        %v7201 = vpop.f32.mrb[0].mxu0
        %v7202 = vpop.f32.mrb[0].mxu0
        %v7203 = vadd.f32 0.0, %v7202
        %v7204 = vpop.f32.mrb[0].mxu0
        %7205 = vmatprep.mubr.bf16.mxu0 0
        %7206 = vmatmul.mubr.bf16.gmra.mrb[0].mxu0 %v7029
        %v7207 = vpop.f32.mrb[0].mxu0
        %v7208 = vadd.f32 0.0, %v7207
        %v7209 = vpop.f32.mrb[0].mxu0
        %v7210 = vpop.f32.mrb[0].mxu0
        %v7211 = vadd.f32 0.0, %v7210
        %v7212 = vpop.f32.mrb[0].mxu0
        %7213 = vmatprep.mubr.bf16.mxu0 0
        %7214 = vmatmul.mubr.bf16.gmra.mrb[0].mxu0 %v7030
        %v7215 = vpop.f32.mrb[0].mxu0
        %v7216 = vadd.f32 0.0, %v7215
        %v7217 = vpop.f32.mrb[0].mxu0
        %v7218 = vpop.f32.mrb[0].mxu0
        %v7219 = vadd.f32 0.0, %v7218
        %v7220 = vpop.f32.mrb[0].mxu0
        %7221 = vmatprep.mubr.bf16.mxu0 0
        %7222 = vmatmul.mubr.bf16.gmra.mrb[0].mxu0 %v7031
        %v7223 = vpop.f32.mrb[0].mxu0
        %v7224 = vadd.f32 0.0, %v7223
        %v7225 = vpop.f32.mrb[0].mxu0
        %v7226 = vpop.f32.mrb[0].mxu0
        %v7227 = vadd.f32 0.0, %v7226
        %v7228 = vpop.f32.mrb[0].mxu0
        %7229 = vmatprep.mubr.bf16.mxu0 0
        %7230 = vmatmul.mubr.bf16.gmra.mrb[0].mxu0 %v7032
        %v7231 = vpop.f32.mrb[0].mxu0
        %v7232 = vadd.f32 0.0, %v7231
        %v7233 = vpop.f32.mrb[0].mxu0
        %v7234 = vpop.f32.mrb[0].mxu0
        %v7235 = vadd.f32 0.0, %v7234
        %v7236 = vpop.f32.mrb[0].mxu0
        %7237 = vmatprep.mubr.bf16.mxu0 0
        %7238 = vmatmul.mubr.bf16.gmra.mrb[0].mxu0 %v7033
        %v7239 = vpop.f32.mrb[0].mxu0
        %v7240 = vadd.f32 0.0, %v7239
        %v7241 = vpop.f32.mrb[0].mxu0
        %v7242 = vpop.f32.mrb[0].mxu0
        %v7243 = vadd.f32 0.0, %v7242
        %v7244 = vpop.f32.mrb[0].mxu0
        %7245 = vmatprep.mubr.bf16.mxu0 0
        %7246 = vmatmul.mubr.bf16.gmra.mrb[0].mxu0 %v7034
        %v7247 = vpop.f32.mrb[0].mxu0
        %v7248 = vadd.f32 0.0, %v7247
        %v7249 = vpop.f32.mrb[0].mxu0
        %v7250 = vpop.f32.mrb[0].mxu0
        %v7251 = vadd.f32 0.0, %v7250
        %v7252 = vpop.f32.mrb[0].mxu0
        %7253 = vmatprep.mubr.bf16.mxu0 0
        %7254 = vmatmul.mubr.bf16.gmra.mrb[0].mxu0 %v7035
        %v7255 = vpop.f32.mrb[0].mxu0
        %v7256 = vadd.f32 0.0, %v7255
        %v7257 = vpop.f32.mrb[0].mxu0
        %v7258 = vpop.f32.mrb[0].mxu0
        %v7259 = vadd.f32 0.0, %v7258
        %v7260 = vpop.f32.mrb[0].mxu0
        %7261 = vdwg.mxu0
        %v7262 = vld [vmem:[#allocation3] sm:$0xff]
        %v7263 = vld [vmem:[#allocation3 + $0x8] sm:$0xff]
        %v7264 = vld [vmem:[#allocation3 + $0x10] sm:$0xff]
        %v7265 = vld [vmem:[#allocation3 + $0x18] sm:$0xff]
        %v7266 = vld [vmem:[#allocation3 + $0x20] sm:$0xff]
        %v7267 = vld [vmem:[#allocation3 + $0x28] sm:$0xff]
        %v7268 = vld [vmem:[#allocation3 + $0x30] sm:$0xff]
        %v7269 = vld [vmem:[#allocation3 + $0x38] sm:$0xff]
        %v7270 = vld [vmem:[#allocation3 + $0x40] sm:$0xff]
        %v7271 = vld [vmem:[#allocation3 + $0x48] sm:$0xff]
        %v7272 = vld [vmem:[#allocation3 + $0x50] sm:$0xff]
        %v7273 = vld [vmem:[#allocation3 + $0x58] sm:$0xff]
        %v7274 = vld [vmem:[#allocation3 + $0x60] sm:$0xff]
        %v7275 = vld [vmem:[#allocation3 + $0x68] sm:$0xff]
        %v7276 = vld [vmem:[#allocation3 + $0x70] sm:$0xff]
        %v7277 = vld [vmem:[#allocation3 + $0x78] sm:$0xff]
        %v7278 = vld [vmem:[#allocation3 + $0x80] sm:$0xff]
        %v7279 = vld [vmem:[#allocation3 + $0x88] sm:$0xff]
        %v7280 = vld [vmem:[#allocation3 + $0x90] sm:$0xff]
        %v7281 = vld [vmem:[#allocation3 + $0x98] sm:$0xff]
        %v7282 = vld [vmem:[#allocation3 + $0xa0] sm:$0xff]
        %v7283 = vld [vmem:[#allocation3 + $0xa8] sm:$0xff]
        %v7284 = vld [vmem:[#allocation3 + $0xb0] sm:$0xff]
        %v7285 = vld [vmem:[#allocation3 + $0xb8] sm:$0xff]
        %v7286 = vld [vmem:[#allocation3 + $0xc0] sm:$0xff]
        %v7287 = vld [vmem:[#allocation3 + $0xc8] sm:$0xff]
        %v7288 = vld [vmem:[#allocation3 + $0xd0] sm:$0xff]
        %v7289 = vld [vmem:[#allocation3 + $0xd8] sm:$0xff]
        %v7290 = vld [vmem:[#allocation3 + $0xe0] sm:$0xff]
        %v7291 = vld [vmem:[#allocation3 + $0xe8] sm:$0xff]
        %v7292 = vld [vmem:[#allocation3 + $0xf0] sm:$0xff]
        %v7293 = vld [vmem:[#allocation3 + $0xf8] sm:$0xff]
        %v7294 = vadd.f32 %v7262, %v7136
        %v7295 = vadd.f32 %v7263, %v7139
        %v7296 = vadd.f32 %v7264, %v7144
        %v7297 = vadd.f32 %v7265, %v7147
        %v7298 = vadd.f32 %v7266, %v7152
        %v7299 = vadd.f32 %v7267, %v7155
        %v7300 = vadd.f32 %v7268, %v7160
        %v7301 = vadd.f32 %v7269, %v7163
        %v7302 = vadd.f32 %v7270, %v7168
        %v7303 = vadd.f32 %v7271, %v7171
        %v7304 = vadd.f32 %v7272, %v7176
        %v7305 = vadd.f32 %v7273, %v7179
        %v7306 = vadd.f32 %v7274, %v7184
        %v7307 = vadd.f32 %v7275, %v7187
        %v7308 = vadd.f32 %v7276, %v7192
        %v7309 = vadd.f32 %v7277, %v7195
        %v7310 = vadd.f32 %v7278, %v7200
        %v7311 = vadd.f32 %v7279, %v7203
        %v7312 = vadd.f32 %v7280, %v7208
        %v7313 = vadd.f32 %v7281, %v7211
        %v7314 = vadd.f32 %v7282, %v7216
        %v7315 = vadd.f32 %v7283, %v7219
        %v7316 = vadd.f32 %v7284, %v7224
        %v7317 = vadd.f32 %v7285, %v7227
        %v7318 = vadd.f32 %v7286, %v7232
        %v7319 = vadd.f32 %v7287, %v7235
        %v7320 = vadd.f32 %v7288, %v7240
        %v7321 = vadd.f32 %v7289, %v7243
        %v7322 = vadd.f32 %v7290, %v7248
        %v7323 = vadd.f32 %v7291, %v7251
        %v7324 = vadd.f32 %v7292, %v7256
        %v7325 = vadd.f32 %v7293, %v7259
        %7326 = vst [vmem:[#allocation3] sm:$0xff] %v7294
        %7327 = vst [vmem:[#allocation3 + $0x8] sm:$0xff] %v7295
        %7328 = vst [vmem:[#allocation3 + $0x10] sm:$0xff] %v7296
        %7329 = vst [vmem:[#allocation3 + $0x18] sm:$0xff] %v7297
        %7330 = vst [vmem:[#allocation3 + $0x20] sm:$0xff] %v7298
        %7331 = vst [vmem:[#allocation3 + $0x28] sm:$0xff] %v7299
        %7332 = vst [vmem:[#allocation3 + $0x30] sm:$0xff] %v7300
        %7333 = vst [vmem:[#allocation3 + $0x38] sm:$0xff] %v7301
        %7334 = vst [vmem:[#allocation3 + $0x40] sm:$0xff] %v7302
        %7335 = vst [vmem:[#allocation3 + $0x48] sm:$0xff] %v7303
        %7336 = vst [vmem:[#allocation3 + $0x50] sm:$0xff] %v7304
        %7337 = vst [vmem:[#allocation3 + $0x58] sm:$0xff] %v7305
        %7338 = vst [vmem:[#allocation3 + $0x60] sm:$0xff] %v7306
        %7339 = vst [vmem:[#allocation3 + $0x68] sm:$0xff] %v7307
        %7340 = vst [vmem:[#allocation3 + $0x70] sm:$0xff] %v7308
        %7341 = vst [vmem:[#allocation3 + $0x78] sm:$0xff] %v7309
        %7342 = vst [vmem:[#allocation3 + $0x80] sm:$0xff] %v7310
        %7343 = vst [vmem:[#allocation3 + $0x88] sm:$0xff] %v7311
        %7344 = vst [vmem:[#allocation3 + $0x90] sm:$0xff] %v7312
        %7345 = vst [vmem:[#allocation3 + $0x98] sm:$0xff] %v7313
        %7346 = vst [vmem:[#allocation3 + $0xa0] sm:$0xff] %v7314
        %7347 = vst [vmem:[#allocation3 + $0xa8] sm:$0xff] %v7315
        %7348 = vst [vmem:[#allocation3 + $0xb0] sm:$0xff] %v7316
        %7349 = vst [vmem:[#allocation3 + $0xb8] sm:$0xff] %v7317
        %7350 = vst [vmem:[#allocation3 + $0xc0] sm:$0xff] %v7318
        %7351 = vst [vmem:[#allocation3 + $0xc8] sm:$0xff] %v7319
        %7352 = vst [vmem:[#allocation3 + $0xd0] sm:$0xff] %v7320
        %7353 = vst [vmem:[#allocation3 + $0xd8] sm:$0xff] %v7321
        %7354 = vst [vmem:[#allocation3 + $0xe0] sm:$0xff] %v7322
        %7355 = vst [vmem:[#allocation3 + $0xe8] sm:$0xff] %v7323
        %7356 = vst [vmem:[#allocation3 + $0xf0] sm:$0xff] %v7324
        %7357 = vst [vmem:[#allocation3 + $0xf8] sm:$0xff] %v7325
        %v7358 = vld [vmem:[%s5910 + $0x1] sm:$0xff]
        %v7359 = vld [vmem:[%s5910 + $0x9] sm:$0xff]
        %v7360 = vld [vmem:[%s5910 + $0x19] sm:$0xff]
        %v7361 = vld [vmem:[%s5910 + $0x21] sm:$0xff]
        %v7362 = vld [vmem:[%s5910 + $0x31] sm:$0xff]
        %v7363 = vld [vmem:[%s5910 + $0x39] sm:$0xff]
        %v7364 = vld [vmem:[%s5910 + $0x49] sm:$0xff]
        %v7365 = vld [vmem:[%s5910 + $0x51] sm:$0xff]
        %v7366 = vld [vmem:[%s5910 + $0x61] sm:$0xff]
        %v7367 = vld [vmem:[%s5910 + $0x69] sm:$0xff]
        %v7368 = vld [vmem:[%s5910 + $0x79] sm:$0xff]
        %v7369 = vld [vmem:[%s5910 + $0x81] sm:$0xff]
        %v7370 = vld [vmem:[%s5910 + $0x91] sm:$0xff]
        %v7371 = vld [vmem:[%s5910 + $0x99] sm:$0xff]
        %v7372 = vld [vmem:[%s5910 + $0xa9] sm:$0xff]
        %v7373 = vld [vmem:[%s5910 + $0xb1] sm:$0xff]
        %v7374 = vld [vmem:[%s5910 + $0xc1] sm:$0xff]
        %v7375 = vld [vmem:[%s5910 + $0xc9] sm:$0xff]
        %v7376 = vld [vmem:[%s5910 + $0xd9] sm:$0xff]
        %v7377 = vld [vmem:[%s5910 + $0xe1] sm:$0xff]
        %v7378 = vld [vmem:[%s5910 + $0xf1] sm:$0xff]
        %v7379 = vld [vmem:[%s5910 + $0xf9] sm:$0xff]
        %v7380 = vld [vmem:[%s5910 + $0x109] sm:$0xff]
        %v7381 = vld [vmem:[%s5910 + $0x111] sm:$0xff]
        %v7382 = vld [vmem:[%s5910 + $0x121] sm:$0xff]
        %v7383 = vld [vmem:[%s5910 + $0x129] sm:$0xff]
        %v7384 = vld [vmem:[%s5910 + $0x139] sm:$0xff]
        %v7385 = vld [vmem:[%s5910 + $0x141] sm:$0xff]
        %v7386 = vld [vmem:[%s5910 + $0x151] sm:$0xff]
        %v7387 = vld [vmem:[%s5910 + $0x159] sm:$0xff]
        %v7388 = vld [vmem:[%s5910 + $0x169] sm:$0xff]
        %v7389 = vld [vmem:[%s5910 + $0x171] sm:$0xff]
        %v7390 = vpack.c.bf16 %v7359, %v7358
        %v7391 = vpack.c.bf16 %v7361, %v7360
        %v7392 = vpack.c.bf16 %v7363, %v7362
        %v7393 = vpack.c.bf16 %v7365, %v7364
        %v7394 = vpack.c.bf16 %v7367, %v7366
        %v7395 = vpack.c.bf16 %v7369, %v7368
        %v7396 = vpack.c.bf16 %v7371, %v7370
        %v7397 = vpack.c.bf16 %v7373, %v7372
        %v7398 = vpack.c.bf16 %v7375, %v7374
        %v7399 = vpack.c.bf16 %v7377, %v7376
        %v7400 = vpack.c.bf16 %v7379, %v7378
        %v7401 = vpack.c.bf16 %v7381, %v7380
        %v7402 = vpack.c.bf16 %v7383, %v7382
        %v7403 = vpack.c.bf16 %v7385, %v7384
        %v7404 = vpack.c.bf16 %v7387, %v7386
        %v7405 = vpack.c.bf16 %v7389, %v7388
        %s7406 = scalar_lea.vmem %s3, 256
        %v7407 = vld [vmem:[%s7406] sm:$0xf]
        %v7408 = vld [vmem:[%s7406 + $0x4] sm:$0xf]
        %v7409 = vld [vmem:[%s7406 + $0x8] sm:$0xf]
        %v7410 = vld [vmem:[%s7406 + $0xc] sm:$0xf]
        %v7411 = vld [vmem:[%s7406 + $0x10] sm:$0xf]
        %v7412 = vld [vmem:[%s7406 + $0x14] sm:$0xf]
        %v7413 = vld [vmem:[%s7406 + $0x18] sm:$0xf]
        %v7414 = vld [vmem:[%s7406 + $0x1c] sm:$0xf]
        %v7415 = vld [vmem:[%s7406 + $0x20] sm:$0xf]
        %v7416 = vld [vmem:[%s7406 + $0x24] sm:$0xf]
        %v7417 = vld [vmem:[%s7406 + $0x28] sm:$0xf]
        %v7418 = vld [vmem:[%s7406 + $0x2c] sm:$0xf]
        %v7419 = vld [vmem:[%s7406 + $0x30] sm:$0xf]
        %v7420 = vld [vmem:[%s7406 + $0x34] sm:$0xf]
        %v7421 = vld [vmem:[%s7406 + $0x38] sm:$0xf]
        %v7422 = vld [vmem:[%s7406 + $0x3c] sm:$0xf]
        %v7439 = vunpack.c.l.b16 %v7407
        %v7440 = vunpack.c.l.b16 %v7408
        %v7441 = vunpack.c.l.b16 %v7409
        %v7442 = vunpack.c.l.b16 %v7410
        %v7443 = vunpack.c.l.b16 %v7411
        %v7444 = vunpack.c.l.b16 %v7412
        %v7445 = vunpack.c.l.b16 %v7413
        %v7446 = vunpack.c.l.b16 %v7414
        %v7447 = vunpack.c.l.b16 %v7415
        %v7448 = vunpack.c.l.b16 %v7416
        %v7449 = vunpack.c.l.b16 %v7417
        %v7450 = vunpack.c.l.b16 %v7418
        %v7451 = vunpack.c.l.b16 %v7419
        %v7452 = vunpack.c.l.b16 %v7420
        %v7453 = vunpack.c.l.b16 %v7421
        %v7454 = vunpack.c.l.b16 %v7422
        %v7455 = vpack.c.b16 %v7440, %v7439
        %v7456 = vpack.c.b16 %v7442, %v7441
        %v7457 = vpack.c.b16 %v7444, %v7443
        %v7458 = vpack.c.b16 %v7446, %v7445
        %v7459 = vpack.c.b16 %v7448, %v7447
        %v7460 = vpack.c.b16 %v7450, %v7449
        %v7461 = vpack.c.b16 %v7452, %v7451
        %v7462 = vpack.c.b16 %v7454, %v7453
        %7471 = vmatprep.subr.bf16.mxu0 0
        %7472 = vmatpush1.bf16.msra.mxu0 %v7455
        %7473 = vmatprep.subr.bf16.mxu0 0
        %7474 = vmatpush1.bf16.msra.mxu0 %v7456
        %7475 = vmatprep.subr.bf16.mxu0 0
        %7476 = vmatpush1.bf16.msra.mxu0 %v7457
        %7477 = vmatprep.subr.bf16.mxu0 0
        %7478 = vmatpush1.bf16.msra.mxu0 %v7458
        %7479 = vmatprep.subr.bf16.mxu0 0
        %7480 = vmatpush1.bf16.msra.mxu0 %v7459
        %7481 = vmatprep.subr.bf16.mxu0 0
        %7482 = vmatpush1.bf16.msra.mxu0 %v7460
        %7483 = vmatprep.subr.bf16.mxu0 0
        %7484 = vmatpush1.bf16.msra.mxu0 %v7461
        %7485 = vmatprep.subr.bf16.mxu0 0
        %7486 = vmatpush1.bf16.msra.mxu0 %v7462
        %7487 = vmatprep.subr.bf16.mxu0 0
        %7488 = vmatpush1.bf16.msra.mxu0 0
        %7489 = vmatprep.subr.bf16.mxu0 0
        %7490 = vmatpush1.bf16.msra.mxu0 0
        %7491 = vmatprep.subr.bf16.mxu0 0
        %7492 = vmatpush1.bf16.msra.mxu0 0
        %7493 = vmatprep.subr.bf16.mxu0 0
        %7494 = vmatpush1.bf16.msra.mxu0 0
        %7495 = vmatprep.subr.bf16.mxu0 0
        %7496 = vmatpush1.bf16.msra.mxu0 0
        %7497 = vmatprep.subr.bf16.mxu0 0
        %7498 = vmatpush1.bf16.msra.mxu0 0
        %7499 = vmatprep.subr.bf16.mxu0 0
        %7500 = vmatpush1.bf16.msra.mxu0 0
        %7501 = vmatprep.subr.bf16.mxu0 0
        %7502 = vmatpush1.bf16.msra.mxu0 0
        %7503 = vmatprep.mubr.bf16.mxu0 0
        %7504 = vmatmul.mubr.bf16.gmra.mrb[0].mxu0 %v7390
        %v7505 = vpop.f32.mrb[0].mxu0
        %v7506 = vadd.f32 0.0, %v7505
        %v7507 = vpop.f32.mrb[0].mxu0
        %v7508 = vpop.f32.mrb[0].mxu0
        %v7509 = vadd.f32 0.0, %v7508
        %v7510 = vpop.f32.mrb[0].mxu0
        %7511 = vmatprep.mubr.bf16.mxu0 0
        %7512 = vmatmul.mubr.bf16.gmra.mrb[0].mxu0 %v7391
        %v7513 = vpop.f32.mrb[0].mxu0
        %v7514 = vadd.f32 0.0, %v7513
        %v7515 = vpop.f32.mrb[0].mxu0
        %v7516 = vpop.f32.mrb[0].mxu0
        %v7517 = vadd.f32 0.0, %v7516
        %v7518 = vpop.f32.mrb[0].mxu0
        %7519 = vmatprep.mubr.bf16.mxu0 0
        %7520 = vmatmul.mubr.bf16.gmra.mrb[0].mxu0 %v7392
        %v7521 = vpop.f32.mrb[0].mxu0
        %v7522 = vadd.f32 0.0, %v7521
        %v7523 = vpop.f32.mrb[0].mxu0
        %v7524 = vpop.f32.mrb[0].mxu0
        %v7525 = vadd.f32 0.0, %v7524
        %v7526 = vpop.f32.mrb[0].mxu0
        %7527 = vmatprep.mubr.bf16.mxu0 0
        %7528 = vmatmul.mubr.bf16.gmra.mrb[0].mxu0 %v7393
        %v7529 = vpop.f32.mrb[0].mxu0
        %v7530 = vadd.f32 0.0, %v7529
        %v7531 = vpop.f32.mrb[0].mxu0
        %v7532 = vpop.f32.mrb[0].mxu0
        %v7533 = vadd.f32 0.0, %v7532
        %v7534 = vpop.f32.mrb[0].mxu0
        %7535 = vmatprep.mubr.bf16.mxu0 0
        %7536 = vmatmul.mubr.bf16.gmra.mrb[0].mxu0 %v7394
        %v7537 = vpop.f32.mrb[0].mxu0
        %v7538 = vadd.f32 0.0, %v7537
        %v7539 = vpop.f32.mrb[0].mxu0
        %v7540 = vpop.f32.mrb[0].mxu0
        %v7541 = vadd.f32 0.0, %v7540
        %v7542 = vpop.f32.mrb[0].mxu0
        %7543 = vmatprep.mubr.bf16.mxu0 0
        %7544 = vmatmul.mubr.bf16.gmra.mrb[0].mxu0 %v7395
        %v7545 = vpop.f32.mrb[0].mxu0
        %v7546 = vadd.f32 0.0, %v7545
        %v7547 = vpop.f32.mrb[0].mxu0
        %v7548 = vpop.f32.mrb[0].mxu0
        %v7549 = vadd.f32 0.0, %v7548
        %v7550 = vpop.f32.mrb[0].mxu0
        %7551 = vmatprep.mubr.bf16.mxu0 0
        %7552 = vmatmul.mubr.bf16.gmra.mrb[0].mxu0 %v7396
        %v7553 = vpop.f32.mrb[0].mxu0
        %v7554 = vadd.f32 0.0, %v7553
        %v7555 = vpop.f32.mrb[0].mxu0
        %v7556 = vpop.f32.mrb[0].mxu0
        %v7557 = vadd.f32 0.0, %v7556
        %v7558 = vpop.f32.mrb[0].mxu0
        %7559 = vmatprep.mubr.bf16.mxu0 0
        %7560 = vmatmul.mubr.bf16.gmra.mrb[0].mxu0 %v7397
        %v7561 = vpop.f32.mrb[0].mxu0
        %v7562 = vadd.f32 0.0, %v7561
        %v7563 = vpop.f32.mrb[0].mxu0
        %v7564 = vpop.f32.mrb[0].mxu0
        %v7565 = vadd.f32 0.0, %v7564
        %v7566 = vpop.f32.mrb[0].mxu0
        %7567 = vmatprep.mubr.bf16.mxu0 0
        %7568 = vmatmul.mubr.bf16.gmra.mrb[0].mxu0 %v7398
        %v7569 = vpop.f32.mrb[0].mxu0
        %v7570 = vadd.f32 0.0, %v7569
        %v7571 = vpop.f32.mrb[0].mxu0
        %v7572 = vpop.f32.mrb[0].mxu0
        %v7573 = vadd.f32 0.0, %v7572
        %v7574 = vpop.f32.mrb[0].mxu0
        %7575 = vmatprep.mubr.bf16.mxu0 0
        %7576 = vmatmul.mubr.bf16.gmra.mrb[0].mxu0 %v7399
        %v7577 = vpop.f32.mrb[0].mxu0
        %v7578 = vadd.f32 0.0, %v7577
        %v7579 = vpop.f32.mrb[0].mxu0
        %v7580 = vpop.f32.mrb[0].mxu0
        %v7581 = vadd.f32 0.0, %v7580
        %v7582 = vpop.f32.mrb[0].mxu0
        %7583 = vmatprep.mubr.bf16.mxu0 0
        %7584 = vmatmul.mubr.bf16.gmra.mrb[0].mxu0 %v7400
        %v7585 = vpop.f32.mrb[0].mxu0
        %v7586 = vadd.f32 0.0, %v7585
        %v7587 = vpop.f32.mrb[0].mxu0
        %v7588 = vpop.f32.mrb[0].mxu0
        %v7589 = vadd.f32 0.0, %v7588
        %v7590 = vpop.f32.mrb[0].mxu0
        %7591 = vmatprep.mubr.bf16.mxu0 0
        %7592 = vmatmul.mubr.bf16.gmra.mrb[0].mxu0 %v7401
        %v7593 = vpop.f32.mrb[0].mxu0
        %v7594 = vadd.f32 0.0, %v7593
        %v7595 = vpop.f32.mrb[0].mxu0
        %v7596 = vpop.f32.mrb[0].mxu0
        %v7597 = vadd.f32 0.0, %v7596
        %v7598 = vpop.f32.mrb[0].mxu0
        %7599 = vmatprep.mubr.bf16.mxu0 0
        %7600 = vmatmul.mubr.bf16.gmra.mrb[0].mxu0 %v7402
        %v7601 = vpop.f32.mrb[0].mxu0
        %v7602 = vadd.f32 0.0, %v7601
        %v7603 = vpop.f32.mrb[0].mxu0
        %v7604 = vpop.f32.mrb[0].mxu0
        %v7605 = vadd.f32 0.0, %v7604
        %v7606 = vpop.f32.mrb[0].mxu0
        %7607 = vmatprep.mubr.bf16.mxu0 0
        %7608 = vmatmul.mubr.bf16.gmra.mrb[0].mxu0 %v7403
        %v7609 = vpop.f32.mrb[0].mxu0
        %v7610 = vadd.f32 0.0, %v7609
        %v7611 = vpop.f32.mrb[0].mxu0
        %v7612 = vpop.f32.mrb[0].mxu0
        %v7613 = vadd.f32 0.0, %v7612
        %v7614 = vpop.f32.mrb[0].mxu0
        %7615 = vmatprep.mubr.bf16.mxu0 0
        %7616 = vmatmul.mubr.bf16.gmra.mrb[0].mxu0 %v7404
        %v7617 = vpop.f32.mrb[0].mxu0
        %v7618 = vadd.f32 0.0, %v7617
        %v7619 = vpop.f32.mrb[0].mxu0
        %v7620 = vpop.f32.mrb[0].mxu0
        %v7621 = vadd.f32 0.0, %v7620
        %v7622 = vpop.f32.mrb[0].mxu0
        %7623 = vmatprep.mubr.bf16.mxu0 0
        %7624 = vmatmul.mubr.bf16.gmra.mrb[0].mxu0 %v7405
        %v7625 = vpop.f32.mrb[0].mxu0
        %v7626 = vadd.f32 0.0, %v7625
        %v7627 = vpop.f32.mrb[0].mxu0
        %v7628 = vpop.f32.mrb[0].mxu0
        %v7629 = vadd.f32 0.0, %v7628
        %v7630 = vpop.f32.mrb[0].mxu0
        %7631 = vdwg.mxu0
        %v7632 = vld [vmem:[#allocation3] sm:$0xff]
        %v7633 = vld [vmem:[#allocation3 + $0x8] sm:$0xff]
        %v7634 = vld [vmem:[#allocation3 + $0x10] sm:$0xff]
        %v7635 = vld [vmem:[#allocation3 + $0x18] sm:$0xff]
        %v7636 = vld [vmem:[#allocation3 + $0x20] sm:$0xff]
        %v7637 = vld [vmem:[#allocation3 + $0x28] sm:$0xff]
        %v7638 = vld [vmem:[#allocation3 + $0x30] sm:$0xff]
        %v7639 = vld [vmem:[#allocation3 + $0x38] sm:$0xff]
        %v7640 = vld [vmem:[#allocation3 + $0x40] sm:$0xff]
        %v7641 = vld [vmem:[#allocation3 + $0x48] sm:$0xff]
        %v7642 = vld [vmem:[#allocation3 + $0x50] sm:$0xff]
        %v7643 = vld [vmem:[#allocation3 + $0x58] sm:$0xff]
        %v7644 = vld [vmem:[#allocation3 + $0x60] sm:$0xff]
        %v7645 = vld [vmem:[#allocation3 + $0x68] sm:$0xff]
        %v7646 = vld [vmem:[#allocation3 + $0x70] sm:$0xff]
        %v7647 = vld [vmem:[#allocation3 + $0x78] sm:$0xff]
        %v7648 = vld [vmem:[#allocation3 + $0x80] sm:$0xff]
        %v7649 = vld [vmem:[#allocation3 + $0x88] sm:$0xff]
        %v7650 = vld [vmem:[#allocation3 + $0x90] sm:$0xff]
        %v7651 = vld [vmem:[#allocation3 + $0x98] sm:$0xff]
        %v7652 = vld [vmem:[#allocation3 + $0xa0] sm:$0xff]
        %v7653 = vld [vmem:[#allocation3 + $0xa8] sm:$0xff]
        %v7654 = vld [vmem:[#allocation3 + $0xb0] sm:$0xff]
        %v7655 = vld [vmem:[#allocation3 + $0xb8] sm:$0xff]
        %v7656 = vld [vmem:[#allocation3 + $0xc0] sm:$0xff]
        %v7657 = vld [vmem:[#allocation3 + $0xc8] sm:$0xff]
        %v7658 = vld [vmem:[#allocation3 + $0xd0] sm:$0xff]
        %v7659 = vld [vmem:[#allocation3 + $0xd8] sm:$0xff]
        %v7660 = vld [vmem:[#allocation3 + $0xe0] sm:$0xff]
        %v7661 = vld [vmem:[#allocation3 + $0xe8] sm:$0xff]
        %v7662 = vld [vmem:[#allocation3 + $0xf0] sm:$0xff]
        %v7663 = vld [vmem:[#allocation3 + $0xf8] sm:$0xff]
        %v7664 = vadd.f32 %v7632, %v7506
        %v7665 = vadd.f32 %v7633, %v7509
        %v7666 = vadd.f32 %v7634, %v7514
        %v7667 = vadd.f32 %v7635, %v7517
        %v7668 = vadd.f32 %v7636, %v7522
        %v7669 = vadd.f32 %v7637, %v7525
        %v7670 = vadd.f32 %v7638, %v7530
        %v7671 = vadd.f32 %v7639, %v7533
        %v7672 = vadd.f32 %v7640, %v7538
        %v7673 = vadd.f32 %v7641, %v7541
        %v7674 = vadd.f32 %v7642, %v7546
        %v7675 = vadd.f32 %v7643, %v7549
        %v7676 = vadd.f32 %v7644, %v7554
        %v7677 = vadd.f32 %v7645, %v7557
        %v7678 = vadd.f32 %v7646, %v7562
        %v7679 = vadd.f32 %v7647, %v7565
        %v7680 = vadd.f32 %v7648, %v7570
        %v7681 = vadd.f32 %v7649, %v7573
        %v7682 = vadd.f32 %v7650, %v7578
        %v7683 = vadd.f32 %v7651, %v7581
        %v7684 = vadd.f32 %v7652, %v7586
        %v7685 = vadd.f32 %v7653, %v7589
        %v7686 = vadd.f32 %v7654, %v7594
        %v7687 = vadd.f32 %v7655, %v7597
        %v7688 = vadd.f32 %v7656, %v7602
        %v7689 = vadd.f32 %v7657, %v7605
        %v7690 = vadd.f32 %v7658, %v7610
        %v7691 = vadd.f32 %v7659, %v7613
        %v7692 = vadd.f32 %v7660, %v7618
        %v7693 = vadd.f32 %v7661, %v7621
        %v7694 = vadd.f32 %v7662, %v7626
        %v7695 = vadd.f32 %v7663, %v7629
        %7696 = vst [vmem:[#allocation3] sm:$0xff] %v7664
        %7697 = vst [vmem:[#allocation3 + $0x8] sm:$0xff] %v7665
        %7698 = vst [vmem:[#allocation3 + $0x10] sm:$0xff] %v7666
        %7699 = vst [vmem:[#allocation3 + $0x18] sm:$0xff] %v7667
        %7700 = vst [vmem:[#allocation3 + $0x20] sm:$0xff] %v7668
        %7701 = vst [vmem:[#allocation3 + $0x28] sm:$0xff] %v7669
        %7702 = vst [vmem:[#allocation3 + $0x30] sm:$0xff] %v7670
        %7703 = vst [vmem:[#allocation3 + $0x38] sm:$0xff] %v7671
        %7704 = vst [vmem:[#allocation3 + $0x40] sm:$0xff] %v7672
        %7705 = vst [vmem:[#allocation3 + $0x48] sm:$0xff] %v7673
        %7706 = vst [vmem:[#allocation3 + $0x50] sm:$0xff] %v7674
        %7707 = vst [vmem:[#allocation3 + $0x58] sm:$0xff] %v7675
        %7708 = vst [vmem:[#allocation3 + $0x60] sm:$0xff] %v7676
        %7709 = vst [vmem:[#allocation3 + $0x68] sm:$0xff] %v7677
        %7710 = vst [vmem:[#allocation3 + $0x70] sm:$0xff] %v7678
        %7711 = vst [vmem:[#allocation3 + $0x78] sm:$0xff] %v7679
        %7712 = vst [vmem:[#allocation3 + $0x80] sm:$0xff] %v7680
        %7713 = vst [vmem:[#allocation3 + $0x88] sm:$0xff] %v7681
        %7714 = vst [vmem:[#allocation3 + $0x90] sm:$0xff] %v7682
        %7715 = vst [vmem:[#allocation3 + $0x98] sm:$0xff] %v7683
        %7716 = vst [vmem:[#allocation3 + $0xa0] sm:$0xff] %v7684
        %7717 = vst [vmem:[#allocation3 + $0xa8] sm:$0xff] %v7685
        %7718 = vst [vmem:[#allocation3 + $0xb0] sm:$0xff] %v7686
        %7719 = vst [vmem:[#allocation3 + $0xb8] sm:$0xff] %v7687
        %7720 = vst [vmem:[#allocation3 + $0xc0] sm:$0xff] %v7688
        %7721 = vst [vmem:[#allocation3 + $0xc8] sm:$0xff] %v7689
        %7722 = vst [vmem:[#allocation3 + $0xd0] sm:$0xff] %v7690
        %7723 = vst [vmem:[#allocation3 + $0xd8] sm:$0xff] %v7691
        %7724 = vst [vmem:[#allocation3 + $0xe0] sm:$0xff] %v7692
        %7725 = vst [vmem:[#allocation3 + $0xe8] sm:$0xff] %v7693
        %7726 = vst [vmem:[#allocation3 + $0xf0] sm:$0xff] %v7694
        %7727 = vst [vmem:[#allocation3 + $0xf8] sm:$0xff] %v7695
        %v7728 = vld [vmem:[%s5910 + $0x2] sm:$0xff]
        %v7729 = vld [vmem:[%s5910 + $0xa] sm:$0xff]
        %v7730 = vld [vmem:[%s5910 + $0x1a] sm:$0xff]
        %v7731 = vld [vmem:[%s5910 + $0x22] sm:$0xff]
        %v7732 = vld [vmem:[%s5910 + $0x32] sm:$0xff]
        %v7733 = vld [vmem:[%s5910 + $0x3a] sm:$0xff]
        %v7734 = vld [vmem:[%s5910 + $0x4a] sm:$0xff]
        %v7735 = vld [vmem:[%s5910 + $0x52] sm:$0xff]
        %v7736 = vld [vmem:[%s5910 + $0x62] sm:$0xff]
        %v7737 = vld [vmem:[%s5910 + $0x6a] sm:$0xff]
        %v7738 = vld [vmem:[%s5910 + $0x7a] sm:$0xff]
        %v7739 = vld [vmem:[%s5910 + $0x82] sm:$0xff]
        %v7740 = vld [vmem:[%s5910 + $0x92] sm:$0xff]
        %v7741 = vld [vmem:[%s5910 + $0x9a] sm:$0xff]
        %v7742 = vld [vmem:[%s5910 + $0xaa] sm:$0xff]
        %v7743 = vld [vmem:[%s5910 + $0xb2] sm:$0xff]
        %v7744 = vld [vmem:[%s5910 + $0xc2] sm:$0xff]
        %v7745 = vld [vmem:[%s5910 + $0xca] sm:$0xff]
        %v7746 = vld [vmem:[%s5910 + $0xda] sm:$0xff]
        %v7747 = vld [vmem:[%s5910 + $0xe2] sm:$0xff]
        %v7748 = vld [vmem:[%s5910 + $0xf2] sm:$0xff]
        %v7749 = vld [vmem:[%s5910 + $0xfa] sm:$0xff]
        %v7750 = vld [vmem:[%s5910 + $0x10a] sm:$0xff]
        %v7751 = vld [vmem:[%s5910 + $0x112] sm:$0xff]
        %v7752 = vld [vmem:[%s5910 + $0x122] sm:$0xff]
        %v7753 = vld [vmem:[%s5910 + $0x12a] sm:$0xff]
        %v7754 = vld [vmem:[%s5910 + $0x13a] sm:$0xff]
        %v7755 = vld [vmem:[%s5910 + $0x142] sm:$0xff]
        %v7756 = vld [vmem:[%s5910 + $0x152] sm:$0xff]
        %v7757 = vld [vmem:[%s5910 + $0x15a] sm:$0xff]
        %v7758 = vld [vmem:[%s5910 + $0x16a] sm:$0xff]
        %v7759 = vld [vmem:[%s5910 + $0x172] sm:$0xff]
        %v7760 = vpack.c.bf16 %v7729, %v7728
        %v7761 = vpack.c.bf16 %v7731, %v7730
        %v7762 = vpack.c.bf16 %v7733, %v7732
        %v7763 = vpack.c.bf16 %v7735, %v7734
        %v7764 = vpack.c.bf16 %v7737, %v7736
        %v7765 = vpack.c.bf16 %v7739, %v7738
        %v7766 = vpack.c.bf16 %v7741, %v7740
        %v7767 = vpack.c.bf16 %v7743, %v7742
        %v7768 = vpack.c.bf16 %v7745, %v7744
        %v7769 = vpack.c.bf16 %v7747, %v7746
        %v7770 = vpack.c.bf16 %v7749, %v7748
        %v7771 = vpack.c.bf16 %v7751, %v7750
        %v7772 = vpack.c.bf16 %v7753, %v7752
        %v7773 = vpack.c.bf16 %v7755, %v7754
        %v7774 = vpack.c.bf16 %v7757, %v7756
        %v7775 = vpack.c.bf16 %v7759, %v7758
        %s7776 = scalar_lea.vmem %s3, 320
        %v7777 = vld [vmem:[%s7776] sm:$0xf]
        %v7778 = vld [vmem:[%s7776 + $0x4] sm:$0xf]
        %v7779 = vld [vmem:[%s7776 + $0x8] sm:$0xf]
        %v7780 = vld [vmem:[%s7776 + $0xc] sm:$0xf]
        %v7781 = vld [vmem:[%s7776 + $0x10] sm:$0xf]
        %v7782 = vld [vmem:[%s7776 + $0x14] sm:$0xf]
        %v7783 = vld [vmem:[%s7776 + $0x18] sm:$0xf]
        %v7784 = vld [vmem:[%s7776 + $0x1c] sm:$0xf]
        %v7785 = vld [vmem:[%s7776 + $0x20] sm:$0xf]
        %v7786 = vld [vmem:[%s7776 + $0x24] sm:$0xf]
        %v7787 = vld [vmem:[%s7776 + $0x28] sm:$0xf]
        %v7788 = vld [vmem:[%s7776 + $0x2c] sm:$0xf]
        %v7789 = vld [vmem:[%s7776 + $0x30] sm:$0xf]
        %v7790 = vld [vmem:[%s7776 + $0x34] sm:$0xf]
        %v7791 = vld [vmem:[%s7776 + $0x38] sm:$0xf]
        %v7792 = vld [vmem:[%s7776 + $0x3c] sm:$0xf]
        %v7809 = vunpack.c.l.b16 %v7777
        %v7810 = vunpack.c.l.b16 %v7778
        %v7811 = vunpack.c.l.b16 %v7779
        %v7812 = vunpack.c.l.b16 %v7780
        %v7813 = vunpack.c.l.b16 %v7781
        %v7814 = vunpack.c.l.b16 %v7782
        %v7815 = vunpack.c.l.b16 %v7783
        %v7816 = vunpack.c.l.b16 %v7784
        %v7817 = vunpack.c.l.b16 %v7785
        %v7818 = vunpack.c.l.b16 %v7786
        %v7819 = vunpack.c.l.b16 %v7787
        %v7820 = vunpack.c.l.b16 %v7788
        %v7821 = vunpack.c.l.b16 %v7789
        %v7822 = vunpack.c.l.b16 %v7790
        %v7823 = vunpack.c.l.b16 %v7791
        %v7824 = vunpack.c.l.b16 %v7792
        %v7825 = vpack.c.b16 %v7810, %v7809
        %v7826 = vpack.c.b16 %v7812, %v7811
        %v7827 = vpack.c.b16 %v7814, %v7813
        %v7828 = vpack.c.b16 %v7816, %v7815
        %v7829 = vpack.c.b16 %v7818, %v7817
        %v7830 = vpack.c.b16 %v7820, %v7819
        %v7831 = vpack.c.b16 %v7822, %v7821
        %v7832 = vpack.c.b16 %v7824, %v7823
        %7841 = vmatprep.subr.bf16.mxu0 0
        %7842 = vmatpush1.bf16.msra.mxu0 %v7825
        %7843 = vmatprep.subr.bf16.mxu0 0
        %7844 = vmatpush1.bf16.msra.mxu0 %v7826
        %7845 = vmatprep.subr.bf16.mxu0 0
        %7846 = vmatpush1.bf16.msra.mxu0 %v7827
        %7847 = vmatprep.subr.bf16.mxu0 0
        %7848 = vmatpush1.bf16.msra.mxu0 %v7828
        %7849 = vmatprep.subr.bf16.mxu0 0
        %7850 = vmatpush1.bf16.msra.mxu0 %v7829
        %7851 = vmatprep.subr.bf16.mxu0 0
        %7852 = vmatpush1.bf16.msra.mxu0 %v7830
        %7853 = vmatprep.subr.bf16.mxu0 0
        %7854 = vmatpush1.bf16.msra.mxu0 %v7831
        %7855 = vmatprep.subr.bf16.mxu0 0
        %7856 = vmatpush1.bf16.msra.mxu0 %v7832
        %7857 = vmatprep.subr.bf16.mxu0 0
        %7858 = vmatpush1.bf16.msra.mxu0 0
        %7859 = vmatprep.subr.bf16.mxu0 0
        %7860 = vmatpush1.bf16.msra.mxu0 0
        %7861 = vmatprep.subr.bf16.mxu0 0
        %7862 = vmatpush1.bf16.msra.mxu0 0
        %7863 = vmatprep.subr.bf16.mxu0 0
        %7864 = vmatpush1.bf16.msra.mxu0 0
        %7865 = vmatprep.subr.bf16.mxu0 0
        %7866 = vmatpush1.bf16.msra.mxu0 0
        %7867 = vmatprep.subr.bf16.mxu0 0
        %7868 = vmatpush1.bf16.msra.mxu0 0
        %7869 = vmatprep.subr.bf16.mxu0 0
        %7870 = vmatpush1.bf16.msra.mxu0 0
        %7871 = vmatprep.subr.bf16.mxu0 0
        %7872 = vmatpush1.bf16.msra.mxu0 0
        %7873 = vmatprep.mubr.bf16.mxu0 0
        %7874 = vmatmul.mubr.bf16.gmra.mrb[0].mxu0 %v7760
        %v7875 = vpop.f32.mrb[0].mxu0
        %v7876 = vadd.f32 0.0, %v7875
        %v7877 = vpop.f32.mrb[0].mxu0
        %v7878 = vpop.f32.mrb[0].mxu0
        %v7879 = vadd.f32 0.0, %v7878
        %v7880 = vpop.f32.mrb[0].mxu0
        %7881 = vmatprep.mubr.bf16.mxu0 0
        %7882 = vmatmul.mubr.bf16.gmra.mrb[0].mxu0 %v7761
        %v7883 = vpop.f32.mrb[0].mxu0
        %v7884 = vadd.f32 0.0, %v7883
        %v7885 = vpop.f32.mrb[0].mxu0
        %v7886 = vpop.f32.mrb[0].mxu0
        %v7887 = vadd.f32 0.0, %v7886
        %v7888 = vpop.f32.mrb[0].mxu0
        %7889 = vmatprep.mubr.bf16.mxu0 0
        %7890 = vmatmul.mubr.bf16.gmra.mrb[0].mxu0 %v7762
        %v7891 = vpop.f32.mrb[0].mxu0
        %v7892 = vadd.f32 0.0, %v7891
        %v7893 = vpop.f32.mrb[0].mxu0
        %v7894 = vpop.f32.mrb[0].mxu0
        %v7895 = vadd.f32 0.0, %v7894
        %v7896 = vpop.f32.mrb[0].mxu0
        %7897 = vmatprep.mubr.bf16.mxu0 0
        %7898 = vmatmul.mubr.bf16.gmra.mrb[0].mxu0 %v7763
        %v7899 = vpop.f32.mrb[0].mxu0
        %v7900 = vadd.f32 0.0, %v7899
        %v7901 = vpop.f32.mrb[0].mxu0
        %v7902 = vpop.f32.mrb[0].mxu0
        %v7903 = vadd.f32 0.0, %v7902
        %v7904 = vpop.f32.mrb[0].mxu0
        %7905 = vmatprep.mubr.bf16.mxu0 0
        %7906 = vmatmul.mubr.bf16.gmra.mrb[0].mxu0 %v7764
        %v7907 = vpop.f32.mrb[0].mxu0
        %v7908 = vadd.f32 0.0, %v7907
        %v7909 = vpop.f32.mrb[0].mxu0
        %v7910 = vpop.f32.mrb[0].mxu0
        %v7911 = vadd.f32 0.0, %v7910
        %v7912 = vpop.f32.mrb[0].mxu0
        %7913 = vmatprep.mubr.bf16.mxu0 0
        %7914 = vmatmul.mubr.bf16.gmra.mrb[0].mxu0 %v7765
        %v7915 = vpop.f32.mrb[0].mxu0
        %v7916 = vadd.f32 0.0, %v7915
        %v7917 = vpop.f32.mrb[0].mxu0
        %v7918 = vpop.f32.mrb[0].mxu0
        %v7919 = vadd.f32 0.0, %v7918
        %v7920 = vpop.f32.mrb[0].mxu0
        %7921 = vmatprep.mubr.bf16.mxu0 0
        %7922 = vmatmul.mubr.bf16.gmra.mrb[0].mxu0 %v7766
        %v7923 = vpop.f32.mrb[0].mxu0
        %v7924 = vadd.f32 0.0, %v7923
        %v7925 = vpop.f32.mrb[0].mxu0
        %v7926 = vpop.f32.mrb[0].mxu0
        %v7927 = vadd.f32 0.0, %v7926
        %v7928 = vpop.f32.mrb[0].mxu0
        %7929 = vmatprep.mubr.bf16.mxu0 0
        %7930 = vmatmul.mubr.bf16.gmra.mrb[0].mxu0 %v7767
        %v7931 = vpop.f32.mrb[0].mxu0
        %v7932 = vadd.f32 0.0, %v7931
        %v7933 = vpop.f32.mrb[0].mxu0
        %v7934 = vpop.f32.mrb[0].mxu0
        %v7935 = vadd.f32 0.0, %v7934
        %v7936 = vpop.f32.mrb[0].mxu0
        %7937 = vmatprep.mubr.bf16.mxu0 0
        %7938 = vmatmul.mubr.bf16.gmra.mrb[0].mxu0 %v7768
        %v7939 = vpop.f32.mrb[0].mxu0
        %v7940 = vadd.f32 0.0, %v7939
        %v7941 = vpop.f32.mrb[0].mxu0
        %v7942 = vpop.f32.mrb[0].mxu0
        %v7943 = vadd.f32 0.0, %v7942
        %v7944 = vpop.f32.mrb[0].mxu0
        %7945 = vmatprep.mubr.bf16.mxu0 0
        %7946 = vmatmul.mubr.bf16.gmra.mrb[0].mxu0 %v7769
        %v7947 = vpop.f32.mrb[0].mxu0
        %v7948 = vadd.f32 0.0, %v7947
        %v7949 = vpop.f32.mrb[0].mxu0
        %v7950 = vpop.f32.mrb[0].mxu0
        %v7951 = vadd.f32 0.0, %v7950
        %v7952 = vpop.f32.mrb[0].mxu0
        %7953 = vmatprep.mubr.bf16.mxu0 0
        %7954 = vmatmul.mubr.bf16.gmra.mrb[0].mxu0 %v7770
        %v7955 = vpop.f32.mrb[0].mxu0
        %v7956 = vadd.f32 0.0, %v7955
        %v7957 = vpop.f32.mrb[0].mxu0
        %v7958 = vpop.f32.mrb[0].mxu0
        %v7959 = vadd.f32 0.0, %v7958
        %v7960 = vpop.f32.mrb[0].mxu0
        %7961 = vmatprep.mubr.bf16.mxu0 0
        %7962 = vmatmul.mubr.bf16.gmra.mrb[0].mxu0 %v7771
        %v7963 = vpop.f32.mrb[0].mxu0
        %v7964 = vadd.f32 0.0, %v7963
        %v7965 = vpop.f32.mrb[0].mxu0
        %v7966 = vpop.f32.mrb[0].mxu0
        %v7967 = vadd.f32 0.0, %v7966
        %v7968 = vpop.f32.mrb[0].mxu0
        %7969 = vmatprep.mubr.bf16.mxu0 0
        %7970 = vmatmul.mubr.bf16.gmra.mrb[0].mxu0 %v7772
        %v7971 = vpop.f32.mrb[0].mxu0
        %v7972 = vadd.f32 0.0, %v7971
        %v7973 = vpop.f32.mrb[0].mxu0
        %v7974 = vpop.f32.mrb[0].mxu0
        %v7975 = vadd.f32 0.0, %v7974
        %v7976 = vpop.f32.mrb[0].mxu0
        %7977 = vmatprep.mubr.bf16.mxu0 0
        %7978 = vmatmul.mubr.bf16.gmra.mrb[0].mxu0 %v7773
        %v7979 = vpop.f32.mrb[0].mxu0
        %v7980 = vadd.f32 0.0, %v7979
        %v7981 = vpop.f32.mrb[0].mxu0
        %v7982 = vpop.f32.mrb[0].mxu0
        %v7983 = vadd.f32 0.0, %v7982
        %v7984 = vpop.f32.mrb[0].mxu0
        %7985 = vmatprep.mubr.bf16.mxu0 0
        %7986 = vmatmul.mubr.bf16.gmra.mrb[0].mxu0 %v7774
        %v7987 = vpop.f32.mrb[0].mxu0
        %v7988 = vadd.f32 0.0, %v7987
        %v7989 = vpop.f32.mrb[0].mxu0
        %v7990 = vpop.f32.mrb[0].mxu0
        %v7991 = vadd.f32 0.0, %v7990
        %v7992 = vpop.f32.mrb[0].mxu0
        %7993 = vmatprep.mubr.bf16.mxu0 0
        %7994 = vmatmul.mubr.bf16.gmra.mrb[0].mxu0 %v7775
        %v7995 = vpop.f32.mrb[0].mxu0
        %v7996 = vadd.f32 0.0, %v7995
        %v7997 = vpop.f32.mrb[0].mxu0
        %v7998 = vpop.f32.mrb[0].mxu0
        %v7999 = vadd.f32 0.0, %v7998
        %v8000 = vpop.f32.mrb[0].mxu0
        %8001 = vdwg.mxu0
        %v8002 = vld [vmem:[#allocation3] sm:$0xff]
        %v8003 = vld [vmem:[#allocation3 + $0x8] sm:$0xff]
        %v8004 = vld [vmem:[#allocation3 + $0x10] sm:$0xff]
        %v8005 = vld [vmem:[#allocation3 + $0x18] sm:$0xff]
        %v8006 = vld [vmem:[#allocation3 + $0x20] sm:$0xff]
        %v8007 = vld [vmem:[#allocation3 + $0x28] sm:$0xff]
        %v8008 = vld [vmem:[#allocation3 + $0x30] sm:$0xff]
        %v8009 = vld [vmem:[#allocation3 + $0x38] sm:$0xff]
        %v8010 = vld [vmem:[#allocation3 + $0x40] sm:$0xff]
        %v8011 = vld [vmem:[#allocation3 + $0x48] sm:$0xff]
        %v8012 = vld [vmem:[#allocation3 + $0x50] sm:$0xff]
        %v8013 = vld [vmem:[#allocation3 + $0x58] sm:$0xff]
        %v8014 = vld [vmem:[#allocation3 + $0x60] sm:$0xff]
        %v8015 = vld [vmem:[#allocation3 + $0x68] sm:$0xff]
        %v8016 = vld [vmem:[#allocation3 + $0x70] sm:$0xff]
        %v8017 = vld [vmem:[#allocation3 + $0x78] sm:$0xff]
        %v8018 = vld [vmem:[#allocation3 + $0x80] sm:$0xff]
        %v8019 = vld [vmem:[#allocation3 + $0x88] sm:$0xff]
        %v8020 = vld [vmem:[#allocation3 + $0x90] sm:$0xff]
        %v8021 = vld [vmem:[#allocation3 + $0x98] sm:$0xff]
        %v8022 = vld [vmem:[#allocation3 + $0xa0] sm:$0xff]
        %v8023 = vld [vmem:[#allocation3 + $0xa8] sm:$0xff]
        %v8024 = vld [vmem:[#allocation3 + $0xb0] sm:$0xff]
        %v8025 = vld [vmem:[#allocation3 + $0xb8] sm:$0xff]
        %v8026 = vld [vmem:[#allocation3 + $0xc0] sm:$0xff]
        %v8027 = vld [vmem:[#allocation3 + $0xc8] sm:$0xff]
        %v8028 = vld [vmem:[#allocation3 + $0xd0] sm:$0xff]
        %v8029 = vld [vmem:[#allocation3 + $0xd8] sm:$0xff]
        %v8030 = vld [vmem:[#allocation3 + $0xe0] sm:$0xff]
        %v8031 = vld [vmem:[#allocation3 + $0xe8] sm:$0xff]
        %v8032 = vld [vmem:[#allocation3 + $0xf0] sm:$0xff]
        %v8033 = vld [vmem:[#allocation3 + $0xf8] sm:$0xff]
        %v8034 = vadd.f32 %v8002, %v7876
        %v8035 = vadd.f32 %v8003, %v7879
        %v8036 = vadd.f32 %v8004, %v7884
        %v8037 = vadd.f32 %v8005, %v7887
        %v8038 = vadd.f32 %v8006, %v7892
        %v8039 = vadd.f32 %v8007, %v7895
        %v8040 = vadd.f32 %v8008, %v7900
        %v8041 = vadd.f32 %v8009, %v7903
        %v8042 = vadd.f32 %v8010, %v7908
        %v8043 = vadd.f32 %v8011, %v7911
        %v8044 = vadd.f32 %v8012, %v7916
        %v8045 = vadd.f32 %v8013, %v7919
        %v8046 = vadd.f32 %v8014, %v7924
        %v8047 = vadd.f32 %v8015, %v7927
        %v8048 = vadd.f32 %v8016, %v7932
        %v8049 = vadd.f32 %v8017, %v7935
        %v8050 = vadd.f32 %v8018, %v7940
        %v8051 = vadd.f32 %v8019, %v7943
        %v8052 = vadd.f32 %v8020, %v7948
        %v8053 = vadd.f32 %v8021, %v7951
        %v8054 = vadd.f32 %v8022, %v7956
        %v8055 = vadd.f32 %v8023, %v7959
        %v8056 = vadd.f32 %v8024, %v7964
        %v8057 = vadd.f32 %v8025, %v7967
        %v8058 = vadd.f32 %v8026, %v7972
        %v8059 = vadd.f32 %v8027, %v7975
        %v8060 = vadd.f32 %v8028, %v7980
        %v8061 = vadd.f32 %v8029, %v7983
        %v8062 = vadd.f32 %v8030, %v7988
        %v8063 = vadd.f32 %v8031, %v7991
        %v8064 = vadd.f32 %v8032, %v7996
        %v8065 = vadd.f32 %v8033, %v7999
        %8066 = vst [vmem:[#allocation3] sm:$0xff] %v8034
        %8067 = vst [vmem:[#allocation3 + $0x8] sm:$0xff] %v8035
        %8068 = vst [vmem:[#allocation3 + $0x10] sm:$0xff] %v8036
        %8069 = vst [vmem:[#allocation3 + $0x18] sm:$0xff] %v8037
        %8070 = vst [vmem:[#allocation3 + $0x20] sm:$0xff] %v8038
        %8071 = vst [vmem:[#allocation3 + $0x28] sm:$0xff] %v8039
        %8072 = vst [vmem:[#allocation3 + $0x30] sm:$0xff] %v8040
        %8073 = vst [vmem:[#allocation3 + $0x38] sm:$0xff] %v8041
        %8074 = vst [vmem:[#allocation3 + $0x40] sm:$0xff] %v8042
        %8075 = vst [vmem:[#allocation3 + $0x48] sm:$0xff] %v8043
        %8076 = vst [vmem:[#allocation3 + $0x50] sm:$0xff] %v8044
        %8077 = vst [vmem:[#allocation3 + $0x58] sm:$0xff] %v8045
        %8078 = vst [vmem:[#allocation3 + $0x60] sm:$0xff] %v8046
        %8079 = vst [vmem:[#allocation3 + $0x68] sm:$0xff] %v8047
        %8080 = vst [vmem:[#allocation3 + $0x70] sm:$0xff] %v8048
        %8081 = vst [vmem:[#allocation3 + $0x78] sm:$0xff] %v8049
        %8082 = vst [vmem:[#allocation3 + $0x80] sm:$0xff] %v8050
        %8083 = vst [vmem:[#allocation3 + $0x88] sm:$0xff] %v8051
        %8084 = vst [vmem:[#allocation3 + $0x90] sm:$0xff] %v8052
        %8085 = vst [vmem:[#allocation3 + $0x98] sm:$0xff] %v8053
        %8086 = vst [vmem:[#allocation3 + $0xa0] sm:$0xff] %v8054
        %8087 = vst [vmem:[#allocation3 + $0xa8] sm:$0xff] %v8055
        %8088 = vst [vmem:[#allocation3 + $0xb0] sm:$0xff] %v8056
        %8089 = vst [vmem:[#allocation3 + $0xb8] sm:$0xff] %v8057
        %8090 = vst [vmem:[#allocation3 + $0xc0] sm:$0xff] %v8058
        %8091 = vst [vmem:[#allocation3 + $0xc8] sm:$0xff] %v8059
        %8092 = vst [vmem:[#allocation3 + $0xd0] sm:$0xff] %v8060
        %8093 = vst [vmem:[#allocation3 + $0xd8] sm:$0xff] %v8061
        %8094 = vst [vmem:[#allocation3 + $0xe0] sm:$0xff] %v8062
        %8095 = vst [vmem:[#allocation3 + $0xe8] sm:$0xff] %v8063
        %8096 = vst [vmem:[#allocation3 + $0xf0] sm:$0xff] %v8064
        %8097 = vst [vmem:[#allocation3 + $0xf8] sm:$0xff] %v8065
        %s8098 = scalar_lea.vmem [#allocation2], 48
        %v8099 = vld [vmem:[%s8098] sm:$0xff]
        %v8100 = vld [vmem:[%s8098 + $0x8] sm:$0xff]
        %v8101 = vld [vmem:[%s8098 + $0x18] sm:$0xff]
        %v8102 = vld [vmem:[%s8098 + $0x20] sm:$0xff]
        %v8103 = vld [vmem:[%s8098 + $0x30] sm:$0xff]
        %v8104 = vld [vmem:[%s8098 + $0x38] sm:$0xff]
        %v8105 = vld [vmem:[%s8098 + $0x48] sm:$0xff]
        %v8106 = vld [vmem:[%s8098 + $0x50] sm:$0xff]
        %v8107 = vld [vmem:[%s8098 + $0x60] sm:$0xff]
        %v8108 = vld [vmem:[%s8098 + $0x68] sm:$0xff]
        %v8109 = vld [vmem:[%s8098 + $0x78] sm:$0xff]
        %v8110 = vld [vmem:[%s8098 + $0x80] sm:$0xff]
        %v8111 = vld [vmem:[%s8098 + $0x90] sm:$0xff]
        %v8112 = vld [vmem:[%s8098 + $0x98] sm:$0xff]
        %v8113 = vld [vmem:[%s8098 + $0xa8] sm:$0xff]
        %v8114 = vld [vmem:[%s8098 + $0xb0] sm:$0xff]
        %v8115 = vld [vmem:[%s8098 + $0xc0] sm:$0xff]
        %v8116 = vld [vmem:[%s8098 + $0xc8] sm:$0xff]
        %v8117 = vld [vmem:[%s8098 + $0xd8] sm:$0xff]
        %v8118 = vld [vmem:[%s8098 + $0xe0] sm:$0xff]
        %v8119 = vld [vmem:[%s8098 + $0xf0] sm:$0xff]
        %v8120 = vld [vmem:[%s8098 + $0xf8] sm:$0xff]
        %v8121 = vld [vmem:[%s8098 + $0x108] sm:$0xff]
        %v8122 = vld [vmem:[%s8098 + $0x110] sm:$0xff]
        %v8123 = vld [vmem:[%s8098 + $0x120] sm:$0xff]
        %v8124 = vld [vmem:[%s8098 + $0x128] sm:$0xff]
        %v8125 = vld [vmem:[%s8098 + $0x138] sm:$0xff]
        %v8126 = vld [vmem:[%s8098 + $0x140] sm:$0xff]
        %v8127 = vld [vmem:[%s8098 + $0x150] sm:$0xff]
        %v8128 = vld [vmem:[%s8098 + $0x158] sm:$0xff]
        %v8129 = vld [vmem:[%s8098 + $0x168] sm:$0xff]
        %v8130 = vld [vmem:[%s8098 + $0x170] sm:$0xff]
        %v8131 = vpack.c.bf16 %v8100, %v8099
        %v8132 = vpack.c.bf16 %v8102, %v8101
        %v8133 = vpack.c.bf16 %v8104, %v8103
        %v8134 = vpack.c.bf16 %v8106, %v8105
        %v8135 = vpack.c.bf16 %v8108, %v8107
        %v8136 = vpack.c.bf16 %v8110, %v8109
        %v8137 = vpack.c.bf16 %v8112, %v8111
        %v8138 = vpack.c.bf16 %v8114, %v8113
        %v8139 = vpack.c.bf16 %v8116, %v8115
        %v8140 = vpack.c.bf16 %v8118, %v8117
        %v8141 = vpack.c.bf16 %v8120, %v8119
        %v8142 = vpack.c.bf16 %v8122, %v8121
        %v8143 = vpack.c.bf16 %v8124, %v8123
        %v8144 = vpack.c.bf16 %v8126, %v8125
        %v8145 = vpack.c.bf16 %v8128, %v8127
        %v8146 = vpack.c.bf16 %v8130, %v8129
        %s8147 = scalar_lea.vmem %s3, 384
        %v8148 = vld [vmem:[%s8147] sm:$0xf]
        %v8149 = vld [vmem:[%s8147 + $0x4] sm:$0xf]
        %v8150 = vld [vmem:[%s8147 + $0x8] sm:$0xf]
        %v8151 = vld [vmem:[%s8147 + $0xc] sm:$0xf]
        %v8152 = vld [vmem:[%s8147 + $0x10] sm:$0xf]
        %v8153 = vld [vmem:[%s8147 + $0x14] sm:$0xf]
        %v8154 = vld [vmem:[%s8147 + $0x18] sm:$0xf]
        %v8155 = vld [vmem:[%s8147 + $0x1c] sm:$0xf]
        %v8156 = vld [vmem:[%s8147 + $0x20] sm:$0xf]
        %v8157 = vld [vmem:[%s8147 + $0x24] sm:$0xf]
        %v8158 = vld [vmem:[%s8147 + $0x28] sm:$0xf]
        %v8159 = vld [vmem:[%s8147 + $0x2c] sm:$0xf]
        %v8160 = vld [vmem:[%s8147 + $0x30] sm:$0xf]
        %v8161 = vld [vmem:[%s8147 + $0x34] sm:$0xf]
        %v8162 = vld [vmem:[%s8147 + $0x38] sm:$0xf]
        %v8163 = vld [vmem:[%s8147 + $0x3c] sm:$0xf]
        %v8180 = vunpack.c.l.b16 %v8148
        %v8181 = vunpack.c.l.b16 %v8149
        %v8182 = vunpack.c.l.b16 %v8150
        %v8183 = vunpack.c.l.b16 %v8151
        %v8184 = vunpack.c.l.b16 %v8152
        %v8185 = vunpack.c.l.b16 %v8153
        %v8186 = vunpack.c.l.b16 %v8154
        %v8187 = vunpack.c.l.b16 %v8155
        %v8188 = vunpack.c.l.b16 %v8156
        %v8189 = vunpack.c.l.b16 %v8157
        %v8190 = vunpack.c.l.b16 %v8158
        %v8191 = vunpack.c.l.b16 %v8159
        %v8192 = vunpack.c.l.b16 %v8160
        %v8193 = vunpack.c.l.b16 %v8161
        %v8194 = vunpack.c.l.b16 %v8162
        %v8195 = vunpack.c.l.b16 %v8163
        %v8196 = vpack.c.b16 %v8181, %v8180
        %v8197 = vpack.c.b16 %v8183, %v8182
        %v8198 = vpack.c.b16 %v8185, %v8184
        %v8199 = vpack.c.b16 %v8187, %v8186
        %v8200 = vpack.c.b16 %v8189, %v8188
        %v8201 = vpack.c.b16 %v8191, %v8190
        %v8202 = vpack.c.b16 %v8193, %v8192
        %v8203 = vpack.c.b16 %v8195, %v8194
        %8212 = vmatprep.subr.bf16.mxu0 0
        %8213 = vmatpush1.bf16.msra.mxu0 %v8196
        %8214 = vmatprep.subr.bf16.mxu0 0
        %8215 = vmatpush1.bf16.msra.mxu0 %v8197
        %8216 = vmatprep.subr.bf16.mxu0 0
        %8217 = vmatpush1.bf16.msra.mxu0 %v8198
        %8218 = vmatprep.subr.bf16.mxu0 0
        %8219 = vmatpush1.bf16.msra.mxu0 %v8199
        %8220 = vmatprep.subr.bf16.mxu0 0
        %8221 = vmatpush1.bf16.msra.mxu0 %v8200
        %8222 = vmatprep.subr.bf16.mxu0 0
        %8223 = vmatpush1.bf16.msra.mxu0 %v8201
        %8224 = vmatprep.subr.bf16.mxu0 0
        %8225 = vmatpush1.bf16.msra.mxu0 %v8202
        %8226 = vmatprep.subr.bf16.mxu0 0
        %8227 = vmatpush1.bf16.msra.mxu0 %v8203
        %8228 = vmatprep.subr.bf16.mxu0 0
        %8229 = vmatpush1.bf16.msra.mxu0 0
        %8230 = vmatprep.subr.bf16.mxu0 0
        %8231 = vmatpush1.bf16.msra.mxu0 0
        %8232 = vmatprep.subr.bf16.mxu0 0
        %8233 = vmatpush1.bf16.msra.mxu0 0
        %8234 = vmatprep.subr.bf16.mxu0 0
        %8235 = vmatpush1.bf16.msra.mxu0 0
        %8236 = vmatprep.subr.bf16.mxu0 0
        %8237 = vmatpush1.bf16.msra.mxu0 0
        %8238 = vmatprep.subr.bf16.mxu0 0
        %8239 = vmatpush1.bf16.msra.mxu0 0
        %8240 = vmatprep.subr.bf16.mxu0 0
        %8241 = vmatpush1.bf16.msra.mxu0 0
        %8242 = vmatprep.subr.bf16.mxu0 0
        %8243 = vmatpush1.bf16.msra.mxu0 0
        %8244 = vmatprep.mubr.bf16.mxu0 0
        %8245 = vmatmul.mubr.bf16.gmra.mrb[0].mxu0 %v8131
        %v8246 = vpop.f32.mrb[0].mxu0
        %v8247 = vadd.f32 0.0, %v8246
        %v8248 = vpop.f32.mrb[0].mxu0
        %v8249 = vpop.f32.mrb[0].mxu0
        %v8250 = vadd.f32 0.0, %v8249
        %v8251 = vpop.f32.mrb[0].mxu0
        %8252 = vmatprep.mubr.bf16.mxu0 0
        %8253 = vmatmul.mubr.bf16.gmra.mrb[0].mxu0 %v8132
        %v8254 = vpop.f32.mrb[0].mxu0
        %v8255 = vadd.f32 0.0, %v8254
        %v8256 = vpop.f32.mrb[0].mxu0
        %v8257 = vpop.f32.mrb[0].mxu0
        %v8258 = vadd.f32 0.0, %v8257
        %v8259 = vpop.f32.mrb[0].mxu0
        %8260 = vmatprep.mubr.bf16.mxu0 0
        %8261 = vmatmul.mubr.bf16.gmra.mrb[0].mxu0 %v8133
        %v8262 = vpop.f32.mrb[0].mxu0
        %v8263 = vadd.f32 0.0, %v8262
        %v8264 = vpop.f32.mrb[0].mxu0
        %v8265 = vpop.f32.mrb[0].mxu0
        %v8266 = vadd.f32 0.0, %v8265
        %v8267 = vpop.f32.mrb[0].mxu0
        %8268 = vmatprep.mubr.bf16.mxu0 0
        %8269 = vmatmul.mubr.bf16.gmra.mrb[0].mxu0 %v8134
        %v8270 = vpop.f32.mrb[0].mxu0
        %v8271 = vadd.f32 0.0, %v8270
        %v8272 = vpop.f32.mrb[0].mxu0
        %v8273 = vpop.f32.mrb[0].mxu0
        %v8274 = vadd.f32 0.0, %v8273
        %v8275 = vpop.f32.mrb[0].mxu0
        %8276 = vmatprep.mubr.bf16.mxu0 0
        %8277 = vmatmul.mubr.bf16.gmra.mrb[0].mxu0 %v8135
        %v8278 = vpop.f32.mrb[0].mxu0
        %v8279 = vadd.f32 0.0, %v8278
        %v8280 = vpop.f32.mrb[0].mxu0
        %v8281 = vpop.f32.mrb[0].mxu0
        %v8282 = vadd.f32 0.0, %v8281
        %v8283 = vpop.f32.mrb[0].mxu0
        %8284 = vmatprep.mubr.bf16.mxu0 0
        %8285 = vmatmul.mubr.bf16.gmra.mrb[0].mxu0 %v8136
        %v8286 = vpop.f32.mrb[0].mxu0
        %v8287 = vadd.f32 0.0, %v8286
        %v8288 = vpop.f32.mrb[0].mxu0
        %v8289 = vpop.f32.mrb[0].mxu0
        %v8290 = vadd.f32 0.0, %v8289
        %v8291 = vpop.f32.mrb[0].mxu0
        %8292 = vmatprep.mubr.bf16.mxu0 0
        %8293 = vmatmul.mubr.bf16.gmra.mrb[0].mxu0 %v8137
        %v8294 = vpop.f32.mrb[0].mxu0
        %v8295 = vadd.f32 0.0, %v8294
        %v8296 = vpop.f32.mrb[0].mxu0
        %v8297 = vpop.f32.mrb[0].mxu0
        %v8298 = vadd.f32 0.0, %v8297
        %v8299 = vpop.f32.mrb[0].mxu0
        %8300 = vmatprep.mubr.bf16.mxu0 0
        %8301 = vmatmul.mubr.bf16.gmra.mrb[0].mxu0 %v8138
        %v8302 = vpop.f32.mrb[0].mxu0
        %v8303 = vadd.f32 0.0, %v8302
        %v8304 = vpop.f32.mrb[0].mxu0
        %v8305 = vpop.f32.mrb[0].mxu0
        %v8306 = vadd.f32 0.0, %v8305
        %v8307 = vpop.f32.mrb[0].mxu0
        %8308 = vmatprep.mubr.bf16.mxu0 0
        %8309 = vmatmul.mubr.bf16.gmra.mrb[0].mxu0 %v8139
        %v8310 = vpop.f32.mrb[0].mxu0
        %v8311 = vadd.f32 0.0, %v8310
        %v8312 = vpop.f32.mrb[0].mxu0
        %v8313 = vpop.f32.mrb[0].mxu0
        %v8314 = vadd.f32 0.0, %v8313
        %v8315 = vpop.f32.mrb[0].mxu0
        %8316 = vmatprep.mubr.bf16.mxu0 0
        %8317 = vmatmul.mubr.bf16.gmra.mrb[0].mxu0 %v8140
        %v8318 = vpop.f32.mrb[0].mxu0
        %v8319 = vadd.f32 0.0, %v8318
        %v8320 = vpop.f32.mrb[0].mxu0
        %v8321 = vpop.f32.mrb[0].mxu0
        %v8322 = vadd.f32 0.0, %v8321
        %v8323 = vpop.f32.mrb[0].mxu0
        %8324 = vmatprep.mubr.bf16.mxu0 0
        %8325 = vmatmul.mubr.bf16.gmra.mrb[0].mxu0 %v8141
        %v8326 = vpop.f32.mrb[0].mxu0
        %v8327 = vadd.f32 0.0, %v8326
        %v8328 = vpop.f32.mrb[0].mxu0
        %v8329 = vpop.f32.mrb[0].mxu0
        %v8330 = vadd.f32 0.0, %v8329
        %v8331 = vpop.f32.mrb[0].mxu0
        %8332 = vmatprep.mubr.bf16.mxu0 0
        %8333 = vmatmul.mubr.bf16.gmra.mrb[0].mxu0 %v8142
        %v8334 = vpop.f32.mrb[0].mxu0
        %v8335 = vadd.f32 0.0, %v8334
        %v8336 = vpop.f32.mrb[0].mxu0
        %v8337 = vpop.f32.mrb[0].mxu0
        %v8338 = vadd.f32 0.0, %v8337
        %v8339 = vpop.f32.mrb[0].mxu0
        %8340 = vmatprep.mubr.bf16.mxu0 0
        %8341 = vmatmul.mubr.bf16.gmra.mrb[0].mxu0 %v8143
        %v8342 = vpop.f32.mrb[0].mxu0
        %v8343 = vadd.f32 0.0, %v8342
        %v8344 = vpop.f32.mrb[0].mxu0
        %v8345 = vpop.f32.mrb[0].mxu0
        %v8346 = vadd.f32 0.0, %v8345
        %v8347 = vpop.f32.mrb[0].mxu0
        %8348 = vmatprep.mubr.bf16.mxu0 0
        %8349 = vmatmul.mubr.bf16.gmra.mrb[0].mxu0 %v8144
        %v8350 = vpop.f32.mrb[0].mxu0
        %v8351 = vadd.f32 0.0, %v8350
        %v8352 = vpop.f32.mrb[0].mxu0
        %v8353 = vpop.f32.mrb[0].mxu0
        %v8354 = vadd.f32 0.0, %v8353
        %v8355 = vpop.f32.mrb[0].mxu0
        %8356 = vmatprep.mubr.bf16.mxu0 0
        %8357 = vmatmul.mubr.bf16.gmra.mrb[0].mxu0 %v8145
        %v8358 = vpop.f32.mrb[0].mxu0
        %v8359 = vadd.f32 0.0, %v8358
        %v8360 = vpop.f32.mrb[0].mxu0
        %v8361 = vpop.f32.mrb[0].mxu0
        %v8362 = vadd.f32 0.0, %v8361
        %v8363 = vpop.f32.mrb[0].mxu0
        %8364 = vmatprep.mubr.bf16.mxu0 0
        %8365 = vmatmul.mubr.bf16.gmra.mrb[0].mxu0 %v8146
        %v8366 = vpop.f32.mrb[0].mxu0
        %v8367 = vadd.f32 0.0, %v8366
        %v8368 = vpop.f32.mrb[0].mxu0
        %v8369 = vpop.f32.mrb[0].mxu0
        %v8370 = vadd.f32 0.0, %v8369
        %v8371 = vpop.f32.mrb[0].mxu0
        %8372 = vdwg.mxu0
        %v8373 = vld [vmem:[#allocation3] sm:$0xff]
        %v8374 = vld [vmem:[#allocation3 + $0x8] sm:$0xff]
        %v8375 = vld [vmem:[#allocation3 + $0x10] sm:$0xff]
        %v8376 = vld [vmem:[#allocation3 + $0x18] sm:$0xff]
        %v8377 = vld [vmem:[#allocation3 + $0x20] sm:$0xff]
        %v8378 = vld [vmem:[#allocation3 + $0x28] sm:$0xff]
        %v8379 = vld [vmem:[#allocation3 + $0x30] sm:$0xff]
        %v8380 = vld [vmem:[#allocation3 + $0x38] sm:$0xff]
        %v8381 = vld [vmem:[#allocation3 + $0x40] sm:$0xff]
        %v8382 = vld [vmem:[#allocation3 + $0x48] sm:$0xff]
        %v8383 = vld [vmem:[#allocation3 + $0x50] sm:$0xff]
        %v8384 = vld [vmem:[#allocation3 + $0x58] sm:$0xff]
        %v8385 = vld [vmem:[#allocation3 + $0x60] sm:$0xff]
        %v8386 = vld [vmem:[#allocation3 + $0x68] sm:$0xff]
        %v8387 = vld [vmem:[#allocation3 + $0x70] sm:$0xff]
        %v8388 = vld [vmem:[#allocation3 + $0x78] sm:$0xff]
        %v8389 = vld [vmem:[#allocation3 + $0x80] sm:$0xff]
        %v8390 = vld [vmem:[#allocation3 + $0x88] sm:$0xff]
        %v8391 = vld [vmem:[#allocation3 + $0x90] sm:$0xff]
        %v8392 = vld [vmem:[#allocation3 + $0x98] sm:$0xff]
        %v8393 = vld [vmem:[#allocation3 + $0xa0] sm:$0xff]
        %v8394 = vld [vmem:[#allocation3 + $0xa8] sm:$0xff]
        %v8395 = vld [vmem:[#allocation3 + $0xb0] sm:$0xff]
        %v8396 = vld [vmem:[#allocation3 + $0xb8] sm:$0xff]
        %v8397 = vld [vmem:[#allocation3 + $0xc0] sm:$0xff]
        %v8398 = vld [vmem:[#allocation3 + $0xc8] sm:$0xff]
        %v8399 = vld [vmem:[#allocation3 + $0xd0] sm:$0xff]
        %v8400 = vld [vmem:[#allocation3 + $0xd8] sm:$0xff]
        %v8401 = vld [vmem:[#allocation3 + $0xe0] sm:$0xff]
        %v8402 = vld [vmem:[#allocation3 + $0xe8] sm:$0xff]
        %v8403 = vld [vmem:[#allocation3 + $0xf0] sm:$0xff]
        %v8404 = vld [vmem:[#allocation3 + $0xf8] sm:$0xff]
        %v8405 = vadd.f32 %v8373, %v8247
        %v8406 = vadd.f32 %v8374, %v8250
        %v8407 = vadd.f32 %v8375, %v8255
        %v8408 = vadd.f32 %v8376, %v8258
        %v8409 = vadd.f32 %v8377, %v8263
        %v8410 = vadd.f32 %v8378, %v8266
        %v8411 = vadd.f32 %v8379, %v8271
        %v8412 = vadd.f32 %v8380, %v8274
        %v8413 = vadd.f32 %v8381, %v8279
        %v8414 = vadd.f32 %v8382, %v8282
        %v8415 = vadd.f32 %v8383, %v8287
        %v8416 = vadd.f32 %v8384, %v8290
        %v8417 = vadd.f32 %v8385, %v8295
        %v8418 = vadd.f32 %v8386, %v8298
        %v8419 = vadd.f32 %v8387, %v8303
        %v8420 = vadd.f32 %v8388, %v8306
        %v8421 = vadd.f32 %v8389, %v8311
        %v8422 = vadd.f32 %v8390, %v8314
        %v8423 = vadd.f32 %v8391, %v8319
        %v8424 = vadd.f32 %v8392, %v8322
        %v8425 = vadd.f32 %v8393, %v8327
        %v8426 = vadd.f32 %v8394, %v8330
        %v8427 = vadd.f32 %v8395, %v8335
        %v8428 = vadd.f32 %v8396, %v8338
        %v8429 = vadd.f32 %v8397, %v8343
        %v8430 = vadd.f32 %v8398, %v8346
        %v8431 = vadd.f32 %v8399, %v8351
        %v8432 = vadd.f32 %v8400, %v8354
        %v8433 = vadd.f32 %v8401, %v8359
        %v8434 = vadd.f32 %v8402, %v8362
        %v8435 = vadd.f32 %v8403, %v8367
        %v8436 = vadd.f32 %v8404, %v8370
        %8437 = vst [vmem:[#allocation3] sm:$0xff] %v8405
        %8438 = vst [vmem:[#allocation3 + $0x8] sm:$0xff] %v8406
        %8439 = vst [vmem:[#allocation3 + $0x10] sm:$0xff] %v8407
        %8440 = vst [vmem:[#allocation3 + $0x18] sm:$0xff] %v8408
        %8441 = vst [vmem:[#allocation3 + $0x20] sm:$0xff] %v8409
        %8442 = vst [vmem:[#allocation3 + $0x28] sm:$0xff] %v8410
        %8443 = vst [vmem:[#allocation3 + $0x30] sm:$0xff] %v8411
        %8444 = vst [vmem:[#allocation3 + $0x38] sm:$0xff] %v8412
        %8445 = vst [vmem:[#allocation3 + $0x40] sm:$0xff] %v8413
        %8446 = vst [vmem:[#allocation3 + $0x48] sm:$0xff] %v8414
        %8447 = vst [vmem:[#allocation3 + $0x50] sm:$0xff] %v8415
        %8448 = vst [vmem:[#allocation3 + $0x58] sm:$0xff] %v8416
        %8449 = vst [vmem:[#allocation3 + $0x60] sm:$0xff] %v8417
        %8450 = vst [vmem:[#allocation3 + $0x68] sm:$0xff] %v8418
        %8451 = vst [vmem:[#allocation3 + $0x70] sm:$0xff] %v8419
        %8452 = vst [vmem:[#allocation3 + $0x78] sm:$0xff] %v8420
        %8453 = vst [vmem:[#allocation3 + $0x80] sm:$0xff] %v8421
        %8454 = vst [vmem:[#allocation3 + $0x88] sm:$0xff] %v8422
        %8455 = vst [vmem:[#allocation3 + $0x90] sm:$0xff] %v8423
        %8456 = vst [vmem:[#allocation3 + $0x98] sm:$0xff] %v8424
        %8457 = vst [vmem:[#allocation3 + $0xa0] sm:$0xff] %v8425
        %8458 = vst [vmem:[#allocation3 + $0xa8] sm:$0xff] %v8426
        %8459 = vst [vmem:[#allocation3 + $0xb0] sm:$0xff] %v8427
        %8460 = vst [vmem:[#allocation3 + $0xb8] sm:$0xff] %v8428
        %8461 = vst [vmem:[#allocation3 + $0xc0] sm:$0xff] %v8429
        %8462 = vst [vmem:[#allocation3 + $0xc8] sm:$0xff] %v8430
        %8463 = vst [vmem:[#allocation3 + $0xd0] sm:$0xff] %v8431
        %8464 = vst [vmem:[#allocation3 + $0xd8] sm:$0xff] %v8432
        %8465 = vst [vmem:[#allocation3 + $0xe0] sm:$0xff] %v8433
        %8466 = vst [vmem:[#allocation3 + $0xe8] sm:$0xff] %v8434
        %8467 = vst [vmem:[#allocation3 + $0xf0] sm:$0xff] %v8435
        %8468 = vst [vmem:[#allocation3 + $0xf8] sm:$0xff] %v8436
        %v8469 = vld [vmem:[%s8098 + $0x1] sm:$0xff]
        %v8470 = vld [vmem:[%s8098 + $0x9] sm:$0xff]
        %v8471 = vld [vmem:[%s8098 + $0x19] sm:$0xff]
        %v8472 = vld [vmem:[%s8098 + $0x21] sm:$0xff]
        %v8473 = vld [vmem:[%s8098 + $0x31] sm:$0xff]
        %v8474 = vld [vmem:[%s8098 + $0x39] sm:$0xff]
        %v8475 = vld [vmem:[%s8098 + $0x49] sm:$0xff]
        %v8476 = vld [vmem:[%s8098 + $0x51] sm:$0xff]
        %v8477 = vld [vmem:[%s8098 + $0x61] sm:$0xff]
        %v8478 = vld [vmem:[%s8098 + $0x69] sm:$0xff]
        %v8479 = vld [vmem:[%s8098 + $0x79] sm:$0xff]
        %v8480 = vld [vmem:[%s8098 + $0x81] sm:$0xff]
        %v8481 = vld [vmem:[%s8098 + $0x91] sm:$0xff]
        %v8482 = vld [vmem:[%s8098 + $0x99] sm:$0xff]
        %v8483 = vld [vmem:[%s8098 + $0xa9] sm:$0xff]
        %v8484 = vld [vmem:[%s8098 + $0xb1] sm:$0xff]
        %v8485 = vld [vmem:[%s8098 + $0xc1] sm:$0xff]
        %v8486 = vld [vmem:[%s8098 + $0xc9] sm:$0xff]
        %v8487 = vld [vmem:[%s8098 + $0xd9] sm:$0xff]
        %v8488 = vld [vmem:[%s8098 + $0xe1] sm:$0xff]
        %v8489 = vld [vmem:[%s8098 + $0xf1] sm:$0xff]
        %v8490 = vld [vmem:[%s8098 + $0xf9] sm:$0xff]
        %v8491 = vld [vmem:[%s8098 + $0x109] sm:$0xff]
        %v8492 = vld [vmem:[%s8098 + $0x111] sm:$0xff]
        %v8493 = vld [vmem:[%s8098 + $0x121] sm:$0xff]
        %v8494 = vld [vmem:[%s8098 + $0x129] sm:$0xff]
        %v8495 = vld [vmem:[%s8098 + $0x139] sm:$0xff]
        %v8496 = vld [vmem:[%s8098 + $0x141] sm:$0xff]
        %v8497 = vld [vmem:[%s8098 + $0x151] sm:$0xff]
        %v8498 = vld [vmem:[%s8098 + $0x159] sm:$0xff]
        %v8499 = vld [vmem:[%s8098 + $0x169] sm:$0xff]
        %v8500 = vld [vmem:[%s8098 + $0x171] sm:$0xff]
        %v8501 = vpack.c.bf16 %v8470, %v8469
        %v8502 = vpack.c.bf16 %v8472, %v8471
        %v8503 = vpack.c.bf16 %v8474, %v8473
        %v8504 = vpack.c.bf16 %v8476, %v8475
        %v8505 = vpack.c.bf16 %v8478, %v8477
        %v8506 = vpack.c.bf16 %v8480, %v8479
        %v8507 = vpack.c.bf16 %v8482, %v8481
        %v8508 = vpack.c.bf16 %v8484, %v8483
        %v8509 = vpack.c.bf16 %v8486, %v8485
        %v8510 = vpack.c.bf16 %v8488, %v8487
        %v8511 = vpack.c.bf16 %v8490, %v8489
        %v8512 = vpack.c.bf16 %v8492, %v8491
        %v8513 = vpack.c.bf16 %v8494, %v8493
        %v8514 = vpack.c.bf16 %v8496, %v8495
        %v8515 = vpack.c.bf16 %v8498, %v8497
        %v8516 = vpack.c.bf16 %v8500, %v8499
        %s8517 = scalar_lea.vmem %s3, 448
        %v8518 = vld [vmem:[%s8517] sm:$0xf]
        %v8519 = vld [vmem:[%s8517 + $0x4] sm:$0xf]
        %v8520 = vld [vmem:[%s8517 + $0x8] sm:$0xf]
        %v8521 = vld [vmem:[%s8517 + $0xc] sm:$0xf]
        %v8522 = vld [vmem:[%s8517 + $0x10] sm:$0xf]
        %v8523 = vld [vmem:[%s8517 + $0x14] sm:$0xf]
        %v8524 = vld [vmem:[%s8517 + $0x18] sm:$0xf]
        %v8525 = vld [vmem:[%s8517 + $0x1c] sm:$0xf]
        %v8526 = vld [vmem:[%s8517 + $0x20] sm:$0xf]
        %v8527 = vld [vmem:[%s8517 + $0x24] sm:$0xf]
        %v8528 = vld [vmem:[%s8517 + $0x28] sm:$0xf]
        %v8529 = vld [vmem:[%s8517 + $0x2c] sm:$0xf]
        %v8530 = vld [vmem:[%s8517 + $0x30] sm:$0xf]
        %v8531 = vld [vmem:[%s8517 + $0x34] sm:$0xf]
        %v8532 = vld [vmem:[%s8517 + $0x38] sm:$0xf]
        %v8533 = vld [vmem:[%s8517 + $0x3c] sm:$0xf]
        %v8550 = vunpack.c.l.b16 %v8518
        %v8551 = vunpack.c.l.b16 %v8519
        %v8552 = vunpack.c.l.b16 %v8520
        %v8553 = vunpack.c.l.b16 %v8521
        %v8554 = vunpack.c.l.b16 %v8522
        %v8555 = vunpack.c.l.b16 %v8523
        %v8556 = vunpack.c.l.b16 %v8524
        %v8557 = vunpack.c.l.b16 %v8525
        %v8558 = vunpack.c.l.b16 %v8526
        %v8559 = vunpack.c.l.b16 %v8527
        %v8560 = vunpack.c.l.b16 %v8528
        %v8561 = vunpack.c.l.b16 %v8529
        %v8562 = vunpack.c.l.b16 %v8530
        %v8563 = vunpack.c.l.b16 %v8531
        %v8564 = vunpack.c.l.b16 %v8532
        %v8565 = vunpack.c.l.b16 %v8533
        %v8566 = vpack.c.b16 %v8551, %v8550
        %v8567 = vpack.c.b16 %v8553, %v8552
        %v8568 = vpack.c.b16 %v8555, %v8554
        %v8569 = vpack.c.b16 %v8557, %v8556
        %v8570 = vpack.c.b16 %v8559, %v8558
        %v8571 = vpack.c.b16 %v8561, %v8560
        %v8572 = vpack.c.b16 %v8563, %v8562
        %v8573 = vpack.c.b16 %v8565, %v8564
        %8582 = vmatprep.subr.bf16.mxu0 0
        %8583 = vmatpush1.bf16.msra.mxu0 %v8566
        %8584 = vmatprep.subr.bf16.mxu0 0
        %8585 = vmatpush1.bf16.msra.mxu0 %v8567
        %8586 = vmatprep.subr.bf16.mxu0 0
        %8587 = vmatpush1.bf16.msra.mxu0 %v8568
        %8588 = vmatprep.subr.bf16.mxu0 0
        %8589 = vmatpush1.bf16.msra.mxu0 %v8569
        %8590 = vmatprep.subr.bf16.mxu0 0
        %8591 = vmatpush1.bf16.msra.mxu0 %v8570
        %8592 = vmatprep.subr.bf16.mxu0 0
        %8593 = vmatpush1.bf16.msra.mxu0 %v8571
        %8594 = vmatprep.subr.bf16.mxu0 0
        %8595 = vmatpush1.bf16.msra.mxu0 %v8572
        %8596 = vmatprep.subr.bf16.mxu0 0
        %8597 = vmatpush1.bf16.msra.mxu0 %v8573
        %8598 = vmatprep.subr.bf16.mxu0 0
        %8599 = vmatpush1.bf16.msra.mxu0 0
        %8600 = vmatprep.subr.bf16.mxu0 0
        %8601 = vmatpush1.bf16.msra.mxu0 0
        %8602 = vmatprep.subr.bf16.mxu0 0
        %8603 = vmatpush1.bf16.msra.mxu0 0
        %8604 = vmatprep.subr.bf16.mxu0 0
        %8605 = vmatpush1.bf16.msra.mxu0 0
        %8606 = vmatprep.subr.bf16.mxu0 0
        %8607 = vmatpush1.bf16.msra.mxu0 0
        %8608 = vmatprep.subr.bf16.mxu0 0
        %8609 = vmatpush1.bf16.msra.mxu0 0
        %8610 = vmatprep.subr.bf16.mxu0 0
        %8611 = vmatpush1.bf16.msra.mxu0 0
        %8612 = vmatprep.subr.bf16.mxu0 0
        %8613 = vmatpush1.bf16.msra.mxu0 0
        %8614 = vmatprep.mubr.bf16.mxu0 0
        %8615 = vmatmul.mubr.bf16.gmra.mrb[0].mxu0 %v8501
        %v8616 = vpop.f32.mrb[0].mxu0
        %v8617 = vadd.f32 0.0, %v8616
        %v8618 = vpop.f32.mrb[0].mxu0
        %v8619 = vpop.f32.mrb[0].mxu0
        %v8620 = vadd.f32 0.0, %v8619
        %v8621 = vpop.f32.mrb[0].mxu0
        %8622 = vmatprep.mubr.bf16.mxu0 0
        %8623 = vmatmul.mubr.bf16.gmra.mrb[0].mxu0 %v8502
        %v8624 = vpop.f32.mrb[0].mxu0
        %v8625 = vadd.f32 0.0, %v8624
        %v8626 = vpop.f32.mrb[0].mxu0
        %v8627 = vpop.f32.mrb[0].mxu0
        %v8628 = vadd.f32 0.0, %v8627
        %v8629 = vpop.f32.mrb[0].mxu0
        %8630 = vmatprep.mubr.bf16.mxu0 0
        %8631 = vmatmul.mubr.bf16.gmra.mrb[0].mxu0 %v8503
        %v8632 = vpop.f32.mrb[0].mxu0
        %v8633 = vadd.f32 0.0, %v8632
        %v8634 = vpop.f32.mrb[0].mxu0
        %v8635 = vpop.f32.mrb[0].mxu0
        %v8636 = vadd.f32 0.0, %v8635
        %v8637 = vpop.f32.mrb[0].mxu0
        %8638 = vmatprep.mubr.bf16.mxu0 0
        %8639 = vmatmul.mubr.bf16.gmra.mrb[0].mxu0 %v8504
        %v8640 = vpop.f32.mrb[0].mxu0
        %v8641 = vadd.f32 0.0, %v8640
        %v8642 = vpop.f32.mrb[0].mxu0
        %v8643 = vpop.f32.mrb[0].mxu0
        %v8644 = vadd.f32 0.0, %v8643
        %v8645 = vpop.f32.mrb[0].mxu0
        %8646 = vmatprep.mubr.bf16.mxu0 0
        %8647 = vmatmul.mubr.bf16.gmra.mrb[0].mxu0 %v8505
        %v8648 = vpop.f32.mrb[0].mxu0
        %v8649 = vadd.f32 0.0, %v8648
        %v8650 = vpop.f32.mrb[0].mxu0
        %v8651 = vpop.f32.mrb[0].mxu0
        %v8652 = vadd.f32 0.0, %v8651
        %v8653 = vpop.f32.mrb[0].mxu0
        %8654 = vmatprep.mubr.bf16.mxu0 0
        %8655 = vmatmul.mubr.bf16.gmra.mrb[0].mxu0 %v8506
        %v8656 = vpop.f32.mrb[0].mxu0
        %v8657 = vadd.f32 0.0, %v8656
        %v8658 = vpop.f32.mrb[0].mxu0
        %v8659 = vpop.f32.mrb[0].mxu0
        %v8660 = vadd.f32 0.0, %v8659
        %v8661 = vpop.f32.mrb[0].mxu0
        %8662 = vmatprep.mubr.bf16.mxu0 0
        %8663 = vmatmul.mubr.bf16.gmra.mrb[0].mxu0 %v8507
        %v8664 = vpop.f32.mrb[0].mxu0
        %v8665 = vadd.f32 0.0, %v8664
        %v8666 = vpop.f32.mrb[0].mxu0
        %v8667 = vpop.f32.mrb[0].mxu0
        %v8668 = vadd.f32 0.0, %v8667
        %v8669 = vpop.f32.mrb[0].mxu0
        %8670 = vmatprep.mubr.bf16.mxu0 0
        %8671 = vmatmul.mubr.bf16.gmra.mrb[0].mxu0 %v8508
        %v8672 = vpop.f32.mrb[0].mxu0
        %v8673 = vadd.f32 0.0, %v8672
        %v8674 = vpop.f32.mrb[0].mxu0
        %v8675 = vpop.f32.mrb[0].mxu0
        %v8676 = vadd.f32 0.0, %v8675
        %v8677 = vpop.f32.mrb[0].mxu0
        %8678 = vmatprep.mubr.bf16.mxu0 0
        %8679 = vmatmul.mubr.bf16.gmra.mrb[0].mxu0 %v8509
        %v8680 = vpop.f32.mrb[0].mxu0
        %v8681 = vadd.f32 0.0, %v8680
        %v8682 = vpop.f32.mrb[0].mxu0
        %v8683 = vpop.f32.mrb[0].mxu0
        %v8684 = vadd.f32 0.0, %v8683
        %v8685 = vpop.f32.mrb[0].mxu0
        %8686 = vmatprep.mubr.bf16.mxu0 0
        %8687 = vmatmul.mubr.bf16.gmra.mrb[0].mxu0 %v8510
        %v8688 = vpop.f32.mrb[0].mxu0
        %v8689 = vadd.f32 0.0, %v8688
        %v8690 = vpop.f32.mrb[0].mxu0
        %v8691 = vpop.f32.mrb[0].mxu0
        %v8692 = vadd.f32 0.0, %v8691
        %v8693 = vpop.f32.mrb[0].mxu0
        %8694 = vmatprep.mubr.bf16.mxu0 0
        %8695 = vmatmul.mubr.bf16.gmra.mrb[0].mxu0 %v8511
        %v8696 = vpop.f32.mrb[0].mxu0
        %v8697 = vadd.f32 0.0, %v8696
        %v8698 = vpop.f32.mrb[0].mxu0
        %v8699 = vpop.f32.mrb[0].mxu0
        %v8700 = vadd.f32 0.0, %v8699
        %v8701 = vpop.f32.mrb[0].mxu0
        %8702 = vmatprep.mubr.bf16.mxu0 0
        %8703 = vmatmul.mubr.bf16.gmra.mrb[0].mxu0 %v8512
        %v8704 = vpop.f32.mrb[0].mxu0
        %v8705 = vadd.f32 0.0, %v8704
        %v8706 = vpop.f32.mrb[0].mxu0
        %v8707 = vpop.f32.mrb[0].mxu0
        %v8708 = vadd.f32 0.0, %v8707
        %v8709 = vpop.f32.mrb[0].mxu0
        %8710 = vmatprep.mubr.bf16.mxu0 0
        %8711 = vmatmul.mubr.bf16.gmra.mrb[0].mxu0 %v8513
        %v8712 = vpop.f32.mrb[0].mxu0
        %v8713 = vadd.f32 0.0, %v8712
        %v8714 = vpop.f32.mrb[0].mxu0
        %v8715 = vpop.f32.mrb[0].mxu0
        %v8716 = vadd.f32 0.0, %v8715
        %v8717 = vpop.f32.mrb[0].mxu0
        %8718 = vmatprep.mubr.bf16.mxu0 0
        %8719 = vmatmul.mubr.bf16.gmra.mrb[0].mxu0 %v8514
        %v8720 = vpop.f32.mrb[0].mxu0
        %v8721 = vadd.f32 0.0, %v8720
        %v8722 = vpop.f32.mrb[0].mxu0
        %v8723 = vpop.f32.mrb[0].mxu0
        %v8724 = vadd.f32 0.0, %v8723
        %v8725 = vpop.f32.mrb[0].mxu0
        %8726 = vmatprep.mubr.bf16.mxu0 0
        %8727 = vmatmul.mubr.bf16.gmra.mrb[0].mxu0 %v8515
        %v8728 = vpop.f32.mrb[0].mxu0
        %v8729 = vadd.f32 0.0, %v8728
        %v8730 = vpop.f32.mrb[0].mxu0
        %v8731 = vpop.f32.mrb[0].mxu0
        %v8732 = vadd.f32 0.0, %v8731
        %v8733 = vpop.f32.mrb[0].mxu0
        %8734 = vmatprep.mubr.bf16.mxu0 0
        %8735 = vmatmul.mubr.bf16.gmra.mrb[0].mxu0 %v8516
        %v8736 = vpop.f32.mrb[0].mxu0
        %v8737 = vadd.f32 0.0, %v8736
        %v8738 = vpop.f32.mrb[0].mxu0
        %v8739 = vpop.f32.mrb[0].mxu0
        %v8740 = vadd.f32 0.0, %v8739
        %v8741 = vpop.f32.mrb[0].mxu0
        %8742 = vdwg.mxu0
        %v8743 = vld [vmem:[#allocation3] sm:$0xff]
        %v8744 = vld [vmem:[#allocation3 + $0x8] sm:$0xff]
        %v8745 = vld [vmem:[#allocation3 + $0x10] sm:$0xff]
        %v8746 = vld [vmem:[#allocation3 + $0x18] sm:$0xff]
        %v8747 = vld [vmem:[#allocation3 + $0x20] sm:$0xff]
        %v8748 = vld [vmem:[#allocation3 + $0x28] sm:$0xff]
        %v8749 = vld [vmem:[#allocation3 + $0x30] sm:$0xff]
        %v8750 = vld [vmem:[#allocation3 + $0x38] sm:$0xff]
        %v8751 = vld [vmem:[#allocation3 + $0x40] sm:$0xff]
        %v8752 = vld [vmem:[#allocation3 + $0x48] sm:$0xff]
        %v8753 = vld [vmem:[#allocation3 + $0x50] sm:$0xff]
        %v8754 = vld [vmem:[#allocation3 + $0x58] sm:$0xff]
        %v8755 = vld [vmem:[#allocation3 + $0x60] sm:$0xff]
        %v8756 = vld [vmem:[#allocation3 + $0x68] sm:$0xff]
        %v8757 = vld [vmem:[#allocation3 + $0x70] sm:$0xff]
        %v8758 = vld [vmem:[#allocation3 + $0x78] sm:$0xff]
        %v8759 = vld [vmem:[#allocation3 + $0x80] sm:$0xff]
        %v8760 = vld [vmem:[#allocation3 + $0x88] sm:$0xff]
        %v8761 = vld [vmem:[#allocation3 + $0x90] sm:$0xff]
        %v8762 = vld [vmem:[#allocation3 + $0x98] sm:$0xff]
        %v8763 = vld [vmem:[#allocation3 + $0xa0] sm:$0xff]
        %v8764 = vld [vmem:[#allocation3 + $0xa8] sm:$0xff]
        %v8765 = vld [vmem:[#allocation3 + $0xb0] sm:$0xff]
        %v8766 = vld [vmem:[#allocation3 + $0xb8] sm:$0xff]
        %v8767 = vld [vmem:[#allocation3 + $0xc0] sm:$0xff]
        %v8768 = vld [vmem:[#allocation3 + $0xc8] sm:$0xff]
        %v8769 = vld [vmem:[#allocation3 + $0xd0] sm:$0xff]
        %v8770 = vld [vmem:[#allocation3 + $0xd8] sm:$0xff]
        %v8771 = vld [vmem:[#allocation3 + $0xe0] sm:$0xff]
        %v8772 = vld [vmem:[#allocation3 + $0xe8] sm:$0xff]
        %v8773 = vld [vmem:[#allocation3 + $0xf0] sm:$0xff]
        %v8774 = vld [vmem:[#allocation3 + $0xf8] sm:$0xff]
        %v8775 = vadd.f32 %v8743, %v8617
        %v8776 = vadd.f32 %v8744, %v8620
        %v8777 = vadd.f32 %v8745, %v8625
        %v8778 = vadd.f32 %v8746, %v8628
        %v8779 = vadd.f32 %v8747, %v8633
        %v8780 = vadd.f32 %v8748, %v8636
        %v8781 = vadd.f32 %v8749, %v8641
        %v8782 = vadd.f32 %v8750, %v8644
        %v8783 = vadd.f32 %v8751, %v8649
        %v8784 = vadd.f32 %v8752, %v8652
        %v8785 = vadd.f32 %v8753, %v8657
        %v8786 = vadd.f32 %v8754, %v8660
        %v8787 = vadd.f32 %v8755, %v8665
        %v8788 = vadd.f32 %v8756, %v8668
        %v8789 = vadd.f32 %v8757, %v8673
        %v8790 = vadd.f32 %v8758, %v8676
        %v8791 = vadd.f32 %v8759, %v8681
        %v8792 = vadd.f32 %v8760, %v8684
        %v8793 = vadd.f32 %v8761, %v8689
        %v8794 = vadd.f32 %v8762, %v8692
        %v8795 = vadd.f32 %v8763, %v8697
        %v8796 = vadd.f32 %v8764, %v8700
        %v8797 = vadd.f32 %v8765, %v8705
        %v8798 = vadd.f32 %v8766, %v8708
        %v8799 = vadd.f32 %v8767, %v8713
        %v8800 = vadd.f32 %v8768, %v8716
        %v8801 = vadd.f32 %v8769, %v8721
        %v8802 = vadd.f32 %v8770, %v8724
        %v8803 = vadd.f32 %v8771, %v8729
        %v8804 = vadd.f32 %v8772, %v8732
        %v8805 = vadd.f32 %v8773, %v8737
        %v8806 = vadd.f32 %v8774, %v8740
        %8807 = vst [vmem:[#allocation3] sm:$0xff] %v8775
        %8808 = vst [vmem:[#allocation3 + $0x8] sm:$0xff] %v8776
        %8809 = vst [vmem:[#allocation3 + $0x10] sm:$0xff] %v8777
        %8810 = vst [vmem:[#allocation3 + $0x18] sm:$0xff] %v8778
        %8811 = vst [vmem:[#allocation3 + $0x20] sm:$0xff] %v8779
        %8812 = vst [vmem:[#allocation3 + $0x28] sm:$0xff] %v8780
        %8813 = vst [vmem:[#allocation3 + $0x30] sm:$0xff] %v8781
        %8814 = vst [vmem:[#allocation3 + $0x38] sm:$0xff] %v8782
        %8815 = vst [vmem:[#allocation3 + $0x40] sm:$0xff] %v8783
        %8816 = vst [vmem:[#allocation3 + $0x48] sm:$0xff] %v8784
        %8817 = vst [vmem:[#allocation3 + $0x50] sm:$0xff] %v8785
        %8818 = vst [vmem:[#allocation3 + $0x58] sm:$0xff] %v8786
        %8819 = vst [vmem:[#allocation3 + $0x60] sm:$0xff] %v8787
        %8820 = vst [vmem:[#allocation3 + $0x68] sm:$0xff] %v8788
        %8821 = vst [vmem:[#allocation3 + $0x70] sm:$0xff] %v8789
        %8822 = vst [vmem:[#allocation3 + $0x78] sm:$0xff] %v8790
        %8823 = vst [vmem:[#allocation3 + $0x80] sm:$0xff] %v8791
        %8824 = vst [vmem:[#allocation3 + $0x88] sm:$0xff] %v8792
        %8825 = vst [vmem:[#allocation3 + $0x90] sm:$0xff] %v8793
        %8826 = vst [vmem:[#allocation3 + $0x98] sm:$0xff] %v8794
        %8827 = vst [vmem:[#allocation3 + $0xa0] sm:$0xff] %v8795
        %8828 = vst [vmem:[#allocation3 + $0xa8] sm:$0xff] %v8796
        %8829 = vst [vmem:[#allocation3 + $0xb0] sm:$0xff] %v8797
        %8830 = vst [vmem:[#allocation3 + $0xb8] sm:$0xff] %v8798
        %8831 = vst [vmem:[#allocation3 + $0xc0] sm:$0xff] %v8799
        %8832 = vst [vmem:[#allocation3 + $0xc8] sm:$0xff] %v8800
        %8833 = vst [vmem:[#allocation3 + $0xd0] sm:$0xff] %v8801
        %8834 = vst [vmem:[#allocation3 + $0xd8] sm:$0xff] %v8802
        %8835 = vst [vmem:[#allocation3 + $0xe0] sm:$0xff] %v8803
        %8836 = vst [vmem:[#allocation3 + $0xe8] sm:$0xff] %v8804
        %8837 = vst [vmem:[#allocation3 + $0xf0] sm:$0xff] %v8805
        %8838 = vst [vmem:[#allocation3 + $0xf8] sm:$0xff] %v8806
        %v8839 = vld [vmem:[%s8098 + $0x2] sm:$0xff]
        %v8840 = vld [vmem:[%s8098 + $0xa] sm:$0xff]
        %v8841 = vld [vmem:[%s8098 + $0x1a] sm:$0xff]
        %v8842 = vld [vmem:[%s8098 + $0x22] sm:$0xff]
        %v8843 = vld [vmem:[%s8098 + $0x32] sm:$0xff]
        %v8844 = vld [vmem:[%s8098 + $0x3a] sm:$0xff]
        %v8845 = vld [vmem:[%s8098 + $0x4a] sm:$0xff]
        %v8846 = vld [vmem:[%s8098 + $0x52] sm:$0xff]
        %v8847 = vld [vmem:[%s8098 + $0x62] sm:$0xff]
        %v8848 = vld [vmem:[%s8098 + $0x6a] sm:$0xff]
        %v8849 = vld [vmem:[%s8098 + $0x7a] sm:$0xff]
        %v8850 = vld [vmem:[%s8098 + $0x82] sm:$0xff]
        %v8851 = vld [vmem:[%s8098 + $0x92] sm:$0xff]
        %v8852 = vld [vmem:[%s8098 + $0x9a] sm:$0xff]
        %v8853 = vld [vmem:[%s8098 + $0xaa] sm:$0xff]
        %v8854 = vld [vmem:[%s8098 + $0xb2] sm:$0xff]
        %v8855 = vld [vmem:[%s8098 + $0xc2] sm:$0xff]
        %v8856 = vld [vmem:[%s8098 + $0xca] sm:$0xff]
        %v8857 = vld [vmem:[%s8098 + $0xda] sm:$0xff]
        %v8858 = vld [vmem:[%s8098 + $0xe2] sm:$0xff]
        %v8859 = vld [vmem:[%s8098 + $0xf2] sm:$0xff]
        %v8860 = vld [vmem:[%s8098 + $0xfa] sm:$0xff]
        %v8861 = vld [vmem:[%s8098 + $0x10a] sm:$0xff]
        %v8862 = vld [vmem:[%s8098 + $0x112] sm:$0xff]
        %v8863 = vld [vmem:[%s8098 + $0x122] sm:$0xff]
        %v8864 = vld [vmem:[%s8098 + $0x12a] sm:$0xff]
        %v8865 = vld [vmem:[%s8098 + $0x13a] sm:$0xff]
        %v8866 = vld [vmem:[%s8098 + $0x142] sm:$0xff]
        %v8867 = vld [vmem:[%s8098 + $0x152] sm:$0xff]
        %v8868 = vld [vmem:[%s8098 + $0x15a] sm:$0xff]
        %v8869 = vld [vmem:[%s8098 + $0x16a] sm:$0xff]
        %v8870 = vld [vmem:[%s8098 + $0x172] sm:$0xff]
        %v8871 = vpack.c.bf16 %v8840, %v8839
        %v8872 = vpack.c.bf16 %v8842, %v8841
        %v8873 = vpack.c.bf16 %v8844, %v8843
        %v8874 = vpack.c.bf16 %v8846, %v8845
        %v8875 = vpack.c.bf16 %v8848, %v8847
        %v8876 = vpack.c.bf16 %v8850, %v8849
        %v8877 = vpack.c.bf16 %v8852, %v8851
        %v8878 = vpack.c.bf16 %v8854, %v8853
        %v8879 = vpack.c.bf16 %v8856, %v8855
        %v8880 = vpack.c.bf16 %v8858, %v8857
        %v8881 = vpack.c.bf16 %v8860, %v8859
        %v8882 = vpack.c.bf16 %v8862, %v8861
        %v8883 = vpack.c.bf16 %v8864, %v8863
        %v8884 = vpack.c.bf16 %v8866, %v8865
        %v8885 = vpack.c.bf16 %v8868, %v8867
        %v8886 = vpack.c.bf16 %v8870, %v8869
        %s8887 = scalar_lea.vmem %s3, 512
        %v8888 = vld [vmem:[%s8887] sm:$0xf]
        %v8889 = vld [vmem:[%s8887 + $0x4] sm:$0xf]
        %v8890 = vld [vmem:[%s8887 + $0x8] sm:$0xf]
        %v8891 = vld [vmem:[%s8887 + $0xc] sm:$0xf]
        %v8892 = vld [vmem:[%s8887 + $0x10] sm:$0xf]
        %v8893 = vld [vmem:[%s8887 + $0x14] sm:$0xf]
        %v8894 = vld [vmem:[%s8887 + $0x18] sm:$0xf]
        %v8895 = vld [vmem:[%s8887 + $0x1c] sm:$0xf]
        %v8896 = vld [vmem:[%s8887 + $0x20] sm:$0xf]
        %v8897 = vld [vmem:[%s8887 + $0x24] sm:$0xf]
        %v8898 = vld [vmem:[%s8887 + $0x28] sm:$0xf]
        %v8899 = vld [vmem:[%s8887 + $0x2c] sm:$0xf]
        %v8900 = vld [vmem:[%s8887 + $0x30] sm:$0xf]
        %v8901 = vld [vmem:[%s8887 + $0x34] sm:$0xf]
        %v8902 = vld [vmem:[%s8887 + $0x38] sm:$0xf]
        %v8903 = vld [vmem:[%s8887 + $0x3c] sm:$0xf]
        %v8920 = vunpack.c.l.b16 %v8888
        %v8921 = vunpack.c.l.b16 %v8889
        %v8922 = vunpack.c.l.b16 %v8890
        %v8923 = vunpack.c.l.b16 %v8891
        %v8924 = vunpack.c.l.b16 %v8892
        %v8925 = vunpack.c.l.b16 %v8893
        %v8926 = vunpack.c.l.b16 %v8894
        %v8927 = vunpack.c.l.b16 %v8895
        %v8928 = vunpack.c.l.b16 %v8896
        %v8929 = vunpack.c.l.b16 %v8897
        %v8930 = vunpack.c.l.b16 %v8898
        %v8931 = vunpack.c.l.b16 %v8899
        %v8932 = vunpack.c.l.b16 %v8900
        %v8933 = vunpack.c.l.b16 %v8901
        %v8934 = vunpack.c.l.b16 %v8902
        %v8935 = vunpack.c.l.b16 %v8903
        %v8936 = vpack.c.b16 %v8921, %v8920
        %v8937 = vpack.c.b16 %v8923, %v8922
        %v8938 = vpack.c.b16 %v8925, %v8924
        %v8939 = vpack.c.b16 %v8927, %v8926
        %v8940 = vpack.c.b16 %v8929, %v8928
        %v8941 = vpack.c.b16 %v8931, %v8930
        %v8942 = vpack.c.b16 %v8933, %v8932
        %v8943 = vpack.c.b16 %v8935, %v8934
        %8952 = vmatprep.subr.bf16.mxu0 0
        %8953 = vmatpush1.bf16.msra.mxu0 %v8936
        %8954 = vmatprep.subr.bf16.mxu0 0
        %8955 = vmatpush1.bf16.msra.mxu0 %v8937
        %8956 = vmatprep.subr.bf16.mxu0 0
        %8957 = vmatpush1.bf16.msra.mxu0 %v8938
        %8958 = vmatprep.subr.bf16.mxu0 0
        %8959 = vmatpush1.bf16.msra.mxu0 %v8939
        %8960 = vmatprep.subr.bf16.mxu0 0
        %8961 = vmatpush1.bf16.msra.mxu0 %v8940
        %8962 = vmatprep.subr.bf16.mxu0 0
        %8963 = vmatpush1.bf16.msra.mxu0 %v8941
        %8964 = vmatprep.subr.bf16.mxu0 0
        %8965 = vmatpush1.bf16.msra.mxu0 %v8942
        %8966 = vmatprep.subr.bf16.mxu0 0
        %8967 = vmatpush1.bf16.msra.mxu0 %v8943
        %8968 = vmatprep.subr.bf16.mxu0 0
        %8969 = vmatpush1.bf16.msra.mxu0 0
        %8970 = vmatprep.subr.bf16.mxu0 0
        %8971 = vmatpush1.bf16.msra.mxu0 0
        %8972 = vmatprep.subr.bf16.mxu0 0
        %8973 = vmatpush1.bf16.msra.mxu0 0
        %8974 = vmatprep.subr.bf16.mxu0 0
        %8975 = vmatpush1.bf16.msra.mxu0 0
        %8976 = vmatprep.subr.bf16.mxu0 0
        %8977 = vmatpush1.bf16.msra.mxu0 0
        %8978 = vmatprep.subr.bf16.mxu0 0
        %8979 = vmatpush1.bf16.msra.mxu0 0
        %8980 = vmatprep.subr.bf16.mxu0 0
        %8981 = vmatpush1.bf16.msra.mxu0 0
        %8982 = vmatprep.subr.bf16.mxu0 0
        %8983 = vmatpush1.bf16.msra.mxu0 0
        %8984 = vmatprep.mubr.bf16.mxu0 0
        %8985 = vmatmul.mubr.bf16.gmra.mrb[0].mxu0 %v8871
        %v8986 = vpop.f32.mrb[0].mxu0
        %v8987 = vadd.f32 0.0, %v8986
        %v8988 = vpop.f32.mrb[0].mxu0
        %v8989 = vpop.f32.mrb[0].mxu0
        %v8990 = vadd.f32 0.0, %v8989
        %v8991 = vpop.f32.mrb[0].mxu0
        %8992 = vmatprep.mubr.bf16.mxu0 0
        %8993 = vmatmul.mubr.bf16.gmra.mrb[0].mxu0 %v8872
        %v8994 = vpop.f32.mrb[0].mxu0
        %v8995 = vadd.f32 0.0, %v8994
        %v8996 = vpop.f32.mrb[0].mxu0
        %v8997 = vpop.f32.mrb[0].mxu0
        %v8998 = vadd.f32 0.0, %v8997
        %v8999 = vpop.f32.mrb[0].mxu0
        %9000 = vmatprep.mubr.bf16.mxu0 0
        %9001 = vmatmul.mubr.bf16.gmra.mrb[0].mxu0 %v8873
        %v9002 = vpop.f32.mrb[0].mxu0
        %v9003 = vadd.f32 0.0, %v9002
        %v9004 = vpop.f32.mrb[0].mxu0
        %v9005 = vpop.f32.mrb[0].mxu0
        %v9006 = vadd.f32 0.0, %v9005
        %v9007 = vpop.f32.mrb[0].mxu0
        %9008 = vmatprep.mubr.bf16.mxu0 0
        %9009 = vmatmul.mubr.bf16.gmra.mrb[0].mxu0 %v8874
        %v9010 = vpop.f32.mrb[0].mxu0
        %v9011 = vadd.f32 0.0, %v9010
        %v9012 = vpop.f32.mrb[0].mxu0
        %v9013 = vpop.f32.mrb[0].mxu0
        %v9014 = vadd.f32 0.0, %v9013
        %v9015 = vpop.f32.mrb[0].mxu0
        %9016 = vmatprep.mubr.bf16.mxu0 0
        %9017 = vmatmul.mubr.bf16.gmra.mrb[0].mxu0 %v8875
        %v9018 = vpop.f32.mrb[0].mxu0
        %v9019 = vadd.f32 0.0, %v9018
        %v9020 = vpop.f32.mrb[0].mxu0
        %v9021 = vpop.f32.mrb[0].mxu0
        %v9022 = vadd.f32 0.0, %v9021
        %v9023 = vpop.f32.mrb[0].mxu0
        %9024 = vmatprep.mubr.bf16.mxu0 0
        %9025 = vmatmul.mubr.bf16.gmra.mrb[0].mxu0 %v8876
        %v9026 = vpop.f32.mrb[0].mxu0
        %v9027 = vadd.f32 0.0, %v9026
        %v9028 = vpop.f32.mrb[0].mxu0
        %v9029 = vpop.f32.mrb[0].mxu0
        %v9030 = vadd.f32 0.0, %v9029
        %v9031 = vpop.f32.mrb[0].mxu0
        %9032 = vmatprep.mubr.bf16.mxu0 0
        %9033 = vmatmul.mubr.bf16.gmra.mrb[0].mxu0 %v8877
        %v9034 = vpop.f32.mrb[0].mxu0
        %v9035 = vadd.f32 0.0, %v9034
        %v9036 = vpop.f32.mrb[0].mxu0
        %v9037 = vpop.f32.mrb[0].mxu0
        %v9038 = vadd.f32 0.0, %v9037
        %v9039 = vpop.f32.mrb[0].mxu0
        %9040 = vmatprep.mubr.bf16.mxu0 0
        %9041 = vmatmul.mubr.bf16.gmra.mrb[0].mxu0 %v8878
        %v9042 = vpop.f32.mrb[0].mxu0
        %v9043 = vadd.f32 0.0, %v9042
        %v9044 = vpop.f32.mrb[0].mxu0
        %v9045 = vpop.f32.mrb[0].mxu0
        %v9046 = vadd.f32 0.0, %v9045
        %v9047 = vpop.f32.mrb[0].mxu0
        %9048 = vmatprep.mubr.bf16.mxu0 0
        %9049 = vmatmul.mubr.bf16.gmra.mrb[0].mxu0 %v8879
        %v9050 = vpop.f32.mrb[0].mxu0
        %v9051 = vadd.f32 0.0, %v9050
        %v9052 = vpop.f32.mrb[0].mxu0
        %v9053 = vpop.f32.mrb[0].mxu0
        %v9054 = vadd.f32 0.0, %v9053
        %v9055 = vpop.f32.mrb[0].mxu0
        %9056 = vmatprep.mubr.bf16.mxu0 0
        %9057 = vmatmul.mubr.bf16.gmra.mrb[0].mxu0 %v8880
        %v9058 = vpop.f32.mrb[0].mxu0
        %v9059 = vadd.f32 0.0, %v9058
        %v9060 = vpop.f32.mrb[0].mxu0
        %v9061 = vpop.f32.mrb[0].mxu0
        %v9062 = vadd.f32 0.0, %v9061
        %v9063 = vpop.f32.mrb[0].mxu0
        %9064 = vmatprep.mubr.bf16.mxu0 0
        %9065 = vmatmul.mubr.bf16.gmra.mrb[0].mxu0 %v8881
        %v9066 = vpop.f32.mrb[0].mxu0
        %v9067 = vadd.f32 0.0, %v9066
        %v9068 = vpop.f32.mrb[0].mxu0
        %v9069 = vpop.f32.mrb[0].mxu0
        %v9070 = vadd.f32 0.0, %v9069
        %v9071 = vpop.f32.mrb[0].mxu0
        %9072 = vmatprep.mubr.bf16.mxu0 0
        %9073 = vmatmul.mubr.bf16.gmra.mrb[0].mxu0 %v8882
        %v9074 = vpop.f32.mrb[0].mxu0
        %v9075 = vadd.f32 0.0, %v9074
        %v9076 = vpop.f32.mrb[0].mxu0
        %v9077 = vpop.f32.mrb[0].mxu0
        %v9078 = vadd.f32 0.0, %v9077
        %v9079 = vpop.f32.mrb[0].mxu0
        %9080 = vmatprep.mubr.bf16.mxu0 0
        %9081 = vmatmul.mubr.bf16.gmra.mrb[0].mxu0 %v8883
        %v9082 = vpop.f32.mrb[0].mxu0
        %v9083 = vadd.f32 0.0, %v9082
        %v9084 = vpop.f32.mrb[0].mxu0
        %v9085 = vpop.f32.mrb[0].mxu0
        %v9086 = vadd.f32 0.0, %v9085
        %v9087 = vpop.f32.mrb[0].mxu0
        %9088 = vmatprep.mubr.bf16.mxu0 0
        %9089 = vmatmul.mubr.bf16.gmra.mrb[0].mxu0 %v8884
        %v9090 = vpop.f32.mrb[0].mxu0
        %v9091 = vadd.f32 0.0, %v9090
        %v9092 = vpop.f32.mrb[0].mxu0
        %v9093 = vpop.f32.mrb[0].mxu0
        %v9094 = vadd.f32 0.0, %v9093
        %v9095 = vpop.f32.mrb[0].mxu0
        %9096 = vmatprep.mubr.bf16.mxu0 0
        %9097 = vmatmul.mubr.bf16.gmra.mrb[0].mxu0 %v8885
        %v9098 = vpop.f32.mrb[0].mxu0
        %v9099 = vadd.f32 0.0, %v9098
        %v9100 = vpop.f32.mrb[0].mxu0
        %v9101 = vpop.f32.mrb[0].mxu0
        %v9102 = vadd.f32 0.0, %v9101
        %v9103 = vpop.f32.mrb[0].mxu0
        %9104 = vmatprep.mubr.bf16.mxu0 0
        %9105 = vmatmul.mubr.bf16.gmra.mrb[0].mxu0 %v8886
        %v9106 = vpop.f32.mrb[0].mxu0
        %v9107 = vadd.f32 0.0, %v9106
        %v9108 = vpop.f32.mrb[0].mxu0
        %v9109 = vpop.f32.mrb[0].mxu0
        %v9110 = vadd.f32 0.0, %v9109
        %v9111 = vpop.f32.mrb[0].mxu0
        %9112 = vdwg.mxu0
        %v9113 = vld [vmem:[#allocation3] sm:$0xff]
        %v9114 = vld [vmem:[#allocation3 + $0x8] sm:$0xff]
        %v9115 = vld [vmem:[#allocation3 + $0x10] sm:$0xff]
        %v9116 = vld [vmem:[#allocation3 + $0x18] sm:$0xff]
        %v9117 = vld [vmem:[#allocation3 + $0x20] sm:$0xff]
        %v9118 = vld [vmem:[#allocation3 + $0x28] sm:$0xff]
        %v9119 = vld [vmem:[#allocation3 + $0x30] sm:$0xff]
        %v9120 = vld [vmem:[#allocation3 + $0x38] sm:$0xff]
        %v9121 = vld [vmem:[#allocation3 + $0x40] sm:$0xff]
        %v9122 = vld [vmem:[#allocation3 + $0x48] sm:$0xff]
        %v9123 = vld [vmem:[#allocation3 + $0x50] sm:$0xff]
        %v9124 = vld [vmem:[#allocation3 + $0x58] sm:$0xff]
        %v9125 = vld [vmem:[#allocation3 + $0x60] sm:$0xff]
        %v9126 = vld [vmem:[#allocation3 + $0x68] sm:$0xff]
        %v9127 = vld [vmem:[#allocation3 + $0x70] sm:$0xff]
        %v9128 = vld [vmem:[#allocation3 + $0x78] sm:$0xff]
        %v9129 = vld [vmem:[#allocation3 + $0x80] sm:$0xff]
        %v9130 = vld [vmem:[#allocation3 + $0x88] sm:$0xff]
        %v9131 = vld [vmem:[#allocation3 + $0x90] sm:$0xff]
        %v9132 = vld [vmem:[#allocation3 + $0x98] sm:$0xff]
        %v9133 = vld [vmem:[#allocation3 + $0xa0] sm:$0xff]
        %v9134 = vld [vmem:[#allocation3 + $0xa8] sm:$0xff]
        %v9135 = vld [vmem:[#allocation3 + $0xb0] sm:$0xff]
        %v9136 = vld [vmem:[#allocation3 + $0xb8] sm:$0xff]
        %v9137 = vld [vmem:[#allocation3 + $0xc0] sm:$0xff]
        %v9138 = vld [vmem:[#allocation3 + $0xc8] sm:$0xff]
        %v9139 = vld [vmem:[#allocation3 + $0xd0] sm:$0xff]
        %v9140 = vld [vmem:[#allocation3 + $0xd8] sm:$0xff]
        %v9141 = vld [vmem:[#allocation3 + $0xe0] sm:$0xff]
        %v9142 = vld [vmem:[#allocation3 + $0xe8] sm:$0xff]
        %v9143 = vld [vmem:[#allocation3 + $0xf0] sm:$0xff]
        %v9144 = vld [vmem:[#allocation3 + $0xf8] sm:$0xff]
        %v9145 = vadd.f32 %v9113, %v8987
        %v9146 = vadd.f32 %v9114, %v8990
        %v9147 = vadd.f32 %v9115, %v8995
        %v9148 = vadd.f32 %v9116, %v8998
        %v9149 = vadd.f32 %v9117, %v9003
        %v9150 = vadd.f32 %v9118, %v9006
        %v9151 = vadd.f32 %v9119, %v9011
        %v9152 = vadd.f32 %v9120, %v9014
        %v9153 = vadd.f32 %v9121, %v9019
        %v9154 = vadd.f32 %v9122, %v9022
        %v9155 = vadd.f32 %v9123, %v9027
        %v9156 = vadd.f32 %v9124, %v9030
        %v9157 = vadd.f32 %v9125, %v9035
        %v9158 = vadd.f32 %v9126, %v9038
        %v9159 = vadd.f32 %v9127, %v9043
        %v9160 = vadd.f32 %v9128, %v9046
        %v9161 = vadd.f32 %v9129, %v9051
        %v9162 = vadd.f32 %v9130, %v9054
        %v9163 = vadd.f32 %v9131, %v9059
        %v9164 = vadd.f32 %v9132, %v9062
        %v9165 = vadd.f32 %v9133, %v9067
        %v9166 = vadd.f32 %v9134, %v9070
        %v9167 = vadd.f32 %v9135, %v9075
        %v9168 = vadd.f32 %v9136, %v9078
        %v9169 = vadd.f32 %v9137, %v9083
        %v9170 = vadd.f32 %v9138, %v9086
        %v9171 = vadd.f32 %v9139, %v9091
        %v9172 = vadd.f32 %v9140, %v9094
        %v9173 = vadd.f32 %v9141, %v9099
        %v9174 = vadd.f32 %v9142, %v9102
        %v9175 = vadd.f32 %v9143, %v9107
        %v9176 = vadd.f32 %v9144, %v9110
        %9177 = vst [vmem:[#allocation3] sm:$0xff] %v9145
        %9178 = vst [vmem:[#allocation3 + $0x8] sm:$0xff] %v9146
        %9179 = vst [vmem:[#allocation3 + $0x10] sm:$0xff] %v9147
        %9180 = vst [vmem:[#allocation3 + $0x18] sm:$0xff] %v9148
        %9181 = vst [vmem:[#allocation3 + $0x20] sm:$0xff] %v9149
        %9182 = vst [vmem:[#allocation3 + $0x28] sm:$0xff] %v9150
        %9183 = vst [vmem:[#allocation3 + $0x30] sm:$0xff] %v9151
        %9184 = vst [vmem:[#allocation3 + $0x38] sm:$0xff] %v9152
        %9185 = vst [vmem:[#allocation3 + $0x40] sm:$0xff] %v9153
        %9186 = vst [vmem:[#allocation3 + $0x48] sm:$0xff] %v9154
        %9187 = vst [vmem:[#allocation3 + $0x50] sm:$0xff] %v9155
        %9188 = vst [vmem:[#allocation3 + $0x58] sm:$0xff] %v9156
        %9189 = vst [vmem:[#allocation3 + $0x60] sm:$0xff] %v9157
        %9190 = vst [vmem:[#allocation3 + $0x68] sm:$0xff] %v9158
        %9191 = vst [vmem:[#allocation3 + $0x70] sm:$0xff] %v9159
        %9192 = vst [vmem:[#allocation3 + $0x78] sm:$0xff] %v9160
        %9193 = vst [vmem:[#allocation3 + $0x80] sm:$0xff] %v9161
        %9194 = vst [vmem:[#allocation3 + $0x88] sm:$0xff] %v9162
        %9195 = vst [vmem:[#allocation3 + $0x90] sm:$0xff] %v9163
        %9196 = vst [vmem:[#allocation3 + $0x98] sm:$0xff] %v9164
        %9197 = vst [vmem:[#allocation3 + $0xa0] sm:$0xff] %v9165
        %9198 = vst [vmem:[#allocation3 + $0xa8] sm:$0xff] %v9166
        %9199 = vst [vmem:[#allocation3 + $0xb0] sm:$0xff] %v9167
        %9200 = vst [vmem:[#allocation3 + $0xb8] sm:$0xff] %v9168
        %9201 = vst [vmem:[#allocation3 + $0xc0] sm:$0xff] %v9169
        %9202 = vst [vmem:[#allocation3 + $0xc8] sm:$0xff] %v9170
        %9203 = vst [vmem:[#allocation3 + $0xd0] sm:$0xff] %v9171
        %9204 = vst [vmem:[#allocation3 + $0xd8] sm:$0xff] %v9172
        %9205 = vst [vmem:[#allocation3 + $0xe0] sm:$0xff] %v9173
        %9206 = vst [vmem:[#allocation3 + $0xe8] sm:$0xff] %v9174
        %9207 = vst [vmem:[#allocation3 + $0xf0] sm:$0xff] %v9175
        %9208 = vst [vmem:[#allocation3 + $0xf8] sm:$0xff] %v9176
        %v9209 = vld [vmem:[%s2027] sm:$0xf]
        %v9210 = vld [vmem:[%s2027 + $0x4] sm:$0xf]
        %v9211 = vld [vmem:[%s2027 + $0x8] sm:$0x1]
        %v9212 = vld [vmem:[%s2027 + $0xc] sm:$0xf]
        %v9213 = vld [vmem:[%s2027 + $0x10] sm:$0xf]
        %v9214 = vld [vmem:[%s2027 + $0x14] sm:$0x1]
        %v9215 = vld [vmem:[%s2027 + $0x18] sm:$0xf]
        %v9216 = vld [vmem:[%s2027 + $0x1c] sm:$0xf]
        %v9217 = vld [vmem:[%s2027 + $0x20] sm:$0x1]
        %v9218 = vld [vmem:[%s2027 + $0x24] sm:$0xf]
        %v9219 = vld [vmem:[%s2027 + $0x28] sm:$0xf]
        %v9220 = vld [vmem:[%s2027 + $0x2c] sm:$0x1]
        %v9221 = vld [vmem:[%s2027 + $0x30] sm:$0xf]
        %v9222 = vld [vmem:[%s2027 + $0x34] sm:$0xf]
        %v9223 = vld [vmem:[%s2027 + $0x38] sm:$0x1]
        %v9224 = vld [vmem:[%s2027 + $0x3c] sm:$0xf]
        %v9225 = vld [vmem:[%s2027 + $0x40] sm:$0xf]
        %v9226 = vld [vmem:[%s2027 + $0x44] sm:$0x1]
        %v9227 = vld [vmem:[%s2027 + $0x48] sm:$0xf]
        %v9228 = vld [vmem:[%s2027 + $0x4c] sm:$0xf]
        %v9229 = vld [vmem:[%s2027 + $0x50] sm:$0x1]
        %v9230 = vld [vmem:[%s2027 + $0x54] sm:$0xf]
        %v9231 = vld [vmem:[%s2027 + $0x58] sm:$0xf]
        %v9232 = vld [vmem:[%s2027 + $0x5c] sm:$0x1]
        %v9233 = vld [vmem:[%s2027 + $0x60] sm:$0xf]
        %v9234 = vld [vmem:[%s2027 + $0x64] sm:$0xf]
        %v9235 = vld [vmem:[%s2027 + $0x68] sm:$0x1]
        %v9236 = vld [vmem:[%s2027 + $0x6c] sm:$0xf]
        %v9237 = vld [vmem:[%s2027 + $0x70] sm:$0xf]
        %v9238 = vld [vmem:[%s2027 + $0x74] sm:$0x1]
        %v9239 = vld [vmem:[%s2027 + $0x78] sm:$0xf]
        %v9240 = vld [vmem:[%s2027 + $0x7c] sm:$0xf]
        %v9241 = vld [vmem:[%s2027 + $0x80] sm:$0x1]
        %v9242 = vld [vmem:[%s2027 + $0x84] sm:$0xf]
        %v9243 = vld [vmem:[%s2027 + $0x88] sm:$0xf]
        %v9244 = vld [vmem:[%s2027 + $0x8c] sm:$0x1]
        %v9245 = vld [vmem:[%s2027 + $0x90] sm:$0xf]
        %v9246 = vld [vmem:[%s2027 + $0x94] sm:$0xf]
        %v9247 = vld [vmem:[%s2027 + $0x98] sm:$0x1]
        %v9248 = vld [vmem:[%s2027 + $0x9c] sm:$0xf]
        %v9249 = vld [vmem:[%s2027 + $0xa0] sm:$0xf]
        %v9250 = vld [vmem:[%s2027 + $0xa4] sm:$0x1]
        %v9251 = vld [vmem:[%s2027 + $0xa8] sm:$0xf]
        %v9252 = vld [vmem:[%s2027 + $0xac] sm:$0xf]
        %v9253 = vld [vmem:[%s2027 + $0xb0] sm:$0x1]
        %v9254 = vld [vmem:[%s2027 + $0xb4] sm:$0xf]
        %v9255 = vld [vmem:[%s2027 + $0xb8] sm:$0xf]
        %v9256 = vld [vmem:[%s2027 + $0xbc] sm:$0x1]
        %v9258 = vshrl.u32 %v9209, 16
        %v9260 = vrot.slane %v9258, 4
        %v9261 = vshll.u32 %v9209, 16
        %v9263 = vrot.slane %v9261, 5
        %v9264 = vor.u32 %v9260, %v9263
        %v9265 = vrot.slane %v9264, 4
        %v9267 = vshll.u32 %v9210, 16
        %v9269 = vrot.slane %v9267, 5
        %v9270 = vsel %vm659, %v9265, %v9269
        %v9271 = vshrl.u32 %v9210, 16
        %v9273 = vrot.slane %v9271, 4
        %v9274 = vor.u32 %v9273, %v9269
        %v9275 = vrot.slane %v9274, 4
        %v9277 = vshll.u32 %v9211, 16
        %v9279 = vrot.slane %v9277, 5
        %v9280 = vsel %vm659, %v9275, %v9279
        %v9282 = vshrl.u32 %v9212, 16
        %v9284 = vrot.slane %v9282, 4
        %v9285 = vshll.u32 %v9212, 16
        %v9287 = vrot.slane %v9285, 5
        %v9288 = vor.u32 %v9284, %v9287
        %v9289 = vrot.slane %v9288, 4
        %v9291 = vshll.u32 %v9213, 16
        %v9293 = vrot.slane %v9291, 5
        %v9294 = vsel %vm659, %v9289, %v9293
        %v9295 = vshrl.u32 %v9213, 16
        %v9297 = vrot.slane %v9295, 4
        %v9298 = vor.u32 %v9297, %v9293
        %v9299 = vrot.slane %v9298, 4
        %v9301 = vshll.u32 %v9214, 16
        %v9303 = vrot.slane %v9301, 5
        %v9304 = vsel %vm659, %v9299, %v9303
        %v9306 = vshrl.u32 %v9215, 16
        %v9308 = vrot.slane %v9306, 4
        %v9309 = vshll.u32 %v9215, 16
        %v9311 = vrot.slane %v9309, 5
        %v9312 = vor.u32 %v9308, %v9311
        %v9313 = vrot.slane %v9312, 4
        %v9315 = vshll.u32 %v9216, 16
        %v9317 = vrot.slane %v9315, 5
        %v9318 = vsel %vm659, %v9313, %v9317
        %v9319 = vshrl.u32 %v9216, 16
        %v9321 = vrot.slane %v9319, 4
        %v9322 = vor.u32 %v9321, %v9317
        %v9323 = vrot.slane %v9322, 4
        %v9325 = vshll.u32 %v9217, 16
        %v9327 = vrot.slane %v9325, 5
        %v9328 = vsel %vm659, %v9323, %v9327
        %v9330 = vshrl.u32 %v9218, 16
        %v9332 = vrot.slane %v9330, 4
        %v9333 = vshll.u32 %v9218, 16
        %v9335 = vrot.slane %v9333, 5
        %v9336 = vor.u32 %v9332, %v9335
        %v9337 = vrot.slane %v9336, 4
        %v9339 = vshll.u32 %v9219, 16
        %v9341 = vrot.slane %v9339, 5
        %v9342 = vsel %vm659, %v9337, %v9341
        %v9343 = vshrl.u32 %v9219, 16
        %v9345 = vrot.slane %v9343, 4
        %v9346 = vor.u32 %v9345, %v9341
        %v9347 = vrot.slane %v9346, 4
        %v9349 = vshll.u32 %v9220, 16
        %v9351 = vrot.slane %v9349, 5
        %v9352 = vsel %vm659, %v9347, %v9351
        %v9354 = vshrl.u32 %v9221, 16
        %v9356 = vrot.slane %v9354, 4
        %v9357 = vshll.u32 %v9221, 16
        %v9359 = vrot.slane %v9357, 5
        %v9360 = vor.u32 %v9356, %v9359
        %v9361 = vrot.slane %v9360, 4
        %v9363 = vshll.u32 %v9222, 16
        %v9365 = vrot.slane %v9363, 5
        %v9366 = vsel %vm659, %v9361, %v9365
        %v9367 = vshrl.u32 %v9222, 16
        %v9369 = vrot.slane %v9367, 4
        %v9370 = vor.u32 %v9369, %v9365
        %v9371 = vrot.slane %v9370, 4
        %v9373 = vshll.u32 %v9223, 16
        %v9375 = vrot.slane %v9373, 5
        %v9376 = vsel %vm659, %v9371, %v9375
        %v9378 = vshrl.u32 %v9224, 16
        %v9380 = vrot.slane %v9378, 4
        %v9381 = vshll.u32 %v9224, 16
        %v9383 = vrot.slane %v9381, 5
        %v9384 = vor.u32 %v9380, %v9383
        %v9385 = vrot.slane %v9384, 4
        %v9387 = vshll.u32 %v9225, 16
        %v9389 = vrot.slane %v9387, 5
        %v9390 = vsel %vm659, %v9385, %v9389
        %v9391 = vshrl.u32 %v9225, 16
        %v9393 = vrot.slane %v9391, 4
        %v9394 = vor.u32 %v9393, %v9389
        %v9395 = vrot.slane %v9394, 4
        %v9397 = vshll.u32 %v9226, 16
        %v9399 = vrot.slane %v9397, 5
        %v9400 = vsel %vm659, %v9395, %v9399
        %v9402 = vshrl.u32 %v9227, 16
        %v9404 = vrot.slane %v9402, 4
        %v9405 = vshll.u32 %v9227, 16
        %v9407 = vrot.slane %v9405, 5
        %v9408 = vor.u32 %v9404, %v9407
        %v9409 = vrot.slane %v9408, 4
        %v9411 = vshll.u32 %v9228, 16
        %v9413 = vrot.slane %v9411, 5
        %v9414 = vsel %vm659, %v9409, %v9413
        %v9415 = vshrl.u32 %v9228, 16
        %v9417 = vrot.slane %v9415, 4
        %v9418 = vor.u32 %v9417, %v9413
        %v9419 = vrot.slane %v9418, 4
        %v9421 = vshll.u32 %v9229, 16
        %v9423 = vrot.slane %v9421, 5
        %v9424 = vsel %vm659, %v9419, %v9423
        %v9426 = vshrl.u32 %v9230, 16
        %v9428 = vrot.slane %v9426, 4
        %v9429 = vshll.u32 %v9230, 16
        %v9431 = vrot.slane %v9429, 5
        %v9432 = vor.u32 %v9428, %v9431
        %v9433 = vrot.slane %v9432, 4
        %v9435 = vshll.u32 %v9231, 16
        %v9437 = vrot.slane %v9435, 5
        %v9438 = vsel %vm659, %v9433, %v9437
        %v9439 = vshrl.u32 %v9231, 16
        %v9441 = vrot.slane %v9439, 4
        %v9442 = vor.u32 %v9441, %v9437
        %v9443 = vrot.slane %v9442, 4
        %v9445 = vshll.u32 %v9232, 16
        %v9447 = vrot.slane %v9445, 5
        %v9448 = vsel %vm659, %v9443, %v9447
        %v9450 = vshrl.u32 %v9233, 16
        %v9452 = vrot.slane %v9450, 4
        %v9453 = vshll.u32 %v9233, 16
        %v9455 = vrot.slane %v9453, 5
        %v9456 = vor.u32 %v9452, %v9455
        %v9457 = vrot.slane %v9456, 4
        %v9459 = vshll.u32 %v9234, 16
        %v9461 = vrot.slane %v9459, 5
        %v9462 = vsel %vm659, %v9457, %v9461
        %v9463 = vshrl.u32 %v9234, 16
        %v9465 = vrot.slane %v9463, 4
        %v9466 = vor.u32 %v9465, %v9461
        %v9467 = vrot.slane %v9466, 4
        %v9469 = vshll.u32 %v9235, 16
        %v9471 = vrot.slane %v9469, 5
        %v9472 = vsel %vm659, %v9467, %v9471
        %v9474 = vshrl.u32 %v9236, 16
        %v9476 = vrot.slane %v9474, 4
        %v9477 = vshll.u32 %v9236, 16
        %v9479 = vrot.slane %v9477, 5
        %v9480 = vor.u32 %v9476, %v9479
        %v9481 = vrot.slane %v9480, 4
        %v9483 = vshll.u32 %v9237, 16
        %v9485 = vrot.slane %v9483, 5
        %v9486 = vsel %vm659, %v9481, %v9485
        %v9487 = vshrl.u32 %v9237, 16
        %v9489 = vrot.slane %v9487, 4
        %v9490 = vor.u32 %v9489, %v9485
        %v9491 = vrot.slane %v9490, 4
        %v9493 = vshll.u32 %v9238, 16
        %v9495 = vrot.slane %v9493, 5
        %v9496 = vsel %vm659, %v9491, %v9495
        %v9498 = vshrl.u32 %v9239, 16
        %v9500 = vrot.slane %v9498, 4
        %v9501 = vshll.u32 %v9239, 16
        %v9503 = vrot.slane %v9501, 5
        %v9504 = vor.u32 %v9500, %v9503
        %v9505 = vrot.slane %v9504, 4
        %v9507 = vshll.u32 %v9240, 16
        %v9509 = vrot.slane %v9507, 5
        %v9510 = vsel %vm659, %v9505, %v9509
        %v9511 = vshrl.u32 %v9240, 16
        %v9513 = vrot.slane %v9511, 4
        %v9514 = vor.u32 %v9513, %v9509
        %v9515 = vrot.slane %v9514, 4
        %v9517 = vshll.u32 %v9241, 16
        %v9519 = vrot.slane %v9517, 5
        %v9520 = vsel %vm659, %v9515, %v9519
        %v9522 = vshrl.u32 %v9242, 16
        %v9524 = vrot.slane %v9522, 4
        %v9525 = vshll.u32 %v9242, 16
        %v9527 = vrot.slane %v9525, 5
        %v9528 = vor.u32 %v9524, %v9527
        %v9529 = vrot.slane %v9528, 4
        %v9531 = vshll.u32 %v9243, 16
        %v9533 = vrot.slane %v9531, 5
        %v9534 = vsel %vm659, %v9529, %v9533
        %v9535 = vshrl.u32 %v9243, 16
        %v9537 = vrot.slane %v9535, 4
        %v9538 = vor.u32 %v9537, %v9533
        %v9539 = vrot.slane %v9538, 4
        %v9541 = vshll.u32 %v9244, 16
        %v9543 = vrot.slane %v9541, 5
        %v9544 = vsel %vm659, %v9539, %v9543
        %v9546 = vshrl.u32 %v9245, 16
        %v9548 = vrot.slane %v9546, 4
        %v9549 = vshll.u32 %v9245, 16
        %v9551 = vrot.slane %v9549, 5
        %v9552 = vor.u32 %v9548, %v9551
        %v9553 = vrot.slane %v9552, 4
        %v9555 = vshll.u32 %v9246, 16
        %v9557 = vrot.slane %v9555, 5
        %v9558 = vsel %vm659, %v9553, %v9557
        %v9559 = vshrl.u32 %v9246, 16
        %v9561 = vrot.slane %v9559, 4
        %v9562 = vor.u32 %v9561, %v9557
        %v9563 = vrot.slane %v9562, 4
        %v9565 = vshll.u32 %v9247, 16
        %v9567 = vrot.slane %v9565, 5
        %v9568 = vsel %vm659, %v9563, %v9567
        %v9570 = vshrl.u32 %v9248, 16
        %v9572 = vrot.slane %v9570, 4
        %v9573 = vshll.u32 %v9248, 16
        %v9575 = vrot.slane %v9573, 5
        %v9576 = vor.u32 %v9572, %v9575
        %v9577 = vrot.slane %v9576, 4
        %v9579 = vshll.u32 %v9249, 16
        %v9581 = vrot.slane %v9579, 5
        %v9582 = vsel %vm659, %v9577, %v9581
        %v9583 = vshrl.u32 %v9249, 16
        %v9585 = vrot.slane %v9583, 4
        %v9586 = vor.u32 %v9585, %v9581
        %v9587 = vrot.slane %v9586, 4
        %v9589 = vshll.u32 %v9250, 16
        %v9591 = vrot.slane %v9589, 5
        %v9592 = vsel %vm659, %v9587, %v9591
        %v9594 = vshrl.u32 %v9251, 16
        %v9596 = vrot.slane %v9594, 4
        %v9597 = vshll.u32 %v9251, 16
        %v9599 = vrot.slane %v9597, 5
        %v9600 = vor.u32 %v9596, %v9599
        %v9601 = vrot.slane %v9600, 4
        %v9603 = vshll.u32 %v9252, 16
        %v9605 = vrot.slane %v9603, 5
        %v9606 = vsel %vm659, %v9601, %v9605
        %v9607 = vshrl.u32 %v9252, 16
        %v9609 = vrot.slane %v9607, 4
        %v9610 = vor.u32 %v9609, %v9605
        %v9611 = vrot.slane %v9610, 4
        %v9613 = vshll.u32 %v9253, 16
        %v9615 = vrot.slane %v9613, 5
        %v9616 = vsel %vm659, %v9611, %v9615
        %v9618 = vshrl.u32 %v9254, 16
        %v9620 = vrot.slane %v9618, 4
        %v9621 = vshll.u32 %v9254, 16
        %v9623 = vrot.slane %v9621, 5
        %v9624 = vor.u32 %v9620, %v9623
        %v9625 = vrot.slane %v9624, 4
        %v9627 = vshll.u32 %v9255, 16
        %v9629 = vrot.slane %v9627, 5
        %v9630 = vsel %vm659, %v9625, %v9629
        %v9631 = vshrl.u32 %v9255, 16
        %v9633 = vrot.slane %v9631, 4
        %v9634 = vor.u32 %v9633, %v9629
        %v9635 = vrot.slane %v9634, 4
        %v9637 = vshll.u32 %v9256, 16
        %v9639 = vrot.slane %v9637, 5
        %v9640 = vsel %vm659, %v9635, %v9639
        %v9641 = vld [vmem:[#allocation3] sm:$0xff]
        %v9642 = vld [vmem:[#allocation3 + $0x8] sm:$0xff]
        %v9643 = vld [vmem:[#allocation3 + $0x10] sm:$0xff]
        %v9644 = vld [vmem:[#allocation3 + $0x18] sm:$0xff]
        %v9645 = vld [vmem:[#allocation3 + $0x20] sm:$0xff]
        %v9646 = vld [vmem:[#allocation3 + $0x28] sm:$0xff]
        %v9647 = vld [vmem:[#allocation3 + $0x30] sm:$0xff]
        %v9648 = vld [vmem:[#allocation3 + $0x38] sm:$0xff]
        %v9649 = vld [vmem:[#allocation3 + $0x40] sm:$0xff]
        %v9650 = vld [vmem:[#allocation3 + $0x48] sm:$0xff]
        %v9651 = vld [vmem:[#allocation3 + $0x50] sm:$0xff]
        %v9652 = vld [vmem:[#allocation3 + $0x58] sm:$0xff]
        %v9653 = vld [vmem:[#allocation3 + $0x60] sm:$0xff]
        %v9654 = vld [vmem:[#allocation3 + $0x68] sm:$0xff]
        %v9655 = vld [vmem:[#allocation3 + $0x70] sm:$0xff]
        %v9656 = vld [vmem:[#allocation3 + $0x78] sm:$0xff]
        %v9657 = vld [vmem:[#allocation3 + $0x80] sm:$0xff]
        %v9658 = vld [vmem:[#allocation3 + $0x88] sm:$0xff]
        %v9659 = vld [vmem:[#allocation3 + $0x90] sm:$0xff]
        %v9660 = vld [vmem:[#allocation3 + $0x98] sm:$0xff]
        %v9661 = vld [vmem:[#allocation3 + $0xa0] sm:$0xff]
        %v9662 = vld [vmem:[#allocation3 + $0xa8] sm:$0xff]
        %v9663 = vld [vmem:[#allocation3 + $0xb0] sm:$0xff]
        %v9664 = vld [vmem:[#allocation3 + $0xb8] sm:$0xff]
        %v9665 = vld [vmem:[#allocation3 + $0xc0] sm:$0xff]
        %v9666 = vld [vmem:[#allocation3 + $0xc8] sm:$0xff]
        %v9667 = vld [vmem:[#allocation3 + $0xd0] sm:$0xff]
        %v9668 = vld [vmem:[#allocation3 + $0xd8] sm:$0xff]
        %v9669 = vld [vmem:[#allocation3 + $0xe0] sm:$0xff]
        %v9670 = vld [vmem:[#allocation3 + $0xe8] sm:$0xff]
        %v9671 = vld [vmem:[#allocation3 + $0xf0] sm:$0xff]
        %v9672 = vld [vmem:[#allocation3 + $0xf8] sm:$0xff]
        %s9673 = scalar_lea.vmem %s3, 576
        %v9674 = vld [vmem:[%s9673] sm:$0xf]
        %v9675 = vld [vmem:[%s9673 + $0x4] sm:$0xf]
        %v9676 = vld [vmem:[%s9673 + $0x8] sm:$0xf]
        %v9677 = vld [vmem:[%s9673 + $0xc] sm:$0xf]
        %v9678 = vld [vmem:[%s9673 + $0x10] sm:$0xf]
        %v9679 = vld [vmem:[%s9673 + $0x14] sm:$0xf]
        %v9680 = vld [vmem:[%s9673 + $0x18] sm:$0xf]
        %v9681 = vld [vmem:[%s9673 + $0x1c] sm:$0xf]
        %v9682 = vld [vmem:[%s9673 + $0x20] sm:$0xf]
        %v9683 = vld [vmem:[%s9673 + $0x24] sm:$0xf]
        %v9684 = vld [vmem:[%s9673 + $0x28] sm:$0xf]
        %v9685 = vld [vmem:[%s9673 + $0x2c] sm:$0xf]
        %v9686 = vld [vmem:[%s9673 + $0x30] sm:$0xf]
        %v9687 = vld [vmem:[%s9673 + $0x34] sm:$0xf]
        %v9688 = vld [vmem:[%s9673 + $0x38] sm:$0xf]
        %v9689 = vld [vmem:[%s9673 + $0x3c] sm:$0xf]
        %v9690 = vunpack.c.l.b16 %v9270
        %v9691 = vunpack.c.l.b16 %v9280
        %v9692 = vunpack.c.l.b16 %v9294
        %v9693 = vunpack.c.l.b16 %v9304
        %v9694 = vunpack.c.l.b16 %v9318
        %v9695 = vunpack.c.l.b16 %v9328
        %v9696 = vunpack.c.l.b16 %v9342
        %v9697 = vunpack.c.l.b16 %v9352
        %v9698 = vunpack.c.l.b16 %v9366
        %v9699 = vunpack.c.l.b16 %v9376
        %v9700 = vunpack.c.l.b16 %v9390
        %v9701 = vunpack.c.l.b16 %v9400
        %v9702 = vunpack.c.l.b16 %v9414
        %v9703 = vunpack.c.l.b16 %v9424
        %v9704 = vunpack.c.l.b16 %v9438
        %v9705 = vunpack.c.l.b16 %v9448
        %v9706 = vunpack.c.l.b16 %v9462
        %v9707 = vunpack.c.l.b16 %v9472
        %v9708 = vunpack.c.l.b16 %v9486
        %v9709 = vunpack.c.l.b16 %v9496
        %v9710 = vunpack.c.l.b16 %v9510
        %v9711 = vunpack.c.l.b16 %v9520
        %v9712 = vunpack.c.l.b16 %v9534
        %v9713 = vunpack.c.l.b16 %v9544
        %v9714 = vunpack.c.l.b16 %v9558
        %v9715 = vunpack.c.l.b16 %v9568
        %v9716 = vunpack.c.l.b16 %v9582
        %v9717 = vunpack.c.l.b16 %v9592
        %v9718 = vunpack.c.l.b16 %v9606
        %v9719 = vunpack.c.l.b16 %v9616
        %v9720 = vunpack.c.l.b16 %v9630
        %v9721 = vunpack.c.l.b16 %v9640
        %v9722 = vpack.c.b16 %v9691, %v9690
        %v9723 = vpack.c.b16 %v9693, %v9692
        %v9724 = vpack.c.b16 %v9695, %v9694
        %v9725 = vpack.c.b16 %v9697, %v9696
        %v9726 = vpack.c.b16 %v9699, %v9698
        %v9727 = vpack.c.b16 %v9701, %v9700
        %v9728 = vpack.c.b16 %v9703, %v9702
        %v9729 = vpack.c.b16 %v9705, %v9704
        %v9730 = vpack.c.b16 %v9707, %v9706
        %v9731 = vpack.c.b16 %v9709, %v9708
        %v9732 = vpack.c.b16 %v9711, %v9710
        %v9733 = vpack.c.b16 %v9713, %v9712
        %v9734 = vpack.c.b16 %v9715, %v9714
        %v9735 = vpack.c.b16 %v9717, %v9716
        %v9736 = vpack.c.b16 %v9719, %v9718
        %v9737 = vpack.c.b16 %v9721, %v9720
        %v9770 = vunpack.c.l.b16 %v9674
        %v9771 = vunpack.c.l.b16 %v9675
        %v9772 = vunpack.c.l.b16 %v9676
        %v9773 = vunpack.c.l.b16 %v9677
        %v9774 = vunpack.c.l.b16 %v9678
        %v9775 = vunpack.c.l.b16 %v9679
        %v9776 = vunpack.c.l.b16 %v9680
        %v9777 = vunpack.c.l.b16 %v9681
        %v9778 = vunpack.c.l.b16 %v9682
        %v9779 = vunpack.c.l.b16 %v9683
        %v9780 = vunpack.c.l.b16 %v9684
        %v9781 = vunpack.c.l.b16 %v9685
        %v9782 = vunpack.c.l.b16 %v9686
        %v9783 = vunpack.c.l.b16 %v9687
        %v9784 = vunpack.c.l.b16 %v9688
        %v9785 = vunpack.c.l.b16 %v9689
        %v9786 = vpack.c.b16 %v9771, %v9770
        %v9787 = vpack.c.b16 %v9773, %v9772
        %v9788 = vpack.c.b16 %v9775, %v9774
        %v9789 = vpack.c.b16 %v9777, %v9776
        %v9790 = vpack.c.b16 %v9779, %v9778
        %v9791 = vpack.c.b16 %v9781, %v9780
        %v9792 = vpack.c.b16 %v9783, %v9782
        %v9793 = vpack.c.b16 %v9785, %v9784
        %9802 = vmatprep.subr.bf16.mxu0 0
        %9803 = vmatpush1.bf16.msra.mxu0 %v9786
        %9804 = vmatprep.subr.bf16.mxu0 0
        %9805 = vmatpush1.bf16.msra.mxu0 %v9787
        %9806 = vmatprep.subr.bf16.mxu0 0
        %9807 = vmatpush1.bf16.msra.mxu0 %v9788
        %9808 = vmatprep.subr.bf16.mxu0 0
        %9809 = vmatpush1.bf16.msra.mxu0 %v9789
        %9810 = vmatprep.subr.bf16.mxu0 0
        %9811 = vmatpush1.bf16.msra.mxu0 %v9790
        %9812 = vmatprep.subr.bf16.mxu0 0
        %9813 = vmatpush1.bf16.msra.mxu0 %v9791
        %9814 = vmatprep.subr.bf16.mxu0 0
        %9815 = vmatpush1.bf16.msra.mxu0 %v9792
        %9816 = vmatprep.subr.bf16.mxu0 0
        %9817 = vmatpush1.bf16.msra.mxu0 %v9793
        %9818 = vmatprep.subr.bf16.mxu0 0
        %9819 = vmatpush1.bf16.msra.mxu0 0
        %9820 = vmatprep.subr.bf16.mxu0 0
        %9821 = vmatpush1.bf16.msra.mxu0 0
        %9822 = vmatprep.subr.bf16.mxu0 0
        %9823 = vmatpush1.bf16.msra.mxu0 0
        %9824 = vmatprep.subr.bf16.mxu0 0
        %9825 = vmatpush1.bf16.msra.mxu0 0
        %9826 = vmatprep.subr.bf16.mxu0 0
        %9827 = vmatpush1.bf16.msra.mxu0 0
        %9828 = vmatprep.subr.bf16.mxu0 0
        %9829 = vmatpush1.bf16.msra.mxu0 0
        %9830 = vmatprep.subr.bf16.mxu0 0
        %9831 = vmatpush1.bf16.msra.mxu0 0
        %9832 = vmatprep.subr.bf16.mxu0 0
        %9833 = vmatpush1.bf16.msra.mxu0 0
        %9834 = vmatprep.mubr.bf16.mxu0 0
        %9835 = vmatmul.mubr.bf16.gmra.mrb[0].mxu0 %v9722
        %v9836 = vpop.f32.mrb[0].mxu0
        %v9837 = vadd.f32 0.0, %v9836
        %v9838 = vpop.f32.mrb[0].mxu0
        %v9839 = vpop.f32.mrb[0].mxu0
        %v9840 = vadd.f32 0.0, %v9839
        %v9841 = vpop.f32.mrb[0].mxu0
        %9842 = vmatprep.mubr.bf16.mxu0 0
        %9843 = vmatmul.mubr.bf16.gmra.mrb[0].mxu0 %v9723
        %v9844 = vpop.f32.mrb[0].mxu0
        %v9845 = vadd.f32 0.0, %v9844
        %v9846 = vpop.f32.mrb[0].mxu0
        %v9847 = vpop.f32.mrb[0].mxu0
        %v9848 = vadd.f32 0.0, %v9847
        %v9849 = vpop.f32.mrb[0].mxu0
        %9850 = vmatprep.mubr.bf16.mxu0 0
        %9851 = vmatmul.mubr.bf16.gmra.mrb[0].mxu0 %v9724
        %v9852 = vpop.f32.mrb[0].mxu0
        %v9853 = vadd.f32 0.0, %v9852
        %v9854 = vpop.f32.mrb[0].mxu0
        %v9855 = vpop.f32.mrb[0].mxu0
        %v9856 = vadd.f32 0.0, %v9855
        %v9857 = vpop.f32.mrb[0].mxu0
        %9858 = vmatprep.mubr.bf16.mxu0 0
        %9859 = vmatmul.mubr.bf16.gmra.mrb[0].mxu0 %v9725
        %v9860 = vpop.f32.mrb[0].mxu0
        %v9861 = vadd.f32 0.0, %v9860
        %v9862 = vpop.f32.mrb[0].mxu0
        %v9863 = vpop.f32.mrb[0].mxu0
        %v9864 = vadd.f32 0.0, %v9863
        %v9865 = vpop.f32.mrb[0].mxu0
        %9866 = vmatprep.mubr.bf16.mxu0 0
        %9867 = vmatmul.mubr.bf16.gmra.mrb[0].mxu0 %v9726
        %v9868 = vpop.f32.mrb[0].mxu0
        %v9869 = vadd.f32 0.0, %v9868
        %v9870 = vpop.f32.mrb[0].mxu0
        %v9871 = vpop.f32.mrb[0].mxu0
        %v9872 = vadd.f32 0.0, %v9871
        %v9873 = vpop.f32.mrb[0].mxu0
        %9874 = vmatprep.mubr.bf16.mxu0 0
        %9875 = vmatmul.mubr.bf16.gmra.mrb[0].mxu0 %v9727
        %v9876 = vpop.f32.mrb[0].mxu0
        %v9877 = vadd.f32 0.0, %v9876
        %v9878 = vpop.f32.mrb[0].mxu0
        %v9879 = vpop.f32.mrb[0].mxu0
        %v9880 = vadd.f32 0.0, %v9879
        %v9881 = vpop.f32.mrb[0].mxu0
        %9882 = vmatprep.mubr.bf16.mxu0 0
        %9883 = vmatmul.mubr.bf16.gmra.mrb[0].mxu0 %v9728
        %v9884 = vpop.f32.mrb[0].mxu0
        %v9885 = vadd.f32 0.0, %v9884
        %v9886 = vpop.f32.mrb[0].mxu0
        %v9887 = vpop.f32.mrb[0].mxu0
        %v9888 = vadd.f32 0.0, %v9887
        %v9889 = vpop.f32.mrb[0].mxu0
        %9890 = vmatprep.mubr.bf16.mxu0 0
        %9891 = vmatmul.mubr.bf16.gmra.mrb[0].mxu0 %v9729
        %v9892 = vpop.f32.mrb[0].mxu0
        %v9893 = vadd.f32 0.0, %v9892
        %v9894 = vpop.f32.mrb[0].mxu0
        %v9895 = vpop.f32.mrb[0].mxu0
        %v9896 = vadd.f32 0.0, %v9895
        %v9897 = vpop.f32.mrb[0].mxu0
        %9898 = vmatprep.mubr.bf16.mxu0 0
        %9899 = vmatmul.mubr.bf16.gmra.mrb[0].mxu0 %v9730
        %v9900 = vpop.f32.mrb[0].mxu0
        %v9901 = vadd.f32 0.0, %v9900
        %v9902 = vpop.f32.mrb[0].mxu0
        %v9903 = vpop.f32.mrb[0].mxu0
        %v9904 = vadd.f32 0.0, %v9903
        %v9905 = vpop.f32.mrb[0].mxu0
        %9906 = vmatprep.mubr.bf16.mxu0 0
        %9907 = vmatmul.mubr.bf16.gmra.mrb[0].mxu0 %v9731
        %v9908 = vpop.f32.mrb[0].mxu0
        %v9909 = vadd.f32 0.0, %v9908
        %v9910 = vpop.f32.mrb[0].mxu0
        %v9911 = vpop.f32.mrb[0].mxu0
        %v9912 = vadd.f32 0.0, %v9911
        %v9913 = vpop.f32.mrb[0].mxu0
        %9914 = vmatprep.mubr.bf16.mxu0 0
        %9915 = vmatmul.mubr.bf16.gmra.mrb[0].mxu0 %v9732
        %v9916 = vpop.f32.mrb[0].mxu0
        %v9917 = vadd.f32 0.0, %v9916
        %v9918 = vpop.f32.mrb[0].mxu0
        %v9919 = vpop.f32.mrb[0].mxu0
        %v9920 = vadd.f32 0.0, %v9919
        %v9921 = vpop.f32.mrb[0].mxu0
        %9922 = vmatprep.mubr.bf16.mxu0 0
        %9923 = vmatmul.mubr.bf16.gmra.mrb[0].mxu0 %v9733
        %v9924 = vpop.f32.mrb[0].mxu0
        %v9925 = vadd.f32 0.0, %v9924
        %v9926 = vpop.f32.mrb[0].mxu0
        %v9927 = vpop.f32.mrb[0].mxu0
        %v9928 = vadd.f32 0.0, %v9927
        %v9929 = vpop.f32.mrb[0].mxu0
        %9930 = vmatprep.mubr.bf16.mxu0 0
        %9931 = vmatmul.mubr.bf16.gmra.mrb[0].mxu0 %v9734
        %v9932 = vpop.f32.mrb[0].mxu0
        %v9933 = vadd.f32 0.0, %v9932
        %v9934 = vpop.f32.mrb[0].mxu0
        %v9935 = vpop.f32.mrb[0].mxu0
        %v9936 = vadd.f32 0.0, %v9935
        %v9937 = vpop.f32.mrb[0].mxu0
        %9938 = vmatprep.mubr.bf16.mxu0 0
        %9939 = vmatmul.mubr.bf16.gmra.mrb[0].mxu0 %v9735
        %v9940 = vpop.f32.mrb[0].mxu0
        %v9941 = vadd.f32 0.0, %v9940
        %v9942 = vpop.f32.mrb[0].mxu0
        %v9943 = vpop.f32.mrb[0].mxu0
        %v9944 = vadd.f32 0.0, %v9943
        %v9945 = vpop.f32.mrb[0].mxu0
        %9946 = vmatprep.mubr.bf16.mxu0 0
        %9947 = vmatmul.mubr.bf16.gmra.mrb[0].mxu0 %v9736
        %v9948 = vpop.f32.mrb[0].mxu0
        %v9949 = vadd.f32 0.0, %v9948
        %v9950 = vpop.f32.mrb[0].mxu0
        %v9951 = vpop.f32.mrb[0].mxu0
        %v9952 = vadd.f32 0.0, %v9951
        %v9953 = vpop.f32.mrb[0].mxu0
        %9954 = vmatprep.mubr.bf16.mxu0 0
        %9955 = vmatmul.mubr.bf16.gmra.mrb[0].mxu0 %v9737
        %v9956 = vpop.f32.mrb[0].mxu0
        %v9957 = vadd.f32 0.0, %v9956
        %v9958 = vpop.f32.mrb[0].mxu0
        %v9959 = vpop.f32.mrb[0].mxu0
        %v9960 = vadd.f32 0.0, %v9959
        %v9961 = vpop.f32.mrb[0].mxu0
        %9962 = vdwg.mxu0
        %v9963 = vadd.f32 %v9641, %v9837
        %v9964 = vadd.f32 %v9642, %v9840
        %v9965 = vadd.f32 %v9643, %v9845
        %v9966 = vadd.f32 %v9644, %v9848
        %v9967 = vadd.f32 %v9645, %v9853
        %v9968 = vadd.f32 %v9646, %v9856
        %v9969 = vadd.f32 %v9647, %v9861
        %v9970 = vadd.f32 %v9648, %v9864
        %v9971 = vadd.f32 %v9649, %v9869
        %v9972 = vadd.f32 %v9650, %v9872
        %v9973 = vadd.f32 %v9651, %v9877
        %v9974 = vadd.f32 %v9652, %v9880
        %v9975 = vadd.f32 %v9653, %v9885
        %v9976 = vadd.f32 %v9654, %v9888
        %v9977 = vadd.f32 %v9655, %v9893
        %v9978 = vadd.f32 %v9656, %v9896
        %v9979 = vadd.f32 %v9657, %v9901
        %v9980 = vadd.f32 %v9658, %v9904
        %v9981 = vadd.f32 %v9659, %v9909
        %v9982 = vadd.f32 %v9660, %v9912
        %v9983 = vadd.f32 %v9661, %v9917
        %v9984 = vadd.f32 %v9662, %v9920
        %v9985 = vadd.f32 %v9663, %v9925
        %v9986 = vadd.f32 %v9664, %v9928
        %v9987 = vadd.f32 %v9665, %v9933
        %v9988 = vadd.f32 %v9666, %v9936
        %v9989 = vadd.f32 %v9667, %v9941
        %v9990 = vadd.f32 %v9668, %v9944
        %v9991 = vadd.f32 %v9669, %v9949
        %v9992 = vadd.f32 %v9670, %v9952
        %v9993 = vadd.f32 %v9671, %v9957
        %v9994 = vadd.f32 %v9672, %v9960
        %9995 = vst [vmem:[#allocation3] sm:$0xff] %v9963
        %9996 = vst [vmem:[#allocation3 + $0x8] sm:$0xff] %v9964
        %9997 = vst [vmem:[#allocation3 + $0x10] sm:$0xff] %v9965
        %9998 = vst [vmem:[#allocation3 + $0x18] sm:$0xff] %v9966
        %9999 = vst [vmem:[#allocation3 + $0x20] sm:$0xff] %v9967
        %10000 = vst [vmem:[#allocation3 + $0x28] sm:$0xff] %v9968
        %10001 = vst [vmem:[#allocation3 + $0x30] sm:$0xff] %v9969
        %10002 = vst [vmem:[#allocation3 + $0x38] sm:$0xff] %v9970
        %10003 = vst [vmem:[#allocation3 + $0x40] sm:$0xff] %v9971
        %10004 = vst [vmem:[#allocation3 + $0x48] sm:$0xff] %v9972
        %10005 = vst [vmem:[#allocation3 + $0x50] sm:$0xff] %v9973
        %10006 = vst [vmem:[#allocation3 + $0x58] sm:$0xff] %v9974
        %10007 = vst [vmem:[#allocation3 + $0x60] sm:$0xff] %v9975
        %10008 = vst [vmem:[#allocation3 + $0x68] sm:$0xff] %v9976
        %10009 = vst [vmem:[#allocation3 + $0x70] sm:$0xff] %v9977
        %10010 = vst [vmem:[#allocation3 + $0x78] sm:$0xff] %v9978
        %10011 = vst [vmem:[#allocation3 + $0x80] sm:$0xff] %v9979
        %10012 = vst [vmem:[#allocation3 + $0x88] sm:$0xff] %v9980
        %10013 = vst [vmem:[#allocation3 + $0x90] sm:$0xff] %v9981
        %10014 = vst [vmem:[#allocation3 + $0x98] sm:$0xff] %v9982
        %10015 = vst [vmem:[#allocation3 + $0xa0] sm:$0xff] %v9983
        %10016 = vst [vmem:[#allocation3 + $0xa8] sm:$0xff] %v9984
        %10017 = vst [vmem:[#allocation3 + $0xb0] sm:$0xff] %v9985
        %10018 = vst [vmem:[#allocation3 + $0xb8] sm:$0xff] %v9986
        %10019 = vst [vmem:[#allocation3 + $0xc0] sm:$0xff] %v9987
        %10020 = vst [vmem:[#allocation3 + $0xc8] sm:$0xff] %v9988
        %10021 = vst [vmem:[#allocation3 + $0xd0] sm:$0xff] %v9989
        %10022 = vst [vmem:[#allocation3 + $0xd8] sm:$0xff] %v9990
        %10023 = vst [vmem:[#allocation3 + $0xe0] sm:$0xff] %v9991
        %10024 = vst [vmem:[#allocation3 + $0xe8] sm:$0xff] %v9992
        %10025 = vst [vmem:[#allocation3 + $0xf0] sm:$0xff] %v9993
        %10026 = vst [vmem:[#allocation3 + $0xf8] sm:$0xff] %v9994
        %v10027 = vld [vmem:[#allocation3] sm:$0xff]
        %v10028 = vld [vmem:[#allocation3 + $0x8] sm:$0xff]
        %v10029 = vld [vmem:[#allocation3 + $0x10] sm:$0xff]
        %v10030 = vld [vmem:[#allocation3 + $0x18] sm:$0xff]
        %v10031 = vld [vmem:[#allocation3 + $0x20] sm:$0xff]
        %v10032 = vld [vmem:[#allocation3 + $0x28] sm:$0xff]
        %v10033 = vld [vmem:[#allocation3 + $0x30] sm:$0xff]
        %v10034 = vld [vmem:[#allocation3 + $0x38] sm:$0xff]
        %v10035 = vld [vmem:[#allocation3 + $0x40] sm:$0xff]
        %v10036 = vld [vmem:[#allocation3 + $0x48] sm:$0xff]
        %v10037 = vld [vmem:[#allocation3 + $0x50] sm:$0xff]
        %v10038 = vld [vmem:[#allocation3 + $0x58] sm:$0xff]
        %v10039 = vld [vmem:[#allocation3 + $0x60] sm:$0xff]
        %v10040 = vld [vmem:[#allocation3 + $0x68] sm:$0xff]
        %v10041 = vld [vmem:[#allocation3 + $0x70] sm:$0xff]
        %v10042 = vld [vmem:[#allocation3 + $0x78] sm:$0xff]
        %v10043 = vld [vmem:[#allocation3 + $0x80] sm:$0xff]
        %v10044 = vld [vmem:[#allocation3 + $0x88] sm:$0xff]
        %v10045 = vld [vmem:[#allocation3 + $0x90] sm:$0xff]
        %v10046 = vld [vmem:[#allocation3 + $0x98] sm:$0xff]
        %v10047 = vld [vmem:[#allocation3 + $0xa0] sm:$0xff]
        %v10048 = vld [vmem:[#allocation3 + $0xa8] sm:$0xff]
        %v10049 = vld [vmem:[#allocation3 + $0xb0] sm:$0xff]
        %v10050 = vld [vmem:[#allocation3 + $0xb8] sm:$0xff]
        %v10051 = vld [vmem:[#allocation3 + $0xc0] sm:$0xff]
        %v10052 = vld [vmem:[#allocation3 + $0xc8] sm:$0xff]
        %v10053 = vld [vmem:[#allocation3 + $0xd0] sm:$0xff]
        %v10054 = vld [vmem:[#allocation3 + $0xd8] sm:$0xff]
        %v10055 = vld [vmem:[#allocation3 + $0xe0] sm:$0xff]
        %v10056 = vld [vmem:[#allocation3 + $0xe8] sm:$0xff]
        %v10057 = vld [vmem:[#allocation3 + $0xf0] sm:$0xff]
        %v10058 = vld [vmem:[#allocation3 + $0xf8] sm:$0xff]
        %v10059 = vld [vmem:[%s4] sm:$0x1]
        %v10061 = vlaneseq
        %v10062 = vshrl.u32 %v10061, 7
        %v10063 = vsub.s32 0, %v10062
        %v10064 = vrot.slane %v10059, %v10063
        %v10066 = vadd.f32 %v10027, %v10064
        %v10067 = vadd.f32 %v10028, %v10064
        %v10068 = vadd.f32 %v10029, %v10064
        %v10069 = vadd.f32 %v10030, %v10064
        %v10070 = vadd.f32 %v10031, %v10064
        %v10071 = vadd.f32 %v10032, %v10064
        %v10072 = vadd.f32 %v10033, %v10064
        %v10073 = vadd.f32 %v10034, %v10064
        %v10074 = vadd.f32 %v10035, %v10064
        %v10075 = vadd.f32 %v10036, %v10064
        %v10076 = vadd.f32 %v10037, %v10064
        %v10077 = vadd.f32 %v10038, %v10064
        %v10078 = vadd.f32 %v10039, %v10064
        %v10079 = vadd.f32 %v10040, %v10064
        %v10080 = vadd.f32 %v10041, %v10064
        %v10081 = vadd.f32 %v10042, %v10064
        %v10082 = vadd.f32 %v10043, %v10064
        %v10083 = vadd.f32 %v10044, %v10064
        %v10084 = vadd.f32 %v10045, %v10064
        %v10085 = vadd.f32 %v10046, %v10064
        %v10086 = vadd.f32 %v10047, %v10064
        %v10087 = vadd.f32 %v10048, %v10064
        %v10088 = vadd.f32 %v10049, %v10064
        %v10089 = vadd.f32 %v10050, %v10064
        %v10090 = vadd.f32 %v10051, %v10064
        %v10091 = vadd.f32 %v10052, %v10064
        %v10092 = vadd.f32 %v10053, %v10064
        %v10093 = vadd.f32 %v10054, %v10064
        %v10094 = vadd.f32 %v10055, %v10064
        %v10095 = vadd.f32 %v10056, %v10064
        %v10096 = vadd.f32 %v10057, %v10064
        %v10097 = vadd.f32 %v10058, %v10064
        %v10098 = vmax.f32 %v10066, 0.0
        %v10099 = vmax.f32 %v10067, 0.0
        %v10100 = vmax.f32 %v10068, 0.0
        %v10101 = vmax.f32 %v10069, 0.0
        %v10102 = vmax.f32 %v10070, 0.0
        %v10103 = vmax.f32 %v10071, 0.0
        %v10104 = vmax.f32 %v10072, 0.0
        %v10105 = vmax.f32 %v10073, 0.0
        %v10106 = vmax.f32 %v10074, 0.0
        %v10107 = vmax.f32 %v10075, 0.0
        %v10108 = vmax.f32 %v10076, 0.0
        %v10109 = vmax.f32 %v10077, 0.0
        %v10110 = vmax.f32 %v10078, 0.0
        %v10111 = vmax.f32 %v10079, 0.0
        %v10112 = vmax.f32 %v10080, 0.0
        %v10113 = vmax.f32 %v10081, 0.0
        %v10114 = vmax.f32 %v10082, 0.0
        %v10115 = vmax.f32 %v10083, 0.0
        %v10116 = vmax.f32 %v10084, 0.0
        %v10117 = vmax.f32 %v10085, 0.0
        %v10118 = vmax.f32 %v10086, 0.0
        %v10119 = vmax.f32 %v10087, 0.0
        %v10120 = vmax.f32 %v10088, 0.0
        %v10121 = vmax.f32 %v10089, 0.0
        %v10122 = vmax.f32 %v10090, 0.0
        %v10123 = vmax.f32 %v10091, 0.0
        %v10124 = vmax.f32 %v10092, 0.0
        %v10125 = vmax.f32 %v10093, 0.0
        %v10126 = vmax.f32 %v10094, 0.0
        %v10127 = vmax.f32 %v10095, 0.0
        %v10128 = vmax.f32 %v10096, 0.0
        %v10129 = vmax.f32 %v10097, 0.0
        %10130 = vst [vmem:[%s217] sm:$0xff] %v10098
        %10131 = vst [vmem:[%s217 + $0x8] sm:$0xff] %v10099
        %10132 = vst [vmem:[%s217 + $0x10] sm:$0xff] %v10100
        %10133 = vst [vmem:[%s217 + $0x18] sm:$0xff] %v10101
        %10134 = vst [vmem:[%s217 + $0x20] sm:$0xff] %v10102
        %10135 = vst [vmem:[%s217 + $0x28] sm:$0xff] %v10103
        %10136 = vst [vmem:[%s217 + $0x30] sm:$0xff] %v10104
        %10137 = vst [vmem:[%s217 + $0x38] sm:$0xff] %v10105
        %10138 = vst [vmem:[%s217 + $0x40] sm:$0xff] %v10106
        %10139 = vst [vmem:[%s217 + $0x48] sm:$0xff] %v10107
        %10140 = vst [vmem:[%s217 + $0x50] sm:$0xff] %v10108
        %10141 = vst [vmem:[%s217 + $0x58] sm:$0xff] %v10109
        %10142 = vst [vmem:[%s217 + $0x60] sm:$0xff] %v10110
        %10143 = vst [vmem:[%s217 + $0x68] sm:$0xff] %v10111
        %10144 = vst [vmem:[%s217 + $0x70] sm:$0xff] %v10112
        %10145 = vst [vmem:[%s217 + $0x78] sm:$0xff] %v10113
        %10146 = vst [vmem:[%s217 + $0x80] sm:$0xff] %v10114
        %10147 = vst [vmem:[%s217 + $0x88] sm:$0xff] %v10115
        %10148 = vst [vmem:[%s217 + $0x90] sm:$0xff] %v10116
        %10149 = vst [vmem:[%s217 + $0x98] sm:$0xff] %v10117
        %10150 = vst [vmem:[%s217 + $0xa0] sm:$0xff] %v10118
        %10151 = vst [vmem:[%s217 + $0xa8] sm:$0xff] %v10119
        %10152 = vst [vmem:[%s217 + $0xb0] sm:$0xff] %v10120
        %10153 = vst [vmem:[%s217 + $0xb8] sm:$0xff] %v10121
        %10154 = vst [vmem:[%s217 + $0xc0] sm:$0xff] %v10122
        %10155 = vst [vmem:[%s217 + $0xc8] sm:$0xff] %v10123
        %10156 = vst [vmem:[%s217 + $0xd0] sm:$0xff] %v10124
        %10157 = vst [vmem:[%s217 + $0xd8] sm:$0xff] %v10125
        %10158 = vst [vmem:[%s217 + $0xe0] sm:$0xff] %v10126
        %10159 = vst [vmem:[%s217 + $0xe8] sm:$0xff] %v10127
        %10160 = vst [vmem:[%s217 + $0xf0] sm:$0xff] %v10128
        %10161 = vst [vmem:[%s217 + $0xf8] sm:$0xff] %v10129
        %s10162 = sand.u32 %s137, 1
        %s10163 = scalar_lea.sflag [#allocation5], %s10162
        %s10164 = sand.u32 %s137, 1
        %s10165 = smul.addr %s10164, 256
        %s10166 = scalar_lea.vmem [#allocation4], %s10165
        // Predicated region
        $region41: #{basic_block_forward.1} parent=39 // pred_check
          %p10167 = pneg %p147
        $region42: #{basic_block_forward.1} parent=39 // pred_check_branch
          %10169 = sbr.rel (%p10167) target = $region44
        $region43: #{basic_block_forward.1} parent=39 // pred_region
          %s10171 = ssub.s32 4096, 4096
          %10172 = vsyncadd %s10163, %s10171
          %s10173 = smul.addr %s19, 32
          %s10174 = smul.addr %s10173, 128
          %s10175 = scalar_lea.hbm %s5, %s10174
          %s10176 = sshll.u32 %s10166, 4
          %s10177 = int_to_ptr.vmem [resolvable:$true] %s10176
          %10182 = dma.vmem_to_hbm [thread:$0]  %s10177, 4096, %s10175, %s10163, 128, 128, 8
        $region44: #{basic_block_forward.1} parent=39 // pred_fallthru
          _
      $region40: #{basic_block_forward.1} parent=5 // pred_fallthru
        _
      %p10183 = scmp.le.s32.totalorder 2, %s14
      // Predicated region
      $region45: #{basic_block_forward.1} parent=5 // pred_check
        %p10184 = pneg %p10183
      $region46: #{basic_block_forward.1} parent=5 // pred_check_branch
        %10186 = sbr.rel (%p10184) target = $region48
      $region47: #{basic_block_forward.1} parent=5 // pred_region
        %s10187 = ssub.s32 %s14, 2
        // Predicated region
        $region49: #{basic_block_forward.1} parent=47 // pred_check
          %p10188 = pneg %p153
        $region50: #{basic_block_forward.1} parent=47 // pred_check_branch
          %10190 = sbr.rel (%p10188) target = $region52
        $region51: #{basic_block_forward.1} parent=47 // pred_region
          %s10191 = sand.u32 %s138, 1
          %s10192 = scalar_lea.sflag [#allocation5], %s10191
          %s10193 = sand.u32 %s138, 1
          %s10194 = smul.addr %s10193, 256
          %s10195 = scalar_lea.vmem [#allocation4], %s10194
          %10196 = dma.done %s10192, 4096
        $region52: #{basic_block_forward.1} parent=47 // pred_fallthru
          _
      $region48: #{basic_block_forward.1} parent=5 // pred_fallthru
        _
    $region6: #{basic_block_forward.1} parent=1 // loop_footer
      %s18 = sadd.s32 1, %s14
    $region7: #{basic_block_forward.1} parent=1 // loop_footer_branch
      %13 = sbr.rel target = $region3
    $region8: #{basic_block_forward.1} parent=1 // loop_exit
      _
    %10197 = vsyncpa [#allocation5], 1
    %s10198 = scalar_lea.sflag [#allocation5], 1
    %10199 = vsyncpa %s10198, 1

</llo_original>
